<compile_context>
chip_gen: v7x
topology: tpu7x:2x2x1
jax: 0.10.0
libtpu: 0.0.40
codegen_flags: <defaults>
</compile_context>

<pallas_src>
import jax
import jax.numpy as jnp
from jax.experimental import pallas as pl
from jax.experimental.pallas import tpu as pltpu

HIDDEN = 320       # hard-coded in the PyTorch module
HIDDEN_PAD = 384   # per-gate lane padding: 384 = 3 * 128


def _sigmoid(x):
    # EUP-friendly sigmoid (tanh form) -- no VPU divide on the recurrent path.
    return 0.5 * (jnp.tanh(0.5 * x) + 1.0)


def _gates_to_hc(z, c, hp):
    # Fused gate layout [i | f | g | o], each padded to `hp` lanes; every
    # slice offset is a multiple of 128.  Gate math kept in f32 (portable:
    # v5e has no bf16 VPU/EUP; a bf16 variant would ~2x EUP throughput on
    # v6e/v7x at large batch tiles -- measurable refinement).
    i = _sigmoid(z[:, 0 * hp:1 * hp])
    f = _sigmoid(z[:, 1 * hp:2 * hp])
    g = jnp.tanh(z[:, 2 * hp:3 * hp])
    o = _sigmoid(z[:, 3 * hp:4 * hp])
    c_new = f * c + i * g
    h_new = o * jnp.tanh(c_new)
    return h_new, c_new


def bilstm_fc_kernel(x_ref,
                     wih_f_ref, whh_f_ref, b_f_ref,
                     wih_b_ref, b_b_ref,
                     w1f_ref, w1b_ref, b1_ref,
                     w2_ref, b2_ref,
                     w3_ref, b3_ref,
                     out_ref,
                     h_sc, c_sc):
    SC, BT, D = x_ref.shape            # time-major chunk: (seq_chunk, batch_tile, D)
    HP = whh_f_ref.shape[0]            # padded per-gate hidden (384)
    G4 = 4 * HP                        # fused gate width (1536)

    s = pl.program_id(1)

    # New batch tile -> reset the carried LSTM state.
    @pl.when(s == 0)
    def _():
        h_sc[...] = jnp.zeros_like(h_sc)
        c_sc[...] = jnp.zeros_like(c_sc)

    x = x_ref[...]                                        # bf16 (SC, BT, D)

    # ---- input projection for ALL timesteps of this chunk in one MXU pass
    # (hoisted off the recurrence); gate bias folded in here.  Time-major so
    # the per-step pick below is a free leading-axis slice. ----
    xp = (jnp.dot(x.reshape(SC * BT, D), wih_f_ref[...],
                  preferred_element_type=jnp.float32)
          + b_f_ref[...]).reshape(SC, BT, G4)             # f32

    whh_f = whh_f_ref[...]                                # bf16 (HP, 4*HP)

    # ---- forward recurrence: ONE (BT,HP) x (HP,4*HP) matmul per timestep.
    # Padded lanes [HIDDEN:HP] see zero weights/bias, so c,h stay 0 there for
    # every step (no contamination of the real lanes).  SC is a small static
    # chunk (<=16 by default) so the full unroll stays bounded. ----
    h = h_sc[...]
    c = c_sc[...]
    for t in range(SC):
        z = xp[t] + jnp.dot(h.astype(jnp.bfloat16), whh_f,
                            preferred_element_type=jnp.float32)
        h, c = _gates_to_hc(z, c, HP)
    h_sc[...] = h
    c_sc[...] = c

    # ---- last chunk: backward direction + fc head + softmax, write out. ----
    # outputs[:, -1, :] only needs the FIRST reverse step (input x_{S-1},
    # zero initial state), so h0 @ W_hh_reverse == 0 and the reverse
    # recurrent weight can never affect the result -> not even loaded.
    @pl.when(s == pl.num_programs(1) - 1)
    def _():
        zb = (jnp.dot(x[SC - 1], wih_b_ref[...],
                      preferred_element_type=jnp.float32) + b_b_ref[...])
        h_b, _ = _gates_to_hc(zb, jnp.zeros((BT, HP), jnp.float32), HP)

        # fc head (Dropout(0.5) is identity at inference).  Linear(640 -> 80)
        # split into fwd/bwd halves: [h_f|h_b] @ W1 = h_f @ W1f + h_b @ W1b
        # (padded rows of W1f/W1b are zero).
        z1 = (jnp.dot(h.astype(jnp.bfloat16), w1f_ref[...],
                      preferred_element_type=jnp.float32)
              + jnp.dot(h_b.astype(jnp.bfloat16), w1b_ref[...],
                        preferred_element_type=jnp.float32)
              + b1_ref[...])
        z2 = jnp.dot(z1, w2_ref[...], preferred_element_type=jnp.float32) + b2_ref[...]
        z3 = jnp.dot(z2, w3_ref[...], preferred_element_type=jnp.float32) + b3_ref[...]

        # Softmax(dim=1)
        z3 = z3 - jnp.max(z3, axis=1, keepdims=True)
        e = jnp.exp(z3)
        out_ref[...] = (e / jnp.sum(e, axis=1, keepdims=True)).astype(out_ref.dtype)


def _const_spec(arr):
    """Full-array block with a constant index_map -> loaded once, VMEM-resident.
    (On v7x, pipeline_mode=pl.Buffered(1) would also drop the unused second
    buffer for these invariant blocks; left at default for portability.)"""
    nd = arr.ndim
    return pl.BlockSpec(arr.shape, lambda i, s, _nd=nd: (0,) * _nd)


def _pick_batch_tile(B):
    # Fill the MXU M dimension (up to 128 rows) whenever the batch allows,
    # rounding small batches up to the 8-sublane granule.  For B > 128 this
    # also keeps the "parallel" batch grid axis >= 2 steps so both v7x
    # TensorCores get work; on v5e/v6e extra grid steps cost only ~0.35 us.
    b8 = max(8, ((B + 7) // 8) * 8)
    return min(b8, 128)


def _pick_seq_chunk(S, target=16):
    # Largest divisor of S that is <= target: keeps the unrolled in-kernel
    # recurrence bounded and caps per-chunk VMEM (bf16 x chunk + f32 gate
    # projection) so realistic encoder S/D fit v7x's 64 MiB as well as
    # v6e/v5e's 128 MiB.
    for c in range(min(target, S), 0, -1):
        if S % c == 0:
            return c
    return 1


def bilstm_model_forward(cls_feats, kparams, *, batch_tile=None, seq_chunk=None):
    """BiLSTM(last timestep) + fc head, entirely inside one Pallas kernel.

    Grid = (batch tiles ["parallel"], seq chunks ["arbitrary"]).  Weight blocks
    use constant index maps so they are loaded once and stay VMEM-resident;
    h/c are carried across seq chunks in VMEM scratch.
    """
    B, S, D = cls_feats.shape
    C = kparams["w3"].shape[1]

    BT = _pick_batch_tile(B) if batch_tile is None else batch_tile
    SC = _pick_seq_chunk(S) if seq_chunk is None else seq_chunk
    assert BT % 8 == 0, "batch_tile must be a multiple of 8 sublanes"
    assert S % SC == 0, "seq_chunk must divide the sequence length"

    B_pad = ((B + BT - 1) // BT) * BT

    # Time-major + bf16 in the wrapper: halves HBM->VMEM DMA bytes for the
    # activation blocks and makes the per-timestep slice a leading-axis pick.
    x = jnp.transpose(cls_feats, (1, 0, 2)).astype(jnp.bfloat16)   # (S, B, D)
    if B_pad != B:
        x = jnp.pad(x, ((0, 0), (0, B_pad - B), (0, 0)))

    weights = (kparams["wih_f"], kparams["whh_f"], kparams["b_f"],
               kparams["wih_b"], kparams["b_b"],
               kparams["w1f"], kparams["w1b"], kparams["b1"],
               kparams["w2"], kparams["b2"],
               kparams["w3"], kparams["b3"])

    out = pl.pallas_call(
        bilstm_fc_kernel,
        out_shape=jax.ShapeDtypeStruct((B_pad, C), jnp.float32),
        grid=(B_pad // BT, S // SC),
        in_specs=[pl.BlockSpec((SC, BT, D), lambda i, s: (s, i, 0))]
                 + [_const_spec(w) for w in weights],
        out_specs=pl.BlockSpec((BT, C), lambda i, s: (i, 0)),
        scratch_shapes=[pltpu.VMEM((BT, HIDDEN_PAD), jnp.float32),   # h carry
                        pltpu.VMEM((BT, HIDDEN_PAD), jnp.float32)],  # c carry
        compiler_params=pltpu.CompilerParams(
            dimension_semantics=("parallel", "arbitrary"),
            vmem_limit_bytes=64 * 1024 * 1024),
    )(x, *weights)
    return out[:B]


def init_params(key, input_size, num_classes, hidden=HIDDEN):
    """Deterministic synthetic parameters matching the nn.Module shapes
    (per-gate layout, gate order i, f, g, o; weights stored (in, out))."""
    ks = jax.random.split(key, 16)

    def u(k, shape, s):
        return jax.random.uniform(k, shape, jnp.float32, minval=-s, maxval=s)

    s_lstm = 1.0 / float(hidden) ** 0.5
    params = dict(
        wih_f=u(ks[0], (4, input_size, hidden), s_lstm),
        whh_f=u(ks[1], (4, hidden, hidden), s_lstm),
        b_f=u(ks[2], (4, 1, hidden), s_lstm) + u(ks[3], (4, 1, hidden), s_lstm),
        wih_b=u(ks[4], (4, input_size, hidden), s_lstm),
        # whh_b exists in the module, but outputs[:, -1, :] uses only the first
        # reverse step from a zero state, so it can never affect the output.
        whh_b=u(ks[5], (4, hidden, hidden), s_lstm),
        b_b=u(ks[6], (4, 1, hidden), s_lstm) + u(ks[7], (4, 1, hidden), s_lstm),
    )
    s1 = 1.0 / float(2 * hidden) ** 0.5
    s2 = 1.0 / 80.0 ** 0.5
    s3 = 1.0 / 20.0 ** 0.5
    params.update(
        w1=u(ks[8], (2 * hidden, 80), s1),      # Linear(640, 80), stored (in,out)
        b1=u(ks[9], (1, 80), s1),
        w2=u(ks[10], (80, 20), s2),
        b2=u(ks[11], (1, 20), s2),
        w3=u(ks[12], (20, num_classes), s3),
        b3=u(ks[13], (1, num_classes), s3),
    )
    return params


def pack_params_for_kernel(params, hidden=HIDDEN, hp=HIDDEN_PAD):
    """Fuse the 4 LSTM gates into one (in, 4*HP) matrix with each gate padded
    320->384 lanes (128-aligned slices), pad the recurrent K dim to HP, and
    cast MXU weights to bf16 (biases / tiny fc weights stay f32; accumulation
    is f32 in-kernel)."""

    def fuse(w):                      # (4, in, H) -> (in, 4*HP)
        din = w.shape[1]
        out = jnp.zeros((din, 4 * hp), jnp.float32)
        for g in range(4):
            out = out.at[:, g * hp:g * hp + hidden].set(w[g])
        return out

    def fuse_bias(b):                 # (4, 1, H) -> (1, 4*HP)
        out = jnp.zeros((1, 4 * hp), jnp.float32)
        for g in range(4):
            out = out.at[:, g * hp:g * hp + hidden].set(b[g, 0])
        return out

    def pad_rows(w):                  # (H, N) -> (HP, N), padded rows zero
        return jnp.pad(w, ((0, hp - w.shape[0]), (0, 0)))

    w1 = params["w1"]
    return dict(
        wih_f=fuse(params["wih_f"]).astype(jnp.bfloat16),
        whh_f=pad_rows(fuse(params["whh_f"])).astype(jnp.bfloat16),
        b_f=fuse_bias(params["b_f"]),
        wih_b=fuse(params["wih_b"]).astype(jnp.bfloat16),
        b_b=fuse_bias(params["b_b"]),
        w1f=pad_rows(w1[:hidden, :]).astype(jnp.bfloat16),
        w1b=pad_rows(w1[hidden:, :]).astype(jnp.bfloat16),
        b1=params["b1"],
        w2=params["w2"], b2=params["b2"],
        w3=params["w3"], b3=params["b3"],
    )


def reference_forward(cls_feats, params):
    """Pure-JAX f32 reference reproducing the nn.Module forward exactly
    (base_model output == cls_feats; Dropout identity at inference)."""
    B, S, _ = cls_feats.shape
    H = params["wih_f"].shape[2]

    def cell(x_t, h, c, wih, whh, b):
        zi = x_t @ wih[0] + h @ whh[0] + b[0, 0]
        zf = x_t @ wih[1] + h @ whh[1] + b[1, 0]
        zg = x_t @ wih[2] + h @ whh[2] + b[2, 0]
        zo = x_t @ wih[3] + h @ whh[3] + b[3, 0]
        i, f = jax.nn.sigmoid(zi), jax.nn.sigmoid(zf)
        g, o = jnp.tanh(zg), jax.nn.sigmoid(zo)
        c = f * c + i * g
        return o * jnp.tanh(c), c

    h = jnp.zeros((B, H), jnp.float32)
    c = jnp.zeros((B, H), jnp.float32)
    for t in range(S):
        h, c = cell(cls_feats[:, t, :], h, c,
                    params["wih_f"], params["whh_f"], params["b_f"])
    h_f = h
    h_b, _ = cell(cls_feats[:, S - 1, :], jnp.zeros((B, H)), jnp.zeros((B, H)),
                  params["wih_b"], params["whh_b"], params["b_b"])
    z = jnp.concatenate([h_f, h_b], axis=1)
    z = z @ params["w1"] + params["b1"]
    z = z @ params["w2"] + params["b2"]
    z = z @ params["w3"] + params["b3"]
    return jax.nn.softmax(z, axis=1)


if __name__ == "__main__":
    key = jax.random.PRNGKey(0)
    k_x, k_p = jax.random.split(key)

    B, S, D = 2, 8, 64        # batch, seq, input_size (base_model hidden size)
    NUM_CLASSES = 2

    # cls_feats = base_model(**inputs).last_hidden_state   (synthetic here)
    # TODO(synk): base_model (pretrained transformer encoder) is not translated;
    # its output feature tensor is the kernel input.
    cls_feats = jax.random.normal(k_x, (B, S, D), dtype=jnp.float32)
    params = init_params(k_p, input_size=D, num_classes=NUM_CLASSES)
    kparams = pack_params_for_kernel(params)

    # Default (auto) tiling: one seq chunk, batch padded up to one MXU tile.
    out = jax.block_until_ready(bilstm_model_forward(cls_feats, kparams))
    # Multi-chunk path: exercises the h/c VMEM-scratch carry across the
    # "arbitrary" seq-chunk grid axis.
    out_chunked = jax.block_until_ready(
        bilstm_model_forward(cls_feats, kparams, batch_tile=8, seq_chunk=4))

    ref = reference_forward(cls_feats, params)

    assert out.shape == (B, NUM_CLASSES)
    assert bool(jnp.all(jnp.isfinite(out)))
    # bf16 weights/inputs vs f32 reference -> loose tolerance.
    assert bool(jnp.allclose(out, ref, atol=3e-2))
    assert bool(jnp.allclose(out_chunked, out, atol=1e-4))
    print("KERNEL_OK")
</pallas_src>

<mosaic_0001>
module attributes {stable_mosaic.version = 11 : i64} {
  func.func @bilstm_fc_kernel(%arg0: i32, %arg1: i32, %arg2: memref<8x8x64xbf16, #tpu.memory_space<vmem>>, %arg3: memref<64x1536xbf16, #tpu.memory_space<vmem>>, %arg4: memref<384x1536xbf16, #tpu.memory_space<vmem>>, %arg5: memref<1x1536xf32, #tpu.memory_space<vmem>>, %arg6: memref<64x1536xbf16, #tpu.memory_space<vmem>>, %arg7: memref<1x1536xf32, #tpu.memory_space<vmem>>, %arg8: memref<384x80xbf16, #tpu.memory_space<vmem>>, %arg9: memref<384x80xbf16, #tpu.memory_space<vmem>>, %arg10: memref<1x80xf32, #tpu.memory_space<vmem>>, %arg11: memref<80x20xf32, #tpu.memory_space<vmem>>, %arg12: memref<1x20xf32, #tpu.memory_space<vmem>>, %arg13: memref<20x2xf32, #tpu.memory_space<vmem>>, %arg14: memref<1x2xf32, #tpu.memory_space<vmem>>, %arg15: memref<8x2xf32, #tpu.memory_space<vmem>>, %arg16: memref<8x384xf32, #tpu.memory_space<vmem>>, %arg17: memref<8x384xf32, #tpu.memory_space<vmem>>) attributes {dimension_semantics = [#tpu.dimension_semantics<parallel>, #tpu.dimension_semantics<arbitrary>], iteration_bounds = array<i64: 1, 1>, scalar_prefetch = 0 : i64, scratch_operands = 2 : i64, tpu.core_type = #tpu.core_type<tc>, window_params = [{transform_indices = @transform_0, window_bounds = array<i64: 8, 8, 64>}, {pipeline_mode = #tpu.pipeline_mode<synchronous>, transform_indices = @transform_1, window_bounds = array<i64: 64, 1536>}, {pipeline_mode = #tpu.pipeline_mode<synchronous>, transform_indices = @transform_2, window_bounds = array<i64: 384, 1536>}, {pipeline_mode = #tpu.pipeline_mode<synchronous>, transform_indices = @transform_3, window_bounds = array<i64: 1, 1536>}, {pipeline_mode = #tpu.pipeline_mode<synchronous>, transform_indices = @transform_4, window_bounds = array<i64: 64, 1536>}, {pipeline_mode = #tpu.pipeline_mode<synchronous>, transform_indices = @transform_5, window_bounds = array<i64: 1, 1536>}, {pipeline_mode = #tpu.pipeline_mode<synchronous>, transform_indices = @transform_6, window_bounds = array<i64: 384, 80>}, {pipeline_mode = #tpu.pipeline_mode<synchronous>, transform_indices = @transform_7, window_bounds = array<i64: 384, 80>}, {pipeline_mode = #tpu.pipeline_mode<synchronous>, transform_indices = @transform_8, window_bounds = array<i64: 1, 80>}, {pipeline_mode = #tpu.pipeline_mode<synchronous>, transform_indices = @transform_9, window_bounds = array<i64: 80, 20>}, {pipeline_mode = #tpu.pipeline_mode<synchronous>, transform_indices = @transform_10, window_bounds = array<i64: 1, 20>}, {pipeline_mode = #tpu.pipeline_mode<synchronous>, transform_indices = @transform_11, window_bounds = array<i64: 20, 2>}, {pipeline_mode = #tpu.pipeline_mode<synchronous>, transform_indices = @transform_12, window_bounds = array<i64: 1, 2>}, {transform_indices = @transform_13, window_bounds = array<i64: 8, 2>}]} {
    %c0_i32 = arith.constant 0 : i32
    %0 = arith.cmpi eq, %arg1, %c0_i32 : i32
    %1 = arith.extui %0 : i1 to i32
    %c0_i32_0 = arith.constant 0 : i32
    %2 = arith.cmpi ne, %1, %c0_i32_0 : i32
    scf.if %2 {
      %cst_99 = arith.constant 0.000000e+00 : f32
      %307 = vector.broadcast %cst_99 : f32 to vector<8x384xf32>
      %c0_100 = arith.constant 0 : index
      %c0_101 = arith.constant 0 : index
      %308 = vector.load %arg16[%c0_100, %c0_101] : memref<8x384xf32, #tpu.memory_space<vmem>>, vector<8x384xf32>
      tpu.vector_store %arg16[%c0_100, %c0_101], %307 {strides = array<i32>} : memref<8x384xf32, #tpu.memory_space<vmem>>, vector<8x384xf32>,
      %cst_102 = arith.constant 0.000000e+00 : f32
      %309 = vector.broadcast %cst_102 : f32 to vector<8x384xf32>
      %c0_103 = arith.constant 0 : index
      %c0_104 = arith.constant 0 : index
      %310 = vector.load %arg17[%c0_103, %c0_104] : memref<8x384xf32, #tpu.memory_space<vmem>>, vector<8x384xf32>
      tpu.vector_store %arg17[%c0_103, %c0_104], %309 {strides = array<i32>} : memref<8x384xf32, #tpu.memory_space<vmem>>, vector<8x384xf32>,
    } else {
    }
    %c0 = arith.constant 0 : index
    %c0_1 = arith.constant 0 : index
    %c0_2 = arith.constant 0 : index
    %3 = vector.load %arg2[%c0, %c0_1, %c0_2] : memref<8x8x64xbf16, #tpu.memory_space<vmem>>, vector<8x8x64xbf16>
    %4 = vector.shape_cast %3 : vector<8x8x64xbf16> to vector<64x64xbf16>
    %c0_3 = arith.constant 0 : index
    %c0_4 = arith.constant 0 : index
    %5 = vector.load %arg3[%c0_3, %c0_4] : memref<64x1536xbf16, #tpu.memory_space<vmem>>, vector<64x1536xbf16>
    %cst = arith.constant dense<0.000000e+00> : vector<64x1536xf32>
    %6 = tpu.matmul %4, %5, %cst {dimension_numbers = #tpu.dot_dimension_numbers<[1], [0], [0], [1], [0, 0, 1, 1], [], []>} : vector<64x64xbf16>, vector<64x1536xbf16>, vector<64x1536xf32> -> vector<64x1536xf32>
    %c0_5 = arith.constant 0 : index
    %c0_6 = arith.constant 0 : index
    %7 = vector.load %arg5[%c0_5, %c0_6] : memref<1x1536xf32, #tpu.memory_space<vmem>>, vector<1x1536xf32>
    %8 = vector.broadcast %7 : vector<1x1536xf32> to vector<64x1536xf32>
    %9 = arith.addf %6, %8 : vector<64x1536xf32>
    %10 = vector.shape_cast %9 : vector<64x1536xf32> to vector<8x8x1536xf32>
    %c0_7 = arith.constant 0 : index
    %c0_8 = arith.constant 0 : index
    %11 = vector.load %arg4[%c0_7, %c0_8] : memref<384x1536xbf16, #tpu.memory_space<vmem>>, vector<384x1536xbf16>
    %c0_9 = arith.constant 0 : index
    %c0_10 = arith.constant 0 : index
    %12 = vector.load %arg16[%c0_9, %c0_10] : memref<8x384xf32, #tpu.memory_space<vmem>>, vector<8x384xf32>
    %c0_11 = arith.constant 0 : index
    %c0_12 = arith.constant 0 : index
    %13 = vector.load %arg17[%c0_11, %c0_12] : memref<8x384xf32, #tpu.memory_space<vmem>>, vector<8x384xf32>
    %14 = vector.extract_strided_slice %10 {offsets = [0, 0, 0], sizes = [1, 8, 1536], strides = [1, 1, 1]} : vector<8x8x1536xf32> to vector<1x8x1536xf32>
    %15 = vector.shape_cast %14 : vector<1x8x1536xf32> to vector<8x1536xf32>
    %16 = arith.truncf %12 : vector<8x384xf32> to vector<8x384xbf16>
    %cst_13 = arith.constant dense<0.000000e+00> : vector<8x1536xf32>
    %17 = tpu.matmul %16, %11, %cst_13 {dimension_numbers = #tpu.dot_dimension_numbers<[1], [0], [0], [1], [0, 0, 1, 1], [], []>} : vector<8x384xbf16>, vector<384x1536xbf16>, vector<8x1536xf32> -> vector<8x1536xf32>
    %18 = arith.addf %15, %17 : vector<8x1536xf32>
    %19 = vector.extract_strided_slice %18 {offsets = [0, 0], sizes = [8, 384], strides = [1, 1]} : vector<8x1536xf32> to vector<8x384xf32>
    %cst_14 = arith.constant 5.000000e-01 : f32
    %20 = vector.broadcast %cst_14 : f32 to vector<8x384xf32>
    %21 = arith.mulf %20, %19 : vector<8x384xf32>
    %22 = math.tanh %21 : vector<8x384xf32>
    %cst_15 = arith.constant 1.000000e+00 : f32
    %23 = vector.broadcast %cst_15 : f32 to vector<8x384xf32>
    %24 = arith.addf %22, %23 : vector<8x384xf32>
    %cst_16 = arith.constant 5.000000e-01 : f32
    %25 = vector.broadcast %cst_16 : f32 to vector<8x384xf32>
    %26 = arith.mulf %25, %24 : vector<8x384xf32>
    %27 = vector.extract_strided_slice %18 {offsets = [0, 384], sizes = [8, 384], strides = [1, 1]} : vector<8x1536xf32> to vector<8x384xf32>
    %cst_17 = arith.constant 5.000000e-01 : f32
    %28 = vector.broadcast %cst_17 : f32 to vector<8x384xf32>
    %29 = arith.mulf %28, %27 : vector<8x384xf32>
    %30 = math.tanh %29 : vector<8x384xf32>
    %cst_18 = arith.constant 1.000000e+00 : f32
    %31 = vector.broadcast %cst_18 : f32 to vector<8x384xf32>
    %32 = arith.addf %30, %31 : vector<8x384xf32>
    %cst_19 = arith.constant 5.000000e-01 : f32
    %33 = vector.broadcast %cst_19 : f32 to vector<8x384xf32>
    %34 = arith.mulf %33, %32 : vector<8x384xf32>
    %35 = vector.extract_strided_slice %18 {offsets = [0, 768], sizes = [8, 384], strides = [1, 1]} : vector<8x1536xf32> to vector<8x384xf32>
    %36 = math.tanh %35 : vector<8x384xf32>
    %37 = vector.extract_strided_slice %18 {offsets = [0, 1152], sizes = [8, 384], strides = [1, 1]} : vector<8x1536xf32> to vector<8x384xf32>
    %cst_20 = arith.constant 5.000000e-01 : f32
    %38 = vector.broadcast %cst_20 : f32 to vector<8x384xf32>
    %39 = arith.mulf %38, %37 : vector<8x384xf32>
    %40 = math.tanh %39 : vector<8x384xf32>
    %cst_21 = arith.constant 1.000000e+00 : f32
    %41 = vector.broadcast %cst_21 : f32 to vector<8x384xf32>
    %42 = arith.addf %40, %41 : vector<8x384xf32>
    %cst_22 = arith.constant 5.000000e-01 : f32
    %43 = vector.broadcast %cst_22 : f32 to vector<8x384xf32>
    %44 = arith.mulf %43, %42 : vector<8x384xf32>
    %45 = arith.mulf %34, %13 : vector<8x384xf32>
    %46 = arith.mulf %26, %36 : vector<8x384xf32>
    %47 = arith.addf %45, %46 : vector<8x384xf32>
    %48 = math.tanh %47 : vector<8x384xf32>
    %49 = arith.mulf %44, %48 : vector<8x384xf32>
    %50 = vector.extract_strided_slice %10 {offsets = [1, 0, 0], sizes = [1, 8, 1536], strides = [1, 1, 1]} : vector<8x8x1536xf32> to vector<1x8x1536xf32>
    %51 = vector.shape_cast %50 : vector<1x8x1536xf32> to vector<8x1536xf32>
    %52 = arith.truncf %49 : vector<8x384xf32> to vector<8x384xbf16>
    %cst_23 = arith.constant dense<0.000000e+00> : vector<8x1536xf32>
    %53 = tpu.matmul %52, %11, %cst_23 {dimension_numbers = #tpu.dot_dimension_numbers<[1], [0], [0], [1], [0, 0, 1, 1], [], []>} : vector<8x384xbf16>, vector<384x1536xbf16>, vector<8x1536xf32> -> vector<8x1536xf32>
    %54 = arith.addf %51, %53 : vector<8x1536xf32>
    %55 = vector.extract_strided_slice %54 {offsets = [0, 0], sizes = [8, 384], strides = [1, 1]} : vector<8x1536xf32> to vector<8x384xf32>
    %cst_24 = arith.constant 5.000000e-01 : f32
    %56 = vector.broadcast %cst_24 : f32 to vector<8x384xf32>
    %57 = arith.mulf %56, %55 : vector<8x384xf32>
    %58 = math.tanh %57 : vector<8x384xf32>
    %cst_25 = arith.constant 1.000000e+00 : f32
    %59 = vector.broadcast %cst_25 : f32 to vector<8x384xf32>
    %60 = arith.addf %58, %59 : vector<8x384xf32>
    %cst_26 = arith.constant 5.000000e-01 : f32
    %61 = vector.broadcast %cst_26 : f32 to vector<8x384xf32>
    %62 = arith.mulf %61, %60 : vector<8x384xf32>
    %63 = vector.extract_strided_slice %54 {offsets = [0, 384], sizes = [8, 384], strides = [1, 1]} : vector<8x1536xf32> to vector<8x384xf32>
    %cst_27 = arith.constant 5.000000e-01 : f32
    %64 = vector.broadcast %cst_27 : f32 to vector<8x384xf32>
    %65 = arith.mulf %64, %63 : vector<8x384xf32>
    %66 = math.tanh %65 : vector<8x384xf32>
    %cst_28 = arith.constant 1.000000e+00 : f32
    %67 = vector.broadcast %cst_28 : f32 to vector<8x384xf32>
    %68 = arith.addf %66, %67 : vector<8x384xf32>
    %cst_29 = arith.constant 5.000000e-01 : f32
    %69 = vector.broadcast %cst_29 : f32 to vector<8x384xf32>
    %70 = arith.mulf %69, %68 : vector<8x384xf32>
    %71 = vector.extract_strided_slice %54 {offsets = [0, 768], sizes = [8, 384], strides = [1, 1]} : vector<8x1536xf32> to vector<8x384xf32>
    %72 = math.tanh %71 : vector<8x384xf32>
    %73 = vector.extract_strided_slice %54 {offsets = [0, 1152], sizes = [8, 384], strides = [1, 1]} : vector<8x1536xf32> to vector<8x384xf32>
    %cst_30 = arith.constant 5.000000e-01 : f32
    %74 = vector.broadcast %cst_30 : f32 to vector<8x384xf32>
    %75 = arith.mulf %74, %73 : vector<8x384xf32>
    %76 = math.tanh %75 : vector<8x384xf32>
    %cst_31 = arith.constant 1.000000e+00 : f32
    %77 = vector.broadcast %cst_31 : f32 to vector<8x384xf32>
    %78 = arith.addf %76, %77 : vector<8x384xf32>
    %cst_32 = arith.constant 5.000000e-01 : f32
    %79 = vector.broadcast %cst_32 : f32 to vector<8x384xf32>
    %80 = arith.mulf %79, %78 : vector<8x384xf32>
    %81 = arith.mulf %70, %47 : vector<8x384xf32>
    %82 = arith.mulf %62, %72 : vector<8x384xf32>
    %83 = arith.addf %81, %82 : vector<8x384xf32>
    %84 = math.tanh %83 : vector<8x384xf32>
    %85 = arith.mulf %80, %84 : vector<8x384xf32>
    %86 = vector.extract_strided_slice %10 {offsets = [2, 0, 0], sizes = [1, 8, 1536], strides = [1, 1, 1]} : vector<8x8x1536xf32> to vector<1x8x1536xf32>
    %87 = vector.shape_cast %86 : vector<1x8x1536xf32> to vector<8x1536xf32>
    %88 = arith.truncf %85 : vector<8x384xf32> to vector<8x384xbf16>
    %cst_33 = arith.constant dense<0.000000e+00> : vector<8x1536xf32>
    %89 = tpu.matmul %88, %11, %cst_33 {dimension_numbers = #tpu.dot_dimension_numbers<[1], [0], [0], [1], [0, 0, 1, 1], [], []>} : vector<8x384xbf16>, vector<384x1536xbf16>, vector<8x1536xf32> -> vector<8x1536xf32>
    %90 = arith.addf %87, %89 : vector<8x1536xf32>
    %91 = vector.extract_strided_slice %90 {offsets = [0, 0], sizes = [8, 384], strides = [1, 1]} : vector<8x1536xf32> to vector<8x384xf32>
    %cst_34 = arith.constant 5.000000e-01 : f32
    %92 = vector.broadcast %cst_34 : f32 to vector<8x384xf32>
    %93 = arith.mulf %92, %91 : vector<8x384xf32>
    %94 = math.tanh %93 : vector<8x384xf32>
    %cst_35 = arith.constant 1.000000e+00 : f32
    %95 = vector.broadcast %cst_35 : f32 to vector<8x384xf32>
    %96 = arith.addf %94, %95 : vector<8x384xf32>
    %cst_36 = arith.constant 5.000000e-01 : f32
    %97 = vector.broadcast %cst_36 : f32 to vector<8x384xf32>
    %98 = arith.mulf %97, %96 : vector<8x384xf32>
    %99 = vector.extract_strided_slice %90 {offsets = [0, 384], sizes = [8, 384], strides = [1, 1]} : vector<8x1536xf32> to vector<8x384xf32>
    %cst_37 = arith.constant 5.000000e-01 : f32
    %100 = vector.broadcast %cst_37 : f32 to vector<8x384xf32>
    %101 = arith.mulf %100, %99 : vector<8x384xf32>
    %102 = math.tanh %101 : vector<8x384xf32>
    %cst_38 = arith.constant 1.000000e+00 : f32
    %103 = vector.broadcast %cst_38 : f32 to vector<8x384xf32>
    %104 = arith.addf %102, %103 : vector<8x384xf32>
    %cst_39 = arith.constant 5.000000e-01 : f32
    %105 = vector.broadcast %cst_39 : f32 to vector<8x384xf32>
    %106 = arith.mulf %105, %104 : vector<8x384xf32>
    %107 = vector.extract_strided_slice %90 {offsets = [0, 768], sizes = [8, 384], strides = [1, 1]} : vector<8x1536xf32> to vector<8x384xf32>
    %108 = math.tanh %107 : vector<8x384xf32>
    %109 = vector.extract_strided_slice %90 {offsets = [0, 1152], sizes = [8, 384], strides = [1, 1]} : vector<8x1536xf32> to vector<8x384xf32>
    %cst_40 = arith.constant 5.000000e-01 : f32
    %110 = vector.broadcast %cst_40 : f32 to vector<8x384xf32>
    %111 = arith.mulf %110, %109 : vector<8x384xf32>
    %112 = math.tanh %111 : vector<8x384xf32>
    %cst_41 = arith.constant 1.000000e+00 : f32
    %113 = vector.broadcast %cst_41 : f32 to vector<8x384xf32>
    %114 = arith.addf %112, %113 : vector<8x384xf32>
    %cst_42 = arith.constant 5.000000e-01 : f32
    %115 = vector.broadcast %cst_42 : f32 to vector<8x384xf32>
    %116 = arith.mulf %115, %114 : vector<8x384xf32>
    %117 = arith.mulf %106, %83 : vector<8x384xf32>
    %118 = arith.mulf %98, %108 : vector<8x384xf32>
    %119 = arith.addf %117, %118 : vector<8x384xf32>
    %120 = math.tanh %119 : vector<8x384xf32>
    %121 = arith.mulf %116, %120 : vector<8x384xf32>
    %122 = vector.extract_strided_slice %10 {offsets = [3, 0, 0], sizes = [1, 8, 1536], strides = [1, 1, 1]} : vector<8x8x1536xf32> to vector<1x8x1536xf32>
    %123 = vector.shape_cast %122 : vector<1x8x1536xf32> to vector<8x1536xf32>
    %124 = arith.truncf %121 : vector<8x384xf32> to vector<8x384xbf16>
    %cst_43 = arith.constant dense<0.000000e+00> : vector<8x1536xf32>
    %125 = tpu.matmul %124, %11, %cst_43 {dimension_numbers = #tpu.dot_dimension_numbers<[1], [0], [0], [1], [0, 0, 1, 1], [], []>} : vector<8x384xbf16>, vector<384x1536xbf16>, vector<8x1536xf32> -> vector<8x1536xf32>
    %126 = arith.addf %123, %125 : vector<8x1536xf32>
    %127 = vector.extract_strided_slice %126 {offsets = [0, 0], sizes = [8, 384], strides = [1, 1]} : vector<8x1536xf32> to vector<8x384xf32>
    %cst_44 = arith.constant 5.000000e-01 : f32
    %128 = vector.broadcast %cst_44 : f32 to vector<8x384xf32>
    %129 = arith.mulf %128, %127 : vector<8x384xf32>
    %130 = math.tanh %129 : vector<8x384xf32>
    %cst_45 = arith.constant 1.000000e+00 : f32
    %131 = vector.broadcast %cst_45 : f32 to vector<8x384xf32>
    %132 = arith.addf %130, %131 : vector<8x384xf32>
    %cst_46 = arith.constant 5.000000e-01 : f32
    %133 = vector.broadcast %cst_46 : f32 to vector<8x384xf32>
    %134 = arith.mulf %133, %132 : vector<8x384xf32>
    %135 = vector.extract_strided_slice %126 {offsets = [0, 384], sizes = [8, 384], strides = [1, 1]} : vector<8x1536xf32> to vector<8x384xf32>
    %cst_47 = arith.constant 5.000000e-01 : f32
    %136 = vector.broadcast %cst_47 : f32 to vector<8x384xf32>
    %137 = arith.mulf %136, %135 : vector<8x384xf32>
    %138 = math.tanh %137 : vector<8x384xf32>
    %cst_48 = arith.constant 1.000000e+00 : f32
    %139 = vector.broadcast %cst_48 : f32 to vector<8x384xf32>
    %140 = arith.addf %138, %139 : vector<8x384xf32>
    %cst_49 = arith.constant 5.000000e-01 : f32
    %141 = vector.broadcast %cst_49 : f32 to vector<8x384xf32>
    %142 = arith.mulf %141, %140 : vector<8x384xf32>
    %143 = vector.extract_strided_slice %126 {offsets = [0, 768], sizes = [8, 384], strides = [1, 1]} : vector<8x1536xf32> to vector<8x384xf32>
    %144 = math.tanh %143 : vector<8x384xf32>
    %145 = vector.extract_strided_slice %126 {offsets = [0, 1152], sizes = [8, 384], strides = [1, 1]} : vector<8x1536xf32> to vector<8x384xf32>
    %cst_50 = arith.constant 5.000000e-01 : f32
    %146 = vector.broadcast %cst_50 : f32 to vector<8x384xf32>
    %147 = arith.mulf %146, %145 : vector<8x384xf32>
    %148 = math.tanh %147 : vector<8x384xf32>
    %cst_51 = arith.constant 1.000000e+00 : f32
    %149 = vector.broadcast %cst_51 : f32 to vector<8x384xf32>
    %150 = arith.addf %148, %149 : vector<8x384xf32>
    %cst_52 = arith.constant 5.000000e-01 : f32
    %151 = vector.broadcast %cst_52 : f32 to vector<8x384xf32>
    %152 = arith.mulf %151, %150 : vector<8x384xf32>
    %153 = arith.mulf %142, %119 : vector<8x384xf32>
    %154 = arith.mulf %134, %144 : vector<8x384xf32>
    %155 = arith.addf %153, %154 : vector<8x384xf32>
    %156 = math.tanh %155 : vector<8x384xf32>
    %157 = arith.mulf %152, %156 : vector<8x384xf32>
    %158 = vector.extract_strided_slice %10 {offsets = [4, 0, 0], sizes = [1, 8, 1536], strides = [1, 1, 1]} : vector<8x8x1536xf32> to vector<1x8x1536xf32>
    %159 = vector.shape_cast %158 : vector<1x8x1536xf32> to vector<8x1536xf32>
    %160 = arith.truncf %157 : vector<8x384xf32> to vector<8x384xbf16>
    %cst_53 = arith.constant dense<0.000000e+00> : vector<8x1536xf32>
    %161 = tpu.matmul %160, %11, %cst_53 {dimension_numbers = #tpu.dot_dimension_numbers<[1], [0], [0], [1], [0, 0, 1, 1], [], []>} : vector<8x384xbf16>, vector<384x1536xbf16>, vector<8x1536xf32> -> vector<8x1536xf32>
    %162 = arith.addf %159, %161 : vector<8x1536xf32>
    %163 = vector.extract_strided_slice %162 {offsets = [0, 0], sizes = [8, 384], strides = [1, 1]} : vector<8x1536xf32> to vector<8x384xf32>
    %cst_54 = arith.constant 5.000000e-01 : f32
    %164 = vector.broadcast %cst_54 : f32 to vector<8x384xf32>
    %165 = arith.mulf %164, %163 : vector<8x384xf32>
    %166 = math.tanh %165 : vector<8x384xf32>
    %cst_55 = arith.constant 1.000000e+00 : f32
    %167 = vector.broadcast %cst_55 : f32 to vector<8x384xf32>
    %168 = arith.addf %166, %167 : vector<8x384xf32>
    %cst_56 = arith.constant 5.000000e-01 : f32
    %169 = vector.broadcast %cst_56 : f32 to vector<8x384xf32>
    %170 = arith.mulf %169, %168 : vector<8x384xf32>
    %171 = vector.extract_strided_slice %162 {offsets = [0, 384], sizes = [8, 384], strides = [1, 1]} : vector<8x1536xf32> to vector<8x384xf32>
    %cst_57 = arith.constant 5.000000e-01 : f32
    %172 = vector.broadcast %cst_57 : f32 to vector<8x384xf32>
    %173 = arith.mulf %172, %171 : vector<8x384xf32>
    %174 = math.tanh %173 : vector<8x384xf32>
    %cst_58 = arith.constant 1.000000e+00 : f32
    %175 = vector.broadcast %cst_58 : f32 to vector<8x384xf32>
    %176 = arith.addf %174, %175 : vector<8x384xf32>
    %cst_59 = arith.constant 5.000000e-01 : f32
    %177 = vector.broadcast %cst_59 : f32 to vector<8x384xf32>
    %178 = arith.mulf %177, %176 : vector<8x384xf32>
    %179 = vector.extract_strided_slice %162 {offsets = [0, 768], sizes = [8, 384], strides = [1, 1]} : vector<8x1536xf32> to vector<8x384xf32>
    %180 = math.tanh %179 : vector<8x384xf32>
    %181 = vector.extract_strided_slice %162 {offsets = [0, 1152], sizes = [8, 384], strides = [1, 1]} : vector<8x1536xf32> to vector<8x384xf32>
    %cst_60 = arith.constant 5.000000e-01 : f32
    %182 = vector.broadcast %cst_60 : f32 to vector<8x384xf32>
    %183 = arith.mulf %182, %181 : vector<8x384xf32>
    %184 = math.tanh %183 : vector<8x384xf32>
    %cst_61 = arith.constant 1.000000e+00 : f32
    %185 = vector.broadcast %cst_61 : f32 to vector<8x384xf32>
    %186 = arith.addf %184, %185 : vector<8x384xf32>
    %cst_62 = arith.constant 5.000000e-01 : f32
    %187 = vector.broadcast %cst_62 : f32 to vector<8x384xf32>
    %188 = arith.mulf %187, %186 : vector<8x384xf32>
    %189 = arith.mulf %178, %155 : vector<8x384xf32>
    %190 = arith.mulf %170, %180 : vector<8x384xf32>
    %191 = arith.addf %189, %190 : vector<8x384xf32>
    %192 = math.tanh %191 : vector<8x384xf32>
    %193 = arith.mulf %188, %192 : vector<8x384xf32>
    %194 = vector.extract_strided_slice %10 {offsets = [5, 0, 0], sizes = [1, 8, 1536], strides = [1, 1, 1]} : vector<8x8x1536xf32> to vector<1x8x1536xf32>
    %195 = vector.shape_cast %194 : vector<1x8x1536xf32> to vector<8x1536xf32>
    %196 = arith.truncf %193 : vector<8x384xf32> to vector<8x384xbf16>
    %cst_63 = arith.constant dense<0.000000e+00> : vector<8x1536xf32>
    %197 = tpu.matmul %196, %11, %cst_63 {dimension_numbers = #tpu.dot_dimension_numbers<[1], [0], [0], [1], [0, 0, 1, 1], [], []>} : vector<8x384xbf16>, vector<384x1536xbf16>, vector<8x1536xf32> -> vector<8x1536xf32>
    %198 = arith.addf %195, %197 : vector<8x1536xf32>
    %199 = vector.extract_strided_slice %198 {offsets = [0, 0], sizes = [8, 384], strides = [1, 1]} : vector<8x1536xf32> to vector<8x384xf32>
    %cst_64 = arith.constant 5.000000e-01 : f32
    %200 = vector.broadcast %cst_64 : f32 to vector<8x384xf32>
    %201 = arith.mulf %200, %199 : vector<8x384xf32>
    %202 = math.tanh %201 : vector<8x384xf32>
    %cst_65 = arith.constant 1.000000e+00 : f32
    %203 = vector.broadcast %cst_65 : f32 to vector<8x384xf32>
    %204 = arith.addf %202, %203 : vector<8x384xf32>
    %cst_66 = arith.constant 5.000000e-01 : f32
    %205 = vector.broadcast %cst_66 : f32 to vector<8x384xf32>
    %206 = arith.mulf %205, %204 : vector<8x384xf32>
    %207 = vector.extract_strided_slice %198 {offsets = [0, 384], sizes = [8, 384], strides = [1, 1]} : vector<8x1536xf32> to vector<8x384xf32>
    %cst_67 = arith.constant 5.000000e-01 : f32
    %208 = vector.broadcast %cst_67 : f32 to vector<8x384xf32>
    %209 = arith.mulf %208, %207 : vector<8x384xf32>
    %210 = math.tanh %209 : vector<8x384xf32>
    %cst_68 = arith.constant 1.000000e+00 : f32
    %211 = vector.broadcast %cst_68 : f32 to vector<8x384xf32>
    %212 = arith.addf %210, %211 : vector<8x384xf32>
    %cst_69 = arith.constant 5.000000e-01 : f32
    %213 = vector.broadcast %cst_69 : f32 to vector<8x384xf32>
    %214 = arith.mulf %213, %212 : vector<8x384xf32>
    %215 = vector.extract_strided_slice %198 {offsets = [0, 768], sizes = [8, 384], strides = [1, 1]} : vector<8x1536xf32> to vector<8x384xf32>
    %216 = math.tanh %215 : vector<8x384xf32>
    %217 = vector.extract_strided_slice %198 {offsets = [0, 1152], sizes = [8, 384], strides = [1, 1]} : vector<8x1536xf32> to vector<8x384xf32>
    %cst_70 = arith.constant 5.000000e-01 : f32
    %218 = vector.broadcast %cst_70 : f32 to vector<8x384xf32>
    %219 = arith.mulf %218, %217 : vector<8x384xf32>
    %220 = math.tanh %219 : vector<8x384xf32>
    %cst_71 = arith.constant 1.000000e+00 : f32
    %221 = vector.broadcast %cst_71 : f32 to vector<8x384xf32>
    %222 = arith.addf %220, %221 : vector<8x384xf32>
    %cst_72 = arith.constant 5.000000e-01 : f32
    %223 = vector.broadcast %cst_72 : f32 to vector<8x384xf32>
    %224 = arith.mulf %223, %222 : vector<8x384xf32>
    %225 = arith.mulf %214, %191 : vector<8x384xf32>
    %226 = arith.mulf %206, %216 : vector<8x384xf32>
    %227 = arith.addf %225, %226 : vector<8x384xf32>
    %228 = math.tanh %227 : vector<8x384xf32>
    %229 = arith.mulf %224, %228 : vector<8x384xf32>
    %230 = vector.extract_strided_slice %10 {offsets = [6, 0, 0], sizes = [1, 8, 1536], strides = [1, 1, 1]} : vector<8x8x1536xf32> to vector<1x8x1536xf32>
    %231 = vector.shape_cast %230 : vector<1x8x1536xf32> to vector<8x1536xf32>
    %232 = arith.truncf %229 : vector<8x384xf32> to vector<8x384xbf16>
    %cst_73 = arith.constant dense<0.000000e+00> : vector<8x1536xf32>
    %233 = tpu.matmul %232, %11, %cst_73 {dimension_numbers = #tpu.dot_dimension_numbers<[1], [0], [0], [1], [0, 0, 1, 1], [], []>} : vector<8x384xbf16>, vector<384x1536xbf16>, vector<8x1536xf32> -> vector<8x1536xf32>
    %234 = arith.addf %231, %233 : vector<8x1536xf32>
    %235 = vector.extract_strided_slice %234 {offsets = [0, 0], sizes = [8, 384], strides = [1, 1]} : vector<8x1536xf32> to vector<8x384xf32>
    %cst_74 = arith.constant 5.000000e-01 : f32
    %236 = vector.broadcast %cst_74 : f32 to vector<8x384xf32>
    %237 = arith.mulf %236, %235 : vector<8x384xf32>
    %238 = math.tanh %237 : vector<8x384xf32>
    %cst_75 = arith.constant 1.000000e+00 : f32
    %239 = vector.broadcast %cst_75 : f32 to vector<8x384xf32>
    %240 = arith.addf %238, %239 : vector<8x384xf32>
    %cst_76 = arith.constant 5.000000e-01 : f32
    %241 = vector.broadcast %cst_76 : f32 to vector<8x384xf32>
    %242 = arith.mulf %241, %240 : vector<8x384xf32>
    %243 = vector.extract_strided_slice %234 {offsets = [0, 384], sizes = [8, 384], strides = [1, 1]} : vector<8x1536xf32> to vector<8x384xf32>
    %cst_77 = arith.constant 5.000000e-01 : f32
    %244 = vector.broadcast %cst_77 : f32 to vector<8x384xf32>
    %245 = arith.mulf %244, %243 : vector<8x384xf32>
    %246 = math.tanh %245 : vector<8x384xf32>
    %cst_78 = arith.constant 1.000000e+00 : f32
    %247 = vector.broadcast %cst_78 : f32 to vector<8x384xf32>
    %248 = arith.addf %246, %247 : vector<8x384xf32>
    %cst_79 = arith.constant 5.000000e-01 : f32
    %249 = vector.broadcast %cst_79 : f32 to vector<8x384xf32>
    %250 = arith.mulf %249, %248 : vector<8x384xf32>
    %251 = vector.extract_strided_slice %234 {offsets = [0, 768], sizes = [8, 384], strides = [1, 1]} : vector<8x1536xf32> to vector<8x384xf32>
    %252 = math.tanh %251 : vector<8x384xf32>
    %253 = vector.extract_strided_slice %234 {offsets = [0, 1152], sizes = [8, 384], strides = [1, 1]} : vector<8x1536xf32> to vector<8x384xf32>
    %cst_80 = arith.constant 5.000000e-01 : f32
    %254 = vector.broadcast %cst_80 : f32 to vector<8x384xf32>
    %255 = arith.mulf %254, %253 : vector<8x384xf32>
    %256 = math.tanh %255 : vector<8x384xf32>
    %cst_81 = arith.constant 1.000000e+00 : f32
    %257 = vector.broadcast %cst_81 : f32 to vector<8x384xf32>
    %258 = arith.addf %256, %257 : vector<8x384xf32>
    %cst_82 = arith.constant 5.000000e-01 : f32
    %259 = vector.broadcast %cst_82 : f32 to vector<8x384xf32>
    %260 = arith.mulf %259, %258 : vector<8x384xf32>
    %261 = arith.mulf %250, %227 : vector<8x384xf32>
    %262 = arith.mulf %242, %252 : vector<8x384xf32>
    %263 = arith.addf %261, %262 : vector<8x384xf32>
    %264 = math.tanh %263 : vector<8x384xf32>
    %265 = arith.mulf %260, %264 : vector<8x384xf32>
    %266 = vector.extract_strided_slice %10 {offsets = [7, 0, 0], sizes = [1, 8, 1536], strides = [1, 1, 1]} : vector<8x8x1536xf32> to vector<1x8x1536xf32>
    %267 = vector.shape_cast %266 : vector<1x8x1536xf32> to vector<8x1536xf32>
    %268 = arith.truncf %265 : vector<8x384xf32> to vector<8x384xbf16>
    %cst_83 = arith.constant dense<0.000000e+00> : vector<8x1536xf32>
    %269 = tpu.matmul %268, %11, %cst_83 {dimension_numbers = #tpu.dot_dimension_numbers<[1], [0], [0], [1], [0, 0, 1, 1], [], []>} : vector<8x384xbf16>, vector<384x1536xbf16>, vector<8x1536xf32> -> vector<8x1536xf32>
    %270 = arith.addf %267, %269 : vector<8x1536xf32>
    %271 = vector.extract_strided_slice %270 {offsets = [0, 0], sizes = [8, 384], strides = [1, 1]} : vector<8x1536xf32> to vector<8x384xf32>
    %cst_84 = arith.constant 5.000000e-01 : f32
    %272 = vector.broadcast %cst_84 : f32 to vector<8x384xf32>
    %273 = arith.mulf %272, %271 : vector<8x384xf32>
    %274 = math.tanh %273 : vector<8x384xf32>
    %cst_85 = arith.constant 1.000000e+00 : f32
    %275 = vector.broadcast %cst_85 : f32 to vector<8x384xf32>
    %276 = arith.addf %274, %275 : vector<8x384xf32>
    %cst_86 = arith.constant 5.000000e-01 : f32
    %277 = vector.broadcast %cst_86 : f32 to vector<8x384xf32>
    %278 = arith.mulf %277, %276 : vector<8x384xf32>
    %279 = vector.extract_strided_slice %270 {offsets = [0, 384], sizes = [8, 384], strides = [1, 1]} : vector<8x1536xf32> to vector<8x384xf32>
    %cst_87 = arith.constant 5.000000e-01 : f32
    %280 = vector.broadcast %cst_87 : f32 to vector<8x384xf32>
    %281 = arith.mulf %280, %279 : vector<8x384xf32>
    %282 = math.tanh %281 : vector<8x384xf32>
    %cst_88 = arith.constant 1.000000e+00 : f32
    %283 = vector.broadcast %cst_88 : f32 to vector<8x384xf32>
    %284 = arith.addf %282, %283 : vector<8x384xf32>
    %cst_89 = arith.constant 5.000000e-01 : f32
    %285 = vector.broadcast %cst_89 : f32 to vector<8x384xf32>
    %286 = arith.mulf %285, %284 : vector<8x384xf32>
    %287 = vector.extract_strided_slice %270 {offsets = [0, 768], sizes = [8, 384], strides = [1, 1]} : vector<8x1536xf32> to vector<8x384xf32>
    %288 = math.tanh %287 : vector<8x384xf32>
    %289 = vector.extract_strided_slice %270 {offsets = [0, 1152], sizes = [8, 384], strides = [1, 1]} : vector<8x1536xf32> to vector<8x384xf32>
    %cst_90 = arith.constant 5.000000e-01 : f32
    %290 = vector.broadcast %cst_90 : f32 to vector<8x384xf32>
    %291 = arith.mulf %290, %289 : vector<8x384xf32>
    %292 = math.tanh %291 : vector<8x384xf32>
    %cst_91 = arith.constant 1.000000e+00 : f32
    %293 = vector.broadcast %cst_91 : f32 to vector<8x384xf32>
    %294 = arith.addf %292, %293 : vector<8x384xf32>
    %cst_92 = arith.constant 5.000000e-01 : f32
    %295 = vector.broadcast %cst_92 : f32 to vector<8x384xf32>
    %296 = arith.mulf %295, %294 : vector<8x384xf32>
    %297 = arith.mulf %286, %263 : vector<8x384xf32>
    %298 = arith.mulf %278, %288 : vector<8x384xf32>
    %299 = arith.addf %297, %298 : vector<8x384xf32>
    %300 = math.tanh %299 : vector<8x384xf32>
    %301 = arith.mulf %296, %300 : vector<8x384xf32>
    %c0_93 = arith.constant 0 : index
    %c0_94 = arith.constant 0 : index
    %302 = vector.load %arg16[%c0_93, %c0_94] : memref<8x384xf32, #tpu.memory_space<vmem>>, vector<8x384xf32>
    tpu.vector_store %arg16[%c0_93, %c0_94], %301 {strides = array<i32>} : memref<8x384xf32, #tpu.memory_space<vmem>>, vector<8x384xf32>,
    %c0_95 = arith.constant 0 : index
    %c0_96 = arith.constant 0 : index
    %303 = vector.load %arg17[%c0_95, %c0_96] : memref<8x384xf32, #tpu.memory_space<vmem>>, vector<8x384xf32>
    tpu.vector_store %arg17[%c0_95, %c0_96], %299 {strides = array<i32>} : memref<8x384xf32, #tpu.memory_space<vmem>>, vector<8x384xf32>,
    %c0_i32_97 = arith.constant 0 : i32
    %304 = arith.cmpi eq, %arg1, %c0_i32_97 : i32
    %305 = arith.extui %304 : i1 to i32
    %c0_i32_98 = arith.constant 0 : i32
    %306 = arith.cmpi ne, %305, %c0_i32_98 : i32
    scf.if %306 {
      %307 = vector.extract_strided_slice %3 {offsets = [7, 0, 0], sizes = [1, 8, 64], strides = [1, 1, 1]} : vector<8x8x64xbf16> to vector<1x8x64xbf16>
      %308 = vector.shape_cast %307 : vector<1x8x64xbf16> to vector<8x64xbf16>
      %c0_99 = arith.constant 0 : index
      %c0_100 = arith.constant 0 : index
      %309 = vector.load %arg6[%c0_99, %c0_100] : memref<64x1536xbf16, #tpu.memory_space<vmem>>, vector<64x1536xbf16>
      %cst_101 = arith.constant dense<0.000000e+00> : vector<8x1536xf32>
      %310 = tpu.matmul %308, %309, %cst_101 {dimension_numbers = #tpu.dot_dimension_numbers<[1], [0], [0], [1], [0, 0, 1, 1], [], []>} : vector<8x64xbf16>, vector<64x1536xbf16>, vector<8x1536xf32> -> vector<8x1536xf32>
      %c0_102 = arith.constant 0 : index
      %c0_103 = arith.constant 0 : index
      %311 = vector.load %arg7[%c0_102, %c0_103] : memref<1x1536xf32, #tpu.memory_space<vmem>>, vector<1x1536xf32>
      %312 = vector.broadcast %311 : vector<1x1536xf32> to vector<8x1536xf32>
      %313 = arith.addf %310, %312 : vector<8x1536xf32>
      %cst_104 = arith.constant 0.000000e+00 : f32
      %314 = vector.broadcast %cst_104 : f32 to vector<8x384xf32>
      %315 = vector.extract_strided_slice %313 {offsets = [0, 0], sizes = [8, 384], strides = [1, 1]} : vector<8x1536xf32> to vector<8x384xf32>
      %cst_105 = arith.constant 5.000000e-01 : f32
      %316 = vector.broadcast %cst_105 : f32 to vector<8x384xf32>
      %317 = arith.mulf %316, %315 : vector<8x384xf32>
      %318 = math.tanh %317 : vector<8x384xf32>
      %cst_106 = arith.constant 1.000000e+00 : f32
      %319 = vector.broadcast %cst_106 : f32 to vector<8x384xf32>
      %320 = arith.addf %318, %319 : vector<8x384xf32>
      %cst_107 = arith.constant 5.000000e-01 : f32
      %321 = vector.broadcast %cst_107 : f32 to vector<8x384xf32>
      %322 = arith.mulf %321, %320 : vector<8x384xf32>
      %323 = vector.extract_strided_slice %313 {offsets = [0, 384], sizes = [8, 384], strides = [1, 1]} : vector<8x1536xf32> to vector<8x384xf32>
      %cst_108 = arith.constant 5.000000e-01 : f32
      %324 = vector.broadcast %cst_108 : f32 to vector<8x384xf32>
      %325 = arith.mulf %324, %323 : vector<8x384xf32>
      %326 = math.tanh %325 : vector<8x384xf32>
      %cst_109 = arith.constant 1.000000e+00 : f32
      %327 = vector.broadcast %cst_109 : f32 to vector<8x384xf32>
      %328 = arith.addf %326, %327 : vector<8x384xf32>
      %cst_110 = arith.constant 5.000000e-01 : f32
      %329 = vector.broadcast %cst_110 : f32 to vector<8x384xf32>
      %330 = arith.mulf %329, %328 : vector<8x384xf32>
      %331 = vector.extract_strided_slice %313 {offsets = [0, 768], sizes = [8, 384], strides = [1, 1]} : vector<8x1536xf32> to vector<8x384xf32>
      %332 = math.tanh %331 : vector<8x384xf32>
      %333 = vector.extract_strided_slice %313 {offsets = [0, 1152], sizes = [8, 384], strides = [1, 1]} : vector<8x1536xf32> to vector<8x384xf32>
      %cst_111 = arith.constant 5.000000e-01 : f32
      %334 = vector.broadcast %cst_111 : f32 to vector<8x384xf32>
      %335 = arith.mulf %334, %333 : vector<8x384xf32>
      %336 = math.tanh %335 : vector<8x384xf32>
      %cst_112 = arith.constant 1.000000e+00 : f32
      %337 = vector.broadcast %cst_112 : f32 to vector<8x384xf32>
      %338 = arith.addf %336, %337 : vector<8x384xf32>
      %cst_113 = arith.constant 5.000000e-01 : f32
      %339 = vector.broadcast %cst_113 : f32 to vector<8x384xf32>
      %340 = arith.mulf %339, %338 : vector<8x384xf32>
      %341 = arith.mulf %330, %314 : vector<8x384xf32>
      %342 = arith.mulf %322, %332 : vector<8x384xf32>
      %343 = arith.addf %341, %342 : vector<8x384xf32>
      %344 = math.tanh %343 : vector<8x384xf32>
      %345 = arith.mulf %340, %344 : vector<8x384xf32>
      %346 = arith.truncf %301 : vector<8x384xf32> to vector<8x384xbf16>
      %c0_114 = arith.constant 0 : index
      %c0_115 = arith.constant 0 : index
      %347 = vector.load %arg8[%c0_114, %c0_115] : memref<384x80xbf16, #tpu.memory_space<vmem>>, vector<384x80xbf16>
      %cst_116 = arith.constant dense<0.000000e+00> : vector<8x80xf32>
      %348 = tpu.matmul %346, %347, %cst_116 {dimension_numbers = #tpu.dot_dimension_numbers<[1], [0], [0], [1], [0, 0, 1, 1], [], []>} : vector<8x384xbf16>, vector<384x80xbf16>, vector<8x80xf32> -> vector<8x80xf32>
      %349 = arith.truncf %345 : vector<8x384xf32> to vector<8x384xbf16>
      %c0_117 = arith.constant 0 : index
      %c0_118 = arith.constant 0 : index
      %350 = vector.load %arg9[%c0_117, %c0_118] : memref<384x80xbf16, #tpu.memory_space<vmem>>, vector<384x80xbf16>
      %cst_119 = arith.constant dense<0.000000e+00> : vector<8x80xf32>
      %351 = tpu.matmul %349, %350, %cst_119 {dimension_numbers = #tpu.dot_dimension_numbers<[1], [0], [0], [1], [0, 0, 1, 1], [], []>} : vector<8x384xbf16>, vector<384x80xbf16>, vector<8x80xf32> -> vector<8x80xf32>
      %352 = arith.addf %348, %351 : vector<8x80xf32>
      %c0_120 = arith.constant 0 : index
      %c0_121 = arith.constant 0 : index
      %353 = vector.load %arg10[%c0_120, %c0_121] : memref<1x80xf32, #tpu.memory_space<vmem>>, vector<1x80xf32>
      %354 = vector.broadcast %353 : vector<1x80xf32> to vector<8x80xf32>
      %355 = arith.addf %352, %354 : vector<8x80xf32>
      %c0_122 = arith.constant 0 : index
      %c0_123 = arith.constant 0 : index
      %356 = vector.load %arg11[%c0_122, %c0_123] : memref<80x20xf32, #tpu.memory_space<vmem>>, vector<80x20xf32>
      %cst_124 = arith.constant dense<0.000000e+00> : vector<8x20xf32>
      %357 = tpu.matmul %355, %356, %cst_124 {dimension_numbers = #tpu.dot_dimension_numbers<[1], [0], [0], [1], [0, 0, 1, 1], [], []>} : vector<8x80xf32>, vector<80x20xf32>, vector<8x20xf32> -> vector<8x20xf32>
      %c0_125 = arith.constant 0 : index
      %c0_126 = arith.constant 0 : index
      %358 = vector.load %arg12[%c0_125, %c0_126] : memref<1x20xf32, #tpu.memory_space<vmem>>, vector<1x20xf32>
      %359 = vector.broadcast %358 : vector<1x20xf32> to vector<8x20xf32>
      %360 = arith.addf %357, %359 : vector<8x20xf32>
      %c0_127 = arith.constant 0 : index
      %c0_128 = arith.constant 0 : index
      %361 = vector.load %arg13[%c0_127, %c0_128] : memref<20x2xf32, #tpu.memory_space<vmem>>, vector<20x2xf32>
      %cst_129 = arith.constant dense<0.000000e+00> : vector<8x2xf32>
      %362 = tpu.matmul %360, %361, %cst_129 {dimension_numbers = #tpu.dot_dimension_numbers<[1], [0], [0], [1], [0, 0, 1, 1], [], []>} : vector<8x20xf32>, vector<20x2xf32>, vector<8x2xf32> -> vector<8x2xf32>
      %c0_130 = arith.constant 0 : index
      %c0_131 = arith.constant 0 : index
      %363 = vector.load %arg14[%c0_130, %c0_131] : memref<1x2xf32, #tpu.memory_space<vmem>>, vector<1x2xf32>
      %364 = vector.broadcast %363 : vector<1x2xf32> to vector<8x2xf32>
      %365 = arith.addf %362, %364 : vector<8x2xf32>
      %cst_132 = arith.constant dense<0xFF800000> : vector<8xf32>
      %366 = vector.multi_reduction <maximumf>, %365, %cst_132 [1] : vector<8x2xf32> to vector<8xf32>
      %367 = vector.shape_cast %366 : vector<8xf32> to vector<8x1xf32>
      %368 = vector.broadcast %367 : vector<8x1xf32> to vector<8x2xf32>
      %369 = arith.subf %365, %368 : vector<8x2xf32>
      %370 = math.exp %369 : vector<8x2xf32>
      %cst_133 = arith.constant dense<0.000000e+00> : vector<8xf32>
      %371 = vector.multi_reduction <add>, %370, %cst_133 [1] : vector<8x2xf32> to vector<8xf32>
      %372 = vector.shape_cast %371 : vector<8xf32> to vector<8x1xf32>
      %373 = vector.broadcast %372 : vector<8x1xf32> to vector<8x2xf32>
      %374 = arith.divf %370, %373 : vector<8x2xf32>
      %c0_134 = arith.constant 0 : index
      %c0_135 = arith.constant 0 : index
      %375 = vector.load %arg15[%c0_134, %c0_135] : memref<8x2xf32, #tpu.memory_space<vmem>>, vector<8x2xf32>
      tpu.vector_store %arg15[%c0_134, %c0_135], %374 {strides = array<i32>} : memref<8x2xf32, #tpu.memory_space<vmem>>, vector<8x2xf32>,
    } else {
    }
    return
  }
  func.func @transform_0(%arg0: i32, %arg1: i32) -> (i32, i32, i32) {
    %c0_i32 = arith.constant 0 : i32
    %c0_i32_0 = arith.constant 0 : i32
    return %arg1, %arg0, %c0_i32 : i32, i32, i32
  }
  func.func @transform_1(%arg0: i32, %arg1: i32) -> (i32, i32) {
    %c0_i32 = arith.constant 0 : i32
    %c0_i32_0 = arith.constant 0 : i32
    %c0_i32_1 = arith.constant 0 : i32
    return %c0_i32, %c0_i32_0 : i32, i32
  }
  func.func @transform_2(%arg0: i32, %arg1: i32) -> (i32, i32) {
    %c0_i32 = arith.constant 0 : i32
    %c0_i32_0 = arith.constant 0 : i32
    %c0_i32_1 = arith.constant 0 : i32
    return %c0_i32, %c0_i32_0 : i32, i32
  }
  func.func @transform_3(%arg0: i32, %arg1: i32) -> (i32, i32) {
    %c0_i32 = arith.constant 0 : i32
    %c0_i32_0 = arith.constant 0 : i32
    %c0_i32_1 = arith.constant 0 : i32
    return %c0_i32, %c0_i32_0 : i32, i32
  }
  func.func @transform_4(%arg0: i32, %arg1: i32) -> (i32, i32) {
    %c0_i32 = arith.constant 0 : i32
    %c0_i32_0 = arith.constant 0 : i32
    %c0_i32_1 = arith.constant 0 : i32
    return %c0_i32, %c0_i32_0 : i32, i32
  }
  func.func @transform_5(%arg0: i32, %arg1: i32) -> (i32, i32) {
    %c0_i32 = arith.constant 0 : i32
    %c0_i32_0 = arith.constant 0 : i32
    %c0_i32_1 = arith.constant 0 : i32
    return %c0_i32, %c0_i32_0 : i32, i32
  }
  func.func @transform_6(%arg0: i32, %arg1: i32) -> (i32, i32) {
    %c0_i32 = arith.constant 0 : i32
    %c0_i32_0 = arith.constant 0 : i32
    %c0_i32_1 = arith.constant 0 : i32
    return %c0_i32, %c0_i32_0 : i32, i32
  }
  func.func @transform_7(%arg0: i32, %arg1: i32) -> (i32, i32) {
    %c0_i32 = arith.constant 0 : i32
    %c0_i32_0 = arith.constant 0 : i32
    %c0_i32_1 = arith.constant 0 : i32
    return %c0_i32, %c0_i32_0 : i32, i32
  }
  func.func @transform_8(%arg0: i32, %arg1: i32) -> (i32, i32) {
    %c0_i32 = arith.constant 0 : i32
    %c0_i32_0 = arith.constant 0 : i32
    %c0_i32_1 = arith.constant 0 : i32
    return %c0_i32, %c0_i32_0 : i32, i32
  }
  func.func @transform_9(%arg0: i32, %arg1: i32) -> (i32, i32) {
    %c0_i32 = arith.constant 0 : i32
    %c0_i32_0 = arith.constant 0 : i32
    %c0_i32_1 = arith.constant 0 : i32
    return %c0_i32, %c0_i32_0 : i32, i32
  }
  func.func @transform_10(%arg0: i32, %arg1: i32) -> (i32, i32) {
    %c0_i32 = arith.constant 0 : i32
    %c0_i32_0 = arith.constant 0 : i32
    %c0_i32_1 = arith.constant 0 : i32
    return %c0_i32, %c0_i32_0 : i32, i32
  }
  func.func @transform_11(%arg0: i32, %arg1: i32) -> (i32, i32) {
    %c0_i32 = arith.constant 0 : i32
    %c0_i32_0 = arith.constant 0 : i32
    %c0_i32_1 = arith.constant 0 : i32
    return %c0_i32, %c0_i32_0 : i32, i32
  }
  func.func @transform_12(%arg0: i32, %arg1: i32) -> (i32, i32) {
    %c0_i32 = arith.constant 0 : i32
    %c0_i32_0 = arith.constant 0 : i32
    %c0_i32_1 = arith.constant 0 : i32
    return %c0_i32, %c0_i32_0 : i32, i32
  }
  func.func @transform_13(%arg0: i32, %arg1: i32) -> (i32, i32) {
    %c0_i32 = arith.constant 0 : i32
    %c0_i32_0 = arith.constant 0 : i32
    return %arg0, %c0_i32 : i32, i32
  }
}

</mosaic_0001>

<llo_original>
// kernel: tpu_custom_call.1
$region0: #{tpu_custom_call.1}
  #allocation0 [shape = 'u32[]', space=smem, size = 0x4, offset = 0x4, fixed_abs, tag = 'smem constant byte address 0x4 - core index']
  #allocation1 [shape = 'u32[144,128]{1,0:T(1,128)}', space=vmem, size = 0x12000, scoped, tag = 'internal scratch']
  #allocation2 [shape = 'f32[8,384]{1,0:T(8,128)}', space=vmem, size = 0x3000, scoped, tag = 'scratch operand']
  #allocation3 [shape = 'f32[8,384]{1,0:T(8,128)}', space=vmem, size = 0x3000, scoped, tag = 'scratch operand']
  %s0 = inlined_call_operand.hbm [shape: bf16[8,8,64], index: 0, kind: input, shape index: {}]
  %s1 = inlined_call_operand.hbm [shape: bf16[64,1536], index: 1, kind: input, shape index: {}]
  %s2 = inlined_call_operand.hbm [shape: bf16[384,1536], index: 2, kind: input, shape index: {}]
  %s3 = inlined_call_operand.hbm [shape: f32[1,1536], index: 3, kind: input, shape index: {}]
  %s4 = inlined_call_operand.hbm [shape: bf16[64,1536], index: 4, kind: input, shape index: {}]
  %s5 = inlined_call_operand.hbm [shape: f32[1,1536], index: 5, kind: input, shape index: {}]
  %s6 = inlined_call_operand.hbm [shape: bf16[384,80], index: 6, kind: input, shape index: {}]
  %s7 = inlined_call_operand.hbm [shape: bf16[384,80], index: 7, kind: input, shape index: {}]
  %s8 = inlined_call_operand.hbm [shape: f32[1,80], index: 8, kind: input, shape index: {}]
  %s9 = inlined_call_operand.hbm [shape: f32[80,20], index: 9, kind: input, shape index: {}]
  %s10 = inlined_call_operand.hbm [shape: f32[1,20], index: 10, kind: input, shape index: {}]
  %s11 = inlined_call_operand.hbm [shape: f32[20,2], index: 11, kind: input, shape index: {}]
  %s12 = inlined_call_operand.hbm [shape: f32[1,2], index: 12, kind: input, shape index: {}]
  %s13 = inlined_call_operand.hbm [shape: f32[8,2], index: 13, kind: output, shape index: {}]
  %s14 = sld [smem:[#allocation0]]
  $region122: #{tpu_custom_call.1} parent=0
    _
  %s16 = ssub.s32 1, %s14
  %s17 = scalar_select 0, %s16, %s14
  $region1: #{tpu_custom_call.1} parent=0
    #allocation4 [shape = 'u8[16384]{0}', space=vmem, size = 0x4000, scoped, tag = 'input window, operand 0, single buffered']
    #allocation5 [shape = 's32[1]{0}', space=sflag, size = 0x4, scoped, tag = 'scoped memory for tpu_custom_call.1']
    #allocation6 [shape = 's32[1]{0}', space=sflag, size = 0x4, scoped, tag = 'scoped memory for tpu_custom_call.1']
    #allocation7 [shape = 'u8[196608]{0}', space=vmem, size = 0x30000, scoped, tag = 'input window, operand 1, single buffered']
    #allocation8 [shape = 's32[1]{0}', space=sflag, size = 0x4, scoped, tag = 'scoped memory for tpu_custom_call.1']
    #allocation9 [shape = 'u8[1179648]{0}', space=vmem, size = 0x120000, scoped, tag = 'input window, operand 2, single buffered']
    #allocation10 [shape = 'u8[6144]{0}', space=vmem, size = 0x1800, scoped, tag = 'input window, operand 3, single buffered']
    #allocation11 [shape = 's32[1]{0}', space=sflag, size = 0x4, scoped, tag = 'scoped memory for tpu_custom_call.1']
    #allocation12 [shape = 'u8[196608]{0}', space=vmem, size = 0x30000, scoped, tag = 'input window, operand 4, single buffered']
    #allocation13 [shape = 'u8[6144]{0}', space=vmem, size = 0x1800, scoped, tag = 'input window, operand 5, single buffered']
    #allocation14 [shape = 's32[1]{0}', space=sflag, size = 0x4, scoped, tag = 'scoped memory for tpu_custom_call.1']
    #allocation15 [shape = 'u8[98304]{0}', space=vmem, size = 0x18000, scoped, tag = 'input window, operand 6, single buffered']
    #allocation16 [shape = 'u8[98304]{0}', space=vmem, size = 0x18000, scoped, tag = 'input window, operand 7, single buffered']
    #allocation17 [shape = 's32[1]{0}', space=sflag, size = 0x4, scoped, tag = 'scoped memory for tpu_custom_call.1']
    #allocation18 [shape = 'u8[512]{0}', space=vmem, size = 0x400, scoped, tag = 'input window, operand 8, single buffered']
    #allocation19 [shape = 'u8[40960]{0}', space=vmem, size = 0xa000, scoped, tag = 'input window, operand 9, single buffered']
    #allocation20 [shape = 's32[1]{0}', space=sflag, size = 0x4, scoped, tag = 'scoped memory for tpu_custom_call.1']
    #allocation21 [shape = 'u8[512]{0}', space=vmem, size = 0x400, scoped, tag = 'input window, operand 10, single buffered']
    #allocation22 [shape = 'u8[12288]{0}', space=vmem, size = 0x3000, scoped, tag = 'input window, operand 11, single buffered']
    #allocation23 [shape = 's32[1]{0}', space=sflag, size = 0x4, scoped, tag = 'scoped memory for tpu_custom_call.1']
    #allocation24 [shape = 'u8[512]{0}', space=vmem, size = 0x400, scoped, tag = 'input window, operand 12, single buffered']
    #allocation25 [shape = 'u8[4096]{0}', space=vmem, size = 0x1000, scoped, tag = 'output window, operand 0, single buffered']
    %18 = vsyncpa [#allocation5], 0
    %19 = vsyncpa [#allocation8], 0
    %20 = vsyncpa [#allocation11], 0
    %21 = vsyncpa [#allocation14], 0
    %22 = vsyncpa [#allocation17], 0
    %23 = vsyncpa [#allocation20], 0
    %24 = vsyncpa [#allocation23], 0
    %25 = vsyncpa [#allocation6], 0
    // Predicated region
    $region2: #{tpu_custom_call.1} parent=1 // pred_check
      _
    $region3: #{tpu_custom_call.1} parent=1 // pred_check_branch
      %27 = sbr.rel (0) target = $region5
    $region4: #{tpu_custom_call.1} parent=1 // pred_region
      %s29 = ssub.s32 512, 512
      %30 = vsyncadd [#allocation5], %s29
      %s31 = sshll.u32 [#allocation4], 4
      %s32 = int_to_ptr.vmem [resolvable:$true] %s31
      %37 = dma.hbm_to_vmem [thread:$0]  %s0, 512, %s32, [#allocation5], 64, 64, 4
    $region5: #{tpu_custom_call.1} parent=1 // pred_fallthru
      _
    // Predicated region
    $region6: #{tpu_custom_call.1} parent=1 // pred_check
      _
    $region7: #{tpu_custom_call.1} parent=1 // pred_check_branch
      %39 = sbr.rel (0) target = $region9
    $region8: #{tpu_custom_call.1} parent=1 // pred_region
      %s41 = ssub.s32 6144, 6144
      %42 = vsyncadd [#allocation8], %s41
      %s43 = sshll.u32 [#allocation7], 4
      %s44 = int_to_ptr.vmem [resolvable:$true] %s43
      %49 = dma.hbm_to_vmem [thread:$0]  %s1, 6144, %s44, [#allocation8], 768, 768, 48
    $region9: #{tpu_custom_call.1} parent=1 // pred_fallthru
      _
    // Predicated region
    $region10: #{tpu_custom_call.1} parent=1 // pred_check
      _
    $region11: #{tpu_custom_call.1} parent=1 // pred_check_branch
      %51 = sbr.rel (0) target = $region13
    $region12: #{tpu_custom_call.1} parent=1 // pred_region
      %s53 = ssub.s32 36864, 36864
      %54 = vsyncadd [#allocation8], %s53
      %s55 = sshll.u32 [#allocation9], 4
      %s56 = int_to_ptr.vmem [resolvable:$true] %s55
      %61 = dma.hbm_to_vmem [thread:$0]  %s2, 36864, %s56, [#allocation8], 768, 768, 48
    $region13: #{tpu_custom_call.1} parent=1 // pred_fallthru
      _
    // Predicated region
    $region14: #{tpu_custom_call.1} parent=1 // pred_check
      _
    $region15: #{tpu_custom_call.1} parent=1 // pred_check_branch
      %63 = sbr.rel (0) target = $region17
    $region16: #{tpu_custom_call.1} parent=1 // pred_region
      %s65 = ssub.s32 192, 192
      %66 = vsyncadd [#allocation11], %s65
      %s68 = sshll.u32 [#allocation10], 4
      %s69 = int_to_ptr.vmem [resolvable:$true] %s68
      %71 = dma.hbm_to_vmem [thread:$0]  %s3, 192, %s69, [#allocation11]
    $region17: #{tpu_custom_call.1} parent=1 // pred_fallthru
      _
    // Predicated region
    $region18: #{tpu_custom_call.1} parent=1 // pred_check
      _
    $region19: #{tpu_custom_call.1} parent=1 // pred_check_branch
      %73 = sbr.rel (0) target = $region21
    $region20: #{tpu_custom_call.1} parent=1 // pred_region
      %s75 = ssub.s32 6144, 6144
      %76 = vsyncadd [#allocation11], %s75
      %s77 = sshll.u32 [#allocation12], 4
      %s78 = int_to_ptr.vmem [resolvable:$true] %s77
      %83 = dma.hbm_to_vmem [thread:$0]  %s4, 6144, %s78, [#allocation11], 768, 768, 48
    $region21: #{tpu_custom_call.1} parent=1 // pred_fallthru
      _
    // Predicated region
    $region22: #{tpu_custom_call.1} parent=1 // pred_check
      _
    $region23: #{tpu_custom_call.1} parent=1 // pred_check_branch
      %85 = sbr.rel (0) target = $region25
    $region24: #{tpu_custom_call.1} parent=1 // pred_region
      %s87 = ssub.s32 192, 192
      %88 = vsyncadd [#allocation14], %s87
      %s90 = sshll.u32 [#allocation13], 4
      %s91 = int_to_ptr.vmem [resolvable:$true] %s90
      %93 = dma.hbm_to_vmem [thread:$0]  %s5, 192, %s91, [#allocation14]
    $region25: #{tpu_custom_call.1} parent=1 // pred_fallthru
      _
    // Predicated region
    $region26: #{tpu_custom_call.1} parent=1 // pred_check
      _
    $region27: #{tpu_custom_call.1} parent=1 // pred_check_branch
      %95 = sbr.rel (0) target = $region29
    $region28: #{tpu_custom_call.1} parent=1 // pred_region
      %s97 = ssub.s32 3072, 3072
      %98 = vsyncadd [#allocation14], %s97
      %s99 = sshll.u32 [#allocation15], 4
      %s100 = int_to_ptr.vmem [resolvable:$true] %s99
      %105 = dma.hbm_to_vmem [thread:$0]  %s6, 3072, %s100, [#allocation14], 64, 64, 4
    $region29: #{tpu_custom_call.1} parent=1 // pred_fallthru
      _
    // Predicated region
    $region30: #{tpu_custom_call.1} parent=1 // pred_check
      _
    $region31: #{tpu_custom_call.1} parent=1 // pred_check_branch
      %107 = sbr.rel (0) target = $region33
    $region32: #{tpu_custom_call.1} parent=1 // pred_region
      %s109 = ssub.s32 3072, 3072
      %110 = vsyncadd [#allocation17], %s109
      %s111 = sshll.u32 [#allocation16], 4
      %s112 = int_to_ptr.vmem [resolvable:$true] %s111
      %117 = dma.hbm_to_vmem [thread:$0]  %s7, 3072, %s112, [#allocation17], 64, 64, 4
    $region33: #{tpu_custom_call.1} parent=1 // pred_fallthru
      _
    // Predicated region
    $region34: #{tpu_custom_call.1} parent=1 // pred_check
      _
    $region35: #{tpu_custom_call.1} parent=1 // pred_check_branch
      %119 = sbr.rel (0) target = $region37
    $region36: #{tpu_custom_call.1} parent=1 // pred_region
      %s121 = ssub.s32 16, 16
      %122 = vsyncadd [#allocation17], %s121
      %s124 = sshll.u32 [#allocation18], 4
      %s125 = int_to_ptr.vmem [resolvable:$true] %s124
      %127 = dma.hbm_to_vmem [thread:$0]  %s8, 16, %s125, [#allocation17]
    $region37: #{tpu_custom_call.1} parent=1 // pred_fallthru
      _
    // Predicated region
    $region38: #{tpu_custom_call.1} parent=1 // pred_check
      _
    $region39: #{tpu_custom_call.1} parent=1 // pred_check_branch
      %129 = sbr.rel (0) target = $region41
    $region40: #{tpu_custom_call.1} parent=1 // pred_region
      %s131 = ssub.s32 1280, 1280
      %132 = vsyncadd [#allocation20], %s131
      %s133 = sshll.u32 [#allocation19], 4
      %s134 = int_to_ptr.vmem [resolvable:$true] %s133
      %139 = dma.hbm_to_vmem [thread:$0]  %s9, 1280, %s134, [#allocation20], 128, 128, 8
    $region41: #{tpu_custom_call.1} parent=1 // pred_fallthru
      _
    // Predicated region
    $region42: #{tpu_custom_call.1} parent=1 // pred_check
      _
    $region43: #{tpu_custom_call.1} parent=1 // pred_check_branch
      %141 = sbr.rel (0) target = $region45
    $region44: #{tpu_custom_call.1} parent=1 // pred_region
      %s143 = ssub.s32 16, 16
      %144 = vsyncadd [#allocation20], %s143
      %s146 = sshll.u32 [#allocation21], 4
      %s147 = int_to_ptr.vmem [resolvable:$true] %s146
      %149 = dma.hbm_to_vmem [thread:$0]  %s10, 16, %s147, [#allocation20]
    $region45: #{tpu_custom_call.1} parent=1 // pred_fallthru
      _
    // Predicated region
    $region46: #{tpu_custom_call.1} parent=1 // pred_check
      _
    $region47: #{tpu_custom_call.1} parent=1 // pred_check_branch
      %151 = sbr.rel (0) target = $region49
    $region48: #{tpu_custom_call.1} parent=1 // pred_region
      %s153 = ssub.s32 384, 384
      %154 = vsyncadd [#allocation23], %s153
      %s155 = sshll.u32 [#allocation22], 4
      %s156 = int_to_ptr.vmem [resolvable:$true] %s155
      %161 = dma.hbm_to_vmem [thread:$0]  %s11, 384, %s156, [#allocation23], 128, 128, 8
    $region49: #{tpu_custom_call.1} parent=1 // pred_fallthru
      _
    // Predicated region
    $region50: #{tpu_custom_call.1} parent=1 // pred_check
      _
    $region51: #{tpu_custom_call.1} parent=1 // pred_check_branch
      %163 = sbr.rel (0) target = $region53
    $region52: #{tpu_custom_call.1} parent=1 // pred_region
      %s165 = ssub.s32 16, 16
      %166 = vsyncadd [#allocation23], %s165
      %s168 = sshll.u32 [#allocation24], 4
      %s169 = int_to_ptr.vmem [resolvable:$true] %s168
      %171 = dma.hbm_to_vmem [thread:$0]  %s12, 16, %s169, [#allocation23]
    $region53: #{tpu_custom_call.1} parent=1 // pred_fallthru
      _
    // Predicated region
    $region54: #{tpu_custom_call.1} parent=1 // pred_check
      _
    $region55: #{tpu_custom_call.1} parent=1 // pred_check_branch
      %173 = sbr.rel (0) target = $region57
    $region56: #{tpu_custom_call.1} parent=1 // pred_region
      %174 = dma.done [#allocation5], 512
    $region57: #{tpu_custom_call.1} parent=1 // pred_fallthru
      _
    // Predicated region
    $region58: #{tpu_custom_call.1} parent=1 // pred_check
      _
    $region59: #{tpu_custom_call.1} parent=1 // pred_check_branch
      %176 = sbr.rel (0) target = $region61
    $region60: #{tpu_custom_call.1} parent=1 // pred_region
      %177 = dma.done [#allocation8], 6144
    $region61: #{tpu_custom_call.1} parent=1 // pred_fallthru
      _
    // Predicated region
    $region62: #{tpu_custom_call.1} parent=1 // pred_check
      _
    $region63: #{tpu_custom_call.1} parent=1 // pred_check_branch
      %179 = sbr.rel (0) target = $region65
    $region64: #{tpu_custom_call.1} parent=1 // pred_region
      %180 = dma.done [#allocation8], 36864
    $region65: #{tpu_custom_call.1} parent=1 // pred_fallthru
      _
    // Predicated region
    $region66: #{tpu_custom_call.1} parent=1 // pred_check
      _
    $region67: #{tpu_custom_call.1} parent=1 // pred_check_branch
      %182 = sbr.rel (0) target = $region69
    $region68: #{tpu_custom_call.1} parent=1 // pred_region
      %183 = dma.done [#allocation11], 192
    $region69: #{tpu_custom_call.1} parent=1 // pred_fallthru
      _
    // Predicated region
    $region70: #{tpu_custom_call.1} parent=1 // pred_check
      _
    $region71: #{tpu_custom_call.1} parent=1 // pred_check_branch
      %185 = sbr.rel (0) target = $region73
    $region72: #{tpu_custom_call.1} parent=1 // pred_region
      %186 = dma.done [#allocation11], 6144
    $region73: #{tpu_custom_call.1} parent=1 // pred_fallthru
      _
    // Predicated region
    $region74: #{tpu_custom_call.1} parent=1 // pred_check
      _
    $region75: #{tpu_custom_call.1} parent=1 // pred_check_branch
      %188 = sbr.rel (0) target = $region77
    $region76: #{tpu_custom_call.1} parent=1 // pred_region
      %189 = dma.done [#allocation14], 192
    $region77: #{tpu_custom_call.1} parent=1 // pred_fallthru
      _
    // Predicated region
    $region78: #{tpu_custom_call.1} parent=1 // pred_check
      _
    $region79: #{tpu_custom_call.1} parent=1 // pred_check_branch
      %191 = sbr.rel (0) target = $region81
    $region80: #{tpu_custom_call.1} parent=1 // pred_region
      %192 = dma.done [#allocation14], 3072
    $region81: #{tpu_custom_call.1} parent=1 // pred_fallthru
      _
    // Predicated region
    $region82: #{tpu_custom_call.1} parent=1 // pred_check
      _
    $region83: #{tpu_custom_call.1} parent=1 // pred_check_branch
      %194 = sbr.rel (0) target = $region85
    $region84: #{tpu_custom_call.1} parent=1 // pred_region
      %195 = dma.done [#allocation17], 3072
    $region85: #{tpu_custom_call.1} parent=1 // pred_fallthru
      _
    // Predicated region
    $region86: #{tpu_custom_call.1} parent=1 // pred_check
      _
    $region87: #{tpu_custom_call.1} parent=1 // pred_check_branch
      %197 = sbr.rel (0) target = $region89
    $region88: #{tpu_custom_call.1} parent=1 // pred_region
      %198 = dma.done [#allocation17], 16
    $region89: #{tpu_custom_call.1} parent=1 // pred_fallthru
      _
    // Predicated region
    $region90: #{tpu_custom_call.1} parent=1 // pred_check
      _
    $region91: #{tpu_custom_call.1} parent=1 // pred_check_branch
      %200 = sbr.rel (0) target = $region93
    $region92: #{tpu_custom_call.1} parent=1 // pred_region
      %201 = dma.done [#allocation20], 1280
    $region93: #{tpu_custom_call.1} parent=1 // pred_fallthru
      _
    // Predicated region
    $region94: #{tpu_custom_call.1} parent=1 // pred_check
      _
    $region95: #{tpu_custom_call.1} parent=1 // pred_check_branch
      %203 = sbr.rel (0) target = $region97
    $region96: #{tpu_custom_call.1} parent=1 // pred_region
      %204 = dma.done [#allocation20], 16
    $region97: #{tpu_custom_call.1} parent=1 // pred_fallthru
      _
    // Predicated region
    $region98: #{tpu_custom_call.1} parent=1 // pred_check
      _
    $region99: #{tpu_custom_call.1} parent=1 // pred_check_branch
      %206 = sbr.rel (0) target = $region101
    $region100: #{tpu_custom_call.1} parent=1 // pred_region
      %207 = dma.done [#allocation23], 384
    $region101: #{tpu_custom_call.1} parent=1 // pred_fallthru
      _
    // Predicated region
    $region102: #{tpu_custom_call.1} parent=1 // pred_check
      _
    $region103: #{tpu_custom_call.1} parent=1 // pred_check_branch
      %209 = sbr.rel (0) target = $region105
    $region104: #{tpu_custom_call.1} parent=1 // pred_region
      %210 = dma.done [#allocation23], 16
    $region105: #{tpu_custom_call.1} parent=1 // pred_fallthru
      _
    %p212 = scmp.eq.s32.totalorder 0, 0
    // Predicated region
    $region106: #{tpu_custom_call.1} parent=1 // pred_check
      %p213 = pneg %p212
    $region107: #{tpu_custom_call.1} parent=1 // pred_check_branch
      %215 = sbr.rel (%p213) target = $region109
    $region108: #{tpu_custom_call.1} parent=1 // pred_region
      %216 = vst [vmem:[#allocation2] sm:$0xff] 0.0
      %217 = vst [vmem:[#allocation2 + $0x8] sm:$0xff] 0.0
      %218 = vst [vmem:[#allocation2 + $0x10] sm:$0xff] 0.0
      %219 = vst [vmem:[#allocation3] sm:$0xff] 0.0
      %220 = vst [vmem:[#allocation3 + $0x8] sm:$0xff] 0.0
      %221 = vst [vmem:[#allocation3 + $0x10] sm:$0xff] 0.0
    $region109: #{tpu_custom_call.1} parent=1 // pred_fallthru
      _
    %v222 = vld [vmem:[#allocation4] sm:$0xf]
    %v223 = vld [vmem:[#allocation4 + $0x4] sm:$0xf]
    %v224 = vld [vmem:[#allocation4 + $0x8] sm:$0xf]
    %v225 = vld [vmem:[#allocation4 + $0xc] sm:$0xf]
    %v226 = vld [vmem:[#allocation4 + $0x10] sm:$0xf]
    %v227 = vld [vmem:[#allocation4 + $0x14] sm:$0xf]
    %v228 = vld [vmem:[#allocation4 + $0x18] sm:$0xf]
    %v229 = vld [vmem:[#allocation4 + $0x1c] sm:$0xf]
    %v230 = vld [vmem:[#allocation7] sm:$0xff]
    %v231 = vld [vmem:[#allocation7 + $0x8] sm:$0xff]
    %v232 = vld [vmem:[#allocation7 + $0x10] sm:$0xff]
    %v233 = vld [vmem:[#allocation7 + $0x18] sm:$0xff]
    %v234 = vld [vmem:[#allocation7 + $0x20] sm:$0xff]
    %v235 = vld [vmem:[#allocation7 + $0x28] sm:$0xff]
    %v236 = vld [vmem:[#allocation7 + $0x30] sm:$0xff]
    %v237 = vld [vmem:[#allocation7 + $0x38] sm:$0xff]
    %v238 = vld [vmem:[#allocation7 + $0x40] sm:$0xff]
    %v239 = vld [vmem:[#allocation7 + $0x48] sm:$0xff]
    %v240 = vld [vmem:[#allocation7 + $0x50] sm:$0xff]
    %v241 = vld [vmem:[#allocation7 + $0x58] sm:$0xff]
    %v242 = vld [vmem:[#allocation7 + $0x60] sm:$0xff]
    %v243 = vld [vmem:[#allocation7 + $0x68] sm:$0xff]
    %v244 = vld [vmem:[#allocation7 + $0x70] sm:$0xff]
    %v245 = vld [vmem:[#allocation7 + $0x78] sm:$0xff]
    %v246 = vld [vmem:[#allocation7 + $0x80] sm:$0xff]
    %v247 = vld [vmem:[#allocation7 + $0x88] sm:$0xff]
    %v248 = vld [vmem:[#allocation7 + $0x90] sm:$0xff]
    %v249 = vld [vmem:[#allocation7 + $0x98] sm:$0xff]
    %v250 = vld [vmem:[#allocation7 + $0xa0] sm:$0xff]
    %v251 = vld [vmem:[#allocation7 + $0xa8] sm:$0xff]
    %v252 = vld [vmem:[#allocation7 + $0xb0] sm:$0xff]
    %v253 = vld [vmem:[#allocation7 + $0xb8] sm:$0xff]
    %v254 = vld [vmem:[#allocation7 + $0xc0] sm:$0xff]
    %v255 = vld [vmem:[#allocation7 + $0xc8] sm:$0xff]
    %v256 = vld [vmem:[#allocation7 + $0xd0] sm:$0xff]
    %v257 = vld [vmem:[#allocation7 + $0xd8] sm:$0xff]
    %v258 = vld [vmem:[#allocation7 + $0xe0] sm:$0xff]
    %v259 = vld [vmem:[#allocation7 + $0xe8] sm:$0xff]
    %v260 = vld [vmem:[#allocation7 + $0xf0] sm:$0xff]
    %v261 = vld [vmem:[#allocation7 + $0xf8] sm:$0xff]
    %v262 = vld [vmem:[#allocation7 + $0x100] sm:$0xff]
    %v263 = vld [vmem:[#allocation7 + $0x108] sm:$0xff]
    %v264 = vld [vmem:[#allocation7 + $0x110] sm:$0xff]
    %v265 = vld [vmem:[#allocation7 + $0x118] sm:$0xff]
    %v266 = vld [vmem:[#allocation7 + $0x120] sm:$0xff]
    %v267 = vld [vmem:[#allocation7 + $0x128] sm:$0xff]
    %v268 = vld [vmem:[#allocation7 + $0x130] sm:$0xff]
    %v269 = vld [vmem:[#allocation7 + $0x138] sm:$0xff]
    %v270 = vld [vmem:[#allocation7 + $0x140] sm:$0xff]
    %v271 = vld [vmem:[#allocation7 + $0x148] sm:$0xff]
    %v272 = vld [vmem:[#allocation7 + $0x150] sm:$0xff]
    %v273 = vld [vmem:[#allocation7 + $0x158] sm:$0xff]
    %v274 = vld [vmem:[#allocation7 + $0x160] sm:$0xff]
    %v275 = vld [vmem:[#allocation7 + $0x168] sm:$0xff]
    %v276 = vld [vmem:[#allocation7 + $0x170] sm:$0xff]
    %v277 = vld [vmem:[#allocation7 + $0x178] sm:$0xff]
    %v278 = vld [vmem:[#allocation10] sm:$0xff]
    %v279 = vld [vmem:[#allocation10 + $0x8] sm:$0xf]
    %v282 = vlaneseq
    %v283 = vshrl.u32 %v282, 7
    %v284 = vsub.s32 0, %v283
    %v285 = vrot.slane %v278, %v284
    %v286 = vlaneseq
    %v287 = vshrl.u32 %v286, 7
    %v288 = vsub.s32 1, %v287
    %v289 = vrot.slane %v278, %v288
    %v290 = vlaneseq
    %v291 = vshrl.u32 %v290, 7
    %v292 = vsub.s32 2, %v291
    %v293 = vrot.slane %v278, %v292
    %v294 = vlaneseq
    %v295 = vshrl.u32 %v294, 7
    %v296 = vsub.s32 3, %v295
    %v297 = vrot.slane %v278, %v296
    %v298 = vlaneseq
    %v299 = vshrl.u32 %v298, 7
    %v300 = vsub.s32 4, %v299
    %v301 = vrot.slane %v278, %v300
    %v302 = vlaneseq
    %v303 = vshrl.u32 %v302, 7
    %v304 = vsub.s32 5, %v303
    %v305 = vrot.slane %v278, %v304
    %v306 = vlaneseq
    %v307 = vshrl.u32 %v306, 7
    %v308 = vsub.s32 6, %v307
    %v309 = vrot.slane %v278, %v308
    %v310 = vlaneseq
    %v311 = vshrl.u32 %v310, 7
    %v312 = vsub.s32 7, %v311
    %v313 = vrot.slane %v278, %v312
    %v314 = vlaneseq
    %v315 = vshrl.u32 %v314, 7
    %v316 = vsub.s32 0, %v315
    %v317 = vrot.slane %v279, %v316
    %v318 = vlaneseq
    %v319 = vshrl.u32 %v318, 7
    %v320 = vsub.s32 1, %v319
    %v321 = vrot.slane %v279, %v320
    %v322 = vlaneseq
    %v323 = vshrl.u32 %v322, 7
    %v324 = vsub.s32 2, %v323
    %v325 = vrot.slane %v279, %v324
    %v326 = vlaneseq
    %v327 = vshrl.u32 %v326, 7
    %v328 = vsub.s32 3, %v327
    %v329 = vrot.slane %v279, %v328
    %v350 = vunpack.c.l.b16 %v222
    %v351 = vunpack.c.l.b16 %v223
    %v352 = vunpack.c.l.b16 %v224
    %v353 = vunpack.c.l.b16 %v225
    %v354 = vunpack.c.l.b16 %v226
    %v355 = vunpack.c.l.b16 %v227
    %v356 = vunpack.c.l.b16 %v228
    %v357 = vunpack.c.l.b16 %v229
    %v358 = vpack.c.b16 %v351, %v350
    %v359 = vpack.c.b16 %v353, %v352
    %v360 = vpack.c.b16 %v355, %v354
    %v361 = vpack.c.b16 %v357, %v356
    %v410 = vunpack.c.l.b16 %v230
    %v411 = vunpack.c.h.b16 %v230
    %v412 = vunpack.c.l.b16 %v231
    %v413 = vunpack.c.h.b16 %v231
    %v414 = vunpack.c.l.b16 %v232
    %v415 = vunpack.c.h.b16 %v232
    %v416 = vunpack.c.l.b16 %v233
    %v417 = vunpack.c.h.b16 %v233
    %v418 = vunpack.c.l.b16 %v234
    %v419 = vunpack.c.h.b16 %v234
    %v420 = vunpack.c.l.b16 %v235
    %v421 = vunpack.c.h.b16 %v235
    %v422 = vunpack.c.l.b16 %v236
    %v423 = vunpack.c.h.b16 %v236
    %v424 = vunpack.c.l.b16 %v237
    %v425 = vunpack.c.h.b16 %v237
    %v426 = vunpack.c.l.b16 %v238
    %v427 = vunpack.c.h.b16 %v238
    %v428 = vunpack.c.l.b16 %v239
    %v429 = vunpack.c.h.b16 %v239
    %v430 = vunpack.c.l.b16 %v240
    %v431 = vunpack.c.h.b16 %v240
    %v432 = vunpack.c.l.b16 %v241
    %v433 = vunpack.c.h.b16 %v241
    %v434 = vunpack.c.l.b16 %v242
    %v435 = vunpack.c.h.b16 %v242
    %v436 = vunpack.c.l.b16 %v243
    %v437 = vunpack.c.h.b16 %v243
    %v438 = vunpack.c.l.b16 %v244
    %v439 = vunpack.c.h.b16 %v244
    %v440 = vunpack.c.l.b16 %v245
    %v441 = vunpack.c.h.b16 %v245
    %v442 = vunpack.c.l.b16 %v246
    %v443 = vunpack.c.h.b16 %v246
    %v444 = vunpack.c.l.b16 %v247
    %v445 = vunpack.c.h.b16 %v247
    %v446 = vunpack.c.l.b16 %v248
    %v447 = vunpack.c.h.b16 %v248
    %v448 = vunpack.c.l.b16 %v249
    %v449 = vunpack.c.h.b16 %v249
    %v450 = vunpack.c.l.b16 %v250
    %v451 = vunpack.c.h.b16 %v250
    %v452 = vunpack.c.l.b16 %v251
    %v453 = vunpack.c.h.b16 %v251
    %v454 = vunpack.c.l.b16 %v252
    %v455 = vunpack.c.h.b16 %v252
    %v456 = vunpack.c.l.b16 %v253
    %v457 = vunpack.c.h.b16 %v253
    %v458 = vunpack.c.l.b16 %v254
    %v459 = vunpack.c.h.b16 %v254
    %v460 = vunpack.c.l.b16 %v255
    %v461 = vunpack.c.h.b16 %v255
    %v462 = vunpack.c.l.b16 %v256
    %v463 = vunpack.c.h.b16 %v256
    %v464 = vunpack.c.l.b16 %v257
    %v465 = vunpack.c.h.b16 %v257
    %v466 = vunpack.c.l.b16 %v258
    %v467 = vunpack.c.h.b16 %v258
    %v468 = vunpack.c.l.b16 %v259
    %v469 = vunpack.c.h.b16 %v259
    %v470 = vunpack.c.l.b16 %v260
    %v471 = vunpack.c.h.b16 %v260
    %v472 = vunpack.c.l.b16 %v261
    %v473 = vunpack.c.h.b16 %v261
    %v474 = vunpack.c.l.b16 %v262
    %v475 = vunpack.c.h.b16 %v262
    %v476 = vunpack.c.l.b16 %v263
    %v477 = vunpack.c.h.b16 %v263
    %v478 = vunpack.c.l.b16 %v264
    %v479 = vunpack.c.h.b16 %v264
    %v480 = vunpack.c.l.b16 %v265
    %v481 = vunpack.c.h.b16 %v265
    %v482 = vunpack.c.l.b16 %v266
    %v483 = vunpack.c.h.b16 %v266
    %v484 = vunpack.c.l.b16 %v267
    %v485 = vunpack.c.h.b16 %v267
    %v486 = vunpack.c.l.b16 %v268
    %v487 = vunpack.c.h.b16 %v268
    %v488 = vunpack.c.l.b16 %v269
    %v489 = vunpack.c.h.b16 %v269
    %v490 = vunpack.c.l.b16 %v270
    %v491 = vunpack.c.h.b16 %v270
    %v492 = vunpack.c.l.b16 %v271
    %v493 = vunpack.c.h.b16 %v271
    %v494 = vunpack.c.l.b16 %v272
    %v495 = vunpack.c.h.b16 %v272
    %v496 = vunpack.c.l.b16 %v273
    %v497 = vunpack.c.h.b16 %v273
    %v498 = vunpack.c.l.b16 %v274
    %v499 = vunpack.c.h.b16 %v274
    %v500 = vunpack.c.l.b16 %v275
    %v501 = vunpack.c.h.b16 %v275
    %v502 = vunpack.c.l.b16 %v276
    %v503 = vunpack.c.h.b16 %v276
    %v504 = vunpack.c.l.b16 %v277
    %v505 = vunpack.c.h.b16 %v277
    %v506 = vpack.c.b16 %v422, %v410
    %v507 = vpack.c.b16 %v423, %v411
    %v508 = vpack.c.b16 %v424, %v412
    %v509 = vpack.c.b16 %v425, %v413
    %v510 = vpack.c.b16 %v426, %v414
    %v511 = vpack.c.b16 %v427, %v415
    %v512 = vpack.c.b16 %v428, %v416
    %v513 = vpack.c.b16 %v429, %v417
    %v514 = vpack.c.b16 %v430, %v418
    %v515 = vpack.c.b16 %v431, %v419
    %v516 = vpack.c.b16 %v432, %v420
    %v517 = vpack.c.b16 %v433, %v421
    %v518 = vpack.c.b16 %v446, %v434
    %v519 = vpack.c.b16 %v447, %v435
    %v520 = vpack.c.b16 %v448, %v436
    %v521 = vpack.c.b16 %v449, %v437
    %v522 = vpack.c.b16 %v450, %v438
    %v523 = vpack.c.b16 %v451, %v439
    %v524 = vpack.c.b16 %v452, %v440
    %v525 = vpack.c.b16 %v453, %v441
    %v526 = vpack.c.b16 %v454, %v442
    %v527 = vpack.c.b16 %v455, %v443
    %v528 = vpack.c.b16 %v456, %v444
    %v529 = vpack.c.b16 %v457, %v445
    %v530 = vpack.c.b16 %v470, %v458
    %v531 = vpack.c.b16 %v471, %v459
    %v532 = vpack.c.b16 %v472, %v460
    %v533 = vpack.c.b16 %v473, %v461
    %v534 = vpack.c.b16 %v474, %v462
    %v535 = vpack.c.b16 %v475, %v463
    %v536 = vpack.c.b16 %v476, %v464
    %v537 = vpack.c.b16 %v477, %v465
    %v538 = vpack.c.b16 %v478, %v466
    %v539 = vpack.c.b16 %v479, %v467
    %v540 = vpack.c.b16 %v480, %v468
    %v541 = vpack.c.b16 %v481, %v469
    %v542 = vpack.c.b16 %v494, %v482
    %v543 = vpack.c.b16 %v495, %v483
    %v544 = vpack.c.b16 %v496, %v484
    %v545 = vpack.c.b16 %v497, %v485
    %v546 = vpack.c.b16 %v498, %v486
    %v547 = vpack.c.b16 %v499, %v487
    %v548 = vpack.c.b16 %v500, %v488
    %v549 = vpack.c.b16 %v501, %v489
    %v550 = vpack.c.b16 %v502, %v490
    %v551 = vpack.c.b16 %v503, %v491
    %v552 = vpack.c.b16 %v504, %v492
    %v553 = vpack.c.b16 %v505, %v493
    %vm602 = vcmask 523264
    %v604 = vsel %vm602, %v358, 0
    %v607 = vsel %vm602, %v359, 0
    %v610 = vsel %vm602, %v360, 0
    %v613 = vsel %vm602, %v361, 0
    %615 = vmatprep.subr.bf16.mxu0 %v507
    %616 = vmatpush1.bf16.msra.mxu0 %v506
    %617 = vmatprep.subr.bf16.mxu0 %v519
    %618 = vmatpush1.bf16.msra.mxu0 %v518
    %619 = vmatprep.subr.bf16.mxu0 %v531
    %620 = vmatpush1.bf16.msra.mxu0 %v530
    %621 = vmatprep.subr.bf16.mxu0 %v543
    %622 = vmatpush1.bf16.msra.mxu0 %v542
    %623 = vmatprep.subr.bf16.mxu0 0
    %624 = vmatpush1.bf16.msra.mxu0 0
    %625 = vmatprep.subr.bf16.mxu0 0
    %626 = vmatpush1.bf16.msra.mxu0 0
    %627 = vmatprep.subr.bf16.mxu0 0
    %628 = vmatpush1.bf16.msra.mxu0 0
    %629 = vmatprep.subr.bf16.mxu0 0
    %630 = vmatpush1.bf16.msra.mxu0 0
    %631 = vmatprep.subr.bf16.mxu0 0
    %632 = vmatpush1.bf16.msra.mxu0 0
    %633 = vmatprep.subr.bf16.mxu0 0
    %634 = vmatpush1.bf16.msra.mxu0 0
    %635 = vmatprep.subr.bf16.mxu0 0
    %636 = vmatpush1.bf16.msra.mxu0 0
    %637 = vmatprep.subr.bf16.mxu0 0
    %638 = vmatpush1.bf16.msra.mxu0 0
    %639 = vmatprep.subr.bf16.mxu0 0
    %640 = vmatpush1.bf16.msra.mxu0 0
    %641 = vmatprep.subr.bf16.mxu0 0
    %642 = vmatpush1.bf16.msra.mxu0 0
    %643 = vmatprep.subr.bf16.mxu0 0
    %644 = vmatpush1.bf16.msra.mxu0 0
    %645 = vmatprep.subr.bf16.mxu0 0
    %646 = vmatpush1.bf16.msra.mxu0 0
    %647 = vmatprep.mubr.bf16.mxu0 0
    %648 = vmatmul.mubr.bf16.gmra.mrb[0].mxu0 %v604
    %v649 = vpop.f32.mrb[0].mxu0
    %v650 = vadd.f32 %v285, %v649
    %v651 = vpop.f32.mrb[0].mxu0
    %v652 = vadd.f32 %v289, %v651
    %v653 = vpop.f32.mrb[0].mxu0
    %v654 = vadd.f32 %v285, %v653
    %v655 = vpop.f32.mrb[0].mxu0
    %v656 = vadd.f32 %v289, %v655
    %657 = vmatprep.mubr.bf16.mxu0 0
    %658 = vmatmul.mubr.bf16.gmra.mrb[0].mxu0 %v607
    %v659 = vpop.f32.mrb[0].mxu0
    %v660 = vadd.f32 %v285, %v659
    %v661 = vpop.f32.mrb[0].mxu0
    %v662 = vadd.f32 %v289, %v661
    %v663 = vpop.f32.mrb[0].mxu0
    %v664 = vadd.f32 %v285, %v663
    %v665 = vpop.f32.mrb[0].mxu0
    %v666 = vadd.f32 %v289, %v665
    %667 = vmatprep.mubr.bf16.mxu0 0
    %668 = vmatmul.mubr.bf16.gmra.mrb[0].mxu0 %v610
    %v669 = vpop.f32.mrb[0].mxu0
    %v670 = vadd.f32 %v285, %v669
    %v671 = vpop.f32.mrb[0].mxu0
    %v672 = vadd.f32 %v289, %v671
    %v673 = vpop.f32.mrb[0].mxu0
    %v674 = vadd.f32 %v285, %v673
    %v675 = vpop.f32.mrb[0].mxu0
    %v676 = vadd.f32 %v289, %v675
    %677 = vmatprep.mubr.bf16.mxu0 0
    %678 = vmatmul.mubr.bf16.gmra.mrb[0].mxu0 %v613
    %v679 = vpop.f32.mrb[0].mxu0
    %v680 = vadd.f32 %v285, %v679
    %v681 = vpop.f32.mrb[0].mxu0
    %v682 = vadd.f32 %v289, %v681
    %v683 = vpop.f32.mrb[0].mxu0
    %v684 = vadd.f32 %v285, %v683
    %v685 = vpop.f32.mrb[0].mxu0
    %v686 = vadd.f32 %v289, %v685
    %687 = vdwg.mxu0
    %688 = vmatprep.subr.bf16.mxu0 %v509
    %689 = vmatpush1.bf16.msra.mxu0 %v508
    %690 = vmatprep.subr.bf16.mxu0 %v521
    %691 = vmatpush1.bf16.msra.mxu0 %v520
    %692 = vmatprep.subr.bf16.mxu0 %v533
    %693 = vmatpush1.bf16.msra.mxu0 %v532
    %694 = vmatprep.subr.bf16.mxu0 %v545
    %695 = vmatpush1.bf16.msra.mxu0 %v544
    %696 = vmatprep.subr.bf16.mxu0 0
    %697 = vmatpush1.bf16.msra.mxu0 0
    %698 = vmatprep.subr.bf16.mxu0 0
    %699 = vmatpush1.bf16.msra.mxu0 0
    %700 = vmatprep.subr.bf16.mxu0 0
    %701 = vmatpush1.bf16.msra.mxu0 0
    %702 = vmatprep.subr.bf16.mxu0 0
    %703 = vmatpush1.bf16.msra.mxu0 0
    %704 = vmatprep.subr.bf16.mxu0 0
    %705 = vmatpush1.bf16.msra.mxu0 0
    %706 = vmatprep.subr.bf16.mxu0 0
    %707 = vmatpush1.bf16.msra.mxu0 0
    %708 = vmatprep.subr.bf16.mxu0 0
    %709 = vmatpush1.bf16.msra.mxu0 0
    %710 = vmatprep.subr.bf16.mxu0 0
    %711 = vmatpush1.bf16.msra.mxu0 0
    %712 = vmatprep.subr.bf16.mxu0 0
    %713 = vmatpush1.bf16.msra.mxu0 0
    %714 = vmatprep.subr.bf16.mxu0 0
    %715 = vmatpush1.bf16.msra.mxu0 0
    %716 = vmatprep.subr.bf16.mxu0 0
    %717 = vmatpush1.bf16.msra.mxu0 0
    %718 = vmatprep.subr.bf16.mxu0 0
    %719 = vmatpush1.bf16.msra.mxu0 0
    %720 = vmatprep.mubr.bf16.mxu0 0
    %721 = vmatmul.mubr.bf16.gmra.mrb[0].mxu0 %v604
    %v722 = vpop.f32.mrb[0].mxu0
    %v723 = vadd.f32 %v293, %v722
    %v724 = vpop.f32.mrb[0].mxu0
    %v725 = vadd.f32 %v297, %v724
    %v726 = vpop.f32.mrb[0].mxu0
    %v727 = vadd.f32 %v293, %v726
    %v728 = vpop.f32.mrb[0].mxu0
    %v729 = vadd.f32 %v297, %v728
    %730 = vmatprep.mubr.bf16.mxu0 0
    %731 = vmatmul.mubr.bf16.gmra.mrb[0].mxu0 %v607
    %v732 = vpop.f32.mrb[0].mxu0
    %v733 = vadd.f32 %v293, %v732
    %v734 = vpop.f32.mrb[0].mxu0
    %v735 = vadd.f32 %v297, %v734
    %v736 = vpop.f32.mrb[0].mxu0
    %v737 = vadd.f32 %v293, %v736
    %v738 = vpop.f32.mrb[0].mxu0
    %v739 = vadd.f32 %v297, %v738
    %740 = vmatprep.mubr.bf16.mxu0 0
    %741 = vmatmul.mubr.bf16.gmra.mrb[0].mxu0 %v610
    %v742 = vpop.f32.mrb[0].mxu0
    %v743 = vadd.f32 %v293, %v742
    %v744 = vpop.f32.mrb[0].mxu0
    %v745 = vadd.f32 %v297, %v744
    %v746 = vpop.f32.mrb[0].mxu0
    %v747 = vadd.f32 %v293, %v746
    %v748 = vpop.f32.mrb[0].mxu0
    %v749 = vadd.f32 %v297, %v748
    %750 = vmatprep.mubr.bf16.mxu0 0
    %751 = vmatmul.mubr.bf16.gmra.mrb[0].mxu0 %v613
    %v752 = vpop.f32.mrb[0].mxu0
    %v753 = vadd.f32 %v293, %v752
    %v754 = vpop.f32.mrb[0].mxu0
    %v755 = vadd.f32 %v297, %v754
    %v756 = vpop.f32.mrb[0].mxu0
    %v757 = vadd.f32 %v293, %v756
    %v758 = vpop.f32.mrb[0].mxu0
    %v759 = vadd.f32 %v297, %v758
    %760 = vdwg.mxu0
    %761 = vmatprep.subr.bf16.mxu0 %v511
    %762 = vmatpush1.bf16.msra.mxu0 %v510
    %763 = vmatprep.subr.bf16.mxu0 %v523
    %764 = vmatpush1.bf16.msra.mxu0 %v522
    %765 = vmatprep.subr.bf16.mxu0 %v535
    %766 = vmatpush1.bf16.msra.mxu0 %v534
    %767 = vmatprep.subr.bf16.mxu0 %v547
    %768 = vmatpush1.bf16.msra.mxu0 %v546
    %769 = vmatprep.subr.bf16.mxu0 0
    %770 = vmatpush1.bf16.msra.mxu0 0
    %771 = vmatprep.subr.bf16.mxu0 0
    %772 = vmatpush1.bf16.msra.mxu0 0
    %773 = vmatprep.subr.bf16.mxu0 0
    %774 = vmatpush1.bf16.msra.mxu0 0
    %775 = vmatprep.subr.bf16.mxu0 0
    %776 = vmatpush1.bf16.msra.mxu0 0
    %777 = vmatprep.subr.bf16.mxu0 0
    %778 = vmatpush1.bf16.msra.mxu0 0
    %779 = vmatprep.subr.bf16.mxu0 0
    %780 = vmatpush1.bf16.msra.mxu0 0
    %781 = vmatprep.subr.bf16.mxu0 0
    %782 = vmatpush1.bf16.msra.mxu0 0
    %783 = vmatprep.subr.bf16.mxu0 0
    %784 = vmatpush1.bf16.msra.mxu0 0
    %785 = vmatprep.subr.bf16.mxu0 0
    %786 = vmatpush1.bf16.msra.mxu0 0
    %787 = vmatprep.subr.bf16.mxu0 0
    %788 = vmatpush1.bf16.msra.mxu0 0
    %789 = vmatprep.subr.bf16.mxu0 0
    %790 = vmatpush1.bf16.msra.mxu0 0
    %791 = vmatprep.subr.bf16.mxu0 0
    %792 = vmatpush1.bf16.msra.mxu0 0
    %793 = vmatprep.mubr.bf16.mxu0 0
    %794 = vmatmul.mubr.bf16.gmra.mrb[0].mxu0 %v604
    %v795 = vpop.f32.mrb[0].mxu0
    %v796 = vadd.f32 %v301, %v795
    %v797 = vpop.f32.mrb[0].mxu0
    %v798 = vadd.f32 %v305, %v797
    %v799 = vpop.f32.mrb[0].mxu0
    %v800 = vadd.f32 %v301, %v799
    %v801 = vpop.f32.mrb[0].mxu0
    %v802 = vadd.f32 %v305, %v801
    %803 = vmatprep.mubr.bf16.mxu0 0
    %804 = vmatmul.mubr.bf16.gmra.mrb[0].mxu0 %v607
    %v805 = vpop.f32.mrb[0].mxu0
    %v806 = vadd.f32 %v301, %v805
    %v807 = vpop.f32.mrb[0].mxu0
    %v808 = vadd.f32 %v305, %v807
    %v809 = vpop.f32.mrb[0].mxu0
    %v810 = vadd.f32 %v301, %v809
    %v811 = vpop.f32.mrb[0].mxu0
    %v812 = vadd.f32 %v305, %v811
    %813 = vmatprep.mubr.bf16.mxu0 0
    %814 = vmatmul.mubr.bf16.gmra.mrb[0].mxu0 %v610
    %v815 = vpop.f32.mrb[0].mxu0
    %v816 = vadd.f32 %v301, %v815
    %v817 = vpop.f32.mrb[0].mxu0
    %v818 = vadd.f32 %v305, %v817
    %v819 = vpop.f32.mrb[0].mxu0
    %v820 = vadd.f32 %v301, %v819
    %v821 = vpop.f32.mrb[0].mxu0
    %v822 = vadd.f32 %v305, %v821
    %823 = vmatprep.mubr.bf16.mxu0 0
    %824 = vmatmul.mubr.bf16.gmra.mrb[0].mxu0 %v613
    %v825 = vpop.f32.mrb[0].mxu0
    %v826 = vadd.f32 %v301, %v825
    %v827 = vpop.f32.mrb[0].mxu0
    %v828 = vadd.f32 %v305, %v827
    %v829 = vpop.f32.mrb[0].mxu0
    %v830 = vadd.f32 %v301, %v829
    %v831 = vpop.f32.mrb[0].mxu0
    %v832 = vadd.f32 %v305, %v831
    %833 = vdwg.mxu0
    %834 = vmatprep.subr.bf16.mxu0 %v513
    %835 = vmatpush1.bf16.msra.mxu0 %v512
    %836 = vmatprep.subr.bf16.mxu0 %v525
    %837 = vmatpush1.bf16.msra.mxu0 %v524
    %838 = vmatprep.subr.bf16.mxu0 %v537
    %839 = vmatpush1.bf16.msra.mxu0 %v536
    %840 = vmatprep.subr.bf16.mxu0 %v549
    %841 = vmatpush1.bf16.msra.mxu0 %v548
    %842 = vmatprep.subr.bf16.mxu0 0
    %843 = vmatpush1.bf16.msra.mxu0 0
    %844 = vmatprep.subr.bf16.mxu0 0
    %845 = vmatpush1.bf16.msra.mxu0 0
    %846 = vmatprep.subr.bf16.mxu0 0
    %847 = vmatpush1.bf16.msra.mxu0 0
    %848 = vmatprep.subr.bf16.mxu0 0
    %849 = vmatpush1.bf16.msra.mxu0 0
    %850 = vmatprep.subr.bf16.mxu0 0
    %851 = vmatpush1.bf16.msra.mxu0 0
    %852 = vmatprep.subr.bf16.mxu0 0
    %853 = vmatpush1.bf16.msra.mxu0 0
    %854 = vmatprep.subr.bf16.mxu0 0
    %855 = vmatpush1.bf16.msra.mxu0 0
    %856 = vmatprep.subr.bf16.mxu0 0
    %857 = vmatpush1.bf16.msra.mxu0 0
    %858 = vmatprep.subr.bf16.mxu0 0
    %859 = vmatpush1.bf16.msra.mxu0 0
    %860 = vmatprep.subr.bf16.mxu0 0
    %861 = vmatpush1.bf16.msra.mxu0 0
    %862 = vmatprep.subr.bf16.mxu0 0
    %863 = vmatpush1.bf16.msra.mxu0 0
    %864 = vmatprep.subr.bf16.mxu0 0
    %865 = vmatpush1.bf16.msra.mxu0 0
    %866 = vmatprep.mubr.bf16.mxu0 0
    %867 = vmatmul.mubr.bf16.gmra.mrb[0].mxu0 %v604
    %v868 = vpop.f32.mrb[0].mxu0
    %v869 = vadd.f32 %v309, %v868
    %v870 = vpop.f32.mrb[0].mxu0
    %v871 = vadd.f32 %v313, %v870
    %v872 = vpop.f32.mrb[0].mxu0
    %v873 = vadd.f32 %v309, %v872
    %v874 = vpop.f32.mrb[0].mxu0
    %v875 = vadd.f32 %v313, %v874
    %876 = vmatprep.mubr.bf16.mxu0 0
    %877 = vmatmul.mubr.bf16.gmra.mrb[0].mxu0 %v607
    %v878 = vpop.f32.mrb[0].mxu0
    %v879 = vadd.f32 %v309, %v878
    %v880 = vpop.f32.mrb[0].mxu0
    %v881 = vadd.f32 %v313, %v880
    %v882 = vpop.f32.mrb[0].mxu0
    %v883 = vadd.f32 %v309, %v882
    %v884 = vpop.f32.mrb[0].mxu0
    %v885 = vadd.f32 %v313, %v884
    %886 = vmatprep.mubr.bf16.mxu0 0
    %887 = vmatmul.mubr.bf16.gmra.mrb[0].mxu0 %v610
    %v888 = vpop.f32.mrb[0].mxu0
    %v889 = vadd.f32 %v309, %v888
    %v890 = vpop.f32.mrb[0].mxu0
    %v891 = vadd.f32 %v313, %v890
    %v892 = vpop.f32.mrb[0].mxu0
    %v893 = vadd.f32 %v309, %v892
    %v894 = vpop.f32.mrb[0].mxu0
    %v895 = vadd.f32 %v313, %v894
    %896 = vmatprep.mubr.bf16.mxu0 0
    %897 = vmatmul.mubr.bf16.gmra.mrb[0].mxu0 %v613
    %v898 = vpop.f32.mrb[0].mxu0
    %v899 = vadd.f32 %v309, %v898
    %v900 = vpop.f32.mrb[0].mxu0
    %v901 = vadd.f32 %v313, %v900
    %v902 = vpop.f32.mrb[0].mxu0
    %v903 = vadd.f32 %v309, %v902
    %v904 = vpop.f32.mrb[0].mxu0
    %v905 = vadd.f32 %v313, %v904
    %906 = vdwg.mxu0
    %907 = vmatprep.subr.bf16.mxu0 %v515
    %908 = vmatpush1.bf16.msra.mxu0 %v514
    %909 = vmatprep.subr.bf16.mxu0 %v527
    %910 = vmatpush1.bf16.msra.mxu0 %v526
    %911 = vmatprep.subr.bf16.mxu0 %v539
    %912 = vmatpush1.bf16.msra.mxu0 %v538
    %913 = vmatprep.subr.bf16.mxu0 %v551
    %914 = vmatpush1.bf16.msra.mxu0 %v550
    %915 = vmatprep.subr.bf16.mxu0 0
    %916 = vmatpush1.bf16.msra.mxu0 0
    %917 = vmatprep.subr.bf16.mxu0 0
    %918 = vmatpush1.bf16.msra.mxu0 0
    %919 = vmatprep.subr.bf16.mxu0 0
    %920 = vmatpush1.bf16.msra.mxu0 0
    %921 = vmatprep.subr.bf16.mxu0 0
    %922 = vmatpush1.bf16.msra.mxu0 0
    %923 = vmatprep.subr.bf16.mxu0 0
    %924 = vmatpush1.bf16.msra.mxu0 0
    %925 = vmatprep.subr.bf16.mxu0 0
    %926 = vmatpush1.bf16.msra.mxu0 0
    %927 = vmatprep.subr.bf16.mxu0 0
    %928 = vmatpush1.bf16.msra.mxu0 0
    %929 = vmatprep.subr.bf16.mxu0 0
    %930 = vmatpush1.bf16.msra.mxu0 0
    %931 = vmatprep.subr.bf16.mxu0 0
    %932 = vmatpush1.bf16.msra.mxu0 0
    %933 = vmatprep.subr.bf16.mxu0 0
    %934 = vmatpush1.bf16.msra.mxu0 0
    %935 = vmatprep.subr.bf16.mxu0 0
    %936 = vmatpush1.bf16.msra.mxu0 0
    %937 = vmatprep.subr.bf16.mxu0 0
    %938 = vmatpush1.bf16.msra.mxu0 0
    %939 = vmatprep.mubr.bf16.mxu0 0
    %940 = vmatmul.mubr.bf16.gmra.mrb[0].mxu0 %v604
    %v941 = vpop.f32.mrb[0].mxu0
    %v942 = vadd.f32 %v317, %v941
    %v943 = vpop.f32.mrb[0].mxu0
    %v944 = vadd.f32 %v321, %v943
    %v945 = vpop.f32.mrb[0].mxu0
    %v946 = vadd.f32 %v317, %v945
    %v947 = vpop.f32.mrb[0].mxu0
    %v948 = vadd.f32 %v321, %v947
    %949 = vmatprep.mubr.bf16.mxu0 0
    %950 = vmatmul.mubr.bf16.gmra.mrb[0].mxu0 %v607
    %v951 = vpop.f32.mrb[0].mxu0
    %v952 = vadd.f32 %v317, %v951
    %v953 = vpop.f32.mrb[0].mxu0
    %v954 = vadd.f32 %v321, %v953
    %v955 = vpop.f32.mrb[0].mxu0
    %v956 = vadd.f32 %v317, %v955
    %v957 = vpop.f32.mrb[0].mxu0
    %v958 = vadd.f32 %v321, %v957
    %959 = vmatprep.mubr.bf16.mxu0 0
    %960 = vmatmul.mubr.bf16.gmra.mrb[0].mxu0 %v610
    %v961 = vpop.f32.mrb[0].mxu0
    %v962 = vadd.f32 %v317, %v961
    %v963 = vpop.f32.mrb[0].mxu0
    %v964 = vadd.f32 %v321, %v963
    %v965 = vpop.f32.mrb[0].mxu0
    %v966 = vadd.f32 %v317, %v965
    %v967 = vpop.f32.mrb[0].mxu0
    %v968 = vadd.f32 %v321, %v967
    %969 = vmatprep.mubr.bf16.mxu0 0
    %970 = vmatmul.mubr.bf16.gmra.mrb[0].mxu0 %v613
    %v971 = vpop.f32.mrb[0].mxu0
    %v972 = vadd.f32 %v317, %v971
    %v973 = vpop.f32.mrb[0].mxu0
    %v974 = vadd.f32 %v321, %v973
    %v975 = vpop.f32.mrb[0].mxu0
    %v976 = vadd.f32 %v317, %v975
    %v977 = vpop.f32.mrb[0].mxu0
    %v978 = vadd.f32 %v321, %v977
    %979 = vdwg.mxu0
    %980 = vmatprep.subr.bf16.mxu0 %v517
    %981 = vmatpush1.bf16.msra.mxu0 %v516
    %982 = vmatprep.subr.bf16.mxu0 %v529
    %983 = vmatpush1.bf16.msra.mxu0 %v528
    %984 = vmatprep.subr.bf16.mxu0 %v541
    %985 = vmatpush1.bf16.msra.mxu0 %v540
    %986 = vmatprep.subr.bf16.mxu0 %v553
    %987 = vmatpush1.bf16.msra.mxu0 %v552
    %988 = vmatprep.subr.bf16.mxu0 0
    %989 = vmatpush1.bf16.msra.mxu0 0
    %990 = vmatprep.subr.bf16.mxu0 0
    %991 = vmatpush1.bf16.msra.mxu0 0
    %992 = vmatprep.subr.bf16.mxu0 0
    %993 = vmatpush1.bf16.msra.mxu0 0
    %994 = vmatprep.subr.bf16.mxu0 0
    %995 = vmatpush1.bf16.msra.mxu0 0
    %996 = vmatprep.subr.bf16.mxu0 0
    %997 = vmatpush1.bf16.msra.mxu0 0
    %998 = vmatprep.subr.bf16.mxu0 0
    %999 = vmatpush1.bf16.msra.mxu0 0
    %1000 = vmatprep.subr.bf16.mxu0 0
    %1001 = vmatpush1.bf16.msra.mxu0 0
    %1002 = vmatprep.subr.bf16.mxu0 0
    %1003 = vmatpush1.bf16.msra.mxu0 0
    %1004 = vmatprep.subr.bf16.mxu0 0
    %1005 = vmatpush1.bf16.msra.mxu0 0
    %1006 = vmatprep.subr.bf16.mxu0 0
    %1007 = vmatpush1.bf16.msra.mxu0 0
    %1008 = vmatprep.subr.bf16.mxu0 0
    %1009 = vmatpush1.bf16.msra.mxu0 0
    %1010 = vmatprep.subr.bf16.mxu0 0
    %1011 = vmatpush1.bf16.msra.mxu0 0
    %1012 = vmatprep.mubr.bf16.mxu0 0
    %1013 = vmatmul.mubr.bf16.gmra.mrb[0].mxu0 %v604
    %v1014 = vpop.f32.mrb[0].mxu0
    %v1015 = vadd.f32 %v325, %v1014
    %v1016 = vpop.f32.mrb[0].mxu0
    %v1017 = vadd.f32 %v329, %v1016
    %v1018 = vpop.f32.mrb[0].mxu0
    %v1019 = vadd.f32 %v325, %v1018
    %v1020 = vpop.f32.mrb[0].mxu0
    %v1021 = vadd.f32 %v329, %v1020
    %1022 = vmatprep.mubr.bf16.mxu0 0
    %1023 = vmatmul.mubr.bf16.gmra.mrb[0].mxu0 %v607
    %v1024 = vpop.f32.mrb[0].mxu0
    %v1025 = vadd.f32 %v325, %v1024
    %v1026 = vpop.f32.mrb[0].mxu0
    %v1027 = vadd.f32 %v329, %v1026
    %v1028 = vpop.f32.mrb[0].mxu0
    %v1029 = vadd.f32 %v325, %v1028
    %v1030 = vpop.f32.mrb[0].mxu0
    %v1031 = vadd.f32 %v329, %v1030
    %1032 = vmatprep.mubr.bf16.mxu0 0
    %1033 = vmatmul.mubr.bf16.gmra.mrb[0].mxu0 %v610
    %v1034 = vpop.f32.mrb[0].mxu0
    %v1035 = vadd.f32 %v325, %v1034
    %v1036 = vpop.f32.mrb[0].mxu0
    %v1037 = vadd.f32 %v329, %v1036
    %v1038 = vpop.f32.mrb[0].mxu0
    %v1039 = vadd.f32 %v325, %v1038
    %v1040 = vpop.f32.mrb[0].mxu0
    %v1041 = vadd.f32 %v329, %v1040
    %1042 = vmatprep.mubr.bf16.mxu0 0
    %1043 = vmatmul.mubr.bf16.gmra.mrb[0].mxu0 %v613
    %v1044 = vpop.f32.mrb[0].mxu0
    %v1045 = vadd.f32 %v325, %v1044
    %v1046 = vpop.f32.mrb[0].mxu0
    %v1047 = vadd.f32 %v329, %v1046
    %v1048 = vpop.f32.mrb[0].mxu0
    %v1049 = vadd.f32 %v325, %v1048
    %v1050 = vpop.f32.mrb[0].mxu0
    %v1051 = vadd.f32 %v329, %v1050
    %1052 = vdwg.mxu0
    %v1053 = vld [vmem:[#allocation9] sm:$0xff]
    %v1054 = vld [vmem:[#allocation9 + $0x8] sm:$0xff]
    %v1055 = vld [vmem:[#allocation9 + $0x10] sm:$0xff]
    %v1056 = vld [vmem:[#allocation9 + $0x18] sm:$0xff]
    %v1057 = vld [vmem:[#allocation9 + $0x20] sm:$0xff]
    %v1058 = vld [vmem:[#allocation9 + $0x28] sm:$0xff]
    %v1059 = vld [vmem:[#allocation9 + $0x30] sm:$0xff]
    %v1060 = vld [vmem:[#allocation9 + $0x38] sm:$0xff]
    %v1061 = vld [vmem:[#allocation9 + $0x40] sm:$0xff]
    %v1062 = vld [vmem:[#allocation9 + $0x48] sm:$0xff]
    %v1063 = vld [vmem:[#allocation9 + $0x50] sm:$0xff]
    %v1064 = vld [vmem:[#allocation9 + $0x58] sm:$0xff]
    %v1065 = vld [vmem:[#allocation9 + $0x60] sm:$0xff]
    %v1066 = vld [vmem:[#allocation9 + $0x68] sm:$0xff]
    %v1067 = vld [vmem:[#allocation9 + $0x70] sm:$0xff]
    %v1068 = vld [vmem:[#allocation9 + $0x78] sm:$0xff]
    %v1069 = vld [vmem:[#allocation9 + $0x80] sm:$0xff]
    %v1070 = vld [vmem:[#allocation9 + $0x88] sm:$0xff]
    %v1071 = vld [vmem:[#allocation9 + $0x90] sm:$0xff]
    %v1072 = vld [vmem:[#allocation9 + $0x98] sm:$0xff]
    %v1073 = vld [vmem:[#allocation9 + $0xa0] sm:$0xff]
    %v1074 = vld [vmem:[#allocation9 + $0xa8] sm:$0xff]
    %v1075 = vld [vmem:[#allocation9 + $0xb0] sm:$0xff]
    %v1076 = vld [vmem:[#allocation9 + $0xb8] sm:$0xff]
    %v1077 = vld [vmem:[#allocation9 + $0xc0] sm:$0xff]
    %v1078 = vld [vmem:[#allocation9 + $0xc8] sm:$0xff]
    %v1079 = vld [vmem:[#allocation9 + $0xd0] sm:$0xff]
    %v1080 = vld [vmem:[#allocation9 + $0xd8] sm:$0xff]
    %v1081 = vld [vmem:[#allocation9 + $0xe0] sm:$0xff]
    %v1082 = vld [vmem:[#allocation9 + $0xe8] sm:$0xff]
    %v1083 = vld [vmem:[#allocation9 + $0xf0] sm:$0xff]
    %v1084 = vld [vmem:[#allocation9 + $0xf8] sm:$0xff]
    %v1085 = vld [vmem:[#allocation9 + $0x100] sm:$0xff]
    %v1086 = vld [vmem:[#allocation9 + $0x108] sm:$0xff]
    %v1087 = vld [vmem:[#allocation9 + $0x110] sm:$0xff]
    %v1088 = vld [vmem:[#allocation9 + $0x118] sm:$0xff]
    %v1089 = vld [vmem:[#allocation9 + $0x120] sm:$0xff]
    %v1090 = vld [vmem:[#allocation9 + $0x128] sm:$0xff]
    %v1091 = vld [vmem:[#allocation9 + $0x130] sm:$0xff]
    %v1092 = vld [vmem:[#allocation9 + $0x138] sm:$0xff]
    %v1093 = vld [vmem:[#allocation9 + $0x140] sm:$0xff]
    %v1094 = vld [vmem:[#allocation9 + $0x148] sm:$0xff]
    %v1095 = vld [vmem:[#allocation9 + $0x150] sm:$0xff]
    %v1096 = vld [vmem:[#allocation9 + $0x158] sm:$0xff]
    %v1097 = vld [vmem:[#allocation9 + $0x160] sm:$0xff]
    %v1098 = vld [vmem:[#allocation9 + $0x168] sm:$0xff]
    %v1099 = vld [vmem:[#allocation9 + $0x170] sm:$0xff]
    %v1100 = vld [vmem:[#allocation9 + $0x178] sm:$0xff]
    %v1101 = vld [vmem:[#allocation9 + $0x180] sm:$0xff]
    %v1102 = vld [vmem:[#allocation9 + $0x188] sm:$0xff]
    %v1103 = vld [vmem:[#allocation9 + $0x190] sm:$0xff]
    %v1104 = vld [vmem:[#allocation9 + $0x198] sm:$0xff]
    %v1105 = vld [vmem:[#allocation9 + $0x1a0] sm:$0xff]
    %v1106 = vld [vmem:[#allocation9 + $0x1a8] sm:$0xff]
    %v1107 = vld [vmem:[#allocation9 + $0x1b0] sm:$0xff]
    %v1108 = vld [vmem:[#allocation9 + $0x1b8] sm:$0xff]
    %v1109 = vld [vmem:[#allocation9 + $0x1c0] sm:$0xff]
    %v1110 = vld [vmem:[#allocation9 + $0x1c8] sm:$0xff]
    %v1111 = vld [vmem:[#allocation9 + $0x1d0] sm:$0xff]
    %v1112 = vld [vmem:[#allocation9 + $0x1d8] sm:$0xff]
    %v1113 = vld [vmem:[#allocation9 + $0x1e0] sm:$0xff]
    %v1114 = vld [vmem:[#allocation9 + $0x1e8] sm:$0xff]
    %v1115 = vld [vmem:[#allocation9 + $0x1f0] sm:$0xff]
    %v1116 = vld [vmem:[#allocation9 + $0x1f8] sm:$0xff]
    %v1117 = vld [vmem:[#allocation9 + $0x200] sm:$0xff]
    %v1118 = vld [vmem:[#allocation9 + $0x208] sm:$0xff]
    %v1119 = vld [vmem:[#allocation9 + $0x210] sm:$0xff]
    %v1120 = vld [vmem:[#allocation9 + $0x218] sm:$0xff]
    %v1121 = vld [vmem:[#allocation9 + $0x220] sm:$0xff]
    %v1122 = vld [vmem:[#allocation9 + $0x228] sm:$0xff]
    %v1123 = vld [vmem:[#allocation9 + $0x230] sm:$0xff]
    %v1124 = vld [vmem:[#allocation9 + $0x238] sm:$0xff]
    %v1125 = vld [vmem:[#allocation9 + $0x240] sm:$0xff]
    %v1126 = vld [vmem:[#allocation9 + $0x248] sm:$0xff]
    %v1127 = vld [vmem:[#allocation9 + $0x250] sm:$0xff]
    %v1128 = vld [vmem:[#allocation9 + $0x258] sm:$0xff]
    %v1129 = vld [vmem:[#allocation9 + $0x260] sm:$0xff]
    %v1130 = vld [vmem:[#allocation9 + $0x268] sm:$0xff]
    %v1131 = vld [vmem:[#allocation9 + $0x270] sm:$0xff]
    %v1132 = vld [vmem:[#allocation9 + $0x278] sm:$0xff]
    %v1133 = vld [vmem:[#allocation9 + $0x280] sm:$0xff]
    %v1134 = vld [vmem:[#allocation9 + $0x288] sm:$0xff]
    %v1135 = vld [vmem:[#allocation9 + $0x290] sm:$0xff]
    %v1136 = vld [vmem:[#allocation9 + $0x298] sm:$0xff]
    %v1137 = vld [vmem:[#allocation9 + $0x2a0] sm:$0xff]
    %v1138 = vld [vmem:[#allocation9 + $0x2a8] sm:$0xff]
    %v1139 = vld [vmem:[#allocation9 + $0x2b0] sm:$0xff]
    %v1140 = vld [vmem:[#allocation9 + $0x2b8] sm:$0xff]
    %v1141 = vld [vmem:[#allocation9 + $0x2c0] sm:$0xff]
    %v1142 = vld [vmem:[#allocation9 + $0x2c8] sm:$0xff]
    %v1143 = vld [vmem:[#allocation9 + $0x2d0] sm:$0xff]
    %v1144 = vld [vmem:[#allocation9 + $0x2d8] sm:$0xff]
    %v1145 = vld [vmem:[#allocation9 + $0x2e0] sm:$0xff]
    %v1146 = vld [vmem:[#allocation9 + $0x2e8] sm:$0xff]
    %v1147 = vld [vmem:[#allocation9 + $0x2f0] sm:$0xff]
    %v1148 = vld [vmem:[#allocation9 + $0x2f8] sm:$0xff]
    %v1149 = vld [vmem:[#allocation9 + $0x300] sm:$0xff]
    %v1150 = vld [vmem:[#allocation9 + $0x308] sm:$0xff]
    %v1151 = vld [vmem:[#allocation9 + $0x310] sm:$0xff]
    %v1152 = vld [vmem:[#allocation9 + $0x318] sm:$0xff]
    %v1153 = vld [vmem:[#allocation9 + $0x320] sm:$0xff]
    %v1154 = vld [vmem:[#allocation9 + $0x328] sm:$0xff]
    %v1155 = vld [vmem:[#allocation9 + $0x330] sm:$0xff]
    %v1156 = vld [vmem:[#allocation9 + $0x338] sm:$0xff]
    %v1157 = vld [vmem:[#allocation9 + $0x340] sm:$0xff]
    %v1158 = vld [vmem:[#allocation9 + $0x348] sm:$0xff]
    %v1159 = vld [vmem:[#allocation9 + $0x350] sm:$0xff]
    %v1160 = vld [vmem:[#allocation9 + $0x358] sm:$0xff]
    %v1161 = vld [vmem:[#allocation9 + $0x360] sm:$0xff]
    %v1162 = vld [vmem:[#allocation9 + $0x368] sm:$0xff]
    %v1163 = vld [vmem:[#allocation9 + $0x370] sm:$0xff]
    %v1164 = vld [vmem:[#allocation9 + $0x378] sm:$0xff]
    %v1165 = vld [vmem:[#allocation9 + $0x380] sm:$0xff]
    %v1166 = vld [vmem:[#allocation9 + $0x388] sm:$0xff]
    %v1167 = vld [vmem:[#allocation9 + $0x390] sm:$0xff]
    %v1168 = vld [vmem:[#allocation9 + $0x398] sm:$0xff]
    %v1169 = vld [vmem:[#allocation9 + $0x3a0] sm:$0xff]
    %v1170 = vld [vmem:[#allocation9 + $0x3a8] sm:$0xff]
    %v1171 = vld [vmem:[#allocation9 + $0x3b0] sm:$0xff]
    %v1172 = vld [vmem:[#allocation9 + $0x3b8] sm:$0xff]
    %v1173 = vld [vmem:[#allocation9 + $0x3c0] sm:$0xff]
    %v1174 = vld [vmem:[#allocation9 + $0x3c8] sm:$0xff]
    %v1175 = vld [vmem:[#allocation9 + $0x3d0] sm:$0xff]
    %v1176 = vld [vmem:[#allocation9 + $0x3d8] sm:$0xff]
    %v1177 = vld [vmem:[#allocation9 + $0x3e0] sm:$0xff]
    %v1178 = vld [vmem:[#allocation9 + $0x3e8] sm:$0xff]
    %v1179 = vld [vmem:[#allocation9 + $0x3f0] sm:$0xff]
    %v1180 = vld [vmem:[#allocation9 + $0x3f8] sm:$0xff]
    %v1181 = vld [vmem:[#allocation9 + $0x400] sm:$0xff]
    %v1182 = vld [vmem:[#allocation9 + $0x408] sm:$0xff]
    %v1183 = vld [vmem:[#allocation9 + $0x410] sm:$0xff]
    %v1184 = vld [vmem:[#allocation9 + $0x418] sm:$0xff]
    %v1185 = vld [vmem:[#allocation9 + $0x420] sm:$0xff]
    %v1186 = vld [vmem:[#allocation9 + $0x428] sm:$0xff]
    %v1187 = vld [vmem:[#allocation9 + $0x430] sm:$0xff]
    %v1188 = vld [vmem:[#allocation9 + $0x438] sm:$0xff]
    %v1189 = vld [vmem:[#allocation9 + $0x440] sm:$0xff]
    %v1190 = vld [vmem:[#allocation9 + $0x448] sm:$0xff]
    %v1191 = vld [vmem:[#allocation9 + $0x450] sm:$0xff]
    %v1192 = vld [vmem:[#allocation9 + $0x458] sm:$0xff]
    %v1193 = vld [vmem:[#allocation9 + $0x460] sm:$0xff]
    %v1194 = vld [vmem:[#allocation9 + $0x468] sm:$0xff]
    %v1195 = vld [vmem:[#allocation9 + $0x470] sm:$0xff]
    %v1196 = vld [vmem:[#allocation9 + $0x478] sm:$0xff]
    %v1197 = vld [vmem:[#allocation9 + $0x480] sm:$0xff]
    %v1198 = vld [vmem:[#allocation9 + $0x488] sm:$0xff]
    %v1199 = vld [vmem:[#allocation9 + $0x490] sm:$0xff]
    %v1200 = vld [vmem:[#allocation9 + $0x498] sm:$0xff]
    %v1201 = vld [vmem:[#allocation9 + $0x4a0] sm:$0xff]
    %v1202 = vld [vmem:[#allocation9 + $0x4a8] sm:$0xff]
    %v1203 = vld [vmem:[#allocation9 + $0x4b0] sm:$0xff]
    %v1204 = vld [vmem:[#allocation9 + $0x4b8] sm:$0xff]
    %v1205 = vld [vmem:[#allocation9 + $0x4c0] sm:$0xff]
    %v1206 = vld [vmem:[#allocation9 + $0x4c8] sm:$0xff]
    %v1207 = vld [vmem:[#allocation9 + $0x4d0] sm:$0xff]
    %v1208 = vld [vmem:[#allocation9 + $0x4d8] sm:$0xff]
    %v1209 = vld [vmem:[#allocation9 + $0x4e0] sm:$0xff]
    %v1210 = vld [vmem:[#allocation9 + $0x4e8] sm:$0xff]
    %v1211 = vld [vmem:[#allocation9 + $0x4f0] sm:$0xff]
    %v1212 = vld [vmem:[#allocation9 + $0x4f8] sm:$0xff]
    %v1213 = vld [vmem:[#allocation9 + $0x500] sm:$0xff]
    %v1214 = vld [vmem:[#allocation9 + $0x508] sm:$0xff]
    %v1215 = vld [vmem:[#allocation9 + $0x510] sm:$0xff]
    %v1216 = vld [vmem:[#allocation9 + $0x518] sm:$0xff]
    %v1217 = vld [vmem:[#allocation9 + $0x520] sm:$0xff]
    %v1218 = vld [vmem:[#allocation9 + $0x528] sm:$0xff]
    %v1219 = vld [vmem:[#allocation9 + $0x530] sm:$0xff]
    %v1220 = vld [vmem:[#allocation9 + $0x538] sm:$0xff]
    %v1221 = vld [vmem:[#allocation9 + $0x540] sm:$0xff]
    %v1222 = vld [vmem:[#allocation9 + $0x548] sm:$0xff]
    %v1223 = vld [vmem:[#allocation9 + $0x550] sm:$0xff]
    %v1224 = vld [vmem:[#allocation9 + $0x558] sm:$0xff]
    %v1225 = vld [vmem:[#allocation9 + $0x560] sm:$0xff]
    %v1226 = vld [vmem:[#allocation9 + $0x568] sm:$0xff]
    %v1227 = vld [vmem:[#allocation9 + $0x570] sm:$0xff]
    %v1228 = vld [vmem:[#allocation9 + $0x578] sm:$0xff]
    %v1229 = vld [vmem:[#allocation9 + $0x580] sm:$0xff]
    %v1230 = vld [vmem:[#allocation9 + $0x588] sm:$0xff]
    %v1231 = vld [vmem:[#allocation9 + $0x590] sm:$0xff]
    %v1232 = vld [vmem:[#allocation9 + $0x598] sm:$0xff]
    %v1233 = vld [vmem:[#allocation9 + $0x5a0] sm:$0xff]
    %v1234 = vld [vmem:[#allocation9 + $0x5a8] sm:$0xff]
    %v1235 = vld [vmem:[#allocation9 + $0x5b0] sm:$0xff]
    %v1236 = vld [vmem:[#allocation9 + $0x5b8] sm:$0xff]
    %v1237 = vld [vmem:[#allocation9 + $0x5c0] sm:$0xff]
    %v1238 = vld [vmem:[#allocation9 + $0x5c8] sm:$0xff]
    %v1239 = vld [vmem:[#allocation9 + $0x5d0] sm:$0xff]
    %v1240 = vld [vmem:[#allocation9 + $0x5d8] sm:$0xff]
    %v1241 = vld [vmem:[#allocation9 + $0x5e0] sm:$0xff]
    %v1242 = vld [vmem:[#allocation9 + $0x5e8] sm:$0xff]
    %v1243 = vld [vmem:[#allocation9 + $0x5f0] sm:$0xff]
    %v1244 = vld [vmem:[#allocation9 + $0x5f8] sm:$0xff]
    %v1245 = vld [vmem:[#allocation9 + $0x600] sm:$0xff]
    %v1246 = vld [vmem:[#allocation9 + $0x608] sm:$0xff]
    %v1247 = vld [vmem:[#allocation9 + $0x610] sm:$0xff]
    %v1248 = vld [vmem:[#allocation9 + $0x618] sm:$0xff]
    %v1249 = vld [vmem:[#allocation9 + $0x620] sm:$0xff]
    %v1250 = vld [vmem:[#allocation9 + $0x628] sm:$0xff]
    %v1251 = vld [vmem:[#allocation9 + $0x630] sm:$0xff]
    %v1252 = vld [vmem:[#allocation9 + $0x638] sm:$0xff]
    %v1253 = vld [vmem:[#allocation9 + $0x640] sm:$0xff]
    %v1254 = vld [vmem:[#allocation9 + $0x648] sm:$0xff]
    %v1255 = vld [vmem:[#allocation9 + $0x650] sm:$0xff]
    %v1256 = vld [vmem:[#allocation9 + $0x658] sm:$0xff]
    %v1257 = vld [vmem:[#allocation9 + $0x660] sm:$0xff]
    %v1258 = vld [vmem:[#allocation9 + $0x668] sm:$0xff]
    %v1259 = vld [vmem:[#allocation9 + $0x670] sm:$0xff]
    %v1260 = vld [vmem:[#allocation9 + $0x678] sm:$0xff]
    %v1261 = vld [vmem:[#allocation9 + $0x680] sm:$0xff]
    %v1262 = vld [vmem:[#allocation9 + $0x688] sm:$0xff]
    %v1263 = vld [vmem:[#allocation9 + $0x690] sm:$0xff]
    %v1264 = vld [vmem:[#allocation9 + $0x698] sm:$0xff]
    %v1265 = vld [vmem:[#allocation9 + $0x6a0] sm:$0xff]
    %v1266 = vld [vmem:[#allocation9 + $0x6a8] sm:$0xff]
    %v1267 = vld [vmem:[#allocation9 + $0x6b0] sm:$0xff]
    %v1268 = vld [vmem:[#allocation9 + $0x6b8] sm:$0xff]
    %v1269 = vld [vmem:[#allocation9 + $0x6c0] sm:$0xff]
    %v1270 = vld [vmem:[#allocation9 + $0x6c8] sm:$0xff]
    %v1271 = vld [vmem:[#allocation9 + $0x6d0] sm:$0xff]
    %v1272 = vld [vmem:[#allocation9 + $0x6d8] sm:$0xff]
    %v1273 = vld [vmem:[#allocation9 + $0x6e0] sm:$0xff]
    %v1274 = vld [vmem:[#allocation9 + $0x6e8] sm:$0xff]
    %v1275 = vld [vmem:[#allocation9 + $0x6f0] sm:$0xff]
    %v1276 = vld [vmem:[#allocation9 + $0x6f8] sm:$0xff]
    %v1277 = vld [vmem:[#allocation9 + $0x700] sm:$0xff]
    %v1278 = vld [vmem:[#allocation9 + $0x708] sm:$0xff]
    %v1279 = vld [vmem:[#allocation9 + $0x710] sm:$0xff]
    %v1280 = vld [vmem:[#allocation9 + $0x718] sm:$0xff]
    %v1281 = vld [vmem:[#allocation9 + $0x720] sm:$0xff]
    %v1282 = vld [vmem:[#allocation9 + $0x728] sm:$0xff]
    %v1283 = vld [vmem:[#allocation9 + $0x730] sm:$0xff]
    %v1284 = vld [vmem:[#allocation9 + $0x738] sm:$0xff]
    %v1285 = vld [vmem:[#allocation9 + $0x740] sm:$0xff]
    %v1286 = vld [vmem:[#allocation9 + $0x748] sm:$0xff]
    %v1287 = vld [vmem:[#allocation9 + $0x750] sm:$0xff]
    %v1288 = vld [vmem:[#allocation9 + $0x758] sm:$0xff]
    %v1289 = vld [vmem:[#allocation9 + $0x760] sm:$0xff]
    %v1290 = vld [vmem:[#allocation9 + $0x768] sm:$0xff]
    %v1291 = vld [vmem:[#allocation9 + $0x770] sm:$0xff]
    %v1292 = vld [vmem:[#allocation9 + $0x778] sm:$0xff]
    %v1293 = vld [vmem:[#allocation9 + $0x780] sm:$0xff]
    %v1294 = vld [vmem:[#allocation9 + $0x788] sm:$0xff]
    %v1295 = vld [vmem:[#allocation9 + $0x790] sm:$0xff]
    %v1296 = vld [vmem:[#allocation9 + $0x798] sm:$0xff]
    %v1297 = vld [vmem:[#allocation9 + $0x7a0] sm:$0xff]
    %v1298 = vld [vmem:[#allocation9 + $0x7a8] sm:$0xff]
    %v1299 = vld [vmem:[#allocation9 + $0x7b0] sm:$0xff]
    %v1300 = vld [vmem:[#allocation9 + $0x7b8] sm:$0xff]
    %v1301 = vld [vmem:[#allocation9 + $0x7c0] sm:$0xff]
    %v1302 = vld [vmem:[#allocation9 + $0x7c8] sm:$0xff]
    %v1303 = vld [vmem:[#allocation9 + $0x7d0] sm:$0xff]
    %v1304 = vld [vmem:[#allocation9 + $0x7d8] sm:$0xff]
    %v1305 = vld [vmem:[#allocation9 + $0x7e0] sm:$0xff]
    %v1306 = vld [vmem:[#allocation9 + $0x7e8] sm:$0xff]
    %v1307 = vld [vmem:[#allocation9 + $0x7f0] sm:$0xff]
    %v1308 = vld [vmem:[#allocation9 + $0x7f8] sm:$0xff]
    %v1309 = vld [vmem:[#allocation9 + $0x800] sm:$0xff]
    %v1310 = vld [vmem:[#allocation9 + $0x808] sm:$0xff]
    %v1311 = vld [vmem:[#allocation9 + $0x810] sm:$0xff]
    %v1312 = vld [vmem:[#allocation9 + $0x818] sm:$0xff]
    %v1313 = vld [vmem:[#allocation9 + $0x820] sm:$0xff]
    %v1314 = vld [vmem:[#allocation9 + $0x828] sm:$0xff]
    %v1315 = vld [vmem:[#allocation9 + $0x830] sm:$0xff]
    %v1316 = vld [vmem:[#allocation9 + $0x838] sm:$0xff]
    %v1317 = vld [vmem:[#allocation9 + $0x840] sm:$0xff]
    %v1318 = vld [vmem:[#allocation9 + $0x848] sm:$0xff]
    %v1319 = vld [vmem:[#allocation9 + $0x850] sm:$0xff]
    %v1320 = vld [vmem:[#allocation9 + $0x858] sm:$0xff]
    %v1321 = vld [vmem:[#allocation9 + $0x860] sm:$0xff]
    %v1322 = vld [vmem:[#allocation9 + $0x868] sm:$0xff]
    %v1323 = vld [vmem:[#allocation9 + $0x870] sm:$0xff]
    %v1324 = vld [vmem:[#allocation9 + $0x878] sm:$0xff]
    %v1325 = vld [vmem:[#allocation9 + $0x880] sm:$0xff]
    %v1326 = vld [vmem:[#allocation9 + $0x888] sm:$0xff]
    %v1327 = vld [vmem:[#allocation9 + $0x890] sm:$0xff]
    %v1328 = vld [vmem:[#allocation9 + $0x898] sm:$0xff]
    %v1329 = vld [vmem:[#allocation9 + $0x8a0] sm:$0xff]
    %v1330 = vld [vmem:[#allocation9 + $0x8a8] sm:$0xff]
    %v1331 = vld [vmem:[#allocation9 + $0x8b0] sm:$0xff]
    %v1332 = vld [vmem:[#allocation9 + $0x8b8] sm:$0xff]
    %v1333 = vld [vmem:[#allocation9 + $0x8c0] sm:$0xff]
    %v1334 = vld [vmem:[#allocation9 + $0x8c8] sm:$0xff]
    %v1335 = vld [vmem:[#allocation9 + $0x8d0] sm:$0xff]
    %v1336 = vld [vmem:[#allocation9 + $0x8d8] sm:$0xff]
    %v1337 = vld [vmem:[#allocation9 + $0x8e0] sm:$0xff]
    %v1338 = vld [vmem:[#allocation9 + $0x8e8] sm:$0xff]
    %v1339 = vld [vmem:[#allocation9 + $0x8f0] sm:$0xff]
    %v1340 = vld [vmem:[#allocation9 + $0x8f8] sm:$0xff]
    %v1341 = vld [vmem:[#allocation2] sm:$0xff]
    %v1342 = vld [vmem:[#allocation2 + $0x8] sm:$0xff]
    %v1343 = vld [vmem:[#allocation2 + $0x10] sm:$0xff]
    %v1344 = vld [vmem:[#allocation3] sm:$0xff]
    %v1345 = vld [vmem:[#allocation3 + $0x8] sm:$0xff]
    %v1346 = vld [vmem:[#allocation3 + $0x10] sm:$0xff]
    %v1347 = vpack.c.bf16 %v1341, %v1341
    %v1348 = vpack.c.bf16 %v1342, %v1342
    %v1349 = vpack.c.bf16 %v1343, %v1343
    %v1638 = vunpack.c.l.b16 %v1053
    %v1639 = vunpack.c.h.b16 %v1053
    %v1640 = vunpack.c.l.b16 %v1054
    %v1641 = vunpack.c.h.b16 %v1054
    %v1642 = vunpack.c.l.b16 %v1055
    %v1643 = vunpack.c.h.b16 %v1055
    %v1644 = vunpack.c.l.b16 %v1056
    %v1645 = vunpack.c.h.b16 %v1056
    %v1646 = vunpack.c.l.b16 %v1057
    %v1647 = vunpack.c.h.b16 %v1057
    %v1648 = vunpack.c.l.b16 %v1058
    %v1649 = vunpack.c.h.b16 %v1058
    %v1650 = vunpack.c.l.b16 %v1059
    %v1651 = vunpack.c.h.b16 %v1059
    %v1652 = vunpack.c.l.b16 %v1060
    %v1653 = vunpack.c.h.b16 %v1060
    %v1654 = vunpack.c.l.b16 %v1061
    %v1655 = vunpack.c.h.b16 %v1061
    %v1656 = vunpack.c.l.b16 %v1062
    %v1657 = vunpack.c.h.b16 %v1062
    %v1658 = vunpack.c.l.b16 %v1063
    %v1659 = vunpack.c.h.b16 %v1063
    %v1660 = vunpack.c.l.b16 %v1064
    %v1661 = vunpack.c.h.b16 %v1064
    %v1662 = vunpack.c.l.b16 %v1065
    %v1663 = vunpack.c.h.b16 %v1065
    %v1664 = vunpack.c.l.b16 %v1066
    %v1665 = vunpack.c.h.b16 %v1066
    %v1666 = vunpack.c.l.b16 %v1067
    %v1667 = vunpack.c.h.b16 %v1067
    %v1668 = vunpack.c.l.b16 %v1068
    %v1669 = vunpack.c.h.b16 %v1068
    %v1670 = vunpack.c.l.b16 %v1069
    %v1671 = vunpack.c.h.b16 %v1069
    %v1672 = vunpack.c.l.b16 %v1070
    %v1673 = vunpack.c.h.b16 %v1070
    %v1674 = vunpack.c.l.b16 %v1071
    %v1675 = vunpack.c.h.b16 %v1071
    %v1676 = vunpack.c.l.b16 %v1072
    %v1677 = vunpack.c.h.b16 %v1072
    %v1678 = vunpack.c.l.b16 %v1073
    %v1679 = vunpack.c.h.b16 %v1073
    %v1680 = vunpack.c.l.b16 %v1074
    %v1681 = vunpack.c.h.b16 %v1074
    %v1682 = vunpack.c.l.b16 %v1075
    %v1683 = vunpack.c.h.b16 %v1075
    %v1684 = vunpack.c.l.b16 %v1076
    %v1685 = vunpack.c.h.b16 %v1076
    %v1686 = vunpack.c.l.b16 %v1077
    %v1687 = vunpack.c.h.b16 %v1077
    %v1688 = vunpack.c.l.b16 %v1078
    %v1689 = vunpack.c.h.b16 %v1078
    %v1690 = vunpack.c.l.b16 %v1079
    %v1691 = vunpack.c.h.b16 %v1079
    %v1692 = vunpack.c.l.b16 %v1080
    %v1693 = vunpack.c.h.b16 %v1080
    %v1694 = vunpack.c.l.b16 %v1081
    %v1695 = vunpack.c.h.b16 %v1081
    %v1696 = vunpack.c.l.b16 %v1082
    %v1697 = vunpack.c.h.b16 %v1082
    %v1698 = vunpack.c.l.b16 %v1083
    %v1699 = vunpack.c.h.b16 %v1083
    %v1700 = vunpack.c.l.b16 %v1084
    %v1701 = vunpack.c.h.b16 %v1084
    %v1702 = vunpack.c.l.b16 %v1085
    %v1703 = vunpack.c.h.b16 %v1085
    %v1704 = vunpack.c.l.b16 %v1086
    %v1705 = vunpack.c.h.b16 %v1086
    %v1706 = vunpack.c.l.b16 %v1087
    %v1707 = vunpack.c.h.b16 %v1087
    %v1708 = vunpack.c.l.b16 %v1088
    %v1709 = vunpack.c.h.b16 %v1088
    %v1710 = vunpack.c.l.b16 %v1089
    %v1711 = vunpack.c.h.b16 %v1089
    %v1712 = vunpack.c.l.b16 %v1090
    %v1713 = vunpack.c.h.b16 %v1090
    %v1714 = vunpack.c.l.b16 %v1091
    %v1715 = vunpack.c.h.b16 %v1091
    %v1716 = vunpack.c.l.b16 %v1092
    %v1717 = vunpack.c.h.b16 %v1092
    %v1718 = vunpack.c.l.b16 %v1093
    %v1719 = vunpack.c.h.b16 %v1093
    %v1720 = vunpack.c.l.b16 %v1094
    %v1721 = vunpack.c.h.b16 %v1094
    %v1722 = vunpack.c.l.b16 %v1095
    %v1723 = vunpack.c.h.b16 %v1095
    %v1724 = vunpack.c.l.b16 %v1096
    %v1725 = vunpack.c.h.b16 %v1096
    %v1726 = vunpack.c.l.b16 %v1097
    %v1727 = vunpack.c.h.b16 %v1097
    %v1728 = vunpack.c.l.b16 %v1098
    %v1729 = vunpack.c.h.b16 %v1098
    %v1730 = vunpack.c.l.b16 %v1099
    %v1731 = vunpack.c.h.b16 %v1099
    %v1732 = vunpack.c.l.b16 %v1100
    %v1733 = vunpack.c.h.b16 %v1100
    %v1734 = vunpack.c.l.b16 %v1101
    %v1735 = vunpack.c.h.b16 %v1101
    %v1736 = vunpack.c.l.b16 %v1102
    %v1737 = vunpack.c.h.b16 %v1102
    %v1738 = vunpack.c.l.b16 %v1103
    %v1739 = vunpack.c.h.b16 %v1103
    %v1740 = vunpack.c.l.b16 %v1104
    %v1741 = vunpack.c.h.b16 %v1104
    %v1742 = vunpack.c.l.b16 %v1105
    %v1743 = vunpack.c.h.b16 %v1105
    %v1744 = vunpack.c.l.b16 %v1106
    %v1745 = vunpack.c.h.b16 %v1106
    %v1746 = vunpack.c.l.b16 %v1107
    %v1747 = vunpack.c.h.b16 %v1107
    %v1748 = vunpack.c.l.b16 %v1108
    %v1749 = vunpack.c.h.b16 %v1108
    %v1750 = vunpack.c.l.b16 %v1109
    %v1751 = vunpack.c.h.b16 %v1109
    %v1752 = vunpack.c.l.b16 %v1110
    %v1753 = vunpack.c.h.b16 %v1110
    %v1754 = vunpack.c.l.b16 %v1111
    %v1755 = vunpack.c.h.b16 %v1111
    %v1756 = vunpack.c.l.b16 %v1112
    %v1757 = vunpack.c.h.b16 %v1112
    %v1758 = vunpack.c.l.b16 %v1113
    %v1759 = vunpack.c.h.b16 %v1113
    %v1760 = vunpack.c.l.b16 %v1114
    %v1761 = vunpack.c.h.b16 %v1114
    %v1762 = vunpack.c.l.b16 %v1115
    %v1763 = vunpack.c.h.b16 %v1115
    %v1764 = vunpack.c.l.b16 %v1116
    %v1765 = vunpack.c.h.b16 %v1116
    %v1766 = vunpack.c.l.b16 %v1117
    %v1767 = vunpack.c.h.b16 %v1117
    %v1768 = vunpack.c.l.b16 %v1118
    %v1769 = vunpack.c.h.b16 %v1118
    %v1770 = vunpack.c.l.b16 %v1119
    %v1771 = vunpack.c.h.b16 %v1119
    %v1772 = vunpack.c.l.b16 %v1120
    %v1773 = vunpack.c.h.b16 %v1120
    %v1774 = vunpack.c.l.b16 %v1121
    %v1775 = vunpack.c.h.b16 %v1121
    %v1776 = vunpack.c.l.b16 %v1122
    %v1777 = vunpack.c.h.b16 %v1122
    %v1778 = vunpack.c.l.b16 %v1123
    %v1779 = vunpack.c.h.b16 %v1123
    %v1780 = vunpack.c.l.b16 %v1124
    %v1781 = vunpack.c.h.b16 %v1124
    %v1782 = vunpack.c.l.b16 %v1125
    %v1783 = vunpack.c.h.b16 %v1125
    %v1784 = vunpack.c.l.b16 %v1126
    %v1785 = vunpack.c.h.b16 %v1126
    %v1786 = vunpack.c.l.b16 %v1127
    %v1787 = vunpack.c.h.b16 %v1127
    %v1788 = vunpack.c.l.b16 %v1128
    %v1789 = vunpack.c.h.b16 %v1128
    %v1790 = vunpack.c.l.b16 %v1129
    %v1791 = vunpack.c.h.b16 %v1129
    %v1792 = vunpack.c.l.b16 %v1130
    %v1793 = vunpack.c.h.b16 %v1130
    %v1794 = vunpack.c.l.b16 %v1131
    %v1795 = vunpack.c.h.b16 %v1131
    %v1796 = vunpack.c.l.b16 %v1132
    %v1797 = vunpack.c.h.b16 %v1132
    %v1798 = vunpack.c.l.b16 %v1133
    %v1799 = vunpack.c.h.b16 %v1133
    %v1800 = vunpack.c.l.b16 %v1134
    %v1801 = vunpack.c.h.b16 %v1134
    %v1802 = vunpack.c.l.b16 %v1135
    %v1803 = vunpack.c.h.b16 %v1135
    %v1804 = vunpack.c.l.b16 %v1136
    %v1805 = vunpack.c.h.b16 %v1136
    %v1806 = vunpack.c.l.b16 %v1137
    %v1807 = vunpack.c.h.b16 %v1137
    %v1808 = vunpack.c.l.b16 %v1138
    %v1809 = vunpack.c.h.b16 %v1138
    %v1810 = vunpack.c.l.b16 %v1139
    %v1811 = vunpack.c.h.b16 %v1139
    %v1812 = vunpack.c.l.b16 %v1140
    %v1813 = vunpack.c.h.b16 %v1140
    %v1814 = vunpack.c.l.b16 %v1141
    %v1815 = vunpack.c.h.b16 %v1141
    %v1816 = vunpack.c.l.b16 %v1142
    %v1817 = vunpack.c.h.b16 %v1142
    %v1818 = vunpack.c.l.b16 %v1143
    %v1819 = vunpack.c.h.b16 %v1143
    %v1820 = vunpack.c.l.b16 %v1144
    %v1821 = vunpack.c.h.b16 %v1144
    %v1822 = vunpack.c.l.b16 %v1145
    %v1823 = vunpack.c.h.b16 %v1145
    %v1824 = vunpack.c.l.b16 %v1146
    %v1825 = vunpack.c.h.b16 %v1146
    %v1826 = vunpack.c.l.b16 %v1147
    %v1827 = vunpack.c.h.b16 %v1147
    %v1828 = vunpack.c.l.b16 %v1148
    %v1829 = vunpack.c.h.b16 %v1148
    %v1830 = vunpack.c.l.b16 %v1149
    %v1831 = vunpack.c.h.b16 %v1149
    %v1832 = vunpack.c.l.b16 %v1150
    %v1833 = vunpack.c.h.b16 %v1150
    %v1834 = vunpack.c.l.b16 %v1151
    %v1835 = vunpack.c.h.b16 %v1151
    %v1836 = vunpack.c.l.b16 %v1152
    %v1837 = vunpack.c.h.b16 %v1152
    %v1838 = vunpack.c.l.b16 %v1153
    %v1839 = vunpack.c.h.b16 %v1153
    %v1840 = vunpack.c.l.b16 %v1154
    %v1841 = vunpack.c.h.b16 %v1154
    %v1842 = vunpack.c.l.b16 %v1155
    %v1843 = vunpack.c.h.b16 %v1155
    %v1844 = vunpack.c.l.b16 %v1156
    %v1845 = vunpack.c.h.b16 %v1156
    %v1846 = vunpack.c.l.b16 %v1157
    %v1847 = vunpack.c.h.b16 %v1157
    %v1848 = vunpack.c.l.b16 %v1158
    %v1849 = vunpack.c.h.b16 %v1158
    %v1850 = vunpack.c.l.b16 %v1159
    %v1851 = vunpack.c.h.b16 %v1159
    %v1852 = vunpack.c.l.b16 %v1160
    %v1853 = vunpack.c.h.b16 %v1160
    %v1854 = vunpack.c.l.b16 %v1161
    %v1855 = vunpack.c.h.b16 %v1161
    %v1856 = vunpack.c.l.b16 %v1162
    %v1857 = vunpack.c.h.b16 %v1162
    %v1858 = vunpack.c.l.b16 %v1163
    %v1859 = vunpack.c.h.b16 %v1163
    %v1860 = vunpack.c.l.b16 %v1164
    %v1861 = vunpack.c.h.b16 %v1164
    %v1862 = vunpack.c.l.b16 %v1165
    %v1863 = vunpack.c.h.b16 %v1165
    %v1864 = vunpack.c.l.b16 %v1166
    %v1865 = vunpack.c.h.b16 %v1166
    %v1866 = vunpack.c.l.b16 %v1167
    %v1867 = vunpack.c.h.b16 %v1167
    %v1868 = vunpack.c.l.b16 %v1168
    %v1869 = vunpack.c.h.b16 %v1168
    %v1870 = vunpack.c.l.b16 %v1169
    %v1871 = vunpack.c.h.b16 %v1169
    %v1872 = vunpack.c.l.b16 %v1170
    %v1873 = vunpack.c.h.b16 %v1170
    %v1874 = vunpack.c.l.b16 %v1171
    %v1875 = vunpack.c.h.b16 %v1171
    %v1876 = vunpack.c.l.b16 %v1172
    %v1877 = vunpack.c.h.b16 %v1172
    %v1878 = vunpack.c.l.b16 %v1173
    %v1879 = vunpack.c.h.b16 %v1173
    %v1880 = vunpack.c.l.b16 %v1174
    %v1881 = vunpack.c.h.b16 %v1174
    %v1882 = vunpack.c.l.b16 %v1175
    %v1883 = vunpack.c.h.b16 %v1175
    %v1884 = vunpack.c.l.b16 %v1176
    %v1885 = vunpack.c.h.b16 %v1176
    %v1886 = vunpack.c.l.b16 %v1177
    %v1887 = vunpack.c.h.b16 %v1177
    %v1888 = vunpack.c.l.b16 %v1178
    %v1889 = vunpack.c.h.b16 %v1178
    %v1890 = vunpack.c.l.b16 %v1179
    %v1891 = vunpack.c.h.b16 %v1179
    %v1892 = vunpack.c.l.b16 %v1180
    %v1893 = vunpack.c.h.b16 %v1180
    %v1894 = vunpack.c.l.b16 %v1181
    %v1895 = vunpack.c.h.b16 %v1181
    %v1896 = vunpack.c.l.b16 %v1182
    %v1897 = vunpack.c.h.b16 %v1182
    %v1898 = vunpack.c.l.b16 %v1183
    %v1899 = vunpack.c.h.b16 %v1183
    %v1900 = vunpack.c.l.b16 %v1184
    %v1901 = vunpack.c.h.b16 %v1184
    %v1902 = vunpack.c.l.b16 %v1185
    %v1903 = vunpack.c.h.b16 %v1185
    %v1904 = vunpack.c.l.b16 %v1186
    %v1905 = vunpack.c.h.b16 %v1186
    %v1906 = vunpack.c.l.b16 %v1187
    %v1907 = vunpack.c.h.b16 %v1187
    %v1908 = vunpack.c.l.b16 %v1188
    %v1909 = vunpack.c.h.b16 %v1188
    %v1910 = vunpack.c.l.b16 %v1189
    %v1911 = vunpack.c.h.b16 %v1189
    %v1912 = vunpack.c.l.b16 %v1190
    %v1913 = vunpack.c.h.b16 %v1190
    %v1914 = vunpack.c.l.b16 %v1191
    %v1915 = vunpack.c.h.b16 %v1191
    %v1916 = vunpack.c.l.b16 %v1192
    %v1917 = vunpack.c.h.b16 %v1192
    %v1918 = vunpack.c.l.b16 %v1193
    %v1919 = vunpack.c.h.b16 %v1193
    %v1920 = vunpack.c.l.b16 %v1194
    %v1921 = vunpack.c.h.b16 %v1194
    %v1922 = vunpack.c.l.b16 %v1195
    %v1923 = vunpack.c.h.b16 %v1195
    %v1924 = vunpack.c.l.b16 %v1196
    %v1925 = vunpack.c.h.b16 %v1196
    %v1926 = vunpack.c.l.b16 %v1197
    %v1927 = vunpack.c.h.b16 %v1197
    %v1928 = vunpack.c.l.b16 %v1198
    %v1929 = vunpack.c.h.b16 %v1198
    %v1930 = vunpack.c.l.b16 %v1199
    %v1931 = vunpack.c.h.b16 %v1199
    %v1932 = vunpack.c.l.b16 %v1200
    %v1933 = vunpack.c.h.b16 %v1200
    %v1934 = vunpack.c.l.b16 %v1201
    %v1935 = vunpack.c.h.b16 %v1201
    %v1936 = vunpack.c.l.b16 %v1202
    %v1937 = vunpack.c.h.b16 %v1202
    %v1938 = vunpack.c.l.b16 %v1203
    %v1939 = vunpack.c.h.b16 %v1203
    %v1940 = vunpack.c.l.b16 %v1204
    %v1941 = vunpack.c.h.b16 %v1204
    %v1942 = vunpack.c.l.b16 %v1205
    %v1943 = vunpack.c.h.b16 %v1205
    %v1944 = vunpack.c.l.b16 %v1206
    %v1945 = vunpack.c.h.b16 %v1206
    %v1946 = vunpack.c.l.b16 %v1207
    %v1947 = vunpack.c.h.b16 %v1207
    %v1948 = vunpack.c.l.b16 %v1208
    %v1949 = vunpack.c.h.b16 %v1208
    %v1950 = vunpack.c.l.b16 %v1209
    %v1951 = vunpack.c.h.b16 %v1209
    %v1952 = vunpack.c.l.b16 %v1210
    %v1953 = vunpack.c.h.b16 %v1210
    %v1954 = vunpack.c.l.b16 %v1211
    %v1955 = vunpack.c.h.b16 %v1211
    %v1956 = vunpack.c.l.b16 %v1212
    %v1957 = vunpack.c.h.b16 %v1212
    %v1958 = vunpack.c.l.b16 %v1213
    %v1959 = vunpack.c.h.b16 %v1213
    %v1960 = vunpack.c.l.b16 %v1214
    %v1961 = vunpack.c.h.b16 %v1214
    %v1962 = vunpack.c.l.b16 %v1215
    %v1963 = vunpack.c.h.b16 %v1215
    %v1964 = vunpack.c.l.b16 %v1216
    %v1965 = vunpack.c.h.b16 %v1216
    %v1966 = vunpack.c.l.b16 %v1217
    %v1967 = vunpack.c.h.b16 %v1217
    %v1968 = vunpack.c.l.b16 %v1218
    %v1969 = vunpack.c.h.b16 %v1218
    %v1970 = vunpack.c.l.b16 %v1219
    %v1971 = vunpack.c.h.b16 %v1219
    %v1972 = vunpack.c.l.b16 %v1220
    %v1973 = vunpack.c.h.b16 %v1220
    %v1974 = vunpack.c.l.b16 %v1221
    %v1975 = vunpack.c.h.b16 %v1221
    %v1976 = vunpack.c.l.b16 %v1222
    %v1977 = vunpack.c.h.b16 %v1222
    %v1978 = vunpack.c.l.b16 %v1223
    %v1979 = vunpack.c.h.b16 %v1223
    %v1980 = vunpack.c.l.b16 %v1224
    %v1981 = vunpack.c.h.b16 %v1224
    %v1982 = vunpack.c.l.b16 %v1225
    %v1983 = vunpack.c.h.b16 %v1225
    %v1984 = vunpack.c.l.b16 %v1226
    %v1985 = vunpack.c.h.b16 %v1226
    %v1986 = vunpack.c.l.b16 %v1227
    %v1987 = vunpack.c.h.b16 %v1227
    %v1988 = vunpack.c.l.b16 %v1228
    %v1989 = vunpack.c.h.b16 %v1228
    %v1990 = vunpack.c.l.b16 %v1229
    %v1991 = vunpack.c.h.b16 %v1229
    %v1992 = vunpack.c.l.b16 %v1230
    %v1993 = vunpack.c.h.b16 %v1230
    %v1994 = vunpack.c.l.b16 %v1231
    %v1995 = vunpack.c.h.b16 %v1231
    %v1996 = vunpack.c.l.b16 %v1232
    %v1997 = vunpack.c.h.b16 %v1232
    %v1998 = vunpack.c.l.b16 %v1233
    %v1999 = vunpack.c.h.b16 %v1233
    %v2000 = vunpack.c.l.b16 %v1234
    %v2001 = vunpack.c.h.b16 %v1234
    %v2002 = vunpack.c.l.b16 %v1235
    %v2003 = vunpack.c.h.b16 %v1235
    %v2004 = vunpack.c.l.b16 %v1236
    %v2005 = vunpack.c.h.b16 %v1236
    %v2006 = vunpack.c.l.b16 %v1237
    %v2007 = vunpack.c.h.b16 %v1237
    %v2008 = vunpack.c.l.b16 %v1238
    %v2009 = vunpack.c.h.b16 %v1238
    %v2010 = vunpack.c.l.b16 %v1239
    %v2011 = vunpack.c.h.b16 %v1239
    %v2012 = vunpack.c.l.b16 %v1240
    %v2013 = vunpack.c.h.b16 %v1240
    %v2014 = vunpack.c.l.b16 %v1241
    %v2015 = vunpack.c.h.b16 %v1241
    %v2016 = vunpack.c.l.b16 %v1242
    %v2017 = vunpack.c.h.b16 %v1242
    %v2018 = vunpack.c.l.b16 %v1243
    %v2019 = vunpack.c.h.b16 %v1243
    %v2020 = vunpack.c.l.b16 %v1244
    %v2021 = vunpack.c.h.b16 %v1244
    %v2022 = vunpack.c.l.b16 %v1245
    %v2023 = vunpack.c.h.b16 %v1245
    %v2024 = vunpack.c.l.b16 %v1246
    %v2025 = vunpack.c.h.b16 %v1246
    %v2026 = vunpack.c.l.b16 %v1247
    %v2027 = vunpack.c.h.b16 %v1247
    %v2028 = vunpack.c.l.b16 %v1248
    %v2029 = vunpack.c.h.b16 %v1248
    %v2030 = vunpack.c.l.b16 %v1249
    %v2031 = vunpack.c.h.b16 %v1249
    %v2032 = vunpack.c.l.b16 %v1250
    %v2033 = vunpack.c.h.b16 %v1250
    %v2034 = vunpack.c.l.b16 %v1251
    %v2035 = vunpack.c.h.b16 %v1251
    %v2036 = vunpack.c.l.b16 %v1252
    %v2037 = vunpack.c.h.b16 %v1252
    %v2038 = vunpack.c.l.b16 %v1253
    %v2039 = vunpack.c.h.b16 %v1253
    %v2040 = vunpack.c.l.b16 %v1254
    %v2041 = vunpack.c.h.b16 %v1254
    %v2042 = vunpack.c.l.b16 %v1255
    %v2043 = vunpack.c.h.b16 %v1255
    %v2044 = vunpack.c.l.b16 %v1256
    %v2045 = vunpack.c.h.b16 %v1256
    %v2046 = vunpack.c.l.b16 %v1257
    %v2047 = vunpack.c.h.b16 %v1257
    %v2048 = vunpack.c.l.b16 %v1258
    %v2049 = vunpack.c.h.b16 %v1258
    %v2050 = vunpack.c.l.b16 %v1259
    %v2051 = vunpack.c.h.b16 %v1259
    %v2052 = vunpack.c.l.b16 %v1260
    %v2053 = vunpack.c.h.b16 %v1260
    %v2054 = vunpack.c.l.b16 %v1261
    %v2055 = vunpack.c.h.b16 %v1261
    %v2056 = vunpack.c.l.b16 %v1262
    %v2057 = vunpack.c.h.b16 %v1262
    %v2058 = vunpack.c.l.b16 %v1263
    %v2059 = vunpack.c.h.b16 %v1263
    %v2060 = vunpack.c.l.b16 %v1264
    %v2061 = vunpack.c.h.b16 %v1264
    %v2062 = vunpack.c.l.b16 %v1265
    %v2063 = vunpack.c.h.b16 %v1265
    %v2064 = vunpack.c.l.b16 %v1266
    %v2065 = vunpack.c.h.b16 %v1266
    %v2066 = vunpack.c.l.b16 %v1267
    %v2067 = vunpack.c.h.b16 %v1267
    %v2068 = vunpack.c.l.b16 %v1268
    %v2069 = vunpack.c.h.b16 %v1268
    %v2070 = vunpack.c.l.b16 %v1269
    %v2071 = vunpack.c.h.b16 %v1269
    %v2072 = vunpack.c.l.b16 %v1270
    %v2073 = vunpack.c.h.b16 %v1270
    %v2074 = vunpack.c.l.b16 %v1271
    %v2075 = vunpack.c.h.b16 %v1271
    %v2076 = vunpack.c.l.b16 %v1272
    %v2077 = vunpack.c.h.b16 %v1272
    %v2078 = vunpack.c.l.b16 %v1273
    %v2079 = vunpack.c.h.b16 %v1273
    %v2080 = vunpack.c.l.b16 %v1274
    %v2081 = vunpack.c.h.b16 %v1274
    %v2082 = vunpack.c.l.b16 %v1275
    %v2083 = vunpack.c.h.b16 %v1275
    %v2084 = vunpack.c.l.b16 %v1276
    %v2085 = vunpack.c.h.b16 %v1276
    %v2086 = vunpack.c.l.b16 %v1277
    %v2087 = vunpack.c.h.b16 %v1277
    %v2088 = vunpack.c.l.b16 %v1278
    %v2089 = vunpack.c.h.b16 %v1278
    %v2090 = vunpack.c.l.b16 %v1279
    %v2091 = vunpack.c.h.b16 %v1279
    %v2092 = vunpack.c.l.b16 %v1280
    %v2093 = vunpack.c.h.b16 %v1280
    %v2094 = vunpack.c.l.b16 %v1281
    %v2095 = vunpack.c.h.b16 %v1281
    %v2096 = vunpack.c.l.b16 %v1282
    %v2097 = vunpack.c.h.b16 %v1282
    %v2098 = vunpack.c.l.b16 %v1283
    %v2099 = vunpack.c.h.b16 %v1283
    %v2100 = vunpack.c.l.b16 %v1284
    %v2101 = vunpack.c.h.b16 %v1284
    %v2102 = vunpack.c.l.b16 %v1285
    %v2103 = vunpack.c.h.b16 %v1285
    %v2104 = vunpack.c.l.b16 %v1286
    %v2105 = vunpack.c.h.b16 %v1286
    %v2106 = vunpack.c.l.b16 %v1287
    %v2107 = vunpack.c.h.b16 %v1287
    %v2108 = vunpack.c.l.b16 %v1288
    %v2109 = vunpack.c.h.b16 %v1288
    %v2110 = vunpack.c.l.b16 %v1289
    %v2111 = vunpack.c.h.b16 %v1289
    %v2112 = vunpack.c.l.b16 %v1290
    %v2113 = vunpack.c.h.b16 %v1290
    %v2114 = vunpack.c.l.b16 %v1291
    %v2115 = vunpack.c.h.b16 %v1291
    %v2116 = vunpack.c.l.b16 %v1292
    %v2117 = vunpack.c.h.b16 %v1292
    %v2118 = vunpack.c.l.b16 %v1293
    %v2119 = vunpack.c.h.b16 %v1293
    %v2120 = vunpack.c.l.b16 %v1294
    %v2121 = vunpack.c.h.b16 %v1294
    %v2122 = vunpack.c.l.b16 %v1295
    %v2123 = vunpack.c.h.b16 %v1295
    %v2124 = vunpack.c.l.b16 %v1296
    %v2125 = vunpack.c.h.b16 %v1296
    %v2126 = vunpack.c.l.b16 %v1297
    %v2127 = vunpack.c.h.b16 %v1297
    %v2128 = vunpack.c.l.b16 %v1298
    %v2129 = vunpack.c.h.b16 %v1298
    %v2130 = vunpack.c.l.b16 %v1299
    %v2131 = vunpack.c.h.b16 %v1299
    %v2132 = vunpack.c.l.b16 %v1300
    %v2133 = vunpack.c.h.b16 %v1300
    %v2134 = vunpack.c.l.b16 %v1301
    %v2135 = vunpack.c.h.b16 %v1301
    %v2136 = vunpack.c.l.b16 %v1302
    %v2137 = vunpack.c.h.b16 %v1302
    %v2138 = vunpack.c.l.b16 %v1303
    %v2139 = vunpack.c.h.b16 %v1303
    %v2140 = vunpack.c.l.b16 %v1304
    %v2141 = vunpack.c.h.b16 %v1304
    %v2142 = vunpack.c.l.b16 %v1305
    %v2143 = vunpack.c.h.b16 %v1305
    %v2144 = vunpack.c.l.b16 %v1306
    %v2145 = vunpack.c.h.b16 %v1306
    %v2146 = vunpack.c.l.b16 %v1307
    %v2147 = vunpack.c.h.b16 %v1307
    %v2148 = vunpack.c.l.b16 %v1308
    %v2149 = vunpack.c.h.b16 %v1308
    %v2150 = vunpack.c.l.b16 %v1309
    %v2151 = vunpack.c.h.b16 %v1309
    %v2152 = vunpack.c.l.b16 %v1310
    %v2153 = vunpack.c.h.b16 %v1310
    %v2154 = vunpack.c.l.b16 %v1311
    %v2155 = vunpack.c.h.b16 %v1311
    %v2156 = vunpack.c.l.b16 %v1312
    %v2157 = vunpack.c.h.b16 %v1312
    %v2158 = vunpack.c.l.b16 %v1313
    %v2159 = vunpack.c.h.b16 %v1313
    %v2160 = vunpack.c.l.b16 %v1314
    %v2161 = vunpack.c.h.b16 %v1314
    %v2162 = vunpack.c.l.b16 %v1315
    %v2163 = vunpack.c.h.b16 %v1315
    %v2164 = vunpack.c.l.b16 %v1316
    %v2165 = vunpack.c.h.b16 %v1316
    %v2166 = vunpack.c.l.b16 %v1317
    %v2167 = vunpack.c.h.b16 %v1317
    %v2168 = vunpack.c.l.b16 %v1318
    %v2169 = vunpack.c.h.b16 %v1318
    %v2170 = vunpack.c.l.b16 %v1319
    %v2171 = vunpack.c.h.b16 %v1319
    %v2172 = vunpack.c.l.b16 %v1320
    %v2173 = vunpack.c.h.b16 %v1320
    %v2174 = vunpack.c.l.b16 %v1321
    %v2175 = vunpack.c.h.b16 %v1321
    %v2176 = vunpack.c.l.b16 %v1322
    %v2177 = vunpack.c.h.b16 %v1322
    %v2178 = vunpack.c.l.b16 %v1323
    %v2179 = vunpack.c.h.b16 %v1323
    %v2180 = vunpack.c.l.b16 %v1324
    %v2181 = vunpack.c.h.b16 %v1324
    %v2182 = vunpack.c.l.b16 %v1325
    %v2183 = vunpack.c.h.b16 %v1325
    %v2184 = vunpack.c.l.b16 %v1326
    %v2185 = vunpack.c.h.b16 %v1326
    %v2186 = vunpack.c.l.b16 %v1327
    %v2187 = vunpack.c.h.b16 %v1327
    %v2188 = vunpack.c.l.b16 %v1328
    %v2189 = vunpack.c.h.b16 %v1328
    %v2190 = vunpack.c.l.b16 %v1329
    %v2191 = vunpack.c.h.b16 %v1329
    %v2192 = vunpack.c.l.b16 %v1330
    %v2193 = vunpack.c.h.b16 %v1330
    %v2194 = vunpack.c.l.b16 %v1331
    %v2195 = vunpack.c.h.b16 %v1331
    %v2196 = vunpack.c.l.b16 %v1332
    %v2197 = vunpack.c.h.b16 %v1332
    %v2198 = vunpack.c.l.b16 %v1333
    %v2199 = vunpack.c.h.b16 %v1333
    %v2200 = vunpack.c.l.b16 %v1334
    %v2201 = vunpack.c.h.b16 %v1334
    %v2202 = vunpack.c.l.b16 %v1335
    %v2203 = vunpack.c.h.b16 %v1335
    %v2204 = vunpack.c.l.b16 %v1336
    %v2205 = vunpack.c.h.b16 %v1336
    %v2206 = vunpack.c.l.b16 %v1337
    %v2207 = vunpack.c.h.b16 %v1337
    %v2208 = vunpack.c.l.b16 %v1338
    %v2209 = vunpack.c.h.b16 %v1338
    %v2210 = vunpack.c.l.b16 %v1339
    %v2211 = vunpack.c.h.b16 %v1339
    %v2212 = vunpack.c.l.b16 %v1340
    %v2213 = vunpack.c.h.b16 %v1340
    %v2214 = vpack.c.b16 %v1650, %v1638
    %v2215 = vpack.c.b16 %v1651, %v1639
    %v2216 = vpack.c.b16 %v1652, %v1640
    %v2217 = vpack.c.b16 %v1653, %v1641
    %v2218 = vpack.c.b16 %v1654, %v1642
    %v2219 = vpack.c.b16 %v1655, %v1643
    %v2220 = vpack.c.b16 %v1656, %v1644
    %v2221 = vpack.c.b16 %v1657, %v1645
    %v2222 = vpack.c.b16 %v1658, %v1646
    %v2223 = vpack.c.b16 %v1659, %v1647
    %v2224 = vpack.c.b16 %v1660, %v1648
    %v2225 = vpack.c.b16 %v1661, %v1649
    %v2226 = vpack.c.b16 %v1674, %v1662
    %v2227 = vpack.c.b16 %v1675, %v1663
    %v2228 = vpack.c.b16 %v1676, %v1664
    %v2229 = vpack.c.b16 %v1677, %v1665
    %v2230 = vpack.c.b16 %v1678, %v1666
    %v2231 = vpack.c.b16 %v1679, %v1667
    %v2232 = vpack.c.b16 %v1680, %v1668
    %v2233 = vpack.c.b16 %v1681, %v1669
    %v2234 = vpack.c.b16 %v1682, %v1670
    %v2235 = vpack.c.b16 %v1683, %v1671
    %v2236 = vpack.c.b16 %v1684, %v1672
    %v2237 = vpack.c.b16 %v1685, %v1673
    %v2238 = vpack.c.b16 %v1698, %v1686
    %v2239 = vpack.c.b16 %v1699, %v1687
    %v2240 = vpack.c.b16 %v1700, %v1688
    %v2241 = vpack.c.b16 %v1701, %v1689
    %v2242 = vpack.c.b16 %v1702, %v1690
    %v2243 = vpack.c.b16 %v1703, %v1691
    %v2244 = vpack.c.b16 %v1704, %v1692
    %v2245 = vpack.c.b16 %v1705, %v1693
    %v2246 = vpack.c.b16 %v1706, %v1694
    %v2247 = vpack.c.b16 %v1707, %v1695
    %v2248 = vpack.c.b16 %v1708, %v1696
    %v2249 = vpack.c.b16 %v1709, %v1697
    %v2250 = vpack.c.b16 %v1722, %v1710
    %v2251 = vpack.c.b16 %v1723, %v1711
    %v2252 = vpack.c.b16 %v1724, %v1712
    %v2253 = vpack.c.b16 %v1725, %v1713
    %v2254 = vpack.c.b16 %v1726, %v1714
    %v2255 = vpack.c.b16 %v1727, %v1715
    %v2256 = vpack.c.b16 %v1728, %v1716
    %v2257 = vpack.c.b16 %v1729, %v1717
    %v2258 = vpack.c.b16 %v1730, %v1718
    %v2259 = vpack.c.b16 %v1731, %v1719
    %v2260 = vpack.c.b16 %v1732, %v1720
    %v2261 = vpack.c.b16 %v1733, %v1721
    %v2262 = vpack.c.b16 %v1746, %v1734
    %v2263 = vpack.c.b16 %v1747, %v1735
    %v2264 = vpack.c.b16 %v1748, %v1736
    %v2265 = vpack.c.b16 %v1749, %v1737
    %v2266 = vpack.c.b16 %v1750, %v1738
    %v2267 = vpack.c.b16 %v1751, %v1739
    %v2268 = vpack.c.b16 %v1752, %v1740
    %v2269 = vpack.c.b16 %v1753, %v1741
    %v2270 = vpack.c.b16 %v1754, %v1742
    %v2271 = vpack.c.b16 %v1755, %v1743
    %v2272 = vpack.c.b16 %v1756, %v1744
    %v2273 = vpack.c.b16 %v1757, %v1745
    %v2274 = vpack.c.b16 %v1770, %v1758
    %v2275 = vpack.c.b16 %v1771, %v1759
    %v2276 = vpack.c.b16 %v1772, %v1760
    %v2277 = vpack.c.b16 %v1773, %v1761
    %v2278 = vpack.c.b16 %v1774, %v1762
    %v2279 = vpack.c.b16 %v1775, %v1763
    %v2280 = vpack.c.b16 %v1776, %v1764
    %v2281 = vpack.c.b16 %v1777, %v1765
    %v2282 = vpack.c.b16 %v1778, %v1766
    %v2283 = vpack.c.b16 %v1779, %v1767
    %v2284 = vpack.c.b16 %v1780, %v1768
    %v2285 = vpack.c.b16 %v1781, %v1769
    %v2286 = vpack.c.b16 %v1794, %v1782
    %v2287 = vpack.c.b16 %v1795, %v1783
    %v2288 = vpack.c.b16 %v1796, %v1784
    %v2289 = vpack.c.b16 %v1797, %v1785
    %v2290 = vpack.c.b16 %v1798, %v1786
    %v2291 = vpack.c.b16 %v1799, %v1787
    %v2292 = vpack.c.b16 %v1800, %v1788
    %v2293 = vpack.c.b16 %v1801, %v1789
    %v2294 = vpack.c.b16 %v1802, %v1790
    %v2295 = vpack.c.b16 %v1803, %v1791
    %v2296 = vpack.c.b16 %v1804, %v1792
    %v2297 = vpack.c.b16 %v1805, %v1793
    %v2298 = vpack.c.b16 %v1818, %v1806
    %v2299 = vpack.c.b16 %v1819, %v1807
    %v2300 = vpack.c.b16 %v1820, %v1808
    %v2301 = vpack.c.b16 %v1821, %v1809
    %v2302 = vpack.c.b16 %v1822, %v1810
    %v2303 = vpack.c.b16 %v1823, %v1811
    %v2304 = vpack.c.b16 %v1824, %v1812
    %v2305 = vpack.c.b16 %v1825, %v1813
    %v2306 = vpack.c.b16 %v1826, %v1814
    %v2307 = vpack.c.b16 %v1827, %v1815
    %v2308 = vpack.c.b16 %v1828, %v1816
    %v2309 = vpack.c.b16 %v1829, %v1817
    %v2310 = vpack.c.b16 %v1842, %v1830
    %v2311 = vpack.c.b16 %v1843, %v1831
    %v2312 = vpack.c.b16 %v1844, %v1832
    %v2313 = vpack.c.b16 %v1845, %v1833
    %v2314 = vpack.c.b16 %v1846, %v1834
    %v2315 = vpack.c.b16 %v1847, %v1835
    %v2316 = vpack.c.b16 %v1848, %v1836
    %v2317 = vpack.c.b16 %v1849, %v1837
    %v2318 = vpack.c.b16 %v1850, %v1838
    %v2319 = vpack.c.b16 %v1851, %v1839
    %v2320 = vpack.c.b16 %v1852, %v1840
    %v2321 = vpack.c.b16 %v1853, %v1841
    %v2322 = vpack.c.b16 %v1866, %v1854
    %v2323 = vpack.c.b16 %v1867, %v1855
    %v2324 = vpack.c.b16 %v1868, %v1856
    %v2325 = vpack.c.b16 %v1869, %v1857
    %v2326 = vpack.c.b16 %v1870, %v1858
    %v2327 = vpack.c.b16 %v1871, %v1859
    %v2328 = vpack.c.b16 %v1872, %v1860
    %v2329 = vpack.c.b16 %v1873, %v1861
    %v2330 = vpack.c.b16 %v1874, %v1862
    %v2331 = vpack.c.b16 %v1875, %v1863
    %v2332 = vpack.c.b16 %v1876, %v1864
    %v2333 = vpack.c.b16 %v1877, %v1865
    %v2334 = vpack.c.b16 %v1890, %v1878
    %v2335 = vpack.c.b16 %v1891, %v1879
    %v2336 = vpack.c.b16 %v1892, %v1880
    %v2337 = vpack.c.b16 %v1893, %v1881
    %v2338 = vpack.c.b16 %v1894, %v1882
    %v2339 = vpack.c.b16 %v1895, %v1883
    %v2340 = vpack.c.b16 %v1896, %v1884
    %v2341 = vpack.c.b16 %v1897, %v1885
    %v2342 = vpack.c.b16 %v1898, %v1886
    %v2343 = vpack.c.b16 %v1899, %v1887
    %v2344 = vpack.c.b16 %v1900, %v1888
    %v2345 = vpack.c.b16 %v1901, %v1889
    %v2346 = vpack.c.b16 %v1914, %v1902
    %v2347 = vpack.c.b16 %v1915, %v1903
    %v2348 = vpack.c.b16 %v1916, %v1904
    %v2349 = vpack.c.b16 %v1917, %v1905
    %v2350 = vpack.c.b16 %v1918, %v1906
    %v2351 = vpack.c.b16 %v1919, %v1907
    %v2352 = vpack.c.b16 %v1920, %v1908
    %v2353 = vpack.c.b16 %v1921, %v1909
    %v2354 = vpack.c.b16 %v1922, %v1910
    %v2355 = vpack.c.b16 %v1923, %v1911
    %v2356 = vpack.c.b16 %v1924, %v1912
    %v2357 = vpack.c.b16 %v1925, %v1913
    %v2358 = vpack.c.b16 %v1938, %v1926
    %v2359 = vpack.c.b16 %v1939, %v1927
    %v2360 = vpack.c.b16 %v1940, %v1928
    %v2361 = vpack.c.b16 %v1941, %v1929
    %v2362 = vpack.c.b16 %v1942, %v1930
    %v2363 = vpack.c.b16 %v1943, %v1931
    %v2364 = vpack.c.b16 %v1944, %v1932
    %v2365 = vpack.c.b16 %v1945, %v1933
    %v2366 = vpack.c.b16 %v1946, %v1934
    %v2367 = vpack.c.b16 %v1947, %v1935
    %v2368 = vpack.c.b16 %v1948, %v1936
    %v2369 = vpack.c.b16 %v1949, %v1937
    %v2370 = vpack.c.b16 %v1962, %v1950
    %v2371 = vpack.c.b16 %v1963, %v1951
    %v2372 = vpack.c.b16 %v1964, %v1952
    %v2373 = vpack.c.b16 %v1965, %v1953
    %v2374 = vpack.c.b16 %v1966, %v1954
    %v2375 = vpack.c.b16 %v1967, %v1955
    %v2376 = vpack.c.b16 %v1968, %v1956
    %v2377 = vpack.c.b16 %v1969, %v1957
    %v2378 = vpack.c.b16 %v1970, %v1958
    %v2379 = vpack.c.b16 %v1971, %v1959
    %v2380 = vpack.c.b16 %v1972, %v1960
    %v2381 = vpack.c.b16 %v1973, %v1961
    %v2382 = vpack.c.b16 %v1986, %v1974
    %v2383 = vpack.c.b16 %v1987, %v1975
    %v2384 = vpack.c.b16 %v1988, %v1976
    %v2385 = vpack.c.b16 %v1989, %v1977
    %v2386 = vpack.c.b16 %v1990, %v1978
    %v2387 = vpack.c.b16 %v1991, %v1979
    %v2388 = vpack.c.b16 %v1992, %v1980
    %v2389 = vpack.c.b16 %v1993, %v1981
    %v2390 = vpack.c.b16 %v1994, %v1982
    %v2391 = vpack.c.b16 %v1995, %v1983
    %v2392 = vpack.c.b16 %v1996, %v1984
    %v2393 = vpack.c.b16 %v1997, %v1985
    %v2394 = vpack.c.b16 %v2010, %v1998
    %v2395 = vpack.c.b16 %v2011, %v1999
    %v2396 = vpack.c.b16 %v2012, %v2000
    %v2397 = vpack.c.b16 %v2013, %v2001
    %v2398 = vpack.c.b16 %v2014, %v2002
    %v2399 = vpack.c.b16 %v2015, %v2003
    %v2400 = vpack.c.b16 %v2016, %v2004
    %v2401 = vpack.c.b16 %v2017, %v2005
    %v2402 = vpack.c.b16 %v2018, %v2006
    %v2403 = vpack.c.b16 %v2019, %v2007
    %v2404 = vpack.c.b16 %v2020, %v2008
    %v2405 = vpack.c.b16 %v2021, %v2009
    %v2406 = vpack.c.b16 %v2034, %v2022
    %v2407 = vpack.c.b16 %v2035, %v2023
    %v2408 = vpack.c.b16 %v2036, %v2024
    %v2409 = vpack.c.b16 %v2037, %v2025
    %v2410 = vpack.c.b16 %v2038, %v2026
    %v2411 = vpack.c.b16 %v2039, %v2027
    %v2412 = vpack.c.b16 %v2040, %v2028
    %v2413 = vpack.c.b16 %v2041, %v2029
    %v2414 = vpack.c.b16 %v2042, %v2030
    %v2415 = vpack.c.b16 %v2043, %v2031
    %v2416 = vpack.c.b16 %v2044, %v2032
    %v2417 = vpack.c.b16 %v2045, %v2033
    %v2418 = vpack.c.b16 %v2058, %v2046
    %v2419 = vpack.c.b16 %v2059, %v2047
    %v2420 = vpack.c.b16 %v2060, %v2048
    %v2421 = vpack.c.b16 %v2061, %v2049
    %v2422 = vpack.c.b16 %v2062, %v2050
    %v2423 = vpack.c.b16 %v2063, %v2051
    %v2424 = vpack.c.b16 %v2064, %v2052
    %v2425 = vpack.c.b16 %v2065, %v2053
    %v2426 = vpack.c.b16 %v2066, %v2054
    %v2427 = vpack.c.b16 %v2067, %v2055
    %v2428 = vpack.c.b16 %v2068, %v2056
    %v2429 = vpack.c.b16 %v2069, %v2057
    %v2430 = vpack.c.b16 %v2082, %v2070
    %v2431 = vpack.c.b16 %v2083, %v2071
    %v2432 = vpack.c.b16 %v2084, %v2072
    %v2433 = vpack.c.b16 %v2085, %v2073
    %v2434 = vpack.c.b16 %v2086, %v2074
    %v2435 = vpack.c.b16 %v2087, %v2075
    %v2436 = vpack.c.b16 %v2088, %v2076
    %v2437 = vpack.c.b16 %v2089, %v2077
    %v2438 = vpack.c.b16 %v2090, %v2078
    %v2439 = vpack.c.b16 %v2091, %v2079
    %v2440 = vpack.c.b16 %v2092, %v2080
    %v2441 = vpack.c.b16 %v2093, %v2081
    %v2442 = vpack.c.b16 %v2106, %v2094
    %v2443 = vpack.c.b16 %v2107, %v2095
    %v2444 = vpack.c.b16 %v2108, %v2096
    %v2445 = vpack.c.b16 %v2109, %v2097
    %v2446 = vpack.c.b16 %v2110, %v2098
    %v2447 = vpack.c.b16 %v2111, %v2099
    %v2448 = vpack.c.b16 %v2112, %v2100
    %v2449 = vpack.c.b16 %v2113, %v2101
    %v2450 = vpack.c.b16 %v2114, %v2102
    %v2451 = vpack.c.b16 %v2115, %v2103
    %v2452 = vpack.c.b16 %v2116, %v2104
    %v2453 = vpack.c.b16 %v2117, %v2105
    %v2454 = vpack.c.b16 %v2130, %v2118
    %v2455 = vpack.c.b16 %v2131, %v2119
    %v2456 = vpack.c.b16 %v2132, %v2120
    %v2457 = vpack.c.b16 %v2133, %v2121
    %v2458 = vpack.c.b16 %v2134, %v2122
    %v2459 = vpack.c.b16 %v2135, %v2123
    %v2460 = vpack.c.b16 %v2136, %v2124
    %v2461 = vpack.c.b16 %v2137, %v2125
    %v2462 = vpack.c.b16 %v2138, %v2126
    %v2463 = vpack.c.b16 %v2139, %v2127
    %v2464 = vpack.c.b16 %v2140, %v2128
    %v2465 = vpack.c.b16 %v2141, %v2129
    %v2466 = vpack.c.b16 %v2154, %v2142
    %v2467 = vpack.c.b16 %v2155, %v2143
    %v2468 = vpack.c.b16 %v2156, %v2144
    %v2469 = vpack.c.b16 %v2157, %v2145
    %v2470 = vpack.c.b16 %v2158, %v2146
    %v2471 = vpack.c.b16 %v2159, %v2147
    %v2472 = vpack.c.b16 %v2160, %v2148
    %v2473 = vpack.c.b16 %v2161, %v2149
    %v2474 = vpack.c.b16 %v2162, %v2150
    %v2475 = vpack.c.b16 %v2163, %v2151
    %v2476 = vpack.c.b16 %v2164, %v2152
    %v2477 = vpack.c.b16 %v2165, %v2153
    %v2478 = vpack.c.b16 %v2178, %v2166
    %v2479 = vpack.c.b16 %v2179, %v2167
    %v2480 = vpack.c.b16 %v2180, %v2168
    %v2481 = vpack.c.b16 %v2181, %v2169
    %v2482 = vpack.c.b16 %v2182, %v2170
    %v2483 = vpack.c.b16 %v2183, %v2171
    %v2484 = vpack.c.b16 %v2184, %v2172
    %v2485 = vpack.c.b16 %v2185, %v2173
    %v2486 = vpack.c.b16 %v2186, %v2174
    %v2487 = vpack.c.b16 %v2187, %v2175
    %v2488 = vpack.c.b16 %v2188, %v2176
    %v2489 = vpack.c.b16 %v2189, %v2177
    %v2490 = vpack.c.b16 %v2202, %v2190
    %v2491 = vpack.c.b16 %v2203, %v2191
    %v2492 = vpack.c.b16 %v2204, %v2192
    %v2493 = vpack.c.b16 %v2205, %v2193
    %v2494 = vpack.c.b16 %v2206, %v2194
    %v2495 = vpack.c.b16 %v2207, %v2195
    %v2496 = vpack.c.b16 %v2208, %v2196
    %v2497 = vpack.c.b16 %v2209, %v2197
    %v2498 = vpack.c.b16 %v2210, %v2198
    %v2499 = vpack.c.b16 %v2211, %v2199
    %v2500 = vpack.c.b16 %v2212, %v2200
    %v2501 = vpack.c.b16 %v2213, %v2201
    %2790 = vmatprep.subr.bf16.mxu0 %v2215
    %2791 = vmatpush1.bf16.msra.mxu0 %v2214
    %2792 = vmatprep.subr.bf16.mxu0 %v2227
    %2793 = vmatpush1.bf16.msra.mxu0 %v2226
    %2794 = vmatprep.subr.bf16.mxu0 %v2239
    %2795 = vmatpush1.bf16.msra.mxu0 %v2238
    %2796 = vmatprep.subr.bf16.mxu0 %v2251
    %2797 = vmatpush1.bf16.msra.mxu0 %v2250
    %2798 = vmatprep.subr.bf16.mxu0 %v2263
    %2799 = vmatpush1.bf16.msra.mxu0 %v2262
    %2800 = vmatprep.subr.bf16.mxu0 %v2275
    %2801 = vmatpush1.bf16.msra.mxu0 %v2274
    %2802 = vmatprep.subr.bf16.mxu0 %v2287
    %2803 = vmatpush1.bf16.msra.mxu0 %v2286
    %2804 = vmatprep.subr.bf16.mxu0 %v2299
    %2805 = vmatpush1.bf16.msra.mxu0 %v2298
    %2806 = vmatprep.subr.bf16.mxu0 %v2311
    %2807 = vmatpush1.bf16.msra.mxu0 %v2310
    %2808 = vmatprep.subr.bf16.mxu0 %v2323
    %2809 = vmatpush1.bf16.msra.mxu0 %v2322
    %2810 = vmatprep.subr.bf16.mxu0 %v2335
    %2811 = vmatpush1.bf16.msra.mxu0 %v2334
    %2812 = vmatprep.subr.bf16.mxu0 %v2347
    %2813 = vmatpush1.bf16.msra.mxu0 %v2346
    %2814 = vmatprep.subr.bf16.mxu0 %v2359
    %2815 = vmatpush1.bf16.msra.mxu0 %v2358
    %2816 = vmatprep.subr.bf16.mxu0 %v2371
    %2817 = vmatpush1.bf16.msra.mxu0 %v2370
    %2818 = vmatprep.subr.bf16.mxu0 %v2383
    %2819 = vmatpush1.bf16.msra.mxu0 %v2382
    %2820 = vmatprep.subr.bf16.mxu0 %v2395
    %2821 = vmatpush1.bf16.msra.mxu0 %v2394
    %2822 = vmatprep.mubr.bf16.mxu0 %v1348
    %2823 = vmatmul.mubr.bf16.gmra.mrb[0].mxu0 %v1347
    %v2824 = vpop.f32.mrb[0].mxu0
    %v2825 = vadd.f32 0.0, %v2824
    %v2826 = vpop.f32.mrb[0].mxu0
    %v2827 = vadd.f32 0.0, %v2826
    %v2828 = vpop.f32.mrb[0].mxu0
    %v2829 = vpop.f32.mrb[0].mxu0
    %2830 = vdwg.mxu0
    %2831 = vmatprep.subr.bf16.mxu0 %v2407
    %2832 = vmatpush1.bf16.msra.mxu0 %v2406
    %2833 = vmatprep.subr.bf16.mxu0 %v2419
    %2834 = vmatpush1.bf16.msra.mxu0 %v2418
    %2835 = vmatprep.subr.bf16.mxu0 %v2431
    %2836 = vmatpush1.bf16.msra.mxu0 %v2430
    %2837 = vmatprep.subr.bf16.mxu0 %v2443
    %2838 = vmatpush1.bf16.msra.mxu0 %v2442
    %2839 = vmatprep.subr.bf16.mxu0 %v2455
    %2840 = vmatpush1.bf16.msra.mxu0 %v2454
    %2841 = vmatprep.subr.bf16.mxu0 %v2467
    %2842 = vmatpush1.bf16.msra.mxu0 %v2466
    %2843 = vmatprep.subr.bf16.mxu0 %v2479
    %2844 = vmatpush1.bf16.msra.mxu0 %v2478
    %2845 = vmatprep.subr.bf16.mxu0 %v2491
    %2846 = vmatpush1.bf16.msra.mxu0 %v2490
    %2847 = vmatprep.subr.bf16.mxu0 0
    %2848 = vmatpush1.bf16.msra.mxu0 0
    %2849 = vmatprep.subr.bf16.mxu0 0
    %2850 = vmatpush1.bf16.msra.mxu0 0
    %2851 = vmatprep.subr.bf16.mxu0 0
    %2852 = vmatpush1.bf16.msra.mxu0 0
    %2853 = vmatprep.subr.bf16.mxu0 0
    %2854 = vmatpush1.bf16.msra.mxu0 0
    %2855 = vmatprep.subr.bf16.mxu0 0
    %2856 = vmatpush1.bf16.msra.mxu0 0
    %2857 = vmatprep.subr.bf16.mxu0 0
    %2858 = vmatpush1.bf16.msra.mxu0 0
    %2859 = vmatprep.subr.bf16.mxu0 0
    %2860 = vmatpush1.bf16.msra.mxu0 0
    %2861 = vmatprep.subr.bf16.mxu0 0
    %2862 = vmatpush1.bf16.msra.mxu0 0
    %2863 = vmatprep.mubr.bf16.mxu0 0
    %2864 = vmatmul.mubr.bf16.gmra.mrb[0].mxu0 %v1349
    %v2865 = vpop.f32.mrb[0].mxu0
    %v2866 = vadd.f32 %v2825, %v2865
    %v2867 = vpop.f32.mrb[0].mxu0
    %v2868 = vadd.f32 %v2827, %v2867
    %v2869 = vpop.f32.mrb[0].mxu0
    %v2870 = vpop.f32.mrb[0].mxu0
    %2871 = vdwg.mxu0
    %2872 = vmatprep.subr.bf16.mxu0 %v2217
    %2873 = vmatpush1.bf16.msra.mxu0 %v2216
    %2874 = vmatprep.subr.bf16.mxu0 %v2229
    %2875 = vmatpush1.bf16.msra.mxu0 %v2228
    %2876 = vmatprep.subr.bf16.mxu0 %v2241
    %2877 = vmatpush1.bf16.msra.mxu0 %v2240
    %2878 = vmatprep.subr.bf16.mxu0 %v2253
    %2879 = vmatpush1.bf16.msra.mxu0 %v2252
    %2880 = vmatprep.subr.bf16.mxu0 %v2265
    %2881 = vmatpush1.bf16.msra.mxu0 %v2264
    %2882 = vmatprep.subr.bf16.mxu0 %v2277
    %2883 = vmatpush1.bf16.msra.mxu0 %v2276
    %2884 = vmatprep.subr.bf16.mxu0 %v2289
    %2885 = vmatpush1.bf16.msra.mxu0 %v2288
    %2886 = vmatprep.subr.bf16.mxu0 %v2301
    %2887 = vmatpush1.bf16.msra.mxu0 %v2300
    %2888 = vmatprep.subr.bf16.mxu0 %v2313
    %2889 = vmatpush1.bf16.msra.mxu0 %v2312
    %2890 = vmatprep.subr.bf16.mxu0 %v2325
    %2891 = vmatpush1.bf16.msra.mxu0 %v2324
    %2892 = vmatprep.subr.bf16.mxu0 %v2337
    %2893 = vmatpush1.bf16.msra.mxu0 %v2336
    %2894 = vmatprep.subr.bf16.mxu0 %v2349
    %2895 = vmatpush1.bf16.msra.mxu0 %v2348
    %2896 = vmatprep.subr.bf16.mxu0 %v2361
    %2897 = vmatpush1.bf16.msra.mxu0 %v2360
    %2898 = vmatprep.subr.bf16.mxu0 %v2373
    %2899 = vmatpush1.bf16.msra.mxu0 %v2372
    %2900 = vmatprep.subr.bf16.mxu0 %v2385
    %2901 = vmatpush1.bf16.msra.mxu0 %v2384
    %2902 = vmatprep.subr.bf16.mxu0 %v2397
    %2903 = vmatpush1.bf16.msra.mxu0 %v2396
    %2904 = vmatprep.mubr.bf16.mxu0 %v1348
    %2905 = vmatmul.mubr.bf16.gmra.mrb[0].mxu0 %v1347
    %v2906 = vpop.f32.mrb[0].mxu0
    %v2907 = vadd.f32 0.0, %v2906
    %v2908 = vpop.f32.mrb[0].mxu0
    %v2909 = vadd.f32 0.0, %v2908
    %v2910 = vpop.f32.mrb[0].mxu0
    %v2911 = vpop.f32.mrb[0].mxu0
    %2912 = vdwg.mxu0
    %2913 = vmatprep.subr.bf16.mxu0 %v2409
    %2914 = vmatpush1.bf16.msra.mxu0 %v2408
    %2915 = vmatprep.subr.bf16.mxu0 %v2421
    %2916 = vmatpush1.bf16.msra.mxu0 %v2420
    %2917 = vmatprep.subr.bf16.mxu0 %v2433
    %2918 = vmatpush1.bf16.msra.mxu0 %v2432
    %2919 = vmatprep.subr.bf16.mxu0 %v2445
    %2920 = vmatpush1.bf16.msra.mxu0 %v2444
    %2921 = vmatprep.subr.bf16.mxu0 %v2457
    %2922 = vmatpush1.bf16.msra.mxu0 %v2456
    %2923 = vmatprep.subr.bf16.mxu0 %v2469
    %2924 = vmatpush1.bf16.msra.mxu0 %v2468
    %2925 = vmatprep.subr.bf16.mxu0 %v2481
    %2926 = vmatpush1.bf16.msra.mxu0 %v2480
    %2927 = vmatprep.subr.bf16.mxu0 %v2493
    %2928 = vmatpush1.bf16.msra.mxu0 %v2492
    %2929 = vmatprep.subr.bf16.mxu0 0
    %2930 = vmatpush1.bf16.msra.mxu0 0
    %2931 = vmatprep.subr.bf16.mxu0 0
    %2932 = vmatpush1.bf16.msra.mxu0 0
    %2933 = vmatprep.subr.bf16.mxu0 0
    %2934 = vmatpush1.bf16.msra.mxu0 0
    %2935 = vmatprep.subr.bf16.mxu0 0
    %2936 = vmatpush1.bf16.msra.mxu0 0
    %2937 = vmatprep.subr.bf16.mxu0 0
    %2938 = vmatpush1.bf16.msra.mxu0 0
    %2939 = vmatprep.subr.bf16.mxu0 0
    %2940 = vmatpush1.bf16.msra.mxu0 0
    %2941 = vmatprep.subr.bf16.mxu0 0
    %2942 = vmatpush1.bf16.msra.mxu0 0
    %2943 = vmatprep.subr.bf16.mxu0 0
    %2944 = vmatpush1.bf16.msra.mxu0 0
    %2945 = vmatprep.mubr.bf16.mxu0 0
    %2946 = vmatmul.mubr.bf16.gmra.mrb[0].mxu0 %v1349
    %v2947 = vpop.f32.mrb[0].mxu0
    %v2948 = vadd.f32 %v2907, %v2947
    %v2949 = vpop.f32.mrb[0].mxu0
    %v2950 = vadd.f32 %v2909, %v2949
    %v2951 = vpop.f32.mrb[0].mxu0
    %v2952 = vpop.f32.mrb[0].mxu0
    %2953 = vdwg.mxu0
    %2954 = vmatprep.subr.bf16.mxu0 %v2219
    %2955 = vmatpush1.bf16.msra.mxu0 %v2218
    %2956 = vmatprep.subr.bf16.mxu0 %v2231
    %2957 = vmatpush1.bf16.msra.mxu0 %v2230
    %2958 = vmatprep.subr.bf16.mxu0 %v2243
    %2959 = vmatpush1.bf16.msra.mxu0 %v2242
    %2960 = vmatprep.subr.bf16.mxu0 %v2255
    %2961 = vmatpush1.bf16.msra.mxu0 %v2254
    %2962 = vmatprep.subr.bf16.mxu0 %v2267
    %2963 = vmatpush1.bf16.msra.mxu0 %v2266
    %2964 = vmatprep.subr.bf16.mxu0 %v2279
    %2965 = vmatpush1.bf16.msra.mxu0 %v2278
    %2966 = vmatprep.subr.bf16.mxu0 %v2291
    %2967 = vmatpush1.bf16.msra.mxu0 %v2290
    %2968 = vmatprep.subr.bf16.mxu0 %v2303
    %2969 = vmatpush1.bf16.msra.mxu0 %v2302
    %2970 = vmatprep.subr.bf16.mxu0 %v2315
    %2971 = vmatpush1.bf16.msra.mxu0 %v2314
    %2972 = vmatprep.subr.bf16.mxu0 %v2327
    %2973 = vmatpush1.bf16.msra.mxu0 %v2326
    %2974 = vmatprep.subr.bf16.mxu0 %v2339
    %2975 = vmatpush1.bf16.msra.mxu0 %v2338
    %2976 = vmatprep.subr.bf16.mxu0 %v2351
    %2977 = vmatpush1.bf16.msra.mxu0 %v2350
    %2978 = vmatprep.subr.bf16.mxu0 %v2363
    %2979 = vmatpush1.bf16.msra.mxu0 %v2362
    %2980 = vmatprep.subr.bf16.mxu0 %v2375
    %2981 = vmatpush1.bf16.msra.mxu0 %v2374
    %2982 = vmatprep.subr.bf16.mxu0 %v2387
    %2983 = vmatpush1.bf16.msra.mxu0 %v2386
    %2984 = vmatprep.subr.bf16.mxu0 %v2399
    %2985 = vmatpush1.bf16.msra.mxu0 %v2398
    %2986 = vmatprep.mubr.bf16.mxu0 %v1348
    %2987 = vmatmul.mubr.bf16.gmra.mrb[0].mxu0 %v1347
    %v2988 = vpop.f32.mrb[0].mxu0
    %v2989 = vadd.f32 0.0, %v2988
    %v2990 = vpop.f32.mrb[0].mxu0
    %v2991 = vadd.f32 0.0, %v2990
    %v2992 = vpop.f32.mrb[0].mxu0
    %v2993 = vpop.f32.mrb[0].mxu0
    %2994 = vdwg.mxu0
    %2995 = vmatprep.subr.bf16.mxu0 %v2411
    %2996 = vmatpush1.bf16.msra.mxu0 %v2410
    %2997 = vmatprep.subr.bf16.mxu0 %v2423
    %2998 = vmatpush1.bf16.msra.mxu0 %v2422
    %2999 = vmatprep.subr.bf16.mxu0 %v2435
    %3000 = vmatpush1.bf16.msra.mxu0 %v2434
    %3001 = vmatprep.subr.bf16.mxu0 %v2447
    %3002 = vmatpush1.bf16.msra.mxu0 %v2446
    %3003 = vmatprep.subr.bf16.mxu0 %v2459
    %3004 = vmatpush1.bf16.msra.mxu0 %v2458
    %3005 = vmatprep.subr.bf16.mxu0 %v2471
    %3006 = vmatpush1.bf16.msra.mxu0 %v2470
    %3007 = vmatprep.subr.bf16.mxu0 %v2483
    %3008 = vmatpush1.bf16.msra.mxu0 %v2482
    %3009 = vmatprep.subr.bf16.mxu0 %v2495
    %3010 = vmatpush1.bf16.msra.mxu0 %v2494
    %3011 = vmatprep.subr.bf16.mxu0 0
    %3012 = vmatpush1.bf16.msra.mxu0 0
    %3013 = vmatprep.subr.bf16.mxu0 0
    %3014 = vmatpush1.bf16.msra.mxu0 0
    %3015 = vmatprep.subr.bf16.mxu0 0
    %3016 = vmatpush1.bf16.msra.mxu0 0
    %3017 = vmatprep.subr.bf16.mxu0 0
    %3018 = vmatpush1.bf16.msra.mxu0 0
    %3019 = vmatprep.subr.bf16.mxu0 0
    %3020 = vmatpush1.bf16.msra.mxu0 0
    %3021 = vmatprep.subr.bf16.mxu0 0
    %3022 = vmatpush1.bf16.msra.mxu0 0
    %3023 = vmatprep.subr.bf16.mxu0 0
    %3024 = vmatpush1.bf16.msra.mxu0 0
    %3025 = vmatprep.subr.bf16.mxu0 0
    %3026 = vmatpush1.bf16.msra.mxu0 0
    %3027 = vmatprep.mubr.bf16.mxu0 0
    %3028 = vmatmul.mubr.bf16.gmra.mrb[0].mxu0 %v1349
    %v3029 = vpop.f32.mrb[0].mxu0
    %v3030 = vadd.f32 %v2989, %v3029
    %v3031 = vpop.f32.mrb[0].mxu0
    %v3032 = vadd.f32 %v2991, %v3031
    %v3033 = vpop.f32.mrb[0].mxu0
    %v3034 = vpop.f32.mrb[0].mxu0
    %3035 = vdwg.mxu0
    %3036 = vmatprep.subr.bf16.mxu0 %v2221
    %3037 = vmatpush1.bf16.msra.mxu0 %v2220
    %3038 = vmatprep.subr.bf16.mxu0 %v2233
    %3039 = vmatpush1.bf16.msra.mxu0 %v2232
    %3040 = vmatprep.subr.bf16.mxu0 %v2245
    %3041 = vmatpush1.bf16.msra.mxu0 %v2244
    %3042 = vmatprep.subr.bf16.mxu0 %v2257
    %3043 = vmatpush1.bf16.msra.mxu0 %v2256
    %3044 = vmatprep.subr.bf16.mxu0 %v2269
    %3045 = vmatpush1.bf16.msra.mxu0 %v2268
    %3046 = vmatprep.subr.bf16.mxu0 %v2281
    %3047 = vmatpush1.bf16.msra.mxu0 %v2280
    %3048 = vmatprep.subr.bf16.mxu0 %v2293
    %3049 = vmatpush1.bf16.msra.mxu0 %v2292
    %3050 = vmatprep.subr.bf16.mxu0 %v2305
    %3051 = vmatpush1.bf16.msra.mxu0 %v2304
    %3052 = vmatprep.subr.bf16.mxu0 %v2317
    %3053 = vmatpush1.bf16.msra.mxu0 %v2316
    %3054 = vmatprep.subr.bf16.mxu0 %v2329
    %3055 = vmatpush1.bf16.msra.mxu0 %v2328
    %3056 = vmatprep.subr.bf16.mxu0 %v2341
    %3057 = vmatpush1.bf16.msra.mxu0 %v2340
    %3058 = vmatprep.subr.bf16.mxu0 %v2353
    %3059 = vmatpush1.bf16.msra.mxu0 %v2352
    %3060 = vmatprep.subr.bf16.mxu0 %v2365
    %3061 = vmatpush1.bf16.msra.mxu0 %v2364
    %3062 = vmatprep.subr.bf16.mxu0 %v2377
    %3063 = vmatpush1.bf16.msra.mxu0 %v2376
    %3064 = vmatprep.subr.bf16.mxu0 %v2389
    %3065 = vmatpush1.bf16.msra.mxu0 %v2388
    %3066 = vmatprep.subr.bf16.mxu0 %v2401
    %3067 = vmatpush1.bf16.msra.mxu0 %v2400
    %3068 = vmatprep.mubr.bf16.mxu0 %v1348
    %3069 = vmatmul.mubr.bf16.gmra.mrb[0].mxu0 %v1347
    %v3070 = vpop.f32.mrb[0].mxu0
    %v3071 = vadd.f32 0.0, %v3070
    %v3072 = vpop.f32.mrb[0].mxu0
    %v3073 = vadd.f32 0.0, %v3072
    %v3074 = vpop.f32.mrb[0].mxu0
    %v3075 = vpop.f32.mrb[0].mxu0
    %3076 = vdwg.mxu0
    %3077 = vmatprep.subr.bf16.mxu0 %v2413
    %3078 = vmatpush1.bf16.msra.mxu0 %v2412
    %3079 = vmatprep.subr.bf16.mxu0 %v2425
    %3080 = vmatpush1.bf16.msra.mxu0 %v2424
    %3081 = vmatprep.subr.bf16.mxu0 %v2437
    %3082 = vmatpush1.bf16.msra.mxu0 %v2436
    %3083 = vmatprep.subr.bf16.mxu0 %v2449
    %3084 = vmatpush1.bf16.msra.mxu0 %v2448
    %3085 = vmatprep.subr.bf16.mxu0 %v2461
    %3086 = vmatpush1.bf16.msra.mxu0 %v2460
    %3087 = vmatprep.subr.bf16.mxu0 %v2473
    %3088 = vmatpush1.bf16.msra.mxu0 %v2472
    %3089 = vmatprep.subr.bf16.mxu0 %v2485
    %3090 = vmatpush1.bf16.msra.mxu0 %v2484
    %3091 = vmatprep.subr.bf16.mxu0 %v2497
    %3092 = vmatpush1.bf16.msra.mxu0 %v2496
    %3093 = vmatprep.subr.bf16.mxu0 0
    %3094 = vmatpush1.bf16.msra.mxu0 0
    %3095 = vmatprep.subr.bf16.mxu0 0
    %3096 = vmatpush1.bf16.msra.mxu0 0
    %3097 = vmatprep.subr.bf16.mxu0 0
    %3098 = vmatpush1.bf16.msra.mxu0 0
    %3099 = vmatprep.subr.bf16.mxu0 0
    %3100 = vmatpush1.bf16.msra.mxu0 0
    %3101 = vmatprep.subr.bf16.mxu0 0
    %3102 = vmatpush1.bf16.msra.mxu0 0
    %3103 = vmatprep.subr.bf16.mxu0 0
    %3104 = vmatpush1.bf16.msra.mxu0 0
    %3105 = vmatprep.subr.bf16.mxu0 0
    %3106 = vmatpush1.bf16.msra.mxu0 0
    %3107 = vmatprep.subr.bf16.mxu0 0
    %3108 = vmatpush1.bf16.msra.mxu0 0
    %3109 = vmatprep.mubr.bf16.mxu0 0
    %3110 = vmatmul.mubr.bf16.gmra.mrb[0].mxu0 %v1349
    %v3111 = vpop.f32.mrb[0].mxu0
    %v3112 = vadd.f32 %v3071, %v3111
    %v3113 = vpop.f32.mrb[0].mxu0
    %v3114 = vadd.f32 %v3073, %v3113
    %v3115 = vpop.f32.mrb[0].mxu0
    %v3116 = vpop.f32.mrb[0].mxu0
    %3117 = vdwg.mxu0
    %3118 = vmatprep.subr.bf16.mxu0 %v2223
    %3119 = vmatpush1.bf16.msra.mxu0 %v2222
    %3120 = vmatprep.subr.bf16.mxu0 %v2235
    %3121 = vmatpush1.bf16.msra.mxu0 %v2234
    %3122 = vmatprep.subr.bf16.mxu0 %v2247
    %3123 = vmatpush1.bf16.msra.mxu0 %v2246
    %3124 = vmatprep.subr.bf16.mxu0 %v2259
    %3125 = vmatpush1.bf16.msra.mxu0 %v2258
    %3126 = vmatprep.subr.bf16.mxu0 %v2271
    %3127 = vmatpush1.bf16.msra.mxu0 %v2270
    %3128 = vmatprep.subr.bf16.mxu0 %v2283
    %3129 = vmatpush1.bf16.msra.mxu0 %v2282
    %3130 = vmatprep.subr.bf16.mxu0 %v2295
    %3131 = vmatpush1.bf16.msra.mxu0 %v2294
    %3132 = vmatprep.subr.bf16.mxu0 %v2307
    %3133 = vmatpush1.bf16.msra.mxu0 %v2306
    %3134 = vmatprep.subr.bf16.mxu0 %v2319
    %3135 = vmatpush1.bf16.msra.mxu0 %v2318
    %3136 = vmatprep.subr.bf16.mxu0 %v2331
    %3137 = vmatpush1.bf16.msra.mxu0 %v2330
    %3138 = vmatprep.subr.bf16.mxu0 %v2343
    %3139 = vmatpush1.bf16.msra.mxu0 %v2342
    %3140 = vmatprep.subr.bf16.mxu0 %v2355
    %3141 = vmatpush1.bf16.msra.mxu0 %v2354
    %3142 = vmatprep.subr.bf16.mxu0 %v2367
    %3143 = vmatpush1.bf16.msra.mxu0 %v2366
    %3144 = vmatprep.subr.bf16.mxu0 %v2379
    %3145 = vmatpush1.bf16.msra.mxu0 %v2378
    %3146 = vmatprep.subr.bf16.mxu0 %v2391
    %3147 = vmatpush1.bf16.msra.mxu0 %v2390
    %3148 = vmatprep.subr.bf16.mxu0 %v2403
    %3149 = vmatpush1.bf16.msra.mxu0 %v2402
    %3150 = vmatprep.mubr.bf16.mxu0 %v1348
    %3151 = vmatmul.mubr.bf16.gmra.mrb[0].mxu0 %v1347
    %v3152 = vpop.f32.mrb[0].mxu0
    %v3153 = vadd.f32 0.0, %v3152
    %v3154 = vpop.f32.mrb[0].mxu0
    %v3155 = vadd.f32 0.0, %v3154
    %v3156 = vpop.f32.mrb[0].mxu0
    %v3157 = vpop.f32.mrb[0].mxu0
    %3158 = vdwg.mxu0
    %3159 = vmatprep.subr.bf16.mxu0 %v2415
    %3160 = vmatpush1.bf16.msra.mxu0 %v2414
    %3161 = vmatprep.subr.bf16.mxu0 %v2427
    %3162 = vmatpush1.bf16.msra.mxu0 %v2426
    %3163 = vmatprep.subr.bf16.mxu0 %v2439
    %3164 = vmatpush1.bf16.msra.mxu0 %v2438
    %3165 = vmatprep.subr.bf16.mxu0 %v2451
    %3166 = vmatpush1.bf16.msra.mxu0 %v2450
    %3167 = vmatprep.subr.bf16.mxu0 %v2463
    %3168 = vmatpush1.bf16.msra.mxu0 %v2462
    %3169 = vmatprep.subr.bf16.mxu0 %v2475
    %3170 = vmatpush1.bf16.msra.mxu0 %v2474
    %3171 = vmatprep.subr.bf16.mxu0 %v2487
    %3172 = vmatpush1.bf16.msra.mxu0 %v2486
    %3173 = vmatprep.subr.bf16.mxu0 %v2499
    %3174 = vmatpush1.bf16.msra.mxu0 %v2498
    %3175 = vmatprep.subr.bf16.mxu0 0
    %3176 = vmatpush1.bf16.msra.mxu0 0
    %3177 = vmatprep.subr.bf16.mxu0 0
    %3178 = vmatpush1.bf16.msra.mxu0 0
    %3179 = vmatprep.subr.bf16.mxu0 0
    %3180 = vmatpush1.bf16.msra.mxu0 0
    %3181 = vmatprep.subr.bf16.mxu0 0
    %3182 = vmatpush1.bf16.msra.mxu0 0
    %3183 = vmatprep.subr.bf16.mxu0 0
    %3184 = vmatpush1.bf16.msra.mxu0 0
    %3185 = vmatprep.subr.bf16.mxu0 0
    %3186 = vmatpush1.bf16.msra.mxu0 0
    %3187 = vmatprep.subr.bf16.mxu0 0
    %3188 = vmatpush1.bf16.msra.mxu0 0
    %3189 = vmatprep.subr.bf16.mxu0 0
    %3190 = vmatpush1.bf16.msra.mxu0 0
    %3191 = vmatprep.mubr.bf16.mxu0 0
    %3192 = vmatmul.mubr.bf16.gmra.mrb[0].mxu0 %v1349
    %v3193 = vpop.f32.mrb[0].mxu0
    %v3194 = vadd.f32 %v3153, %v3193
    %v3195 = vpop.f32.mrb[0].mxu0
    %v3196 = vadd.f32 %v3155, %v3195
    %v3197 = vpop.f32.mrb[0].mxu0
    %v3198 = vpop.f32.mrb[0].mxu0
    %3199 = vdwg.mxu0
    %3200 = vmatprep.subr.bf16.mxu0 %v2225
    %3201 = vmatpush1.bf16.msra.mxu0 %v2224
    %3202 = vmatprep.subr.bf16.mxu0 %v2237
    %3203 = vmatpush1.bf16.msra.mxu0 %v2236
    %3204 = vmatprep.subr.bf16.mxu0 %v2249
    %3205 = vmatpush1.bf16.msra.mxu0 %v2248
    %3206 = vmatprep.subr.bf16.mxu0 %v2261
    %3207 = vmatpush1.bf16.msra.mxu0 %v2260
    %3208 = vmatprep.subr.bf16.mxu0 %v2273
    %3209 = vmatpush1.bf16.msra.mxu0 %v2272
    %3210 = vmatprep.subr.bf16.mxu0 %v2285
    %3211 = vmatpush1.bf16.msra.mxu0 %v2284
    %3212 = vmatprep.subr.bf16.mxu0 %v2297
    %3213 = vmatpush1.bf16.msra.mxu0 %v2296
    %3214 = vmatprep.subr.bf16.mxu0 %v2309
    %3215 = vmatpush1.bf16.msra.mxu0 %v2308
    %3216 = vmatprep.subr.bf16.mxu0 %v2321
    %3217 = vmatpush1.bf16.msra.mxu0 %v2320
    %3218 = vmatprep.subr.bf16.mxu0 %v2333
    %3219 = vmatpush1.bf16.msra.mxu0 %v2332
    %3220 = vmatprep.subr.bf16.mxu0 %v2345
    %3221 = vmatpush1.bf16.msra.mxu0 %v2344
    %3222 = vmatprep.subr.bf16.mxu0 %v2357
    %3223 = vmatpush1.bf16.msra.mxu0 %v2356
    %3224 = vmatprep.subr.bf16.mxu0 %v2369
    %3225 = vmatpush1.bf16.msra.mxu0 %v2368
    %3226 = vmatprep.subr.bf16.mxu0 %v2381
    %3227 = vmatpush1.bf16.msra.mxu0 %v2380
    %3228 = vmatprep.subr.bf16.mxu0 %v2393
    %3229 = vmatpush1.bf16.msra.mxu0 %v2392
    %3230 = vmatprep.subr.bf16.mxu0 %v2405
    %3231 = vmatpush1.bf16.msra.mxu0 %v2404
    %3232 = vmatprep.mubr.bf16.mxu0 %v1348
    %3233 = vmatmul.mubr.bf16.gmra.mrb[0].mxu0 %v1347
    %v3234 = vpop.f32.mrb[0].mxu0
    %v3235 = vadd.f32 0.0, %v3234
    %v3236 = vpop.f32.mrb[0].mxu0
    %v3237 = vadd.f32 0.0, %v3236
    %v3238 = vpop.f32.mrb[0].mxu0
    %v3239 = vpop.f32.mrb[0].mxu0
    %3240 = vdwg.mxu0
    %3241 = vmatprep.subr.bf16.mxu0 %v2417
    %3242 = vmatpush1.bf16.msra.mxu0 %v2416
    %3243 = vmatprep.subr.bf16.mxu0 %v2429
    %3244 = vmatpush1.bf16.msra.mxu0 %v2428
    %3245 = vmatprep.subr.bf16.mxu0 %v2441
    %3246 = vmatpush1.bf16.msra.mxu0 %v2440
    %3247 = vmatprep.subr.bf16.mxu0 %v2453
    %3248 = vmatpush1.bf16.msra.mxu0 %v2452
    %3249 = vmatprep.subr.bf16.mxu0 %v2465
    %3250 = vmatpush1.bf16.msra.mxu0 %v2464
    %3251 = vmatprep.subr.bf16.mxu0 %v2477
    %3252 = vmatpush1.bf16.msra.mxu0 %v2476
    %3253 = vmatprep.subr.bf16.mxu0 %v2489
    %3254 = vmatpush1.bf16.msra.mxu0 %v2488
    %3255 = vmatprep.subr.bf16.mxu0 %v2501
    %3256 = vmatpush1.bf16.msra.mxu0 %v2500
    %3257 = vmatprep.subr.bf16.mxu0 0
    %3258 = vmatpush1.bf16.msra.mxu0 0
    %3259 = vmatprep.subr.bf16.mxu0 0
    %3260 = vmatpush1.bf16.msra.mxu0 0
    %3261 = vmatprep.subr.bf16.mxu0 0
    %3262 = vmatpush1.bf16.msra.mxu0 0
    %3263 = vmatprep.subr.bf16.mxu0 0
    %3264 = vmatpush1.bf16.msra.mxu0 0
    %3265 = vmatprep.subr.bf16.mxu0 0
    %3266 = vmatpush1.bf16.msra.mxu0 0
    %3267 = vmatprep.subr.bf16.mxu0 0
    %3268 = vmatpush1.bf16.msra.mxu0 0
    %3269 = vmatprep.subr.bf16.mxu0 0
    %3270 = vmatpush1.bf16.msra.mxu0 0
    %3271 = vmatprep.subr.bf16.mxu0 0
    %3272 = vmatpush1.bf16.msra.mxu0 0
    %3273 = vmatprep.mubr.bf16.mxu0 0
    %3274 = vmatmul.mubr.bf16.gmra.mrb[0].mxu0 %v1349
    %v3275 = vpop.f32.mrb[0].mxu0
    %v3276 = vadd.f32 %v3235, %v3275
    %v3277 = vpop.f32.mrb[0].mxu0
    %v3278 = vadd.f32 %v3237, %v3277
    %v3279 = vpop.f32.mrb[0].mxu0
    %v3280 = vpop.f32.mrb[0].mxu0
    %3281 = vdwg.mxu0
    %v3282 = vadd.f32 %v650, %v2866
    %v3283 = vadd.f32 %v652, %v2868
    %v3284 = vadd.f32 %v723, %v2948
    %v3285 = vadd.f32 %v725, %v2950
    %v3286 = vadd.f32 %v796, %v3030
    %v3287 = vadd.f32 %v798, %v3032
    %v3288 = vadd.f32 %v869, %v3112
    %v3289 = vadd.f32 %v871, %v3114
    %v3290 = vadd.f32 %v942, %v3194
    %v3291 = vadd.f32 %v944, %v3196
    %v3292 = vadd.f32 %v1015, %v3276
    %v3293 = vadd.f32 %v1017, %v3278
    %v3294 = vmul.f32 %v3282, 0.5
    %v3295 = vmul.f32 %v3283, 0.5
    %v3296 = vmul.f32 %v3284, 0.5
    %v3297 = vtanh.pop %v3294
    %v3298 = vtanh.pop %v3295
    %v3299 = vtanh.pop %v3296
    %v3300 = vadd.f32 %v3297, 1.0
    %v3301 = vadd.f32 %v3298, 1.0
    %v3302 = vadd.f32 %v3299, 1.0
    %v3303 = vmul.f32 %v3300, 0.5
    %v3304 = vmul.f32 %v3301, 0.5
    %v3305 = vmul.f32 %v3302, 0.5
    %v3306 = vmul.f32 %v3285, 0.5
    %v3307 = vmul.f32 %v3286, 0.5
    %v3308 = vmul.f32 %v3287, 0.5
    %v3309 = vtanh.pop %v3306
    %v3310 = vtanh.pop %v3307
    %v3311 = vtanh.pop %v3308
    %v3312 = vadd.f32 %v3309, 1.0
    %v3313 = vadd.f32 %v3310, 1.0
    %v3314 = vadd.f32 %v3311, 1.0
    %v3315 = vmul.f32 %v3312, 0.5
    %v3316 = vmul.f32 %v3313, 0.5
    %v3317 = vmul.f32 %v3314, 0.5
    %v3318 = vtanh.pop %v3288
    %v3319 = vtanh.pop %v3289
    %v3320 = vtanh.pop %v3290
    %v3321 = vmul.f32 %v3291, 0.5
    %v3322 = vmul.f32 %v3292, 0.5
    %v3323 = vmul.f32 %v3293, 0.5
    %v3324 = vtanh.pop %v3321
    %v3325 = vtanh.pop %v3322
    %v3326 = vtanh.pop %v3323
    %v3327 = vadd.f32 %v3324, 1.0
    %v3328 = vadd.f32 %v3325, 1.0
    %v3329 = vadd.f32 %v3326, 1.0
    %v3330 = vmul.f32 %v3327, 0.5
    %v3331 = vmul.f32 %v3328, 0.5
    %v3332 = vmul.f32 %v3329, 0.5
    %v3333 = vmul.f32 %v3315, %v1344
    %v3334 = vmul.f32 %v3316, %v1345
    %v3335 = vmul.f32 %v3317, %v1346
    %v3336 = vmul.f32 %v3303, %v3318
    %v3337 = vmul.f32 %v3304, %v3319
    %v3338 = vmul.f32 %v3305, %v3320
    %v3339 = vadd.f32 %v3333, %v3336
    %v3340 = vadd.f32 %v3334, %v3337
    %v3341 = vadd.f32 %v3335, %v3338
    %v3342 = vtanh.pop %v3339
    %v3343 = vtanh.pop %v3340
    %v3344 = vtanh.pop %v3341
    %v3345 = vmul.f32 %v3330, %v3342
    %v3346 = vmul.f32 %v3331, %v3343
    %v3347 = vmul.f32 %v3332, %v3344
    %v3348 = vpack.c.bf16 %v3345, %v3345
    %v3349 = vpack.c.bf16 %v3346, %v3346
    %v3350 = vpack.c.bf16 %v3347, %v3347
    %3351 = vmatprep.subr.bf16.mxu0 %v2215
    %3352 = vmatpush1.bf16.msra.mxu0 %v2214
    %3353 = vmatprep.subr.bf16.mxu0 %v2227
    %3354 = vmatpush1.bf16.msra.mxu0 %v2226
    %3355 = vmatprep.subr.bf16.mxu0 %v2239
    %3356 = vmatpush1.bf16.msra.mxu0 %v2238
    %3357 = vmatprep.subr.bf16.mxu0 %v2251
    %3358 = vmatpush1.bf16.msra.mxu0 %v2250
    %3359 = vmatprep.subr.bf16.mxu0 %v2263
    %3360 = vmatpush1.bf16.msra.mxu0 %v2262
    %3361 = vmatprep.subr.bf16.mxu0 %v2275
    %3362 = vmatpush1.bf16.msra.mxu0 %v2274
    %3363 = vmatprep.subr.bf16.mxu0 %v2287
    %3364 = vmatpush1.bf16.msra.mxu0 %v2286
    %3365 = vmatprep.subr.bf16.mxu0 %v2299
    %3366 = vmatpush1.bf16.msra.mxu0 %v2298
    %3367 = vmatprep.subr.bf16.mxu0 %v2311
    %3368 = vmatpush1.bf16.msra.mxu0 %v2310
    %3369 = vmatprep.subr.bf16.mxu0 %v2323
    %3370 = vmatpush1.bf16.msra.mxu0 %v2322
    %3371 = vmatprep.subr.bf16.mxu0 %v2335
    %3372 = vmatpush1.bf16.msra.mxu0 %v2334
    %3373 = vmatprep.subr.bf16.mxu0 %v2347
    %3374 = vmatpush1.bf16.msra.mxu0 %v2346
    %3375 = vmatprep.subr.bf16.mxu0 %v2359
    %3376 = vmatpush1.bf16.msra.mxu0 %v2358
    %3377 = vmatprep.subr.bf16.mxu0 %v2371
    %3378 = vmatpush1.bf16.msra.mxu0 %v2370
    %3379 = vmatprep.subr.bf16.mxu0 %v2383
    %3380 = vmatpush1.bf16.msra.mxu0 %v2382
    %3381 = vmatprep.subr.bf16.mxu0 %v2395
    %3382 = vmatpush1.bf16.msra.mxu0 %v2394
    %3383 = vmatprep.mubr.bf16.mxu0 %v3349
    %3384 = vmatmul.mubr.bf16.gmra.mrb[0].mxu0 %v3348
    %v3385 = vpop.f32.mrb[0].mxu0
    %v3386 = vadd.f32 0.0, %v3385
    %v3387 = vpop.f32.mrb[0].mxu0
    %v3388 = vadd.f32 0.0, %v3387
    %v3389 = vpop.f32.mrb[0].mxu0
    %v3390 = vpop.f32.mrb[0].mxu0
    %3391 = vdwg.mxu0
    %3392 = vmatprep.subr.bf16.mxu0 %v2407
    %3393 = vmatpush1.bf16.msra.mxu0 %v2406
    %3394 = vmatprep.subr.bf16.mxu0 %v2419
    %3395 = vmatpush1.bf16.msra.mxu0 %v2418
    %3396 = vmatprep.subr.bf16.mxu0 %v2431
    %3397 = vmatpush1.bf16.msra.mxu0 %v2430
    %3398 = vmatprep.subr.bf16.mxu0 %v2443
    %3399 = vmatpush1.bf16.msra.mxu0 %v2442
    %3400 = vmatprep.subr.bf16.mxu0 %v2455
    %3401 = vmatpush1.bf16.msra.mxu0 %v2454
    %3402 = vmatprep.subr.bf16.mxu0 %v2467
    %3403 = vmatpush1.bf16.msra.mxu0 %v2466
    %3404 = vmatprep.subr.bf16.mxu0 %v2479
    %3405 = vmatpush1.bf16.msra.mxu0 %v2478
    %3406 = vmatprep.subr.bf16.mxu0 %v2491
    %3407 = vmatpush1.bf16.msra.mxu0 %v2490
    %3408 = vmatprep.subr.bf16.mxu0 0
    %3409 = vmatpush1.bf16.msra.mxu0 0
    %3410 = vmatprep.subr.bf16.mxu0 0
    %3411 = vmatpush1.bf16.msra.mxu0 0
    %3412 = vmatprep.subr.bf16.mxu0 0
    %3413 = vmatpush1.bf16.msra.mxu0 0
    %3414 = vmatprep.subr.bf16.mxu0 0
    %3415 = vmatpush1.bf16.msra.mxu0 0
    %3416 = vmatprep.subr.bf16.mxu0 0
    %3417 = vmatpush1.bf16.msra.mxu0 0
    %3418 = vmatprep.subr.bf16.mxu0 0
    %3419 = vmatpush1.bf16.msra.mxu0 0
    %3420 = vmatprep.subr.bf16.mxu0 0
    %3421 = vmatpush1.bf16.msra.mxu0 0
    %3422 = vmatprep.subr.bf16.mxu0 0
    %3423 = vmatpush1.bf16.msra.mxu0 0
    %3424 = vmatprep.mubr.bf16.mxu0 0
    %3425 = vmatmul.mubr.bf16.gmra.mrb[0].mxu0 %v3350
    %v3426 = vpop.f32.mrb[0].mxu0
    %v3427 = vadd.f32 %v3386, %v3426
    %v3428 = vpop.f32.mrb[0].mxu0
    %v3429 = vadd.f32 %v3388, %v3428
    %v3430 = vpop.f32.mrb[0].mxu0
    %v3431 = vpop.f32.mrb[0].mxu0
    %3432 = vdwg.mxu0
    %3433 = vmatprep.subr.bf16.mxu0 %v2217
    %3434 = vmatpush1.bf16.msra.mxu0 %v2216
    %3435 = vmatprep.subr.bf16.mxu0 %v2229
    %3436 = vmatpush1.bf16.msra.mxu0 %v2228
    %3437 = vmatprep.subr.bf16.mxu0 %v2241
    %3438 = vmatpush1.bf16.msra.mxu0 %v2240
    %3439 = vmatprep.subr.bf16.mxu0 %v2253
    %3440 = vmatpush1.bf16.msra.mxu0 %v2252
    %3441 = vmatprep.subr.bf16.mxu0 %v2265
    %3442 = vmatpush1.bf16.msra.mxu0 %v2264
    %3443 = vmatprep.subr.bf16.mxu0 %v2277
    %3444 = vmatpush1.bf16.msra.mxu0 %v2276
    %3445 = vmatprep.subr.bf16.mxu0 %v2289
    %3446 = vmatpush1.bf16.msra.mxu0 %v2288
    %3447 = vmatprep.subr.bf16.mxu0 %v2301
    %3448 = vmatpush1.bf16.msra.mxu0 %v2300
    %3449 = vmatprep.subr.bf16.mxu0 %v2313
    %3450 = vmatpush1.bf16.msra.mxu0 %v2312
    %3451 = vmatprep.subr.bf16.mxu0 %v2325
    %3452 = vmatpush1.bf16.msra.mxu0 %v2324
    %3453 = vmatprep.subr.bf16.mxu0 %v2337
    %3454 = vmatpush1.bf16.msra.mxu0 %v2336
    %3455 = vmatprep.subr.bf16.mxu0 %v2349
    %3456 = vmatpush1.bf16.msra.mxu0 %v2348
    %3457 = vmatprep.subr.bf16.mxu0 %v2361
    %3458 = vmatpush1.bf16.msra.mxu0 %v2360
    %3459 = vmatprep.subr.bf16.mxu0 %v2373
    %3460 = vmatpush1.bf16.msra.mxu0 %v2372
    %3461 = vmatprep.subr.bf16.mxu0 %v2385
    %3462 = vmatpush1.bf16.msra.mxu0 %v2384
    %3463 = vmatprep.subr.bf16.mxu0 %v2397
    %3464 = vmatpush1.bf16.msra.mxu0 %v2396
    %3465 = vmatprep.mubr.bf16.mxu0 %v3349
    %3466 = vmatmul.mubr.bf16.gmra.mrb[0].mxu0 %v3348
    %v3467 = vpop.f32.mrb[0].mxu0
    %v3468 = vadd.f32 0.0, %v3467
    %v3469 = vpop.f32.mrb[0].mxu0
    %v3470 = vadd.f32 0.0, %v3469
    %v3471 = vpop.f32.mrb[0].mxu0
    %v3472 = vpop.f32.mrb[0].mxu0
    %3473 = vdwg.mxu0
    %3474 = vmatprep.subr.bf16.mxu0 %v2409
    %3475 = vmatpush1.bf16.msra.mxu0 %v2408
    %3476 = vmatprep.subr.bf16.mxu0 %v2421
    %3477 = vmatpush1.bf16.msra.mxu0 %v2420
    %3478 = vmatprep.subr.bf16.mxu0 %v2433
    %3479 = vmatpush1.bf16.msra.mxu0 %v2432
    %3480 = vmatprep.subr.bf16.mxu0 %v2445
    %3481 = vmatpush1.bf16.msra.mxu0 %v2444
    %3482 = vmatprep.subr.bf16.mxu0 %v2457
    %3483 = vmatpush1.bf16.msra.mxu0 %v2456
    %3484 = vmatprep.subr.bf16.mxu0 %v2469
    %3485 = vmatpush1.bf16.msra.mxu0 %v2468
    %3486 = vmatprep.subr.bf16.mxu0 %v2481
    %3487 = vmatpush1.bf16.msra.mxu0 %v2480
    %3488 = vmatprep.subr.bf16.mxu0 %v2493
    %3489 = vmatpush1.bf16.msra.mxu0 %v2492
    %3490 = vmatprep.subr.bf16.mxu0 0
    %3491 = vmatpush1.bf16.msra.mxu0 0
    %3492 = vmatprep.subr.bf16.mxu0 0
    %3493 = vmatpush1.bf16.msra.mxu0 0
    %3494 = vmatprep.subr.bf16.mxu0 0
    %3495 = vmatpush1.bf16.msra.mxu0 0
    %3496 = vmatprep.subr.bf16.mxu0 0
    %3497 = vmatpush1.bf16.msra.mxu0 0
    %3498 = vmatprep.subr.bf16.mxu0 0
    %3499 = vmatpush1.bf16.msra.mxu0 0
    %3500 = vmatprep.subr.bf16.mxu0 0
    %3501 = vmatpush1.bf16.msra.mxu0 0
    %3502 = vmatprep.subr.bf16.mxu0 0
    %3503 = vmatpush1.bf16.msra.mxu0 0
    %3504 = vmatprep.subr.bf16.mxu0 0
    %3505 = vmatpush1.bf16.msra.mxu0 0
    %3506 = vmatprep.mubr.bf16.mxu0 0
    %3507 = vmatmul.mubr.bf16.gmra.mrb[0].mxu0 %v3350
    %v3508 = vpop.f32.mrb[0].mxu0
    %v3509 = vadd.f32 %v3468, %v3508
    %v3510 = vpop.f32.mrb[0].mxu0
    %v3511 = vadd.f32 %v3470, %v3510
    %v3512 = vpop.f32.mrb[0].mxu0
    %v3513 = vpop.f32.mrb[0].mxu0
    %3514 = vdwg.mxu0
    %3515 = vmatprep.subr.bf16.mxu0 %v2219
    %3516 = vmatpush1.bf16.msra.mxu0 %v2218
    %3517 = vmatprep.subr.bf16.mxu0 %v2231
    %3518 = vmatpush1.bf16.msra.mxu0 %v2230
    %3519 = vmatprep.subr.bf16.mxu0 %v2243
    %3520 = vmatpush1.bf16.msra.mxu0 %v2242
    %3521 = vmatprep.subr.bf16.mxu0 %v2255
    %3522 = vmatpush1.bf16.msra.mxu0 %v2254
    %3523 = vmatprep.subr.bf16.mxu0 %v2267
    %3524 = vmatpush1.bf16.msra.mxu0 %v2266
    %3525 = vmatprep.subr.bf16.mxu0 %v2279
    %3526 = vmatpush1.bf16.msra.mxu0 %v2278
    %3527 = vmatprep.subr.bf16.mxu0 %v2291
    %3528 = vmatpush1.bf16.msra.mxu0 %v2290
    %3529 = vmatprep.subr.bf16.mxu0 %v2303
    %3530 = vmatpush1.bf16.msra.mxu0 %v2302
    %3531 = vmatprep.subr.bf16.mxu0 %v2315
    %3532 = vmatpush1.bf16.msra.mxu0 %v2314
    %3533 = vmatprep.subr.bf16.mxu0 %v2327
    %3534 = vmatpush1.bf16.msra.mxu0 %v2326
    %3535 = vmatprep.subr.bf16.mxu0 %v2339
    %3536 = vmatpush1.bf16.msra.mxu0 %v2338
    %3537 = vmatprep.subr.bf16.mxu0 %v2351
    %3538 = vmatpush1.bf16.msra.mxu0 %v2350
    %3539 = vmatprep.subr.bf16.mxu0 %v2363
    %3540 = vmatpush1.bf16.msra.mxu0 %v2362
    %3541 = vmatprep.subr.bf16.mxu0 %v2375
    %3542 = vmatpush1.bf16.msra.mxu0 %v2374
    %3543 = vmatprep.subr.bf16.mxu0 %v2387
    %3544 = vmatpush1.bf16.msra.mxu0 %v2386
    %3545 = vmatprep.subr.bf16.mxu0 %v2399
    %3546 = vmatpush1.bf16.msra.mxu0 %v2398
    %3547 = vmatprep.mubr.bf16.mxu0 %v3349
    %3548 = vmatmul.mubr.bf16.gmra.mrb[0].mxu0 %v3348
    %v3549 = vpop.f32.mrb[0].mxu0
    %v3550 = vadd.f32 0.0, %v3549
    %v3551 = vpop.f32.mrb[0].mxu0
    %v3552 = vadd.f32 0.0, %v3551
    %v3553 = vpop.f32.mrb[0].mxu0
    %v3554 = vpop.f32.mrb[0].mxu0
    %3555 = vdwg.mxu0
    %3556 = vmatprep.subr.bf16.mxu0 %v2411
    %3557 = vmatpush1.bf16.msra.mxu0 %v2410
    %3558 = vmatprep.subr.bf16.mxu0 %v2423
    %3559 = vmatpush1.bf16.msra.mxu0 %v2422
    %3560 = vmatprep.subr.bf16.mxu0 %v2435
    %3561 = vmatpush1.bf16.msra.mxu0 %v2434
    %3562 = vmatprep.subr.bf16.mxu0 %v2447
    %3563 = vmatpush1.bf16.msra.mxu0 %v2446
    %3564 = vmatprep.subr.bf16.mxu0 %v2459
    %3565 = vmatpush1.bf16.msra.mxu0 %v2458
    %3566 = vmatprep.subr.bf16.mxu0 %v2471
    %3567 = vmatpush1.bf16.msra.mxu0 %v2470
    %3568 = vmatprep.subr.bf16.mxu0 %v2483
    %3569 = vmatpush1.bf16.msra.mxu0 %v2482
    %3570 = vmatprep.subr.bf16.mxu0 %v2495
    %3571 = vmatpush1.bf16.msra.mxu0 %v2494
    %3572 = vmatprep.subr.bf16.mxu0 0
    %3573 = vmatpush1.bf16.msra.mxu0 0
    %3574 = vmatprep.subr.bf16.mxu0 0
    %3575 = vmatpush1.bf16.msra.mxu0 0
    %3576 = vmatprep.subr.bf16.mxu0 0
    %3577 = vmatpush1.bf16.msra.mxu0 0
    %3578 = vmatprep.subr.bf16.mxu0 0
    %3579 = vmatpush1.bf16.msra.mxu0 0
    %3580 = vmatprep.subr.bf16.mxu0 0
    %3581 = vmatpush1.bf16.msra.mxu0 0
    %3582 = vmatprep.subr.bf16.mxu0 0
    %3583 = vmatpush1.bf16.msra.mxu0 0
    %3584 = vmatprep.subr.bf16.mxu0 0
    %3585 = vmatpush1.bf16.msra.mxu0 0
    %3586 = vmatprep.subr.bf16.mxu0 0
    %3587 = vmatpush1.bf16.msra.mxu0 0
    %3588 = vmatprep.mubr.bf16.mxu0 0
    %3589 = vmatmul.mubr.bf16.gmra.mrb[0].mxu0 %v3350
    %v3590 = vpop.f32.mrb[0].mxu0
    %v3591 = vadd.f32 %v3550, %v3590
    %v3592 = vpop.f32.mrb[0].mxu0
    %v3593 = vadd.f32 %v3552, %v3592
    %v3594 = vpop.f32.mrb[0].mxu0
    %v3595 = vpop.f32.mrb[0].mxu0
    %3596 = vdwg.mxu0
    %3597 = vmatprep.subr.bf16.mxu0 %v2221
    %3598 = vmatpush1.bf16.msra.mxu0 %v2220
    %3599 = vmatprep.subr.bf16.mxu0 %v2233
    %3600 = vmatpush1.bf16.msra.mxu0 %v2232
    %3601 = vmatprep.subr.bf16.mxu0 %v2245
    %3602 = vmatpush1.bf16.msra.mxu0 %v2244
    %3603 = vmatprep.subr.bf16.mxu0 %v2257
    %3604 = vmatpush1.bf16.msra.mxu0 %v2256
    %3605 = vmatprep.subr.bf16.mxu0 %v2269
    %3606 = vmatpush1.bf16.msra.mxu0 %v2268
    %3607 = vmatprep.subr.bf16.mxu0 %v2281
    %3608 = vmatpush1.bf16.msra.mxu0 %v2280
    %3609 = vmatprep.subr.bf16.mxu0 %v2293
    %3610 = vmatpush1.bf16.msra.mxu0 %v2292
    %3611 = vmatprep.subr.bf16.mxu0 %v2305
    %3612 = vmatpush1.bf16.msra.mxu0 %v2304
    %3613 = vmatprep.subr.bf16.mxu0 %v2317
    %3614 = vmatpush1.bf16.msra.mxu0 %v2316
    %3615 = vmatprep.subr.bf16.mxu0 %v2329
    %3616 = vmatpush1.bf16.msra.mxu0 %v2328
    %3617 = vmatprep.subr.bf16.mxu0 %v2341
    %3618 = vmatpush1.bf16.msra.mxu0 %v2340
    %3619 = vmatprep.subr.bf16.mxu0 %v2353
    %3620 = vmatpush1.bf16.msra.mxu0 %v2352
    %3621 = vmatprep.subr.bf16.mxu0 %v2365
    %3622 = vmatpush1.bf16.msra.mxu0 %v2364
    %3623 = vmatprep.subr.bf16.mxu0 %v2377
    %3624 = vmatpush1.bf16.msra.mxu0 %v2376
    %3625 = vmatprep.subr.bf16.mxu0 %v2389
    %3626 = vmatpush1.bf16.msra.mxu0 %v2388
    %3627 = vmatprep.subr.bf16.mxu0 %v2401
    %3628 = vmatpush1.bf16.msra.mxu0 %v2400
    %3629 = vmatprep.mubr.bf16.mxu0 %v3349
    %3630 = vmatmul.mubr.bf16.gmra.mrb[0].mxu0 %v3348
    %v3631 = vpop.f32.mrb[0].mxu0
    %v3632 = vadd.f32 0.0, %v3631
    %v3633 = vpop.f32.mrb[0].mxu0
    %v3634 = vadd.f32 0.0, %v3633
    %v3635 = vpop.f32.mrb[0].mxu0
    %v3636 = vpop.f32.mrb[0].mxu0
    %3637 = vdwg.mxu0
    %3638 = vmatprep.subr.bf16.mxu0 %v2413
    %3639 = vmatpush1.bf16.msra.mxu0 %v2412
    %3640 = vmatprep.subr.bf16.mxu0 %v2425
    %3641 = vmatpush1.bf16.msra.mxu0 %v2424
    %3642 = vmatprep.subr.bf16.mxu0 %v2437
    %3643 = vmatpush1.bf16.msra.mxu0 %v2436
    %3644 = vmatprep.subr.bf16.mxu0 %v2449
    %3645 = vmatpush1.bf16.msra.mxu0 %v2448
    %3646 = vmatprep.subr.bf16.mxu0 %v2461
    %3647 = vmatpush1.bf16.msra.mxu0 %v2460
    %3648 = vmatprep.subr.bf16.mxu0 %v2473
    %3649 = vmatpush1.bf16.msra.mxu0 %v2472
    %3650 = vmatprep.subr.bf16.mxu0 %v2485
    %3651 = vmatpush1.bf16.msra.mxu0 %v2484
    %3652 = vmatprep.subr.bf16.mxu0 %v2497
    %3653 = vmatpush1.bf16.msra.mxu0 %v2496
    %3654 = vmatprep.subr.bf16.mxu0 0
    %3655 = vmatpush1.bf16.msra.mxu0 0
    %3656 = vmatprep.subr.bf16.mxu0 0
    %3657 = vmatpush1.bf16.msra.mxu0 0
    %3658 = vmatprep.subr.bf16.mxu0 0
    %3659 = vmatpush1.bf16.msra.mxu0 0
    %3660 = vmatprep.subr.bf16.mxu0 0
    %3661 = vmatpush1.bf16.msra.mxu0 0
    %3662 = vmatprep.subr.bf16.mxu0 0
    %3663 = vmatpush1.bf16.msra.mxu0 0
    %3664 = vmatprep.subr.bf16.mxu0 0
    %3665 = vmatpush1.bf16.msra.mxu0 0
    %3666 = vmatprep.subr.bf16.mxu0 0
    %3667 = vmatpush1.bf16.msra.mxu0 0
    %3668 = vmatprep.subr.bf16.mxu0 0
    %3669 = vmatpush1.bf16.msra.mxu0 0
    %3670 = vmatprep.mubr.bf16.mxu0 0
    %3671 = vmatmul.mubr.bf16.gmra.mrb[0].mxu0 %v3350
    %v3672 = vpop.f32.mrb[0].mxu0
    %v3673 = vadd.f32 %v3632, %v3672
    %v3674 = vpop.f32.mrb[0].mxu0
    %v3675 = vadd.f32 %v3634, %v3674
    %v3676 = vpop.f32.mrb[0].mxu0
    %v3677 = vpop.f32.mrb[0].mxu0
    %3678 = vdwg.mxu0
    %3679 = vmatprep.subr.bf16.mxu0 %v2223
    %3680 = vmatpush1.bf16.msra.mxu0 %v2222
    %3681 = vmatprep.subr.bf16.mxu0 %v2235
    %3682 = vmatpush1.bf16.msra.mxu0 %v2234
    %3683 = vmatprep.subr.bf16.mxu0 %v2247
    %3684 = vmatpush1.bf16.msra.mxu0 %v2246
    %3685 = vmatprep.subr.bf16.mxu0 %v2259
    %3686 = vmatpush1.bf16.msra.mxu0 %v2258
    %3687 = vmatprep.subr.bf16.mxu0 %v2271
    %3688 = vmatpush1.bf16.msra.mxu0 %v2270
    %3689 = vmatprep.subr.bf16.mxu0 %v2283
    %3690 = vmatpush1.bf16.msra.mxu0 %v2282
    %3691 = vmatprep.subr.bf16.mxu0 %v2295
    %3692 = vmatpush1.bf16.msra.mxu0 %v2294
    %3693 = vmatprep.subr.bf16.mxu0 %v2307
    %3694 = vmatpush1.bf16.msra.mxu0 %v2306
    %3695 = vmatprep.subr.bf16.mxu0 %v2319
    %3696 = vmatpush1.bf16.msra.mxu0 %v2318
    %3697 = vmatprep.subr.bf16.mxu0 %v2331
    %3698 = vmatpush1.bf16.msra.mxu0 %v2330
    %3699 = vmatprep.subr.bf16.mxu0 %v2343
    %3700 = vmatpush1.bf16.msra.mxu0 %v2342
    %3701 = vmatprep.subr.bf16.mxu0 %v2355
    %3702 = vmatpush1.bf16.msra.mxu0 %v2354
    %3703 = vmatprep.subr.bf16.mxu0 %v2367
    %3704 = vmatpush1.bf16.msra.mxu0 %v2366
    %3705 = vmatprep.subr.bf16.mxu0 %v2379
    %3706 = vmatpush1.bf16.msra.mxu0 %v2378
    %3707 = vmatprep.subr.bf16.mxu0 %v2391
    %3708 = vmatpush1.bf16.msra.mxu0 %v2390
    %3709 = vmatprep.subr.bf16.mxu0 %v2403
    %3710 = vmatpush1.bf16.msra.mxu0 %v2402
    %3711 = vmatprep.mubr.bf16.mxu0 %v3349
    %3712 = vmatmul.mubr.bf16.gmra.mrb[0].mxu0 %v3348
    %v3713 = vpop.f32.mrb[0].mxu0
    %v3714 = vadd.f32 0.0, %v3713
    %v3715 = vpop.f32.mrb[0].mxu0
    %v3716 = vadd.f32 0.0, %v3715
    %v3717 = vpop.f32.mrb[0].mxu0
    %v3718 = vpop.f32.mrb[0].mxu0
    %3719 = vdwg.mxu0
    %3720 = vmatprep.subr.bf16.mxu0 %v2415
    %3721 = vmatpush1.bf16.msra.mxu0 %v2414
    %3722 = vmatprep.subr.bf16.mxu0 %v2427
    %3723 = vmatpush1.bf16.msra.mxu0 %v2426
    %3724 = vmatprep.subr.bf16.mxu0 %v2439
    %3725 = vmatpush1.bf16.msra.mxu0 %v2438
    %3726 = vmatprep.subr.bf16.mxu0 %v2451
    %3727 = vmatpush1.bf16.msra.mxu0 %v2450
    %3728 = vmatprep.subr.bf16.mxu0 %v2463
    %3729 = vmatpush1.bf16.msra.mxu0 %v2462
    %3730 = vmatprep.subr.bf16.mxu0 %v2475
    %3731 = vmatpush1.bf16.msra.mxu0 %v2474
    %3732 = vmatprep.subr.bf16.mxu0 %v2487
    %3733 = vmatpush1.bf16.msra.mxu0 %v2486
    %3734 = vmatprep.subr.bf16.mxu0 %v2499
    %3735 = vmatpush1.bf16.msra.mxu0 %v2498
    %3736 = vmatprep.subr.bf16.mxu0 0
    %3737 = vmatpush1.bf16.msra.mxu0 0
    %3738 = vmatprep.subr.bf16.mxu0 0
    %3739 = vmatpush1.bf16.msra.mxu0 0
    %3740 = vmatprep.subr.bf16.mxu0 0
    %3741 = vmatpush1.bf16.msra.mxu0 0
    %3742 = vmatprep.subr.bf16.mxu0 0
    %3743 = vmatpush1.bf16.msra.mxu0 0
    %3744 = vmatprep.subr.bf16.mxu0 0
    %3745 = vmatpush1.bf16.msra.mxu0 0
    %3746 = vmatprep.subr.bf16.mxu0 0
    %3747 = vmatpush1.bf16.msra.mxu0 0
    %3748 = vmatprep.subr.bf16.mxu0 0
    %3749 = vmatpush1.bf16.msra.mxu0 0
    %3750 = vmatprep.subr.bf16.mxu0 0
    %3751 = vmatpush1.bf16.msra.mxu0 0
    %3752 = vmatprep.mubr.bf16.mxu0 0
    %3753 = vmatmul.mubr.bf16.gmra.mrb[0].mxu0 %v3350
    %v3754 = vpop.f32.mrb[0].mxu0
    %v3755 = vadd.f32 %v3714, %v3754
    %v3756 = vpop.f32.mrb[0].mxu0
    %v3757 = vadd.f32 %v3716, %v3756
    %v3758 = vpop.f32.mrb[0].mxu0
    %v3759 = vpop.f32.mrb[0].mxu0
    %3760 = vdwg.mxu0
    %3761 = vmatprep.subr.bf16.mxu0 %v2225
    %3762 = vmatpush1.bf16.msra.mxu0 %v2224
    %3763 = vmatprep.subr.bf16.mxu0 %v2237
    %3764 = vmatpush1.bf16.msra.mxu0 %v2236
    %3765 = vmatprep.subr.bf16.mxu0 %v2249
    %3766 = vmatpush1.bf16.msra.mxu0 %v2248
    %3767 = vmatprep.subr.bf16.mxu0 %v2261
    %3768 = vmatpush1.bf16.msra.mxu0 %v2260
    %3769 = vmatprep.subr.bf16.mxu0 %v2273
    %3770 = vmatpush1.bf16.msra.mxu0 %v2272
    %3771 = vmatprep.subr.bf16.mxu0 %v2285
    %3772 = vmatpush1.bf16.msra.mxu0 %v2284
    %3773 = vmatprep.subr.bf16.mxu0 %v2297
    %3774 = vmatpush1.bf16.msra.mxu0 %v2296
    %3775 = vmatprep.subr.bf16.mxu0 %v2309
    %3776 = vmatpush1.bf16.msra.mxu0 %v2308
    %3777 = vmatprep.subr.bf16.mxu0 %v2321
    %3778 = vmatpush1.bf16.msra.mxu0 %v2320
    %3779 = vmatprep.subr.bf16.mxu0 %v2333
    %3780 = vmatpush1.bf16.msra.mxu0 %v2332
    %3781 = vmatprep.subr.bf16.mxu0 %v2345
    %3782 = vmatpush1.bf16.msra.mxu0 %v2344
    %3783 = vmatprep.subr.bf16.mxu0 %v2357
    %3784 = vmatpush1.bf16.msra.mxu0 %v2356
    %3785 = vmatprep.subr.bf16.mxu0 %v2369
    %3786 = vmatpush1.bf16.msra.mxu0 %v2368
    %3787 = vmatprep.subr.bf16.mxu0 %v2381
    %3788 = vmatpush1.bf16.msra.mxu0 %v2380
    %3789 = vmatprep.subr.bf16.mxu0 %v2393
    %3790 = vmatpush1.bf16.msra.mxu0 %v2392
    %3791 = vmatprep.subr.bf16.mxu0 %v2405
    %3792 = vmatpush1.bf16.msra.mxu0 %v2404
    %3793 = vmatprep.mubr.bf16.mxu0 %v3349
    %3794 = vmatmul.mubr.bf16.gmra.mrb[0].mxu0 %v3348
    %v3795 = vpop.f32.mrb[0].mxu0
    %v3796 = vadd.f32 0.0, %v3795
    %v3797 = vpop.f32.mrb[0].mxu0
    %v3798 = vadd.f32 0.0, %v3797
    %v3799 = vpop.f32.mrb[0].mxu0
    %v3800 = vpop.f32.mrb[0].mxu0
    %3801 = vdwg.mxu0
    %3802 = vmatprep.subr.bf16.mxu0 %v2417
    %3803 = vmatpush1.bf16.msra.mxu0 %v2416
    %3804 = vmatprep.subr.bf16.mxu0 %v2429
    %3805 = vmatpush1.bf16.msra.mxu0 %v2428
    %3806 = vmatprep.subr.bf16.mxu0 %v2441
    %3807 = vmatpush1.bf16.msra.mxu0 %v2440
    %3808 = vmatprep.subr.bf16.mxu0 %v2453
    %3809 = vmatpush1.bf16.msra.mxu0 %v2452
    %3810 = vmatprep.subr.bf16.mxu0 %v2465
    %3811 = vmatpush1.bf16.msra.mxu0 %v2464
    %3812 = vmatprep.subr.bf16.mxu0 %v2477
    %3813 = vmatpush1.bf16.msra.mxu0 %v2476
    %3814 = vmatprep.subr.bf16.mxu0 %v2489
    %3815 = vmatpush1.bf16.msra.mxu0 %v2488
    %3816 = vmatprep.subr.bf16.mxu0 %v2501
    %3817 = vmatpush1.bf16.msra.mxu0 %v2500
    %3818 = vmatprep.subr.bf16.mxu0 0
    %3819 = vmatpush1.bf16.msra.mxu0 0
    %3820 = vmatprep.subr.bf16.mxu0 0
    %3821 = vmatpush1.bf16.msra.mxu0 0
    %3822 = vmatprep.subr.bf16.mxu0 0
    %3823 = vmatpush1.bf16.msra.mxu0 0
    %3824 = vmatprep.subr.bf16.mxu0 0
    %3825 = vmatpush1.bf16.msra.mxu0 0
    %3826 = vmatprep.subr.bf16.mxu0 0
    %3827 = vmatpush1.bf16.msra.mxu0 0
    %3828 = vmatprep.subr.bf16.mxu0 0
    %3829 = vmatpush1.bf16.msra.mxu0 0
    %3830 = vmatprep.subr.bf16.mxu0 0
    %3831 = vmatpush1.bf16.msra.mxu0 0
    %3832 = vmatprep.subr.bf16.mxu0 0
    %3833 = vmatpush1.bf16.msra.mxu0 0
    %3834 = vmatprep.mubr.bf16.mxu0 0
    %3835 = vmatmul.mubr.bf16.gmra.mrb[0].mxu0 %v3350
    %v3836 = vpop.f32.mrb[0].mxu0
    %v3837 = vadd.f32 %v3796, %v3836
    %v3838 = vpop.f32.mrb[0].mxu0
    %v3839 = vadd.f32 %v3798, %v3838
    %v3840 = vpop.f32.mrb[0].mxu0
    %v3841 = vpop.f32.mrb[0].mxu0
    %3842 = vdwg.mxu0
    %v3843 = vadd.f32 %v654, %v3427
    %v3844 = vadd.f32 %v656, %v3429
    %v3845 = vadd.f32 %v727, %v3509
    %v3846 = vadd.f32 %v729, %v3511
    %v3847 = vadd.f32 %v800, %v3591
    %v3848 = vadd.f32 %v802, %v3593
    %v3849 = vadd.f32 %v873, %v3673
    %v3850 = vadd.f32 %v875, %v3675
    %v3851 = vadd.f32 %v946, %v3755
    %v3852 = vadd.f32 %v948, %v3757
    %v3853 = vadd.f32 %v1019, %v3837
    %v3854 = vadd.f32 %v1021, %v3839
    %v3855 = vmul.f32 %v3843, 0.5
    %v3856 = vmul.f32 %v3844, 0.5
    %v3857 = vmul.f32 %v3845, 0.5
    %v3858 = vtanh.pop %v3855
    %v3859 = vtanh.pop %v3856
    %v3860 = vtanh.pop %v3857
    %v3861 = vadd.f32 %v3858, 1.0
    %v3862 = vadd.f32 %v3859, 1.0
    %v3863 = vadd.f32 %v3860, 1.0
    %v3864 = vmul.f32 %v3861, 0.5
    %v3865 = vmul.f32 %v3862, 0.5
    %v3866 = vmul.f32 %v3863, 0.5
    %v3867 = vmul.f32 %v3846, 0.5
    %v3868 = vmul.f32 %v3847, 0.5
    %v3869 = vmul.f32 %v3848, 0.5
    %v3870 = vtanh.pop %v3867
    %v3871 = vtanh.pop %v3868
    %v3872 = vtanh.pop %v3869
    %v3873 = vadd.f32 %v3870, 1.0
    %v3874 = vadd.f32 %v3871, 1.0
    %v3875 = vadd.f32 %v3872, 1.0
    %v3876 = vmul.f32 %v3873, 0.5
    %v3877 = vmul.f32 %v3874, 0.5
    %v3878 = vmul.f32 %v3875, 0.5
    %v3879 = vtanh.pop %v3849
    %v3880 = vtanh.pop %v3850
    %v3881 = vtanh.pop %v3851
    %v3882 = vmul.f32 %v3852, 0.5
    %v3883 = vmul.f32 %v3853, 0.5
    %v3884 = vmul.f32 %v3854, 0.5
    %v3885 = vtanh.pop %v3882
    %v3886 = vtanh.pop %v3883
    %v3887 = vtanh.pop %v3884
    %v3888 = vadd.f32 %v3885, 1.0
    %v3889 = vadd.f32 %v3886, 1.0
    %v3890 = vadd.f32 %v3887, 1.0
    %v3891 = vmul.f32 %v3888, 0.5
    %v3892 = vmul.f32 %v3889, 0.5
    %v3893 = vmul.f32 %v3890, 0.5
    %v3894 = vmul.f32 %v3876, %v3339
    %v3895 = vmul.f32 %v3877, %v3340
    %v3896 = vmul.f32 %v3878, %v3341
    %v3897 = vmul.f32 %v3864, %v3879
    %v3898 = vmul.f32 %v3865, %v3880
    %v3899 = vmul.f32 %v3866, %v3881
    %v3900 = vadd.f32 %v3894, %v3897
    %v3901 = vadd.f32 %v3895, %v3898
    %v3902 = vadd.f32 %v3896, %v3899
    %v3903 = vtanh.pop %v3900
    %v3904 = vtanh.pop %v3901
    %v3905 = vtanh.pop %v3902
    %v3906 = vmul.f32 %v3891, %v3903
    %v3907 = vmul.f32 %v3892, %v3904
    %v3908 = vmul.f32 %v3893, %v3905
    %v3909 = vpack.c.bf16 %v3906, %v3906
    %v3910 = vpack.c.bf16 %v3907, %v3907
    %v3911 = vpack.c.bf16 %v3908, %v3908
    %3912 = vmatprep.subr.bf16.mxu0 %v2215
    %3913 = vmatpush1.bf16.msra.mxu0 %v2214
    %3914 = vmatprep.subr.bf16.mxu0 %v2227
    %3915 = vmatpush1.bf16.msra.mxu0 %v2226
    %3916 = vmatprep.subr.bf16.mxu0 %v2239
    %3917 = vmatpush1.bf16.msra.mxu0 %v2238
    %3918 = vmatprep.subr.bf16.mxu0 %v2251
    %3919 = vmatpush1.bf16.msra.mxu0 %v2250
    %3920 = vmatprep.subr.bf16.mxu0 %v2263
    %3921 = vmatpush1.bf16.msra.mxu0 %v2262
    %3922 = vmatprep.subr.bf16.mxu0 %v2275
    %3923 = vmatpush1.bf16.msra.mxu0 %v2274
    %3924 = vmatprep.subr.bf16.mxu0 %v2287
    %3925 = vmatpush1.bf16.msra.mxu0 %v2286
    %3926 = vmatprep.subr.bf16.mxu0 %v2299
    %3927 = vmatpush1.bf16.msra.mxu0 %v2298
    %3928 = vmatprep.subr.bf16.mxu0 %v2311
    %3929 = vmatpush1.bf16.msra.mxu0 %v2310
    %3930 = vmatprep.subr.bf16.mxu0 %v2323
    %3931 = vmatpush1.bf16.msra.mxu0 %v2322
    %3932 = vmatprep.subr.bf16.mxu0 %v2335
    %3933 = vmatpush1.bf16.msra.mxu0 %v2334
    %3934 = vmatprep.subr.bf16.mxu0 %v2347
    %3935 = vmatpush1.bf16.msra.mxu0 %v2346
    %3936 = vmatprep.subr.bf16.mxu0 %v2359
    %3937 = vmatpush1.bf16.msra.mxu0 %v2358
    %3938 = vmatprep.subr.bf16.mxu0 %v2371
    %3939 = vmatpush1.bf16.msra.mxu0 %v2370
    %3940 = vmatprep.subr.bf16.mxu0 %v2383
    %3941 = vmatpush1.bf16.msra.mxu0 %v2382
    %3942 = vmatprep.subr.bf16.mxu0 %v2395
    %3943 = vmatpush1.bf16.msra.mxu0 %v2394
    %3944 = vmatprep.mubr.bf16.mxu0 %v3910
    %3945 = vmatmul.mubr.bf16.gmra.mrb[0].mxu0 %v3909
    %v3946 = vpop.f32.mrb[0].mxu0
    %v3947 = vadd.f32 0.0, %v3946
    %v3948 = vpop.f32.mrb[0].mxu0
    %v3949 = vadd.f32 0.0, %v3948
    %v3950 = vpop.f32.mrb[0].mxu0
    %v3951 = vpop.f32.mrb[0].mxu0
    %3952 = vdwg.mxu0
    %3953 = vmatprep.subr.bf16.mxu0 %v2407
    %3954 = vmatpush1.bf16.msra.mxu0 %v2406
    %3955 = vmatprep.subr.bf16.mxu0 %v2419
    %3956 = vmatpush1.bf16.msra.mxu0 %v2418
    %3957 = vmatprep.subr.bf16.mxu0 %v2431
    %3958 = vmatpush1.bf16.msra.mxu0 %v2430
    %3959 = vmatprep.subr.bf16.mxu0 %v2443
    %3960 = vmatpush1.bf16.msra.mxu0 %v2442
    %3961 = vmatprep.subr.bf16.mxu0 %v2455
    %3962 = vmatpush1.bf16.msra.mxu0 %v2454
    %3963 = vmatprep.subr.bf16.mxu0 %v2467
    %3964 = vmatpush1.bf16.msra.mxu0 %v2466
    %3965 = vmatprep.subr.bf16.mxu0 %v2479
    %3966 = vmatpush1.bf16.msra.mxu0 %v2478
    %3967 = vmatprep.subr.bf16.mxu0 %v2491
    %3968 = vmatpush1.bf16.msra.mxu0 %v2490
    %3969 = vmatprep.subr.bf16.mxu0 0
    %3970 = vmatpush1.bf16.msra.mxu0 0
    %3971 = vmatprep.subr.bf16.mxu0 0
    %3972 = vmatpush1.bf16.msra.mxu0 0
    %3973 = vmatprep.subr.bf16.mxu0 0
    %3974 = vmatpush1.bf16.msra.mxu0 0
    %3975 = vmatprep.subr.bf16.mxu0 0
    %3976 = vmatpush1.bf16.msra.mxu0 0
    %3977 = vmatprep.subr.bf16.mxu0 0
    %3978 = vmatpush1.bf16.msra.mxu0 0
    %3979 = vmatprep.subr.bf16.mxu0 0
    %3980 = vmatpush1.bf16.msra.mxu0 0
    %3981 = vmatprep.subr.bf16.mxu0 0
    %3982 = vmatpush1.bf16.msra.mxu0 0
    %3983 = vmatprep.subr.bf16.mxu0 0
    %3984 = vmatpush1.bf16.msra.mxu0 0
    %3985 = vmatprep.mubr.bf16.mxu0 0
    %3986 = vmatmul.mubr.bf16.gmra.mrb[0].mxu0 %v3911
    %v3987 = vpop.f32.mrb[0].mxu0
    %v3988 = vadd.f32 %v3947, %v3987
    %v3989 = vpop.f32.mrb[0].mxu0
    %v3990 = vadd.f32 %v3949, %v3989
    %v3991 = vpop.f32.mrb[0].mxu0
    %v3992 = vpop.f32.mrb[0].mxu0
    %3993 = vdwg.mxu0
    %3994 = vmatprep.subr.bf16.mxu0 %v2217
    %3995 = vmatpush1.bf16.msra.mxu0 %v2216
    %3996 = vmatprep.subr.bf16.mxu0 %v2229
    %3997 = vmatpush1.bf16.msra.mxu0 %v2228
    %3998 = vmatprep.subr.bf16.mxu0 %v2241
    %3999 = vmatpush1.bf16.msra.mxu0 %v2240
    %4000 = vmatprep.subr.bf16.mxu0 %v2253
    %4001 = vmatpush1.bf16.msra.mxu0 %v2252
    %4002 = vmatprep.subr.bf16.mxu0 %v2265
    %4003 = vmatpush1.bf16.msra.mxu0 %v2264
    %4004 = vmatprep.subr.bf16.mxu0 %v2277
    %4005 = vmatpush1.bf16.msra.mxu0 %v2276
    %4006 = vmatprep.subr.bf16.mxu0 %v2289
    %4007 = vmatpush1.bf16.msra.mxu0 %v2288
    %4008 = vmatprep.subr.bf16.mxu0 %v2301
    %4009 = vmatpush1.bf16.msra.mxu0 %v2300
    %4010 = vmatprep.subr.bf16.mxu0 %v2313
    %4011 = vmatpush1.bf16.msra.mxu0 %v2312
    %4012 = vmatprep.subr.bf16.mxu0 %v2325
    %4013 = vmatpush1.bf16.msra.mxu0 %v2324
    %4014 = vmatprep.subr.bf16.mxu0 %v2337
    %4015 = vmatpush1.bf16.msra.mxu0 %v2336
    %4016 = vmatprep.subr.bf16.mxu0 %v2349
    %4017 = vmatpush1.bf16.msra.mxu0 %v2348
    %4018 = vmatprep.subr.bf16.mxu0 %v2361
    %4019 = vmatpush1.bf16.msra.mxu0 %v2360
    %4020 = vmatprep.subr.bf16.mxu0 %v2373
    %4021 = vmatpush1.bf16.msra.mxu0 %v2372
    %4022 = vmatprep.subr.bf16.mxu0 %v2385
    %4023 = vmatpush1.bf16.msra.mxu0 %v2384
    %4024 = vmatprep.subr.bf16.mxu0 %v2397
    %4025 = vmatpush1.bf16.msra.mxu0 %v2396
    %4026 = vmatprep.mubr.bf16.mxu0 %v3910
    %4027 = vmatmul.mubr.bf16.gmra.mrb[0].mxu0 %v3909
    %v4028 = vpop.f32.mrb[0].mxu0
    %v4029 = vadd.f32 0.0, %v4028
    %v4030 = vpop.f32.mrb[0].mxu0
    %v4031 = vadd.f32 0.0, %v4030
    %v4032 = vpop.f32.mrb[0].mxu0
    %v4033 = vpop.f32.mrb[0].mxu0
    %4034 = vdwg.mxu0
    %4035 = vmatprep.subr.bf16.mxu0 %v2409
    %4036 = vmatpush1.bf16.msra.mxu0 %v2408
    %4037 = vmatprep.subr.bf16.mxu0 %v2421
    %4038 = vmatpush1.bf16.msra.mxu0 %v2420
    %4039 = vmatprep.subr.bf16.mxu0 %v2433
    %4040 = vmatpush1.bf16.msra.mxu0 %v2432
    %4041 = vmatprep.subr.bf16.mxu0 %v2445
    %4042 = vmatpush1.bf16.msra.mxu0 %v2444
    %4043 = vmatprep.subr.bf16.mxu0 %v2457
    %4044 = vmatpush1.bf16.msra.mxu0 %v2456
    %4045 = vmatprep.subr.bf16.mxu0 %v2469
    %4046 = vmatpush1.bf16.msra.mxu0 %v2468
    %4047 = vmatprep.subr.bf16.mxu0 %v2481
    %4048 = vmatpush1.bf16.msra.mxu0 %v2480
    %4049 = vmatprep.subr.bf16.mxu0 %v2493
    %4050 = vmatpush1.bf16.msra.mxu0 %v2492
    %4051 = vmatprep.subr.bf16.mxu0 0
    %4052 = vmatpush1.bf16.msra.mxu0 0
    %4053 = vmatprep.subr.bf16.mxu0 0
    %4054 = vmatpush1.bf16.msra.mxu0 0
    %4055 = vmatprep.subr.bf16.mxu0 0
    %4056 = vmatpush1.bf16.msra.mxu0 0
    %4057 = vmatprep.subr.bf16.mxu0 0
    %4058 = vmatpush1.bf16.msra.mxu0 0
    %4059 = vmatprep.subr.bf16.mxu0 0
    %4060 = vmatpush1.bf16.msra.mxu0 0
    %4061 = vmatprep.subr.bf16.mxu0 0
    %4062 = vmatpush1.bf16.msra.mxu0 0
    %4063 = vmatprep.subr.bf16.mxu0 0
    %4064 = vmatpush1.bf16.msra.mxu0 0
    %4065 = vmatprep.subr.bf16.mxu0 0
    %4066 = vmatpush1.bf16.msra.mxu0 0
    %4067 = vmatprep.mubr.bf16.mxu0 0
    %4068 = vmatmul.mubr.bf16.gmra.mrb[0].mxu0 %v3911
    %v4069 = vpop.f32.mrb[0].mxu0
    %v4070 = vadd.f32 %v4029, %v4069
    %v4071 = vpop.f32.mrb[0].mxu0
    %v4072 = vadd.f32 %v4031, %v4071
    %v4073 = vpop.f32.mrb[0].mxu0
    %v4074 = vpop.f32.mrb[0].mxu0
    %4075 = vdwg.mxu0
    %4076 = vmatprep.subr.bf16.mxu0 %v2219
    %4077 = vmatpush1.bf16.msra.mxu0 %v2218
    %4078 = vmatprep.subr.bf16.mxu0 %v2231
    %4079 = vmatpush1.bf16.msra.mxu0 %v2230
    %4080 = vmatprep.subr.bf16.mxu0 %v2243
    %4081 = vmatpush1.bf16.msra.mxu0 %v2242
    %4082 = vmatprep.subr.bf16.mxu0 %v2255
    %4083 = vmatpush1.bf16.msra.mxu0 %v2254
    %4084 = vmatprep.subr.bf16.mxu0 %v2267
    %4085 = vmatpush1.bf16.msra.mxu0 %v2266
    %4086 = vmatprep.subr.bf16.mxu0 %v2279
    %4087 = vmatpush1.bf16.msra.mxu0 %v2278
    %4088 = vmatprep.subr.bf16.mxu0 %v2291
    %4089 = vmatpush1.bf16.msra.mxu0 %v2290
    %4090 = vmatprep.subr.bf16.mxu0 %v2303
    %4091 = vmatpush1.bf16.msra.mxu0 %v2302
    %4092 = vmatprep.subr.bf16.mxu0 %v2315
    %4093 = vmatpush1.bf16.msra.mxu0 %v2314
    %4094 = vmatprep.subr.bf16.mxu0 %v2327
    %4095 = vmatpush1.bf16.msra.mxu0 %v2326
    %4096 = vmatprep.subr.bf16.mxu0 %v2339
    %4097 = vmatpush1.bf16.msra.mxu0 %v2338
    %4098 = vmatprep.subr.bf16.mxu0 %v2351
    %4099 = vmatpush1.bf16.msra.mxu0 %v2350
    %4100 = vmatprep.subr.bf16.mxu0 %v2363
    %4101 = vmatpush1.bf16.msra.mxu0 %v2362
    %4102 = vmatprep.subr.bf16.mxu0 %v2375
    %4103 = vmatpush1.bf16.msra.mxu0 %v2374
    %4104 = vmatprep.subr.bf16.mxu0 %v2387
    %4105 = vmatpush1.bf16.msra.mxu0 %v2386
    %4106 = vmatprep.subr.bf16.mxu0 %v2399
    %4107 = vmatpush1.bf16.msra.mxu0 %v2398
    %4108 = vmatprep.mubr.bf16.mxu0 %v3910
    %4109 = vmatmul.mubr.bf16.gmra.mrb[0].mxu0 %v3909
    %v4110 = vpop.f32.mrb[0].mxu0
    %v4111 = vadd.f32 0.0, %v4110
    %v4112 = vpop.f32.mrb[0].mxu0
    %v4113 = vadd.f32 0.0, %v4112
    %v4114 = vpop.f32.mrb[0].mxu0
    %v4115 = vpop.f32.mrb[0].mxu0
    %4116 = vdwg.mxu0
    %4117 = vmatprep.subr.bf16.mxu0 %v2411
    %4118 = vmatpush1.bf16.msra.mxu0 %v2410
    %4119 = vmatprep.subr.bf16.mxu0 %v2423
    %4120 = vmatpush1.bf16.msra.mxu0 %v2422
    %4121 = vmatprep.subr.bf16.mxu0 %v2435
    %4122 = vmatpush1.bf16.msra.mxu0 %v2434
    %4123 = vmatprep.subr.bf16.mxu0 %v2447
    %4124 = vmatpush1.bf16.msra.mxu0 %v2446
    %4125 = vmatprep.subr.bf16.mxu0 %v2459
    %4126 = vmatpush1.bf16.msra.mxu0 %v2458
    %4127 = vmatprep.subr.bf16.mxu0 %v2471
    %4128 = vmatpush1.bf16.msra.mxu0 %v2470
    %4129 = vmatprep.subr.bf16.mxu0 %v2483
    %4130 = vmatpush1.bf16.msra.mxu0 %v2482
    %4131 = vmatprep.subr.bf16.mxu0 %v2495
    %4132 = vmatpush1.bf16.msra.mxu0 %v2494
    %4133 = vmatprep.subr.bf16.mxu0 0
    %4134 = vmatpush1.bf16.msra.mxu0 0
    %4135 = vmatprep.subr.bf16.mxu0 0
    %4136 = vmatpush1.bf16.msra.mxu0 0
    %4137 = vmatprep.subr.bf16.mxu0 0
    %4138 = vmatpush1.bf16.msra.mxu0 0
    %4139 = vmatprep.subr.bf16.mxu0 0
    %4140 = vmatpush1.bf16.msra.mxu0 0
    %4141 = vmatprep.subr.bf16.mxu0 0
    %4142 = vmatpush1.bf16.msra.mxu0 0
    %4143 = vmatprep.subr.bf16.mxu0 0
    %4144 = vmatpush1.bf16.msra.mxu0 0
    %4145 = vmatprep.subr.bf16.mxu0 0
    %4146 = vmatpush1.bf16.msra.mxu0 0
    %4147 = vmatprep.subr.bf16.mxu0 0
    %4148 = vmatpush1.bf16.msra.mxu0 0
    %4149 = vmatprep.mubr.bf16.mxu0 0
    %4150 = vmatmul.mubr.bf16.gmra.mrb[0].mxu0 %v3911
    %v4151 = vpop.f32.mrb[0].mxu0
    %v4152 = vadd.f32 %v4111, %v4151
    %v4153 = vpop.f32.mrb[0].mxu0
    %v4154 = vadd.f32 %v4113, %v4153
    %v4155 = vpop.f32.mrb[0].mxu0
    %v4156 = vpop.f32.mrb[0].mxu0
    %4157 = vdwg.mxu0
    %4158 = vmatprep.subr.bf16.mxu0 %v2221
    %4159 = vmatpush1.bf16.msra.mxu0 %v2220
    %4160 = vmatprep.subr.bf16.mxu0 %v2233
    %4161 = vmatpush1.bf16.msra.mxu0 %v2232
    %4162 = vmatprep.subr.bf16.mxu0 %v2245
    %4163 = vmatpush1.bf16.msra.mxu0 %v2244
    %4164 = vmatprep.subr.bf16.mxu0 %v2257
    %4165 = vmatpush1.bf16.msra.mxu0 %v2256
    %4166 = vmatprep.subr.bf16.mxu0 %v2269
    %4167 = vmatpush1.bf16.msra.mxu0 %v2268
    %4168 = vmatprep.subr.bf16.mxu0 %v2281
    %4169 = vmatpush1.bf16.msra.mxu0 %v2280
    %4170 = vmatprep.subr.bf16.mxu0 %v2293
    %4171 = vmatpush1.bf16.msra.mxu0 %v2292
    %4172 = vmatprep.subr.bf16.mxu0 %v2305
    %4173 = vmatpush1.bf16.msra.mxu0 %v2304
    %4174 = vmatprep.subr.bf16.mxu0 %v2317
    %4175 = vmatpush1.bf16.msra.mxu0 %v2316
    %4176 = vmatprep.subr.bf16.mxu0 %v2329
    %4177 = vmatpush1.bf16.msra.mxu0 %v2328
    %4178 = vmatprep.subr.bf16.mxu0 %v2341
    %4179 = vmatpush1.bf16.msra.mxu0 %v2340
    %4180 = vmatprep.subr.bf16.mxu0 %v2353
    %4181 = vmatpush1.bf16.msra.mxu0 %v2352
    %4182 = vmatprep.subr.bf16.mxu0 %v2365
    %4183 = vmatpush1.bf16.msra.mxu0 %v2364
    %4184 = vmatprep.subr.bf16.mxu0 %v2377
    %4185 = vmatpush1.bf16.msra.mxu0 %v2376
    %4186 = vmatprep.subr.bf16.mxu0 %v2389
    %4187 = vmatpush1.bf16.msra.mxu0 %v2388
    %4188 = vmatprep.subr.bf16.mxu0 %v2401
    %4189 = vmatpush1.bf16.msra.mxu0 %v2400
    %4190 = vmatprep.mubr.bf16.mxu0 %v3910
    %4191 = vmatmul.mubr.bf16.gmra.mrb[0].mxu0 %v3909
    %v4192 = vpop.f32.mrb[0].mxu0
    %v4193 = vadd.f32 0.0, %v4192
    %v4194 = vpop.f32.mrb[0].mxu0
    %v4195 = vadd.f32 0.0, %v4194
    %v4196 = vpop.f32.mrb[0].mxu0
    %v4197 = vpop.f32.mrb[0].mxu0
    %4198 = vdwg.mxu0
    %4199 = vmatprep.subr.bf16.mxu0 %v2413
    %4200 = vmatpush1.bf16.msra.mxu0 %v2412
    %4201 = vmatprep.subr.bf16.mxu0 %v2425
    %4202 = vmatpush1.bf16.msra.mxu0 %v2424
    %4203 = vmatprep.subr.bf16.mxu0 %v2437
    %4204 = vmatpush1.bf16.msra.mxu0 %v2436
    %4205 = vmatprep.subr.bf16.mxu0 %v2449
    %4206 = vmatpush1.bf16.msra.mxu0 %v2448
    %4207 = vmatprep.subr.bf16.mxu0 %v2461
    %4208 = vmatpush1.bf16.msra.mxu0 %v2460
    %4209 = vmatprep.subr.bf16.mxu0 %v2473
    %4210 = vmatpush1.bf16.msra.mxu0 %v2472
    %4211 = vmatprep.subr.bf16.mxu0 %v2485
    %4212 = vmatpush1.bf16.msra.mxu0 %v2484
    %4213 = vmatprep.subr.bf16.mxu0 %v2497
    %4214 = vmatpush1.bf16.msra.mxu0 %v2496
    %4215 = vmatprep.subr.bf16.mxu0 0
    %4216 = vmatpush1.bf16.msra.mxu0 0
    %4217 = vmatprep.subr.bf16.mxu0 0
    %4218 = vmatpush1.bf16.msra.mxu0 0
    %4219 = vmatprep.subr.bf16.mxu0 0
    %4220 = vmatpush1.bf16.msra.mxu0 0
    %4221 = vmatprep.subr.bf16.mxu0 0
    %4222 = vmatpush1.bf16.msra.mxu0 0
    %4223 = vmatprep.subr.bf16.mxu0 0
    %4224 = vmatpush1.bf16.msra.mxu0 0
    %4225 = vmatprep.subr.bf16.mxu0 0
    %4226 = vmatpush1.bf16.msra.mxu0 0
    %4227 = vmatprep.subr.bf16.mxu0 0
    %4228 = vmatpush1.bf16.msra.mxu0 0
    %4229 = vmatprep.subr.bf16.mxu0 0
    %4230 = vmatpush1.bf16.msra.mxu0 0
    %4231 = vmatprep.mubr.bf16.mxu0 0
    %4232 = vmatmul.mubr.bf16.gmra.mrb[0].mxu0 %v3911
    %v4233 = vpop.f32.mrb[0].mxu0
    %v4234 = vadd.f32 %v4193, %v4233
    %v4235 = vpop.f32.mrb[0].mxu0
    %v4236 = vadd.f32 %v4195, %v4235
    %v4237 = vpop.f32.mrb[0].mxu0
    %v4238 = vpop.f32.mrb[0].mxu0
    %4239 = vdwg.mxu0
    %4240 = vmatprep.subr.bf16.mxu0 %v2223
    %4241 = vmatpush1.bf16.msra.mxu0 %v2222
    %4242 = vmatprep.subr.bf16.mxu0 %v2235
    %4243 = vmatpush1.bf16.msra.mxu0 %v2234
    %4244 = vmatprep.subr.bf16.mxu0 %v2247
    %4245 = vmatpush1.bf16.msra.mxu0 %v2246
    %4246 = vmatprep.subr.bf16.mxu0 %v2259
    %4247 = vmatpush1.bf16.msra.mxu0 %v2258
    %4248 = vmatprep.subr.bf16.mxu0 %v2271
    %4249 = vmatpush1.bf16.msra.mxu0 %v2270
    %4250 = vmatprep.subr.bf16.mxu0 %v2283
    %4251 = vmatpush1.bf16.msra.mxu0 %v2282
    %4252 = vmatprep.subr.bf16.mxu0 %v2295
    %4253 = vmatpush1.bf16.msra.mxu0 %v2294
    %4254 = vmatprep.subr.bf16.mxu0 %v2307
    %4255 = vmatpush1.bf16.msra.mxu0 %v2306
    %4256 = vmatprep.subr.bf16.mxu0 %v2319
    %4257 = vmatpush1.bf16.msra.mxu0 %v2318
    %4258 = vmatprep.subr.bf16.mxu0 %v2331
    %4259 = vmatpush1.bf16.msra.mxu0 %v2330
    %4260 = vmatprep.subr.bf16.mxu0 %v2343
    %4261 = vmatpush1.bf16.msra.mxu0 %v2342
    %4262 = vmatprep.subr.bf16.mxu0 %v2355
    %4263 = vmatpush1.bf16.msra.mxu0 %v2354
    %4264 = vmatprep.subr.bf16.mxu0 %v2367
    %4265 = vmatpush1.bf16.msra.mxu0 %v2366
    %4266 = vmatprep.subr.bf16.mxu0 %v2379
    %4267 = vmatpush1.bf16.msra.mxu0 %v2378
    %4268 = vmatprep.subr.bf16.mxu0 %v2391
    %4269 = vmatpush1.bf16.msra.mxu0 %v2390
    %4270 = vmatprep.subr.bf16.mxu0 %v2403
    %4271 = vmatpush1.bf16.msra.mxu0 %v2402
    %4272 = vmatprep.mubr.bf16.mxu0 %v3910
    %4273 = vmatmul.mubr.bf16.gmra.mrb[0].mxu0 %v3909
    %v4274 = vpop.f32.mrb[0].mxu0
    %v4275 = vadd.f32 0.0, %v4274
    %v4276 = vpop.f32.mrb[0].mxu0
    %v4277 = vadd.f32 0.0, %v4276
    %v4278 = vpop.f32.mrb[0].mxu0
    %v4279 = vpop.f32.mrb[0].mxu0
    %4280 = vdwg.mxu0
    %4281 = vmatprep.subr.bf16.mxu0 %v2415
    %4282 = vmatpush1.bf16.msra.mxu0 %v2414
    %4283 = vmatprep.subr.bf16.mxu0 %v2427
    %4284 = vmatpush1.bf16.msra.mxu0 %v2426
    %4285 = vmatprep.subr.bf16.mxu0 %v2439
    %4286 = vmatpush1.bf16.msra.mxu0 %v2438
    %4287 = vmatprep.subr.bf16.mxu0 %v2451
    %4288 = vmatpush1.bf16.msra.mxu0 %v2450
    %4289 = vmatprep.subr.bf16.mxu0 %v2463
    %4290 = vmatpush1.bf16.msra.mxu0 %v2462
    %4291 = vmatprep.subr.bf16.mxu0 %v2475
    %4292 = vmatpush1.bf16.msra.mxu0 %v2474
    %4293 = vmatprep.subr.bf16.mxu0 %v2487
    %4294 = vmatpush1.bf16.msra.mxu0 %v2486
    %4295 = vmatprep.subr.bf16.mxu0 %v2499
    %4296 = vmatpush1.bf16.msra.mxu0 %v2498
    %4297 = vmatprep.subr.bf16.mxu0 0
    %4298 = vmatpush1.bf16.msra.mxu0 0
    %4299 = vmatprep.subr.bf16.mxu0 0
    %4300 = vmatpush1.bf16.msra.mxu0 0
    %4301 = vmatprep.subr.bf16.mxu0 0
    %4302 = vmatpush1.bf16.msra.mxu0 0
    %4303 = vmatprep.subr.bf16.mxu0 0
    %4304 = vmatpush1.bf16.msra.mxu0 0
    %4305 = vmatprep.subr.bf16.mxu0 0
    %4306 = vmatpush1.bf16.msra.mxu0 0
    %4307 = vmatprep.subr.bf16.mxu0 0
    %4308 = vmatpush1.bf16.msra.mxu0 0
    %4309 = vmatprep.subr.bf16.mxu0 0
    %4310 = vmatpush1.bf16.msra.mxu0 0
    %4311 = vmatprep.subr.bf16.mxu0 0
    %4312 = vmatpush1.bf16.msra.mxu0 0
    %4313 = vmatprep.mubr.bf16.mxu0 0
    %4314 = vmatmul.mubr.bf16.gmra.mrb[0].mxu0 %v3911
    %v4315 = vpop.f32.mrb[0].mxu0
    %v4316 = vadd.f32 %v4275, %v4315
    %v4317 = vpop.f32.mrb[0].mxu0
    %v4318 = vadd.f32 %v4277, %v4317
    %v4319 = vpop.f32.mrb[0].mxu0
    %v4320 = vpop.f32.mrb[0].mxu0
    %4321 = vdwg.mxu0
    %4322 = vmatprep.subr.bf16.mxu0 %v2225
    %4323 = vmatpush1.bf16.msra.mxu0 %v2224
    %4324 = vmatprep.subr.bf16.mxu0 %v2237
    %4325 = vmatpush1.bf16.msra.mxu0 %v2236
    %4326 = vmatprep.subr.bf16.mxu0 %v2249
    %4327 = vmatpush1.bf16.msra.mxu0 %v2248
    %4328 = vmatprep.subr.bf16.mxu0 %v2261
    %4329 = vmatpush1.bf16.msra.mxu0 %v2260
    %4330 = vmatprep.subr.bf16.mxu0 %v2273
    %4331 = vmatpush1.bf16.msra.mxu0 %v2272
    %4332 = vmatprep.subr.bf16.mxu0 %v2285
    %4333 = vmatpush1.bf16.msra.mxu0 %v2284
    %4334 = vmatprep.subr.bf16.mxu0 %v2297
    %4335 = vmatpush1.bf16.msra.mxu0 %v2296
    %4336 = vmatprep.subr.bf16.mxu0 %v2309
    %4337 = vmatpush1.bf16.msra.mxu0 %v2308
    %4338 = vmatprep.subr.bf16.mxu0 %v2321
    %4339 = vmatpush1.bf16.msra.mxu0 %v2320
    %4340 = vmatprep.subr.bf16.mxu0 %v2333
    %4341 = vmatpush1.bf16.msra.mxu0 %v2332
    %4342 = vmatprep.subr.bf16.mxu0 %v2345
    %4343 = vmatpush1.bf16.msra.mxu0 %v2344
    %4344 = vmatprep.subr.bf16.mxu0 %v2357
    %4345 = vmatpush1.bf16.msra.mxu0 %v2356
    %4346 = vmatprep.subr.bf16.mxu0 %v2369
    %4347 = vmatpush1.bf16.msra.mxu0 %v2368
    %4348 = vmatprep.subr.bf16.mxu0 %v2381
    %4349 = vmatpush1.bf16.msra.mxu0 %v2380
    %4350 = vmatprep.subr.bf16.mxu0 %v2393
    %4351 = vmatpush1.bf16.msra.mxu0 %v2392
    %4352 = vmatprep.subr.bf16.mxu0 %v2405
    %4353 = vmatpush1.bf16.msra.mxu0 %v2404
    %4354 = vmatprep.mubr.bf16.mxu0 %v3910
    %4355 = vmatmul.mubr.bf16.gmra.mrb[0].mxu0 %v3909
    %v4356 = vpop.f32.mrb[0].mxu0
    %v4357 = vadd.f32 0.0, %v4356
    %v4358 = vpop.f32.mrb[0].mxu0
    %v4359 = vadd.f32 0.0, %v4358
    %v4360 = vpop.f32.mrb[0].mxu0
    %v4361 = vpop.f32.mrb[0].mxu0
    %4362 = vdwg.mxu0
    %4363 = vmatprep.subr.bf16.mxu0 %v2417
    %4364 = vmatpush1.bf16.msra.mxu0 %v2416
    %4365 = vmatprep.subr.bf16.mxu0 %v2429
    %4366 = vmatpush1.bf16.msra.mxu0 %v2428
    %4367 = vmatprep.subr.bf16.mxu0 %v2441
    %4368 = vmatpush1.bf16.msra.mxu0 %v2440
    %4369 = vmatprep.subr.bf16.mxu0 %v2453
    %4370 = vmatpush1.bf16.msra.mxu0 %v2452
    %4371 = vmatprep.subr.bf16.mxu0 %v2465
    %4372 = vmatpush1.bf16.msra.mxu0 %v2464
    %4373 = vmatprep.subr.bf16.mxu0 %v2477
    %4374 = vmatpush1.bf16.msra.mxu0 %v2476
    %4375 = vmatprep.subr.bf16.mxu0 %v2489
    %4376 = vmatpush1.bf16.msra.mxu0 %v2488
    %4377 = vmatprep.subr.bf16.mxu0 %v2501
    %4378 = vmatpush1.bf16.msra.mxu0 %v2500
    %4379 = vmatprep.subr.bf16.mxu0 0
    %4380 = vmatpush1.bf16.msra.mxu0 0
    %4381 = vmatprep.subr.bf16.mxu0 0
    %4382 = vmatpush1.bf16.msra.mxu0 0
    %4383 = vmatprep.subr.bf16.mxu0 0
    %4384 = vmatpush1.bf16.msra.mxu0 0
    %4385 = vmatprep.subr.bf16.mxu0 0
    %4386 = vmatpush1.bf16.msra.mxu0 0
    %4387 = vmatprep.subr.bf16.mxu0 0
    %4388 = vmatpush1.bf16.msra.mxu0 0
    %4389 = vmatprep.subr.bf16.mxu0 0
    %4390 = vmatpush1.bf16.msra.mxu0 0
    %4391 = vmatprep.subr.bf16.mxu0 0
    %4392 = vmatpush1.bf16.msra.mxu0 0
    %4393 = vmatprep.subr.bf16.mxu0 0
    %4394 = vmatpush1.bf16.msra.mxu0 0
    %4395 = vmatprep.mubr.bf16.mxu0 0
    %4396 = vmatmul.mubr.bf16.gmra.mrb[0].mxu0 %v3911
    %v4397 = vpop.f32.mrb[0].mxu0
    %v4398 = vadd.f32 %v4357, %v4397
    %v4399 = vpop.f32.mrb[0].mxu0
    %v4400 = vadd.f32 %v4359, %v4399
    %v4401 = vpop.f32.mrb[0].mxu0
    %v4402 = vpop.f32.mrb[0].mxu0
    %4403 = vdwg.mxu0
    %v4404 = vadd.f32 %v660, %v3988
    %v4405 = vadd.f32 %v662, %v3990
    %v4406 = vadd.f32 %v733, %v4070
    %v4407 = vadd.f32 %v735, %v4072
    %v4408 = vadd.f32 %v806, %v4152
    %v4409 = vadd.f32 %v808, %v4154
    %v4410 = vadd.f32 %v879, %v4234
    %v4411 = vadd.f32 %v881, %v4236
    %v4412 = vadd.f32 %v952, %v4316
    %v4413 = vadd.f32 %v954, %v4318
    %v4414 = vadd.f32 %v1025, %v4398
    %v4415 = vadd.f32 %v1027, %v4400
    %v4416 = vmul.f32 %v4404, 0.5
    %v4417 = vmul.f32 %v4405, 0.5
    %v4418 = vmul.f32 %v4406, 0.5
    %v4419 = vtanh.pop %v4416
    %v4420 = vtanh.pop %v4417
    %v4421 = vtanh.pop %v4418
    %v4422 = vadd.f32 %v4419, 1.0
    %v4423 = vadd.f32 %v4420, 1.0
    %v4424 = vadd.f32 %v4421, 1.0
    %v4425 = vmul.f32 %v4422, 0.5
    %v4426 = vmul.f32 %v4423, 0.5
    %v4427 = vmul.f32 %v4424, 0.5
    %v4428 = vmul.f32 %v4407, 0.5
    %v4429 = vmul.f32 %v4408, 0.5
    %v4430 = vmul.f32 %v4409, 0.5
    %v4431 = vtanh.pop %v4428
    %v4432 = vtanh.pop %v4429
    %v4433 = vtanh.pop %v4430
    %v4434 = vadd.f32 %v4431, 1.0
    %v4435 = vadd.f32 %v4432, 1.0
    %v4436 = vadd.f32 %v4433, 1.0
    %v4437 = vmul.f32 %v4434, 0.5
    %v4438 = vmul.f32 %v4435, 0.5
    %v4439 = vmul.f32 %v4436, 0.5
    %v4440 = vtanh.pop %v4410
    %v4441 = vtanh.pop %v4411
    %v4442 = vtanh.pop %v4412
    %v4443 = vmul.f32 %v4413, 0.5
    %v4444 = vmul.f32 %v4414, 0.5
    %v4445 = vmul.f32 %v4415, 0.5
    %v4446 = vtanh.pop %v4443
    %v4447 = vtanh.pop %v4444
    %v4448 = vtanh.pop %v4445
    %v4449 = vadd.f32 %v4446, 1.0
    %v4450 = vadd.f32 %v4447, 1.0
    %v4451 = vadd.f32 %v4448, 1.0
    %v4452 = vmul.f32 %v4449, 0.5
    %v4453 = vmul.f32 %v4450, 0.5
    %v4454 = vmul.f32 %v4451, 0.5
    %v4455 = vmul.f32 %v4437, %v3900
    %v4456 = vmul.f32 %v4438, %v3901
    %v4457 = vmul.f32 %v4439, %v3902
    %v4458 = vmul.f32 %v4425, %v4440
    %v4459 = vmul.f32 %v4426, %v4441
    %v4460 = vmul.f32 %v4427, %v4442
    %v4461 = vadd.f32 %v4455, %v4458
    %v4462 = vadd.f32 %v4456, %v4459
    %v4463 = vadd.f32 %v4457, %v4460
    %v4464 = vtanh.pop %v4461
    %v4465 = vtanh.pop %v4462
    %v4466 = vtanh.pop %v4463
    %v4467 = vmul.f32 %v4452, %v4464
    %v4468 = vmul.f32 %v4453, %v4465
    %v4469 = vmul.f32 %v4454, %v4466
    %v4470 = vpack.c.bf16 %v4467, %v4467
    %v4471 = vpack.c.bf16 %v4468, %v4468
    %v4472 = vpack.c.bf16 %v4469, %v4469
    %4473 = vmatprep.subr.bf16.mxu0 %v2215
    %4474 = vmatpush1.bf16.msra.mxu0 %v2214
    %4475 = vmatprep.subr.bf16.mxu0 %v2227
    %4476 = vmatpush1.bf16.msra.mxu0 %v2226
    %4477 = vmatprep.subr.bf16.mxu0 %v2239
    %4478 = vmatpush1.bf16.msra.mxu0 %v2238
    %4479 = vmatprep.subr.bf16.mxu0 %v2251
    %4480 = vmatpush1.bf16.msra.mxu0 %v2250
    %4481 = vmatprep.subr.bf16.mxu0 %v2263
    %4482 = vmatpush1.bf16.msra.mxu0 %v2262
    %4483 = vmatprep.subr.bf16.mxu0 %v2275
    %4484 = vmatpush1.bf16.msra.mxu0 %v2274
    %4485 = vmatprep.subr.bf16.mxu0 %v2287
    %4486 = vmatpush1.bf16.msra.mxu0 %v2286
    %4487 = vmatprep.subr.bf16.mxu0 %v2299
    %4488 = vmatpush1.bf16.msra.mxu0 %v2298
    %4489 = vmatprep.subr.bf16.mxu0 %v2311
    %4490 = vmatpush1.bf16.msra.mxu0 %v2310
    %4491 = vmatprep.subr.bf16.mxu0 %v2323
    %4492 = vmatpush1.bf16.msra.mxu0 %v2322
    %4493 = vmatprep.subr.bf16.mxu0 %v2335
    %4494 = vmatpush1.bf16.msra.mxu0 %v2334
    %4495 = vmatprep.subr.bf16.mxu0 %v2347
    %4496 = vmatpush1.bf16.msra.mxu0 %v2346
    %4497 = vmatprep.subr.bf16.mxu0 %v2359
    %4498 = vmatpush1.bf16.msra.mxu0 %v2358
    %4499 = vmatprep.subr.bf16.mxu0 %v2371
    %4500 = vmatpush1.bf16.msra.mxu0 %v2370
    %4501 = vmatprep.subr.bf16.mxu0 %v2383
    %4502 = vmatpush1.bf16.msra.mxu0 %v2382
    %4503 = vmatprep.subr.bf16.mxu0 %v2395
    %4504 = vmatpush1.bf16.msra.mxu0 %v2394
    %4505 = vmatprep.mubr.bf16.mxu0 %v4471
    %4506 = vmatmul.mubr.bf16.gmra.mrb[0].mxu0 %v4470
    %v4507 = vpop.f32.mrb[0].mxu0
    %v4508 = vadd.f32 0.0, %v4507
    %v4509 = vpop.f32.mrb[0].mxu0
    %v4510 = vadd.f32 0.0, %v4509
    %v4511 = vpop.f32.mrb[0].mxu0
    %v4512 = vpop.f32.mrb[0].mxu0
    %4513 = vdwg.mxu0
    %4514 = vmatprep.subr.bf16.mxu0 %v2407
    %4515 = vmatpush1.bf16.msra.mxu0 %v2406
    %4516 = vmatprep.subr.bf16.mxu0 %v2419
    %4517 = vmatpush1.bf16.msra.mxu0 %v2418
    %4518 = vmatprep.subr.bf16.mxu0 %v2431
    %4519 = vmatpush1.bf16.msra.mxu0 %v2430
    %4520 = vmatprep.subr.bf16.mxu0 %v2443
    %4521 = vmatpush1.bf16.msra.mxu0 %v2442
    %4522 = vmatprep.subr.bf16.mxu0 %v2455
    %4523 = vmatpush1.bf16.msra.mxu0 %v2454
    %4524 = vmatprep.subr.bf16.mxu0 %v2467
    %4525 = vmatpush1.bf16.msra.mxu0 %v2466
    %4526 = vmatprep.subr.bf16.mxu0 %v2479
    %4527 = vmatpush1.bf16.msra.mxu0 %v2478
    %4528 = vmatprep.subr.bf16.mxu0 %v2491
    %4529 = vmatpush1.bf16.msra.mxu0 %v2490
    %4530 = vmatprep.subr.bf16.mxu0 0
    %4531 = vmatpush1.bf16.msra.mxu0 0
    %4532 = vmatprep.subr.bf16.mxu0 0
    %4533 = vmatpush1.bf16.msra.mxu0 0
    %4534 = vmatprep.subr.bf16.mxu0 0
    %4535 = vmatpush1.bf16.msra.mxu0 0
    %4536 = vmatprep.subr.bf16.mxu0 0
    %4537 = vmatpush1.bf16.msra.mxu0 0
    %4538 = vmatprep.subr.bf16.mxu0 0
    %4539 = vmatpush1.bf16.msra.mxu0 0
    %4540 = vmatprep.subr.bf16.mxu0 0
    %4541 = vmatpush1.bf16.msra.mxu0 0
    %4542 = vmatprep.subr.bf16.mxu0 0
    %4543 = vmatpush1.bf16.msra.mxu0 0
    %4544 = vmatprep.subr.bf16.mxu0 0
    %4545 = vmatpush1.bf16.msra.mxu0 0
    %4546 = vmatprep.mubr.bf16.mxu0 0
    %4547 = vmatmul.mubr.bf16.gmra.mrb[0].mxu0 %v4472
    %v4548 = vpop.f32.mrb[0].mxu0
    %v4549 = vadd.f32 %v4508, %v4548
    %v4550 = vpop.f32.mrb[0].mxu0
    %v4551 = vadd.f32 %v4510, %v4550
    %v4552 = vpop.f32.mrb[0].mxu0
    %v4553 = vpop.f32.mrb[0].mxu0
    %4554 = vdwg.mxu0
    %4555 = vmatprep.subr.bf16.mxu0 %v2217
    %4556 = vmatpush1.bf16.msra.mxu0 %v2216
    %4557 = vmatprep.subr.bf16.mxu0 %v2229
    %4558 = vmatpush1.bf16.msra.mxu0 %v2228
    %4559 = vmatprep.subr.bf16.mxu0 %v2241
    %4560 = vmatpush1.bf16.msra.mxu0 %v2240
    %4561 = vmatprep.subr.bf16.mxu0 %v2253
    %4562 = vmatpush1.bf16.msra.mxu0 %v2252
    %4563 = vmatprep.subr.bf16.mxu0 %v2265
    %4564 = vmatpush1.bf16.msra.mxu0 %v2264
    %4565 = vmatprep.subr.bf16.mxu0 %v2277
    %4566 = vmatpush1.bf16.msra.mxu0 %v2276
    %4567 = vmatprep.subr.bf16.mxu0 %v2289
    %4568 = vmatpush1.bf16.msra.mxu0 %v2288
    %4569 = vmatprep.subr.bf16.mxu0 %v2301
    %4570 = vmatpush1.bf16.msra.mxu0 %v2300
    %4571 = vmatprep.subr.bf16.mxu0 %v2313
    %4572 = vmatpush1.bf16.msra.mxu0 %v2312
    %4573 = vmatprep.subr.bf16.mxu0 %v2325
    %4574 = vmatpush1.bf16.msra.mxu0 %v2324
    %4575 = vmatprep.subr.bf16.mxu0 %v2337
    %4576 = vmatpush1.bf16.msra.mxu0 %v2336
    %4577 = vmatprep.subr.bf16.mxu0 %v2349
    %4578 = vmatpush1.bf16.msra.mxu0 %v2348
    %4579 = vmatprep.subr.bf16.mxu0 %v2361
    %4580 = vmatpush1.bf16.msra.mxu0 %v2360
    %4581 = vmatprep.subr.bf16.mxu0 %v2373
    %4582 = vmatpush1.bf16.msra.mxu0 %v2372
    %4583 = vmatprep.subr.bf16.mxu0 %v2385
    %4584 = vmatpush1.bf16.msra.mxu0 %v2384
    %4585 = vmatprep.subr.bf16.mxu0 %v2397
    %4586 = vmatpush1.bf16.msra.mxu0 %v2396
    %4587 = vmatprep.mubr.bf16.mxu0 %v4471
    %4588 = vmatmul.mubr.bf16.gmra.mrb[0].mxu0 %v4470
    %v4589 = vpop.f32.mrb[0].mxu0
    %v4590 = vadd.f32 0.0, %v4589
    %v4591 = vpop.f32.mrb[0].mxu0
    %v4592 = vadd.f32 0.0, %v4591
    %v4593 = vpop.f32.mrb[0].mxu0
    %v4594 = vpop.f32.mrb[0].mxu0
    %4595 = vdwg.mxu0
    %4596 = vmatprep.subr.bf16.mxu0 %v2409
    %4597 = vmatpush1.bf16.msra.mxu0 %v2408
    %4598 = vmatprep.subr.bf16.mxu0 %v2421
    %4599 = vmatpush1.bf16.msra.mxu0 %v2420
    %4600 = vmatprep.subr.bf16.mxu0 %v2433
    %4601 = vmatpush1.bf16.msra.mxu0 %v2432
    %4602 = vmatprep.subr.bf16.mxu0 %v2445
    %4603 = vmatpush1.bf16.msra.mxu0 %v2444
    %4604 = vmatprep.subr.bf16.mxu0 %v2457
    %4605 = vmatpush1.bf16.msra.mxu0 %v2456
    %4606 = vmatprep.subr.bf16.mxu0 %v2469
    %4607 = vmatpush1.bf16.msra.mxu0 %v2468
    %4608 = vmatprep.subr.bf16.mxu0 %v2481
    %4609 = vmatpush1.bf16.msra.mxu0 %v2480
    %4610 = vmatprep.subr.bf16.mxu0 %v2493
    %4611 = vmatpush1.bf16.msra.mxu0 %v2492
    %4612 = vmatprep.subr.bf16.mxu0 0
    %4613 = vmatpush1.bf16.msra.mxu0 0
    %4614 = vmatprep.subr.bf16.mxu0 0
    %4615 = vmatpush1.bf16.msra.mxu0 0
    %4616 = vmatprep.subr.bf16.mxu0 0
    %4617 = vmatpush1.bf16.msra.mxu0 0
    %4618 = vmatprep.subr.bf16.mxu0 0
    %4619 = vmatpush1.bf16.msra.mxu0 0
    %4620 = vmatprep.subr.bf16.mxu0 0
    %4621 = vmatpush1.bf16.msra.mxu0 0
    %4622 = vmatprep.subr.bf16.mxu0 0
    %4623 = vmatpush1.bf16.msra.mxu0 0
    %4624 = vmatprep.subr.bf16.mxu0 0
    %4625 = vmatpush1.bf16.msra.mxu0 0
    %4626 = vmatprep.subr.bf16.mxu0 0
    %4627 = vmatpush1.bf16.msra.mxu0 0
    %4628 = vmatprep.mubr.bf16.mxu0 0
    %4629 = vmatmul.mubr.bf16.gmra.mrb[0].mxu0 %v4472
    %v4630 = vpop.f32.mrb[0].mxu0
    %v4631 = vadd.f32 %v4590, %v4630
    %v4632 = vpop.f32.mrb[0].mxu0
    %v4633 = vadd.f32 %v4592, %v4632
    %v4634 = vpop.f32.mrb[0].mxu0
    %v4635 = vpop.f32.mrb[0].mxu0
    %4636 = vdwg.mxu0
    %4637 = vmatprep.subr.bf16.mxu0 %v2219
    %4638 = vmatpush1.bf16.msra.mxu0 %v2218
    %4639 = vmatprep.subr.bf16.mxu0 %v2231
    %4640 = vmatpush1.bf16.msra.mxu0 %v2230
    %4641 = vmatprep.subr.bf16.mxu0 %v2243
    %4642 = vmatpush1.bf16.msra.mxu0 %v2242
    %4643 = vmatprep.subr.bf16.mxu0 %v2255
    %4644 = vmatpush1.bf16.msra.mxu0 %v2254
    %4645 = vmatprep.subr.bf16.mxu0 %v2267
    %4646 = vmatpush1.bf16.msra.mxu0 %v2266
    %4647 = vmatprep.subr.bf16.mxu0 %v2279
    %4648 = vmatpush1.bf16.msra.mxu0 %v2278
    %4649 = vmatprep.subr.bf16.mxu0 %v2291
    %4650 = vmatpush1.bf16.msra.mxu0 %v2290
    %4651 = vmatprep.subr.bf16.mxu0 %v2303
    %4652 = vmatpush1.bf16.msra.mxu0 %v2302
    %4653 = vmatprep.subr.bf16.mxu0 %v2315
    %4654 = vmatpush1.bf16.msra.mxu0 %v2314
    %4655 = vmatprep.subr.bf16.mxu0 %v2327
    %4656 = vmatpush1.bf16.msra.mxu0 %v2326
    %4657 = vmatprep.subr.bf16.mxu0 %v2339
    %4658 = vmatpush1.bf16.msra.mxu0 %v2338
    %4659 = vmatprep.subr.bf16.mxu0 %v2351
    %4660 = vmatpush1.bf16.msra.mxu0 %v2350
    %4661 = vmatprep.subr.bf16.mxu0 %v2363
    %4662 = vmatpush1.bf16.msra.mxu0 %v2362
    %4663 = vmatprep.subr.bf16.mxu0 %v2375
    %4664 = vmatpush1.bf16.msra.mxu0 %v2374
    %4665 = vmatprep.subr.bf16.mxu0 %v2387
    %4666 = vmatpush1.bf16.msra.mxu0 %v2386
    %4667 = vmatprep.subr.bf16.mxu0 %v2399
    %4668 = vmatpush1.bf16.msra.mxu0 %v2398
    %4669 = vmatprep.mubr.bf16.mxu0 %v4471
    %4670 = vmatmul.mubr.bf16.gmra.mrb[0].mxu0 %v4470
    %v4671 = vpop.f32.mrb[0].mxu0
    %v4672 = vadd.f32 0.0, %v4671
    %v4673 = vpop.f32.mrb[0].mxu0
    %v4674 = vadd.f32 0.0, %v4673
    %v4675 = vpop.f32.mrb[0].mxu0
    %v4676 = vpop.f32.mrb[0].mxu0
    %4677 = vdwg.mxu0
    %4678 = vmatprep.subr.bf16.mxu0 %v2411
    %4679 = vmatpush1.bf16.msra.mxu0 %v2410
    %4680 = vmatprep.subr.bf16.mxu0 %v2423
    %4681 = vmatpush1.bf16.msra.mxu0 %v2422
    %4682 = vmatprep.subr.bf16.mxu0 %v2435
    %4683 = vmatpush1.bf16.msra.mxu0 %v2434
    %4684 = vmatprep.subr.bf16.mxu0 %v2447
    %4685 = vmatpush1.bf16.msra.mxu0 %v2446
    %4686 = vmatprep.subr.bf16.mxu0 %v2459
    %4687 = vmatpush1.bf16.msra.mxu0 %v2458
    %4688 = vmatprep.subr.bf16.mxu0 %v2471
    %4689 = vmatpush1.bf16.msra.mxu0 %v2470
    %4690 = vmatprep.subr.bf16.mxu0 %v2483
    %4691 = vmatpush1.bf16.msra.mxu0 %v2482
    %4692 = vmatprep.subr.bf16.mxu0 %v2495
    %4693 = vmatpush1.bf16.msra.mxu0 %v2494
    %4694 = vmatprep.subr.bf16.mxu0 0
    %4695 = vmatpush1.bf16.msra.mxu0 0
    %4696 = vmatprep.subr.bf16.mxu0 0
    %4697 = vmatpush1.bf16.msra.mxu0 0
    %4698 = vmatprep.subr.bf16.mxu0 0
    %4699 = vmatpush1.bf16.msra.mxu0 0
    %4700 = vmatprep.subr.bf16.mxu0 0
    %4701 = vmatpush1.bf16.msra.mxu0 0
    %4702 = vmatprep.subr.bf16.mxu0 0
    %4703 = vmatpush1.bf16.msra.mxu0 0
    %4704 = vmatprep.subr.bf16.mxu0 0
    %4705 = vmatpush1.bf16.msra.mxu0 0
    %4706 = vmatprep.subr.bf16.mxu0 0
    %4707 = vmatpush1.bf16.msra.mxu0 0
    %4708 = vmatprep.subr.bf16.mxu0 0
    %4709 = vmatpush1.bf16.msra.mxu0 0
    %4710 = vmatprep.mubr.bf16.mxu0 0
    %4711 = vmatmul.mubr.bf16.gmra.mrb[0].mxu0 %v4472
    %v4712 = vpop.f32.mrb[0].mxu0
    %v4713 = vadd.f32 %v4672, %v4712
    %v4714 = vpop.f32.mrb[0].mxu0
    %v4715 = vadd.f32 %v4674, %v4714
    %v4716 = vpop.f32.mrb[0].mxu0
    %v4717 = vpop.f32.mrb[0].mxu0
    %4718 = vdwg.mxu0
    %4719 = vmatprep.subr.bf16.mxu0 %v2221
    %4720 = vmatpush1.bf16.msra.mxu0 %v2220
    %4721 = vmatprep.subr.bf16.mxu0 %v2233
    %4722 = vmatpush1.bf16.msra.mxu0 %v2232
    %4723 = vmatprep.subr.bf16.mxu0 %v2245
    %4724 = vmatpush1.bf16.msra.mxu0 %v2244
    %4725 = vmatprep.subr.bf16.mxu0 %v2257
    %4726 = vmatpush1.bf16.msra.mxu0 %v2256
    %4727 = vmatprep.subr.bf16.mxu0 %v2269
    %4728 = vmatpush1.bf16.msra.mxu0 %v2268
    %4729 = vmatprep.subr.bf16.mxu0 %v2281
    %4730 = vmatpush1.bf16.msra.mxu0 %v2280
    %4731 = vmatprep.subr.bf16.mxu0 %v2293
    %4732 = vmatpush1.bf16.msra.mxu0 %v2292
    %4733 = vmatprep.subr.bf16.mxu0 %v2305
    %4734 = vmatpush1.bf16.msra.mxu0 %v2304
    %4735 = vmatprep.subr.bf16.mxu0 %v2317
    %4736 = vmatpush1.bf16.msra.mxu0 %v2316
    %4737 = vmatprep.subr.bf16.mxu0 %v2329
    %4738 = vmatpush1.bf16.msra.mxu0 %v2328
    %4739 = vmatprep.subr.bf16.mxu0 %v2341
    %4740 = vmatpush1.bf16.msra.mxu0 %v2340
    %4741 = vmatprep.subr.bf16.mxu0 %v2353
    %4742 = vmatpush1.bf16.msra.mxu0 %v2352
    %4743 = vmatprep.subr.bf16.mxu0 %v2365
    %4744 = vmatpush1.bf16.msra.mxu0 %v2364
    %4745 = vmatprep.subr.bf16.mxu0 %v2377
    %4746 = vmatpush1.bf16.msra.mxu0 %v2376
    %4747 = vmatprep.subr.bf16.mxu0 %v2389
    %4748 = vmatpush1.bf16.msra.mxu0 %v2388
    %4749 = vmatprep.subr.bf16.mxu0 %v2401
    %4750 = vmatpush1.bf16.msra.mxu0 %v2400
    %4751 = vmatprep.mubr.bf16.mxu0 %v4471
    %4752 = vmatmul.mubr.bf16.gmra.mrb[0].mxu0 %v4470
    %v4753 = vpop.f32.mrb[0].mxu0
    %v4754 = vadd.f32 0.0, %v4753
    %v4755 = vpop.f32.mrb[0].mxu0
    %v4756 = vadd.f32 0.0, %v4755
    %v4757 = vpop.f32.mrb[0].mxu0
    %v4758 = vpop.f32.mrb[0].mxu0
    %4759 = vdwg.mxu0
    %4760 = vmatprep.subr.bf16.mxu0 %v2413
    %4761 = vmatpush1.bf16.msra.mxu0 %v2412
    %4762 = vmatprep.subr.bf16.mxu0 %v2425
    %4763 = vmatpush1.bf16.msra.mxu0 %v2424
    %4764 = vmatprep.subr.bf16.mxu0 %v2437
    %4765 = vmatpush1.bf16.msra.mxu0 %v2436
    %4766 = vmatprep.subr.bf16.mxu0 %v2449
    %4767 = vmatpush1.bf16.msra.mxu0 %v2448
    %4768 = vmatprep.subr.bf16.mxu0 %v2461
    %4769 = vmatpush1.bf16.msra.mxu0 %v2460
    %4770 = vmatprep.subr.bf16.mxu0 %v2473
    %4771 = vmatpush1.bf16.msra.mxu0 %v2472
    %4772 = vmatprep.subr.bf16.mxu0 %v2485
    %4773 = vmatpush1.bf16.msra.mxu0 %v2484
    %4774 = vmatprep.subr.bf16.mxu0 %v2497
    %4775 = vmatpush1.bf16.msra.mxu0 %v2496
    %4776 = vmatprep.subr.bf16.mxu0 0
    %4777 = vmatpush1.bf16.msra.mxu0 0
    %4778 = vmatprep.subr.bf16.mxu0 0
    %4779 = vmatpush1.bf16.msra.mxu0 0
    %4780 = vmatprep.subr.bf16.mxu0 0
    %4781 = vmatpush1.bf16.msra.mxu0 0
    %4782 = vmatprep.subr.bf16.mxu0 0
    %4783 = vmatpush1.bf16.msra.mxu0 0
    %4784 = vmatprep.subr.bf16.mxu0 0
    %4785 = vmatpush1.bf16.msra.mxu0 0
    %4786 = vmatprep.subr.bf16.mxu0 0
    %4787 = vmatpush1.bf16.msra.mxu0 0
    %4788 = vmatprep.subr.bf16.mxu0 0
    %4789 = vmatpush1.bf16.msra.mxu0 0
    %4790 = vmatprep.subr.bf16.mxu0 0
    %4791 = vmatpush1.bf16.msra.mxu0 0
    %4792 = vmatprep.mubr.bf16.mxu0 0
    %4793 = vmatmul.mubr.bf16.gmra.mrb[0].mxu0 %v4472
    %v4794 = vpop.f32.mrb[0].mxu0
    %v4795 = vadd.f32 %v4754, %v4794
    %v4796 = vpop.f32.mrb[0].mxu0
    %v4797 = vadd.f32 %v4756, %v4796
    %v4798 = vpop.f32.mrb[0].mxu0
    %v4799 = vpop.f32.mrb[0].mxu0
    %4800 = vdwg.mxu0
    %4801 = vmatprep.subr.bf16.mxu0 %v2223
    %4802 = vmatpush1.bf16.msra.mxu0 %v2222
    %4803 = vmatprep.subr.bf16.mxu0 %v2235
    %4804 = vmatpush1.bf16.msra.mxu0 %v2234
    %4805 = vmatprep.subr.bf16.mxu0 %v2247
    %4806 = vmatpush1.bf16.msra.mxu0 %v2246
    %4807 = vmatprep.subr.bf16.mxu0 %v2259
    %4808 = vmatpush1.bf16.msra.mxu0 %v2258
    %4809 = vmatprep.subr.bf16.mxu0 %v2271
    %4810 = vmatpush1.bf16.msra.mxu0 %v2270
    %4811 = vmatprep.subr.bf16.mxu0 %v2283
    %4812 = vmatpush1.bf16.msra.mxu0 %v2282
    %4813 = vmatprep.subr.bf16.mxu0 %v2295
    %4814 = vmatpush1.bf16.msra.mxu0 %v2294
    %4815 = vmatprep.subr.bf16.mxu0 %v2307
    %4816 = vmatpush1.bf16.msra.mxu0 %v2306
    %4817 = vmatprep.subr.bf16.mxu0 %v2319
    %4818 = vmatpush1.bf16.msra.mxu0 %v2318
    %4819 = vmatprep.subr.bf16.mxu0 %v2331
    %4820 = vmatpush1.bf16.msra.mxu0 %v2330
    %4821 = vmatprep.subr.bf16.mxu0 %v2343
    %4822 = vmatpush1.bf16.msra.mxu0 %v2342
    %4823 = vmatprep.subr.bf16.mxu0 %v2355
    %4824 = vmatpush1.bf16.msra.mxu0 %v2354
    %4825 = vmatprep.subr.bf16.mxu0 %v2367
    %4826 = vmatpush1.bf16.msra.mxu0 %v2366
    %4827 = vmatprep.subr.bf16.mxu0 %v2379
    %4828 = vmatpush1.bf16.msra.mxu0 %v2378
    %4829 = vmatprep.subr.bf16.mxu0 %v2391
    %4830 = vmatpush1.bf16.msra.mxu0 %v2390
    %4831 = vmatprep.subr.bf16.mxu0 %v2403
    %4832 = vmatpush1.bf16.msra.mxu0 %v2402
    %4833 = vmatprep.mubr.bf16.mxu0 %v4471
    %4834 = vmatmul.mubr.bf16.gmra.mrb[0].mxu0 %v4470
    %v4835 = vpop.f32.mrb[0].mxu0
    %v4836 = vadd.f32 0.0, %v4835
    %v4837 = vpop.f32.mrb[0].mxu0
    %v4838 = vadd.f32 0.0, %v4837
    %v4839 = vpop.f32.mrb[0].mxu0
    %v4840 = vpop.f32.mrb[0].mxu0
    %4841 = vdwg.mxu0
    %4842 = vmatprep.subr.bf16.mxu0 %v2415
    %4843 = vmatpush1.bf16.msra.mxu0 %v2414
    %4844 = vmatprep.subr.bf16.mxu0 %v2427
    %4845 = vmatpush1.bf16.msra.mxu0 %v2426
    %4846 = vmatprep.subr.bf16.mxu0 %v2439
    %4847 = vmatpush1.bf16.msra.mxu0 %v2438
    %4848 = vmatprep.subr.bf16.mxu0 %v2451
    %4849 = vmatpush1.bf16.msra.mxu0 %v2450
    %4850 = vmatprep.subr.bf16.mxu0 %v2463
    %4851 = vmatpush1.bf16.msra.mxu0 %v2462
    %4852 = vmatprep.subr.bf16.mxu0 %v2475
    %4853 = vmatpush1.bf16.msra.mxu0 %v2474
    %4854 = vmatprep.subr.bf16.mxu0 %v2487
    %4855 = vmatpush1.bf16.msra.mxu0 %v2486
    %4856 = vmatprep.subr.bf16.mxu0 %v2499
    %4857 = vmatpush1.bf16.msra.mxu0 %v2498
    %4858 = vmatprep.subr.bf16.mxu0 0
    %4859 = vmatpush1.bf16.msra.mxu0 0
    %4860 = vmatprep.subr.bf16.mxu0 0
    %4861 = vmatpush1.bf16.msra.mxu0 0
    %4862 = vmatprep.subr.bf16.mxu0 0
    %4863 = vmatpush1.bf16.msra.mxu0 0
    %4864 = vmatprep.subr.bf16.mxu0 0
    %4865 = vmatpush1.bf16.msra.mxu0 0
    %4866 = vmatprep.subr.bf16.mxu0 0
    %4867 = vmatpush1.bf16.msra.mxu0 0
    %4868 = vmatprep.subr.bf16.mxu0 0
    %4869 = vmatpush1.bf16.msra.mxu0 0
    %4870 = vmatprep.subr.bf16.mxu0 0
    %4871 = vmatpush1.bf16.msra.mxu0 0
    %4872 = vmatprep.subr.bf16.mxu0 0
    %4873 = vmatpush1.bf16.msra.mxu0 0
    %4874 = vmatprep.mubr.bf16.mxu0 0
    %4875 = vmatmul.mubr.bf16.gmra.mrb[0].mxu0 %v4472
    %v4876 = vpop.f32.mrb[0].mxu0
    %v4877 = vadd.f32 %v4836, %v4876
    %v4878 = vpop.f32.mrb[0].mxu0
    %v4879 = vadd.f32 %v4838, %v4878
    %v4880 = vpop.f32.mrb[0].mxu0
    %v4881 = vpop.f32.mrb[0].mxu0
    %4882 = vdwg.mxu0
    %4883 = vmatprep.subr.bf16.mxu0 %v2225
    %4884 = vmatpush1.bf16.msra.mxu0 %v2224
    %4885 = vmatprep.subr.bf16.mxu0 %v2237
    %4886 = vmatpush1.bf16.msra.mxu0 %v2236
    %4887 = vmatprep.subr.bf16.mxu0 %v2249
    %4888 = vmatpush1.bf16.msra.mxu0 %v2248
    %4889 = vmatprep.subr.bf16.mxu0 %v2261
    %4890 = vmatpush1.bf16.msra.mxu0 %v2260
    %4891 = vmatprep.subr.bf16.mxu0 %v2273
    %4892 = vmatpush1.bf16.msra.mxu0 %v2272
    %4893 = vmatprep.subr.bf16.mxu0 %v2285
    %4894 = vmatpush1.bf16.msra.mxu0 %v2284
    %4895 = vmatprep.subr.bf16.mxu0 %v2297
    %4896 = vmatpush1.bf16.msra.mxu0 %v2296
    %4897 = vmatprep.subr.bf16.mxu0 %v2309
    %4898 = vmatpush1.bf16.msra.mxu0 %v2308
    %4899 = vmatprep.subr.bf16.mxu0 %v2321
    %4900 = vmatpush1.bf16.msra.mxu0 %v2320
    %4901 = vmatprep.subr.bf16.mxu0 %v2333
    %4902 = vmatpush1.bf16.msra.mxu0 %v2332
    %4903 = vmatprep.subr.bf16.mxu0 %v2345
    %4904 = vmatpush1.bf16.msra.mxu0 %v2344
    %4905 = vmatprep.subr.bf16.mxu0 %v2357
    %4906 = vmatpush1.bf16.msra.mxu0 %v2356
    %4907 = vmatprep.subr.bf16.mxu0 %v2369
    %4908 = vmatpush1.bf16.msra.mxu0 %v2368
    %4909 = vmatprep.subr.bf16.mxu0 %v2381
    %4910 = vmatpush1.bf16.msra.mxu0 %v2380
    %4911 = vmatprep.subr.bf16.mxu0 %v2393
    %4912 = vmatpush1.bf16.msra.mxu0 %v2392
    %4913 = vmatprep.subr.bf16.mxu0 %v2405
    %4914 = vmatpush1.bf16.msra.mxu0 %v2404
    %4915 = vmatprep.mubr.bf16.mxu0 %v4471
    %4916 = vmatmul.mubr.bf16.gmra.mrb[0].mxu0 %v4470
    %v4917 = vpop.f32.mrb[0].mxu0
    %v4918 = vadd.f32 0.0, %v4917
    %v4919 = vpop.f32.mrb[0].mxu0
    %v4920 = vadd.f32 0.0, %v4919
    %v4921 = vpop.f32.mrb[0].mxu0
    %v4922 = vpop.f32.mrb[0].mxu0
    %4923 = vdwg.mxu0
    %4924 = vmatprep.subr.bf16.mxu0 %v2417
    %4925 = vmatpush1.bf16.msra.mxu0 %v2416
    %4926 = vmatprep.subr.bf16.mxu0 %v2429
    %4927 = vmatpush1.bf16.msra.mxu0 %v2428
    %4928 = vmatprep.subr.bf16.mxu0 %v2441
    %4929 = vmatpush1.bf16.msra.mxu0 %v2440
    %4930 = vmatprep.subr.bf16.mxu0 %v2453
    %4931 = vmatpush1.bf16.msra.mxu0 %v2452
    %4932 = vmatprep.subr.bf16.mxu0 %v2465
    %4933 = vmatpush1.bf16.msra.mxu0 %v2464
    %4934 = vmatprep.subr.bf16.mxu0 %v2477
    %4935 = vmatpush1.bf16.msra.mxu0 %v2476
    %4936 = vmatprep.subr.bf16.mxu0 %v2489
    %4937 = vmatpush1.bf16.msra.mxu0 %v2488
    %4938 = vmatprep.subr.bf16.mxu0 %v2501
    %4939 = vmatpush1.bf16.msra.mxu0 %v2500
    %4940 = vmatprep.subr.bf16.mxu0 0
    %4941 = vmatpush1.bf16.msra.mxu0 0
    %4942 = vmatprep.subr.bf16.mxu0 0
    %4943 = vmatpush1.bf16.msra.mxu0 0
    %4944 = vmatprep.subr.bf16.mxu0 0
    %4945 = vmatpush1.bf16.msra.mxu0 0
    %4946 = vmatprep.subr.bf16.mxu0 0
    %4947 = vmatpush1.bf16.msra.mxu0 0
    %4948 = vmatprep.subr.bf16.mxu0 0
    %4949 = vmatpush1.bf16.msra.mxu0 0
    %4950 = vmatprep.subr.bf16.mxu0 0
    %4951 = vmatpush1.bf16.msra.mxu0 0
    %4952 = vmatprep.subr.bf16.mxu0 0
    %4953 = vmatpush1.bf16.msra.mxu0 0
    %4954 = vmatprep.subr.bf16.mxu0 0
    %4955 = vmatpush1.bf16.msra.mxu0 0
    %4956 = vmatprep.mubr.bf16.mxu0 0
    %4957 = vmatmul.mubr.bf16.gmra.mrb[0].mxu0 %v4472
    %v4958 = vpop.f32.mrb[0].mxu0
    %v4959 = vadd.f32 %v4918, %v4958
    %v4960 = vpop.f32.mrb[0].mxu0
    %v4961 = vadd.f32 %v4920, %v4960
    %v4962 = vpop.f32.mrb[0].mxu0
    %v4963 = vpop.f32.mrb[0].mxu0
    %4964 = vdwg.mxu0
    %v4965 = vadd.f32 %v664, %v4549
    %v4966 = vadd.f32 %v666, %v4551
    %v4967 = vadd.f32 %v737, %v4631
    %v4968 = vadd.f32 %v739, %v4633
    %v4969 = vadd.f32 %v810, %v4713
    %v4970 = vadd.f32 %v812, %v4715
    %v4971 = vadd.f32 %v883, %v4795
    %v4972 = vadd.f32 %v885, %v4797
    %v4973 = vadd.f32 %v956, %v4877
    %v4974 = vadd.f32 %v958, %v4879
    %v4975 = vadd.f32 %v1029, %v4959
    %v4976 = vadd.f32 %v1031, %v4961
    %v4977 = vmul.f32 %v4965, 0.5
    %v4978 = vmul.f32 %v4966, 0.5
    %v4979 = vmul.f32 %v4967, 0.5
    %v4980 = vtanh.pop %v4977
    %v4981 = vtanh.pop %v4978
    %v4982 = vtanh.pop %v4979
    %v4983 = vadd.f32 %v4980, 1.0
    %v4984 = vadd.f32 %v4981, 1.0
    %v4985 = vadd.f32 %v4982, 1.0
    %v4986 = vmul.f32 %v4983, 0.5
    %v4987 = vmul.f32 %v4984, 0.5
    %v4988 = vmul.f32 %v4985, 0.5
    %v4989 = vmul.f32 %v4968, 0.5
    %v4990 = vmul.f32 %v4969, 0.5
    %v4991 = vmul.f32 %v4970, 0.5
    %v4992 = vtanh.pop %v4989
    %v4993 = vtanh.pop %v4990
    %v4994 = vtanh.pop %v4991
    %v4995 = vadd.f32 %v4992, 1.0
    %v4996 = vadd.f32 %v4993, 1.0
    %v4997 = vadd.f32 %v4994, 1.0
    %v4998 = vmul.f32 %v4995, 0.5
    %v4999 = vmul.f32 %v4996, 0.5
    %v5000 = vmul.f32 %v4997, 0.5
    %v5001 = vtanh.pop %v4971
    %v5002 = vtanh.pop %v4972
    %v5003 = vtanh.pop %v4973
    %v5004 = vmul.f32 %v4974, 0.5
    %v5005 = vmul.f32 %v4975, 0.5
    %v5006 = vmul.f32 %v4976, 0.5
    %v5007 = vtanh.pop %v5004
    %v5008 = vtanh.pop %v5005
    %v5009 = vtanh.pop %v5006
    %v5010 = vadd.f32 %v5007, 1.0
    %v5011 = vadd.f32 %v5008, 1.0
    %v5012 = vadd.f32 %v5009, 1.0
    %v5013 = vmul.f32 %v5010, 0.5
    %v5014 = vmul.f32 %v5011, 0.5
    %v5015 = vmul.f32 %v5012, 0.5
    %v5016 = vmul.f32 %v4998, %v4461
    %v5017 = vmul.f32 %v4999, %v4462
    %v5018 = vmul.f32 %v5000, %v4463
    %v5019 = vmul.f32 %v4986, %v5001
    %v5020 = vmul.f32 %v4987, %v5002
    %v5021 = vmul.f32 %v4988, %v5003
    %v5022 = vadd.f32 %v5016, %v5019
    %v5023 = vadd.f32 %v5017, %v5020
    %v5024 = vadd.f32 %v5018, %v5021
    %v5025 = vtanh.pop %v5022
    %v5026 = vtanh.pop %v5023
    %v5027 = vtanh.pop %v5024
    %v5028 = vmul.f32 %v5013, %v5025
    %v5029 = vmul.f32 %v5014, %v5026
    %v5030 = vmul.f32 %v5015, %v5027
    %v5031 = vpack.c.bf16 %v5028, %v5028
    %v5032 = vpack.c.bf16 %v5029, %v5029
    %v5033 = vpack.c.bf16 %v5030, %v5030
    %5034 = vmatprep.subr.bf16.mxu0 %v2215
    %5035 = vmatpush1.bf16.msra.mxu0 %v2214
    %5036 = vmatprep.subr.bf16.mxu0 %v2227
    %5037 = vmatpush1.bf16.msra.mxu0 %v2226
    %5038 = vmatprep.subr.bf16.mxu0 %v2239
    %5039 = vmatpush1.bf16.msra.mxu0 %v2238
    %5040 = vmatprep.subr.bf16.mxu0 %v2251
    %5041 = vmatpush1.bf16.msra.mxu0 %v2250
    %5042 = vmatprep.subr.bf16.mxu0 %v2263
    %5043 = vmatpush1.bf16.msra.mxu0 %v2262
    %5044 = vmatprep.subr.bf16.mxu0 %v2275
    %5045 = vmatpush1.bf16.msra.mxu0 %v2274
    %5046 = vmatprep.subr.bf16.mxu0 %v2287
    %5047 = vmatpush1.bf16.msra.mxu0 %v2286
    %5048 = vmatprep.subr.bf16.mxu0 %v2299
    %5049 = vmatpush1.bf16.msra.mxu0 %v2298
    %5050 = vmatprep.subr.bf16.mxu0 %v2311
    %5051 = vmatpush1.bf16.msra.mxu0 %v2310
    %5052 = vmatprep.subr.bf16.mxu0 %v2323
    %5053 = vmatpush1.bf16.msra.mxu0 %v2322
    %5054 = vmatprep.subr.bf16.mxu0 %v2335
    %5055 = vmatpush1.bf16.msra.mxu0 %v2334
    %5056 = vmatprep.subr.bf16.mxu0 %v2347
    %5057 = vmatpush1.bf16.msra.mxu0 %v2346
    %5058 = vmatprep.subr.bf16.mxu0 %v2359
    %5059 = vmatpush1.bf16.msra.mxu0 %v2358
    %5060 = vmatprep.subr.bf16.mxu0 %v2371
    %5061 = vmatpush1.bf16.msra.mxu0 %v2370
    %5062 = vmatprep.subr.bf16.mxu0 %v2383
    %5063 = vmatpush1.bf16.msra.mxu0 %v2382
    %5064 = vmatprep.subr.bf16.mxu0 %v2395
    %5065 = vmatpush1.bf16.msra.mxu0 %v2394
    %5066 = vmatprep.mubr.bf16.mxu0 %v5032
    %5067 = vmatmul.mubr.bf16.gmra.mrb[0].mxu0 %v5031
    %v5068 = vpop.f32.mrb[0].mxu0
    %v5069 = vadd.f32 0.0, %v5068
    %v5070 = vpop.f32.mrb[0].mxu0
    %v5071 = vadd.f32 0.0, %v5070
    %v5072 = vpop.f32.mrb[0].mxu0
    %v5073 = vpop.f32.mrb[0].mxu0
    %5074 = vdwg.mxu0
    %5075 = vmatprep.subr.bf16.mxu0 %v2407
    %5076 = vmatpush1.bf16.msra.mxu0 %v2406
    %5077 = vmatprep.subr.bf16.mxu0 %v2419
    %5078 = vmatpush1.bf16.msra.mxu0 %v2418
    %5079 = vmatprep.subr.bf16.mxu0 %v2431
    %5080 = vmatpush1.bf16.msra.mxu0 %v2430
    %5081 = vmatprep.subr.bf16.mxu0 %v2443
    %5082 = vmatpush1.bf16.msra.mxu0 %v2442
    %5083 = vmatprep.subr.bf16.mxu0 %v2455
    %5084 = vmatpush1.bf16.msra.mxu0 %v2454
    %5085 = vmatprep.subr.bf16.mxu0 %v2467
    %5086 = vmatpush1.bf16.msra.mxu0 %v2466
    %5087 = vmatprep.subr.bf16.mxu0 %v2479
    %5088 = vmatpush1.bf16.msra.mxu0 %v2478
    %5089 = vmatprep.subr.bf16.mxu0 %v2491
    %5090 = vmatpush1.bf16.msra.mxu0 %v2490
    %5091 = vmatprep.subr.bf16.mxu0 0
    %5092 = vmatpush1.bf16.msra.mxu0 0
    %5093 = vmatprep.subr.bf16.mxu0 0
    %5094 = vmatpush1.bf16.msra.mxu0 0
    %5095 = vmatprep.subr.bf16.mxu0 0
    %5096 = vmatpush1.bf16.msra.mxu0 0
    %5097 = vmatprep.subr.bf16.mxu0 0
    %5098 = vmatpush1.bf16.msra.mxu0 0
    %5099 = vmatprep.subr.bf16.mxu0 0
    %5100 = vmatpush1.bf16.msra.mxu0 0
    %5101 = vmatprep.subr.bf16.mxu0 0
    %5102 = vmatpush1.bf16.msra.mxu0 0
    %5103 = vmatprep.subr.bf16.mxu0 0
    %5104 = vmatpush1.bf16.msra.mxu0 0
    %5105 = vmatprep.subr.bf16.mxu0 0
    %5106 = vmatpush1.bf16.msra.mxu0 0
    %5107 = vmatprep.mubr.bf16.mxu0 0
    %5108 = vmatmul.mubr.bf16.gmra.mrb[0].mxu0 %v5033
    %v5109 = vpop.f32.mrb[0].mxu0
    %v5110 = vadd.f32 %v5069, %v5109
    %v5111 = vpop.f32.mrb[0].mxu0
    %v5112 = vadd.f32 %v5071, %v5111
    %v5113 = vpop.f32.mrb[0].mxu0
    %v5114 = vpop.f32.mrb[0].mxu0
    %5115 = vdwg.mxu0
    %5116 = vmatprep.subr.bf16.mxu0 %v2217
    %5117 = vmatpush1.bf16.msra.mxu0 %v2216
    %5118 = vmatprep.subr.bf16.mxu0 %v2229
    %5119 = vmatpush1.bf16.msra.mxu0 %v2228
    %5120 = vmatprep.subr.bf16.mxu0 %v2241
    %5121 = vmatpush1.bf16.msra.mxu0 %v2240
    %5122 = vmatprep.subr.bf16.mxu0 %v2253
    %5123 = vmatpush1.bf16.msra.mxu0 %v2252
    %5124 = vmatprep.subr.bf16.mxu0 %v2265
    %5125 = vmatpush1.bf16.msra.mxu0 %v2264
    %5126 = vmatprep.subr.bf16.mxu0 %v2277
    %5127 = vmatpush1.bf16.msra.mxu0 %v2276
    %5128 = vmatprep.subr.bf16.mxu0 %v2289
    %5129 = vmatpush1.bf16.msra.mxu0 %v2288
    %5130 = vmatprep.subr.bf16.mxu0 %v2301
    %5131 = vmatpush1.bf16.msra.mxu0 %v2300
    %5132 = vmatprep.subr.bf16.mxu0 %v2313
    %5133 = vmatpush1.bf16.msra.mxu0 %v2312
    %5134 = vmatprep.subr.bf16.mxu0 %v2325
    %5135 = vmatpush1.bf16.msra.mxu0 %v2324
    %5136 = vmatprep.subr.bf16.mxu0 %v2337
    %5137 = vmatpush1.bf16.msra.mxu0 %v2336
    %5138 = vmatprep.subr.bf16.mxu0 %v2349
    %5139 = vmatpush1.bf16.msra.mxu0 %v2348
    %5140 = vmatprep.subr.bf16.mxu0 %v2361
    %5141 = vmatpush1.bf16.msra.mxu0 %v2360
    %5142 = vmatprep.subr.bf16.mxu0 %v2373
    %5143 = vmatpush1.bf16.msra.mxu0 %v2372
    %5144 = vmatprep.subr.bf16.mxu0 %v2385
    %5145 = vmatpush1.bf16.msra.mxu0 %v2384
    %5146 = vmatprep.subr.bf16.mxu0 %v2397
    %5147 = vmatpush1.bf16.msra.mxu0 %v2396
    %5148 = vmatprep.mubr.bf16.mxu0 %v5032
    %5149 = vmatmul.mubr.bf16.gmra.mrb[0].mxu0 %v5031
    %v5150 = vpop.f32.mrb[0].mxu0
    %v5151 = vadd.f32 0.0, %v5150
    %v5152 = vpop.f32.mrb[0].mxu0
    %v5153 = vadd.f32 0.0, %v5152
    %v5154 = vpop.f32.mrb[0].mxu0
    %v5155 = vpop.f32.mrb[0].mxu0
    %5156 = vdwg.mxu0
    %5157 = vmatprep.subr.bf16.mxu0 %v2409
    %5158 = vmatpush1.bf16.msra.mxu0 %v2408
    %5159 = vmatprep.subr.bf16.mxu0 %v2421
    %5160 = vmatpush1.bf16.msra.mxu0 %v2420
    %5161 = vmatprep.subr.bf16.mxu0 %v2433
    %5162 = vmatpush1.bf16.msra.mxu0 %v2432
    %5163 = vmatprep.subr.bf16.mxu0 %v2445
    %5164 = vmatpush1.bf16.msra.mxu0 %v2444
    %5165 = vmatprep.subr.bf16.mxu0 %v2457
    %5166 = vmatpush1.bf16.msra.mxu0 %v2456
    %5167 = vmatprep.subr.bf16.mxu0 %v2469
    %5168 = vmatpush1.bf16.msra.mxu0 %v2468
    %5169 = vmatprep.subr.bf16.mxu0 %v2481
    %5170 = vmatpush1.bf16.msra.mxu0 %v2480
    %5171 = vmatprep.subr.bf16.mxu0 %v2493
    %5172 = vmatpush1.bf16.msra.mxu0 %v2492
    %5173 = vmatprep.subr.bf16.mxu0 0
    %5174 = vmatpush1.bf16.msra.mxu0 0
    %5175 = vmatprep.subr.bf16.mxu0 0
    %5176 = vmatpush1.bf16.msra.mxu0 0
    %5177 = vmatprep.subr.bf16.mxu0 0
    %5178 = vmatpush1.bf16.msra.mxu0 0
    %5179 = vmatprep.subr.bf16.mxu0 0
    %5180 = vmatpush1.bf16.msra.mxu0 0
    %5181 = vmatprep.subr.bf16.mxu0 0
    %5182 = vmatpush1.bf16.msra.mxu0 0
    %5183 = vmatprep.subr.bf16.mxu0 0
    %5184 = vmatpush1.bf16.msra.mxu0 0
    %5185 = vmatprep.subr.bf16.mxu0 0
    %5186 = vmatpush1.bf16.msra.mxu0 0
    %5187 = vmatprep.subr.bf16.mxu0 0
    %5188 = vmatpush1.bf16.msra.mxu0 0
    %5189 = vmatprep.mubr.bf16.mxu0 0
    %5190 = vmatmul.mubr.bf16.gmra.mrb[0].mxu0 %v5033
    %v5191 = vpop.f32.mrb[0].mxu0
    %v5192 = vadd.f32 %v5151, %v5191
    %v5193 = vpop.f32.mrb[0].mxu0
    %v5194 = vadd.f32 %v5153, %v5193
    %v5195 = vpop.f32.mrb[0].mxu0
    %v5196 = vpop.f32.mrb[0].mxu0
    %5197 = vdwg.mxu0
    %5198 = vmatprep.subr.bf16.mxu0 %v2219
    %5199 = vmatpush1.bf16.msra.mxu0 %v2218
    %5200 = vmatprep.subr.bf16.mxu0 %v2231
    %5201 = vmatpush1.bf16.msra.mxu0 %v2230
    %5202 = vmatprep.subr.bf16.mxu0 %v2243
    %5203 = vmatpush1.bf16.msra.mxu0 %v2242
    %5204 = vmatprep.subr.bf16.mxu0 %v2255
    %5205 = vmatpush1.bf16.msra.mxu0 %v2254
    %5206 = vmatprep.subr.bf16.mxu0 %v2267
    %5207 = vmatpush1.bf16.msra.mxu0 %v2266
    %5208 = vmatprep.subr.bf16.mxu0 %v2279
    %5209 = vmatpush1.bf16.msra.mxu0 %v2278
    %5210 = vmatprep.subr.bf16.mxu0 %v2291
    %5211 = vmatpush1.bf16.msra.mxu0 %v2290
    %5212 = vmatprep.subr.bf16.mxu0 %v2303
    %5213 = vmatpush1.bf16.msra.mxu0 %v2302
    %5214 = vmatprep.subr.bf16.mxu0 %v2315
    %5215 = vmatpush1.bf16.msra.mxu0 %v2314
    %5216 = vmatprep.subr.bf16.mxu0 %v2327
    %5217 = vmatpush1.bf16.msra.mxu0 %v2326
    %5218 = vmatprep.subr.bf16.mxu0 %v2339
    %5219 = vmatpush1.bf16.msra.mxu0 %v2338
    %5220 = vmatprep.subr.bf16.mxu0 %v2351
    %5221 = vmatpush1.bf16.msra.mxu0 %v2350
    %5222 = vmatprep.subr.bf16.mxu0 %v2363
    %5223 = vmatpush1.bf16.msra.mxu0 %v2362
    %5224 = vmatprep.subr.bf16.mxu0 %v2375
    %5225 = vmatpush1.bf16.msra.mxu0 %v2374
    %5226 = vmatprep.subr.bf16.mxu0 %v2387
    %5227 = vmatpush1.bf16.msra.mxu0 %v2386
    %5228 = vmatprep.subr.bf16.mxu0 %v2399
    %5229 = vmatpush1.bf16.msra.mxu0 %v2398
    %5230 = vmatprep.mubr.bf16.mxu0 %v5032
    %5231 = vmatmul.mubr.bf16.gmra.mrb[0].mxu0 %v5031
    %v5232 = vpop.f32.mrb[0].mxu0
    %v5233 = vadd.f32 0.0, %v5232
    %v5234 = vpop.f32.mrb[0].mxu0
    %v5235 = vadd.f32 0.0, %v5234
    %v5236 = vpop.f32.mrb[0].mxu0
    %v5237 = vpop.f32.mrb[0].mxu0
    %5238 = vdwg.mxu0
    %5239 = vmatprep.subr.bf16.mxu0 %v2411
    %5240 = vmatpush1.bf16.msra.mxu0 %v2410
    %5241 = vmatprep.subr.bf16.mxu0 %v2423
    %5242 = vmatpush1.bf16.msra.mxu0 %v2422
    %5243 = vmatprep.subr.bf16.mxu0 %v2435
    %5244 = vmatpush1.bf16.msra.mxu0 %v2434
    %5245 = vmatprep.subr.bf16.mxu0 %v2447
    %5246 = vmatpush1.bf16.msra.mxu0 %v2446
    %5247 = vmatprep.subr.bf16.mxu0 %v2459
    %5248 = vmatpush1.bf16.msra.mxu0 %v2458
    %5249 = vmatprep.subr.bf16.mxu0 %v2471
    %5250 = vmatpush1.bf16.msra.mxu0 %v2470
    %5251 = vmatprep.subr.bf16.mxu0 %v2483
    %5252 = vmatpush1.bf16.msra.mxu0 %v2482
    %5253 = vmatprep.subr.bf16.mxu0 %v2495
    %5254 = vmatpush1.bf16.msra.mxu0 %v2494
    %5255 = vmatprep.subr.bf16.mxu0 0
    %5256 = vmatpush1.bf16.msra.mxu0 0
    %5257 = vmatprep.subr.bf16.mxu0 0
    %5258 = vmatpush1.bf16.msra.mxu0 0
    %5259 = vmatprep.subr.bf16.mxu0 0
    %5260 = vmatpush1.bf16.msra.mxu0 0
    %5261 = vmatprep.subr.bf16.mxu0 0
    %5262 = vmatpush1.bf16.msra.mxu0 0
    %5263 = vmatprep.subr.bf16.mxu0 0
    %5264 = vmatpush1.bf16.msra.mxu0 0
    %5265 = vmatprep.subr.bf16.mxu0 0
    %5266 = vmatpush1.bf16.msra.mxu0 0
    %5267 = vmatprep.subr.bf16.mxu0 0
    %5268 = vmatpush1.bf16.msra.mxu0 0
    %5269 = vmatprep.subr.bf16.mxu0 0
    %5270 = vmatpush1.bf16.msra.mxu0 0
    %5271 = vmatprep.mubr.bf16.mxu0 0
    %5272 = vmatmul.mubr.bf16.gmra.mrb[0].mxu0 %v5033
    %v5273 = vpop.f32.mrb[0].mxu0
    %v5274 = vadd.f32 %v5233, %v5273
    %v5275 = vpop.f32.mrb[0].mxu0
    %v5276 = vadd.f32 %v5235, %v5275
    %v5277 = vpop.f32.mrb[0].mxu0
    %v5278 = vpop.f32.mrb[0].mxu0
    %5279 = vdwg.mxu0
    %5280 = vmatprep.subr.bf16.mxu0 %v2221
    %5281 = vmatpush1.bf16.msra.mxu0 %v2220
    %5282 = vmatprep.subr.bf16.mxu0 %v2233
    %5283 = vmatpush1.bf16.msra.mxu0 %v2232
    %5284 = vmatprep.subr.bf16.mxu0 %v2245
    %5285 = vmatpush1.bf16.msra.mxu0 %v2244
    %5286 = vmatprep.subr.bf16.mxu0 %v2257
    %5287 = vmatpush1.bf16.msra.mxu0 %v2256
    %5288 = vmatprep.subr.bf16.mxu0 %v2269
    %5289 = vmatpush1.bf16.msra.mxu0 %v2268
    %5290 = vmatprep.subr.bf16.mxu0 %v2281
    %5291 = vmatpush1.bf16.msra.mxu0 %v2280
    %5292 = vmatprep.subr.bf16.mxu0 %v2293
    %5293 = vmatpush1.bf16.msra.mxu0 %v2292
    %5294 = vmatprep.subr.bf16.mxu0 %v2305
    %5295 = vmatpush1.bf16.msra.mxu0 %v2304
    %5296 = vmatprep.subr.bf16.mxu0 %v2317
    %5297 = vmatpush1.bf16.msra.mxu0 %v2316
    %5298 = vmatprep.subr.bf16.mxu0 %v2329
    %5299 = vmatpush1.bf16.msra.mxu0 %v2328
    %5300 = vmatprep.subr.bf16.mxu0 %v2341
    %5301 = vmatpush1.bf16.msra.mxu0 %v2340
    %5302 = vmatprep.subr.bf16.mxu0 %v2353
    %5303 = vmatpush1.bf16.msra.mxu0 %v2352
    %5304 = vmatprep.subr.bf16.mxu0 %v2365
    %5305 = vmatpush1.bf16.msra.mxu0 %v2364
    %5306 = vmatprep.subr.bf16.mxu0 %v2377
    %5307 = vmatpush1.bf16.msra.mxu0 %v2376
    %5308 = vmatprep.subr.bf16.mxu0 %v2389
    %5309 = vmatpush1.bf16.msra.mxu0 %v2388
    %5310 = vmatprep.subr.bf16.mxu0 %v2401
    %5311 = vmatpush1.bf16.msra.mxu0 %v2400
    %5312 = vmatprep.mubr.bf16.mxu0 %v5032
    %5313 = vmatmul.mubr.bf16.gmra.mrb[0].mxu0 %v5031
    %v5314 = vpop.f32.mrb[0].mxu0
    %v5315 = vadd.f32 0.0, %v5314
    %v5316 = vpop.f32.mrb[0].mxu0
    %v5317 = vadd.f32 0.0, %v5316
    %v5318 = vpop.f32.mrb[0].mxu0
    %v5319 = vpop.f32.mrb[0].mxu0
    %5320 = vdwg.mxu0
    %5321 = vmatprep.subr.bf16.mxu0 %v2413
    %5322 = vmatpush1.bf16.msra.mxu0 %v2412
    %5323 = vmatprep.subr.bf16.mxu0 %v2425
    %5324 = vmatpush1.bf16.msra.mxu0 %v2424
    %5325 = vmatprep.subr.bf16.mxu0 %v2437
    %5326 = vmatpush1.bf16.msra.mxu0 %v2436
    %5327 = vmatprep.subr.bf16.mxu0 %v2449
    %5328 = vmatpush1.bf16.msra.mxu0 %v2448
    %5329 = vmatprep.subr.bf16.mxu0 %v2461
    %5330 = vmatpush1.bf16.msra.mxu0 %v2460
    %5331 = vmatprep.subr.bf16.mxu0 %v2473
    %5332 = vmatpush1.bf16.msra.mxu0 %v2472
    %5333 = vmatprep.subr.bf16.mxu0 %v2485
    %5334 = vmatpush1.bf16.msra.mxu0 %v2484
    %5335 = vmatprep.subr.bf16.mxu0 %v2497
    %5336 = vmatpush1.bf16.msra.mxu0 %v2496
    %5337 = vmatprep.subr.bf16.mxu0 0
    %5338 = vmatpush1.bf16.msra.mxu0 0
    %5339 = vmatprep.subr.bf16.mxu0 0
    %5340 = vmatpush1.bf16.msra.mxu0 0
    %5341 = vmatprep.subr.bf16.mxu0 0
    %5342 = vmatpush1.bf16.msra.mxu0 0
    %5343 = vmatprep.subr.bf16.mxu0 0
    %5344 = vmatpush1.bf16.msra.mxu0 0
    %5345 = vmatprep.subr.bf16.mxu0 0
    %5346 = vmatpush1.bf16.msra.mxu0 0
    %5347 = vmatprep.subr.bf16.mxu0 0
    %5348 = vmatpush1.bf16.msra.mxu0 0
    %5349 = vmatprep.subr.bf16.mxu0 0
    %5350 = vmatpush1.bf16.msra.mxu0 0
    %5351 = vmatprep.subr.bf16.mxu0 0
    %5352 = vmatpush1.bf16.msra.mxu0 0
    %5353 = vmatprep.mubr.bf16.mxu0 0
    %5354 = vmatmul.mubr.bf16.gmra.mrb[0].mxu0 %v5033
    %v5355 = vpop.f32.mrb[0].mxu0
    %v5356 = vadd.f32 %v5315, %v5355
    %v5357 = vpop.f32.mrb[0].mxu0
    %v5358 = vadd.f32 %v5317, %v5357
    %v5359 = vpop.f32.mrb[0].mxu0
    %v5360 = vpop.f32.mrb[0].mxu0
    %5361 = vdwg.mxu0
    %5362 = vmatprep.subr.bf16.mxu0 %v2223
    %5363 = vmatpush1.bf16.msra.mxu0 %v2222
    %5364 = vmatprep.subr.bf16.mxu0 %v2235
    %5365 = vmatpush1.bf16.msra.mxu0 %v2234
    %5366 = vmatprep.subr.bf16.mxu0 %v2247
    %5367 = vmatpush1.bf16.msra.mxu0 %v2246
    %5368 = vmatprep.subr.bf16.mxu0 %v2259
    %5369 = vmatpush1.bf16.msra.mxu0 %v2258
    %5370 = vmatprep.subr.bf16.mxu0 %v2271
    %5371 = vmatpush1.bf16.msra.mxu0 %v2270
    %5372 = vmatprep.subr.bf16.mxu0 %v2283
    %5373 = vmatpush1.bf16.msra.mxu0 %v2282
    %5374 = vmatprep.subr.bf16.mxu0 %v2295
    %5375 = vmatpush1.bf16.msra.mxu0 %v2294
    %5376 = vmatprep.subr.bf16.mxu0 %v2307
    %5377 = vmatpush1.bf16.msra.mxu0 %v2306
    %5378 = vmatprep.subr.bf16.mxu0 %v2319
    %5379 = vmatpush1.bf16.msra.mxu0 %v2318
    %5380 = vmatprep.subr.bf16.mxu0 %v2331
    %5381 = vmatpush1.bf16.msra.mxu0 %v2330
    %5382 = vmatprep.subr.bf16.mxu0 %v2343
    %5383 = vmatpush1.bf16.msra.mxu0 %v2342
    %5384 = vmatprep.subr.bf16.mxu0 %v2355
    %5385 = vmatpush1.bf16.msra.mxu0 %v2354
    %5386 = vmatprep.subr.bf16.mxu0 %v2367
    %5387 = vmatpush1.bf16.msra.mxu0 %v2366
    %5388 = vmatprep.subr.bf16.mxu0 %v2379
    %5389 = vmatpush1.bf16.msra.mxu0 %v2378
    %5390 = vmatprep.subr.bf16.mxu0 %v2391
    %5391 = vmatpush1.bf16.msra.mxu0 %v2390
    %5392 = vmatprep.subr.bf16.mxu0 %v2403
    %5393 = vmatpush1.bf16.msra.mxu0 %v2402
    %5394 = vmatprep.mubr.bf16.mxu0 %v5032
    %5395 = vmatmul.mubr.bf16.gmra.mrb[0].mxu0 %v5031
    %v5396 = vpop.f32.mrb[0].mxu0
    %v5397 = vadd.f32 0.0, %v5396
    %v5398 = vpop.f32.mrb[0].mxu0
    %v5399 = vadd.f32 0.0, %v5398
    %v5400 = vpop.f32.mrb[0].mxu0
    %v5401 = vpop.f32.mrb[0].mxu0
    %5402 = vdwg.mxu0
    %5403 = vmatprep.subr.bf16.mxu0 %v2415
    %5404 = vmatpush1.bf16.msra.mxu0 %v2414
    %5405 = vmatprep.subr.bf16.mxu0 %v2427
    %5406 = vmatpush1.bf16.msra.mxu0 %v2426
    %5407 = vmatprep.subr.bf16.mxu0 %v2439
    %5408 = vmatpush1.bf16.msra.mxu0 %v2438
    %5409 = vmatprep.subr.bf16.mxu0 %v2451
    %5410 = vmatpush1.bf16.msra.mxu0 %v2450
    %5411 = vmatprep.subr.bf16.mxu0 %v2463
    %5412 = vmatpush1.bf16.msra.mxu0 %v2462
    %5413 = vmatprep.subr.bf16.mxu0 %v2475
    %5414 = vmatpush1.bf16.msra.mxu0 %v2474
    %5415 = vmatprep.subr.bf16.mxu0 %v2487
    %5416 = vmatpush1.bf16.msra.mxu0 %v2486
    %5417 = vmatprep.subr.bf16.mxu0 %v2499
    %5418 = vmatpush1.bf16.msra.mxu0 %v2498
    %5419 = vmatprep.subr.bf16.mxu0 0
    %5420 = vmatpush1.bf16.msra.mxu0 0
    %5421 = vmatprep.subr.bf16.mxu0 0
    %5422 = vmatpush1.bf16.msra.mxu0 0
    %5423 = vmatprep.subr.bf16.mxu0 0
    %5424 = vmatpush1.bf16.msra.mxu0 0
    %5425 = vmatprep.subr.bf16.mxu0 0
    %5426 = vmatpush1.bf16.msra.mxu0 0
    %5427 = vmatprep.subr.bf16.mxu0 0
    %5428 = vmatpush1.bf16.msra.mxu0 0
    %5429 = vmatprep.subr.bf16.mxu0 0
    %5430 = vmatpush1.bf16.msra.mxu0 0
    %5431 = vmatprep.subr.bf16.mxu0 0
    %5432 = vmatpush1.bf16.msra.mxu0 0
    %5433 = vmatprep.subr.bf16.mxu0 0
    %5434 = vmatpush1.bf16.msra.mxu0 0
    %5435 = vmatprep.mubr.bf16.mxu0 0
    %5436 = vmatmul.mubr.bf16.gmra.mrb[0].mxu0 %v5033
    %v5437 = vpop.f32.mrb[0].mxu0
    %v5438 = vadd.f32 %v5397, %v5437
    %v5439 = vpop.f32.mrb[0].mxu0
    %v5440 = vadd.f32 %v5399, %v5439
    %v5441 = vpop.f32.mrb[0].mxu0
    %v5442 = vpop.f32.mrb[0].mxu0
    %5443 = vdwg.mxu0
    %5444 = vmatprep.subr.bf16.mxu0 %v2225
    %5445 = vmatpush1.bf16.msra.mxu0 %v2224
    %5446 = vmatprep.subr.bf16.mxu0 %v2237
    %5447 = vmatpush1.bf16.msra.mxu0 %v2236
    %5448 = vmatprep.subr.bf16.mxu0 %v2249
    %5449 = vmatpush1.bf16.msra.mxu0 %v2248
    %5450 = vmatprep.subr.bf16.mxu0 %v2261
    %5451 = vmatpush1.bf16.msra.mxu0 %v2260
    %5452 = vmatprep.subr.bf16.mxu0 %v2273
    %5453 = vmatpush1.bf16.msra.mxu0 %v2272
    %5454 = vmatprep.subr.bf16.mxu0 %v2285
    %5455 = vmatpush1.bf16.msra.mxu0 %v2284
    %5456 = vmatprep.subr.bf16.mxu0 %v2297
    %5457 = vmatpush1.bf16.msra.mxu0 %v2296
    %5458 = vmatprep.subr.bf16.mxu0 %v2309
    %5459 = vmatpush1.bf16.msra.mxu0 %v2308
    %5460 = vmatprep.subr.bf16.mxu0 %v2321
    %5461 = vmatpush1.bf16.msra.mxu0 %v2320
    %5462 = vmatprep.subr.bf16.mxu0 %v2333
    %5463 = vmatpush1.bf16.msra.mxu0 %v2332
    %5464 = vmatprep.subr.bf16.mxu0 %v2345
    %5465 = vmatpush1.bf16.msra.mxu0 %v2344
    %5466 = vmatprep.subr.bf16.mxu0 %v2357
    %5467 = vmatpush1.bf16.msra.mxu0 %v2356
    %5468 = vmatprep.subr.bf16.mxu0 %v2369
    %5469 = vmatpush1.bf16.msra.mxu0 %v2368
    %5470 = vmatprep.subr.bf16.mxu0 %v2381
    %5471 = vmatpush1.bf16.msra.mxu0 %v2380
    %5472 = vmatprep.subr.bf16.mxu0 %v2393
    %5473 = vmatpush1.bf16.msra.mxu0 %v2392
    %5474 = vmatprep.subr.bf16.mxu0 %v2405
    %5475 = vmatpush1.bf16.msra.mxu0 %v2404
    %5476 = vmatprep.mubr.bf16.mxu0 %v5032
    %5477 = vmatmul.mubr.bf16.gmra.mrb[0].mxu0 %v5031
    %v5478 = vpop.f32.mrb[0].mxu0
    %v5479 = vadd.f32 0.0, %v5478
    %v5480 = vpop.f32.mrb[0].mxu0
    %v5481 = vadd.f32 0.0, %v5480
    %v5482 = vpop.f32.mrb[0].mxu0
    %v5483 = vpop.f32.mrb[0].mxu0
    %5484 = vdwg.mxu0
    %5485 = vmatprep.subr.bf16.mxu0 %v2417
    %5486 = vmatpush1.bf16.msra.mxu0 %v2416
    %5487 = vmatprep.subr.bf16.mxu0 %v2429
    %5488 = vmatpush1.bf16.msra.mxu0 %v2428
    %5489 = vmatprep.subr.bf16.mxu0 %v2441
    %5490 = vmatpush1.bf16.msra.mxu0 %v2440
    %5491 = vmatprep.subr.bf16.mxu0 %v2453
    %5492 = vmatpush1.bf16.msra.mxu0 %v2452
    %5493 = vmatprep.subr.bf16.mxu0 %v2465
    %5494 = vmatpush1.bf16.msra.mxu0 %v2464
    %5495 = vmatprep.subr.bf16.mxu0 %v2477
    %5496 = vmatpush1.bf16.msra.mxu0 %v2476
    %5497 = vmatprep.subr.bf16.mxu0 %v2489
    %5498 = vmatpush1.bf16.msra.mxu0 %v2488
    %5499 = vmatprep.subr.bf16.mxu0 %v2501
    %5500 = vmatpush1.bf16.msra.mxu0 %v2500
    %5501 = vmatprep.subr.bf16.mxu0 0
    %5502 = vmatpush1.bf16.msra.mxu0 0
    %5503 = vmatprep.subr.bf16.mxu0 0
    %5504 = vmatpush1.bf16.msra.mxu0 0
    %5505 = vmatprep.subr.bf16.mxu0 0
    %5506 = vmatpush1.bf16.msra.mxu0 0
    %5507 = vmatprep.subr.bf16.mxu0 0
    %5508 = vmatpush1.bf16.msra.mxu0 0
    %5509 = vmatprep.subr.bf16.mxu0 0
    %5510 = vmatpush1.bf16.msra.mxu0 0
    %5511 = vmatprep.subr.bf16.mxu0 0
    %5512 = vmatpush1.bf16.msra.mxu0 0
    %5513 = vmatprep.subr.bf16.mxu0 0
    %5514 = vmatpush1.bf16.msra.mxu0 0
    %5515 = vmatprep.subr.bf16.mxu0 0
    %5516 = vmatpush1.bf16.msra.mxu0 0
    %5517 = vmatprep.mubr.bf16.mxu0 0
    %5518 = vmatmul.mubr.bf16.gmra.mrb[0].mxu0 %v5033
    %v5519 = vpop.f32.mrb[0].mxu0
    %v5520 = vadd.f32 %v5479, %v5519
    %v5521 = vpop.f32.mrb[0].mxu0
    %v5522 = vadd.f32 %v5481, %v5521
    %v5523 = vpop.f32.mrb[0].mxu0
    %v5524 = vpop.f32.mrb[0].mxu0
    %5525 = vdwg.mxu0
    %v5526 = vadd.f32 %v670, %v5110
    %v5527 = vadd.f32 %v672, %v5112
    %v5528 = vadd.f32 %v743, %v5192
    %v5529 = vadd.f32 %v745, %v5194
    %v5530 = vadd.f32 %v816, %v5274
    %v5531 = vadd.f32 %v818, %v5276
    %v5532 = vadd.f32 %v889, %v5356
    %v5533 = vadd.f32 %v891, %v5358
    %v5534 = vadd.f32 %v962, %v5438
    %v5535 = vadd.f32 %v964, %v5440
    %v5536 = vadd.f32 %v1035, %v5520
    %v5537 = vadd.f32 %v1037, %v5522
    %v5538 = vmul.f32 %v5526, 0.5
    %v5539 = vmul.f32 %v5527, 0.5
    %v5540 = vmul.f32 %v5528, 0.5
    %v5541 = vtanh.pop %v5538
    %v5542 = vtanh.pop %v5539
    %v5543 = vtanh.pop %v5540
    %v5544 = vadd.f32 %v5541, 1.0
    %v5545 = vadd.f32 %v5542, 1.0
    %v5546 = vadd.f32 %v5543, 1.0
    %v5547 = vmul.f32 %v5544, 0.5
    %v5548 = vmul.f32 %v5545, 0.5
    %v5549 = vmul.f32 %v5546, 0.5
    %v5550 = vmul.f32 %v5529, 0.5
    %v5551 = vmul.f32 %v5530, 0.5
    %v5552 = vmul.f32 %v5531, 0.5
    %v5553 = vtanh.pop %v5550
    %v5554 = vtanh.pop %v5551
    %v5555 = vtanh.pop %v5552
    %v5556 = vadd.f32 %v5553, 1.0
    %v5557 = vadd.f32 %v5554, 1.0
    %v5558 = vadd.f32 %v5555, 1.0
    %v5559 = vmul.f32 %v5556, 0.5
    %v5560 = vmul.f32 %v5557, 0.5
    %v5561 = vmul.f32 %v5558, 0.5
    %v5562 = vtanh.pop %v5532
    %v5563 = vtanh.pop %v5533
    %v5564 = vtanh.pop %v5534
    %v5565 = vmul.f32 %v5535, 0.5
    %v5566 = vmul.f32 %v5536, 0.5
    %v5567 = vmul.f32 %v5537, 0.5
    %v5568 = vtanh.pop %v5565
    %v5569 = vtanh.pop %v5566
    %v5570 = vtanh.pop %v5567
    %v5571 = vadd.f32 %v5568, 1.0
    %v5572 = vadd.f32 %v5569, 1.0
    %v5573 = vadd.f32 %v5570, 1.0
    %v5574 = vmul.f32 %v5571, 0.5
    %v5575 = vmul.f32 %v5572, 0.5
    %v5576 = vmul.f32 %v5573, 0.5
    %v5577 = vmul.f32 %v5559, %v5022
    %v5578 = vmul.f32 %v5560, %v5023
    %v5579 = vmul.f32 %v5561, %v5024
    %v5580 = vmul.f32 %v5547, %v5562
    %v5581 = vmul.f32 %v5548, %v5563
    %v5582 = vmul.f32 %v5549, %v5564
    %v5583 = vadd.f32 %v5577, %v5580
    %v5584 = vadd.f32 %v5578, %v5581
    %v5585 = vadd.f32 %v5579, %v5582
    %v5586 = vtanh.pop %v5583
    %v5587 = vtanh.pop %v5584
    %v5588 = vtanh.pop %v5585
    %v5589 = vmul.f32 %v5574, %v5586
    %v5590 = vmul.f32 %v5575, %v5587
    %v5591 = vmul.f32 %v5576, %v5588
    %v5592 = vpack.c.bf16 %v5589, %v5589
    %v5593 = vpack.c.bf16 %v5590, %v5590
    %v5594 = vpack.c.bf16 %v5591, %v5591
    %5595 = vmatprep.subr.bf16.mxu0 %v2215
    %5596 = vmatpush1.bf16.msra.mxu0 %v2214
    %5597 = vmatprep.subr.bf16.mxu0 %v2227
    %5598 = vmatpush1.bf16.msra.mxu0 %v2226
    %5599 = vmatprep.subr.bf16.mxu0 %v2239
    %5600 = vmatpush1.bf16.msra.mxu0 %v2238
    %5601 = vmatprep.subr.bf16.mxu0 %v2251
    %5602 = vmatpush1.bf16.msra.mxu0 %v2250
    %5603 = vmatprep.subr.bf16.mxu0 %v2263
    %5604 = vmatpush1.bf16.msra.mxu0 %v2262
    %5605 = vmatprep.subr.bf16.mxu0 %v2275
    %5606 = vmatpush1.bf16.msra.mxu0 %v2274
    %5607 = vmatprep.subr.bf16.mxu0 %v2287
    %5608 = vmatpush1.bf16.msra.mxu0 %v2286
    %5609 = vmatprep.subr.bf16.mxu0 %v2299
    %5610 = vmatpush1.bf16.msra.mxu0 %v2298
    %5611 = vmatprep.subr.bf16.mxu0 %v2311
    %5612 = vmatpush1.bf16.msra.mxu0 %v2310
    %5613 = vmatprep.subr.bf16.mxu0 %v2323
    %5614 = vmatpush1.bf16.msra.mxu0 %v2322
    %5615 = vmatprep.subr.bf16.mxu0 %v2335
    %5616 = vmatpush1.bf16.msra.mxu0 %v2334
    %5617 = vmatprep.subr.bf16.mxu0 %v2347
    %5618 = vmatpush1.bf16.msra.mxu0 %v2346
    %5619 = vmatprep.subr.bf16.mxu0 %v2359
    %5620 = vmatpush1.bf16.msra.mxu0 %v2358
    %5621 = vmatprep.subr.bf16.mxu0 %v2371
    %5622 = vmatpush1.bf16.msra.mxu0 %v2370
    %5623 = vmatprep.subr.bf16.mxu0 %v2383
    %5624 = vmatpush1.bf16.msra.mxu0 %v2382
    %5625 = vmatprep.subr.bf16.mxu0 %v2395
    %5626 = vmatpush1.bf16.msra.mxu0 %v2394
    %5627 = vmatprep.mubr.bf16.mxu0 %v5593
    %5628 = vmatmul.mubr.bf16.gmra.mrb[0].mxu0 %v5592
    %v5629 = vpop.f32.mrb[0].mxu0
    %v5630 = vadd.f32 0.0, %v5629
    %v5631 = vpop.f32.mrb[0].mxu0
    %v5632 = vadd.f32 0.0, %v5631
    %v5633 = vpop.f32.mrb[0].mxu0
    %v5634 = vpop.f32.mrb[0].mxu0
    %5635 = vdwg.mxu0
    %5636 = vmatprep.subr.bf16.mxu0 %v2407
    %5637 = vmatpush1.bf16.msra.mxu0 %v2406
    %5638 = vmatprep.subr.bf16.mxu0 %v2419
    %5639 = vmatpush1.bf16.msra.mxu0 %v2418
    %5640 = vmatprep.subr.bf16.mxu0 %v2431
    %5641 = vmatpush1.bf16.msra.mxu0 %v2430
    %5642 = vmatprep.subr.bf16.mxu0 %v2443
    %5643 = vmatpush1.bf16.msra.mxu0 %v2442
    %5644 = vmatprep.subr.bf16.mxu0 %v2455
    %5645 = vmatpush1.bf16.msra.mxu0 %v2454
    %5646 = vmatprep.subr.bf16.mxu0 %v2467
    %5647 = vmatpush1.bf16.msra.mxu0 %v2466
    %5648 = vmatprep.subr.bf16.mxu0 %v2479
    %5649 = vmatpush1.bf16.msra.mxu0 %v2478
    %5650 = vmatprep.subr.bf16.mxu0 %v2491
    %5651 = vmatpush1.bf16.msra.mxu0 %v2490
    %5652 = vmatprep.subr.bf16.mxu0 0
    %5653 = vmatpush1.bf16.msra.mxu0 0
    %5654 = vmatprep.subr.bf16.mxu0 0
    %5655 = vmatpush1.bf16.msra.mxu0 0
    %5656 = vmatprep.subr.bf16.mxu0 0
    %5657 = vmatpush1.bf16.msra.mxu0 0
    %5658 = vmatprep.subr.bf16.mxu0 0
    %5659 = vmatpush1.bf16.msra.mxu0 0
    %5660 = vmatprep.subr.bf16.mxu0 0
    %5661 = vmatpush1.bf16.msra.mxu0 0
    %5662 = vmatprep.subr.bf16.mxu0 0
    %5663 = vmatpush1.bf16.msra.mxu0 0
    %5664 = vmatprep.subr.bf16.mxu0 0
    %5665 = vmatpush1.bf16.msra.mxu0 0
    %5666 = vmatprep.subr.bf16.mxu0 0
    %5667 = vmatpush1.bf16.msra.mxu0 0
    %5668 = vmatprep.mubr.bf16.mxu0 0
    %5669 = vmatmul.mubr.bf16.gmra.mrb[0].mxu0 %v5594
    %v5670 = vpop.f32.mrb[0].mxu0
    %v5671 = vadd.f32 %v5630, %v5670
    %v5672 = vpop.f32.mrb[0].mxu0
    %v5673 = vadd.f32 %v5632, %v5672
    %v5674 = vpop.f32.mrb[0].mxu0
    %v5675 = vpop.f32.mrb[0].mxu0
    %5676 = vdwg.mxu0
    %5677 = vmatprep.subr.bf16.mxu0 %v2217
    %5678 = vmatpush1.bf16.msra.mxu0 %v2216
    %5679 = vmatprep.subr.bf16.mxu0 %v2229
    %5680 = vmatpush1.bf16.msra.mxu0 %v2228
    %5681 = vmatprep.subr.bf16.mxu0 %v2241
    %5682 = vmatpush1.bf16.msra.mxu0 %v2240
    %5683 = vmatprep.subr.bf16.mxu0 %v2253
    %5684 = vmatpush1.bf16.msra.mxu0 %v2252
    %5685 = vmatprep.subr.bf16.mxu0 %v2265
    %5686 = vmatpush1.bf16.msra.mxu0 %v2264
    %5687 = vmatprep.subr.bf16.mxu0 %v2277
    %5688 = vmatpush1.bf16.msra.mxu0 %v2276
    %5689 = vmatprep.subr.bf16.mxu0 %v2289
    %5690 = vmatpush1.bf16.msra.mxu0 %v2288
    %5691 = vmatprep.subr.bf16.mxu0 %v2301
    %5692 = vmatpush1.bf16.msra.mxu0 %v2300
    %5693 = vmatprep.subr.bf16.mxu0 %v2313
    %5694 = vmatpush1.bf16.msra.mxu0 %v2312
    %5695 = vmatprep.subr.bf16.mxu0 %v2325
    %5696 = vmatpush1.bf16.msra.mxu0 %v2324
    %5697 = vmatprep.subr.bf16.mxu0 %v2337
    %5698 = vmatpush1.bf16.msra.mxu0 %v2336
    %5699 = vmatprep.subr.bf16.mxu0 %v2349
    %5700 = vmatpush1.bf16.msra.mxu0 %v2348
    %5701 = vmatprep.subr.bf16.mxu0 %v2361
    %5702 = vmatpush1.bf16.msra.mxu0 %v2360
    %5703 = vmatprep.subr.bf16.mxu0 %v2373
    %5704 = vmatpush1.bf16.msra.mxu0 %v2372
    %5705 = vmatprep.subr.bf16.mxu0 %v2385
    %5706 = vmatpush1.bf16.msra.mxu0 %v2384
    %5707 = vmatprep.subr.bf16.mxu0 %v2397
    %5708 = vmatpush1.bf16.msra.mxu0 %v2396
    %5709 = vmatprep.mubr.bf16.mxu0 %v5593
    %5710 = vmatmul.mubr.bf16.gmra.mrb[0].mxu0 %v5592
    %v5711 = vpop.f32.mrb[0].mxu0
    %v5712 = vadd.f32 0.0, %v5711
    %v5713 = vpop.f32.mrb[0].mxu0
    %v5714 = vadd.f32 0.0, %v5713
    %v5715 = vpop.f32.mrb[0].mxu0
    %v5716 = vpop.f32.mrb[0].mxu0
    %5717 = vdwg.mxu0
    %5718 = vmatprep.subr.bf16.mxu0 %v2409
    %5719 = vmatpush1.bf16.msra.mxu0 %v2408
    %5720 = vmatprep.subr.bf16.mxu0 %v2421
    %5721 = vmatpush1.bf16.msra.mxu0 %v2420
    %5722 = vmatprep.subr.bf16.mxu0 %v2433
    %5723 = vmatpush1.bf16.msra.mxu0 %v2432
    %5724 = vmatprep.subr.bf16.mxu0 %v2445
    %5725 = vmatpush1.bf16.msra.mxu0 %v2444
    %5726 = vmatprep.subr.bf16.mxu0 %v2457
    %5727 = vmatpush1.bf16.msra.mxu0 %v2456
    %5728 = vmatprep.subr.bf16.mxu0 %v2469
    %5729 = vmatpush1.bf16.msra.mxu0 %v2468
    %5730 = vmatprep.subr.bf16.mxu0 %v2481
    %5731 = vmatpush1.bf16.msra.mxu0 %v2480
    %5732 = vmatprep.subr.bf16.mxu0 %v2493
    %5733 = vmatpush1.bf16.msra.mxu0 %v2492
    %5734 = vmatprep.subr.bf16.mxu0 0
    %5735 = vmatpush1.bf16.msra.mxu0 0
    %5736 = vmatprep.subr.bf16.mxu0 0
    %5737 = vmatpush1.bf16.msra.mxu0 0
    %5738 = vmatprep.subr.bf16.mxu0 0
    %5739 = vmatpush1.bf16.msra.mxu0 0
    %5740 = vmatprep.subr.bf16.mxu0 0
    %5741 = vmatpush1.bf16.msra.mxu0 0
    %5742 = vmatprep.subr.bf16.mxu0 0
    %5743 = vmatpush1.bf16.msra.mxu0 0
    %5744 = vmatprep.subr.bf16.mxu0 0
    %5745 = vmatpush1.bf16.msra.mxu0 0
    %5746 = vmatprep.subr.bf16.mxu0 0
    %5747 = vmatpush1.bf16.msra.mxu0 0
    %5748 = vmatprep.subr.bf16.mxu0 0
    %5749 = vmatpush1.bf16.msra.mxu0 0
    %5750 = vmatprep.mubr.bf16.mxu0 0
    %5751 = vmatmul.mubr.bf16.gmra.mrb[0].mxu0 %v5594
    %v5752 = vpop.f32.mrb[0].mxu0
    %v5753 = vadd.f32 %v5712, %v5752
    %v5754 = vpop.f32.mrb[0].mxu0
    %v5755 = vadd.f32 %v5714, %v5754
    %v5756 = vpop.f32.mrb[0].mxu0
    %v5757 = vpop.f32.mrb[0].mxu0
    %5758 = vdwg.mxu0
    %5759 = vmatprep.subr.bf16.mxu0 %v2219
    %5760 = vmatpush1.bf16.msra.mxu0 %v2218
    %5761 = vmatprep.subr.bf16.mxu0 %v2231
    %5762 = vmatpush1.bf16.msra.mxu0 %v2230
    %5763 = vmatprep.subr.bf16.mxu0 %v2243
    %5764 = vmatpush1.bf16.msra.mxu0 %v2242
    %5765 = vmatprep.subr.bf16.mxu0 %v2255
    %5766 = vmatpush1.bf16.msra.mxu0 %v2254
    %5767 = vmatprep.subr.bf16.mxu0 %v2267
    %5768 = vmatpush1.bf16.msra.mxu0 %v2266
    %5769 = vmatprep.subr.bf16.mxu0 %v2279
    %5770 = vmatpush1.bf16.msra.mxu0 %v2278
    %5771 = vmatprep.subr.bf16.mxu0 %v2291
    %5772 = vmatpush1.bf16.msra.mxu0 %v2290
    %5773 = vmatprep.subr.bf16.mxu0 %v2303
    %5774 = vmatpush1.bf16.msra.mxu0 %v2302
    %5775 = vmatprep.subr.bf16.mxu0 %v2315
    %5776 = vmatpush1.bf16.msra.mxu0 %v2314
    %5777 = vmatprep.subr.bf16.mxu0 %v2327
    %5778 = vmatpush1.bf16.msra.mxu0 %v2326
    %5779 = vmatprep.subr.bf16.mxu0 %v2339
    %5780 = vmatpush1.bf16.msra.mxu0 %v2338
    %5781 = vmatprep.subr.bf16.mxu0 %v2351
    %5782 = vmatpush1.bf16.msra.mxu0 %v2350
    %5783 = vmatprep.subr.bf16.mxu0 %v2363
    %5784 = vmatpush1.bf16.msra.mxu0 %v2362
    %5785 = vmatprep.subr.bf16.mxu0 %v2375
    %5786 = vmatpush1.bf16.msra.mxu0 %v2374
    %5787 = vmatprep.subr.bf16.mxu0 %v2387
    %5788 = vmatpush1.bf16.msra.mxu0 %v2386
    %5789 = vmatprep.subr.bf16.mxu0 %v2399
    %5790 = vmatpush1.bf16.msra.mxu0 %v2398
    %5791 = vmatprep.mubr.bf16.mxu0 %v5593
    %5792 = vmatmul.mubr.bf16.gmra.mrb[0].mxu0 %v5592
    %v5793 = vpop.f32.mrb[0].mxu0
    %v5794 = vadd.f32 0.0, %v5793
    %v5795 = vpop.f32.mrb[0].mxu0
    %v5796 = vadd.f32 0.0, %v5795
    %v5797 = vpop.f32.mrb[0].mxu0
    %v5798 = vpop.f32.mrb[0].mxu0
    %5799 = vdwg.mxu0
    %5800 = vmatprep.subr.bf16.mxu0 %v2411
    %5801 = vmatpush1.bf16.msra.mxu0 %v2410
    %5802 = vmatprep.subr.bf16.mxu0 %v2423
    %5803 = vmatpush1.bf16.msra.mxu0 %v2422
    %5804 = vmatprep.subr.bf16.mxu0 %v2435
    %5805 = vmatpush1.bf16.msra.mxu0 %v2434
    %5806 = vmatprep.subr.bf16.mxu0 %v2447
    %5807 = vmatpush1.bf16.msra.mxu0 %v2446
    %5808 = vmatprep.subr.bf16.mxu0 %v2459
    %5809 = vmatpush1.bf16.msra.mxu0 %v2458
    %5810 = vmatprep.subr.bf16.mxu0 %v2471
    %5811 = vmatpush1.bf16.msra.mxu0 %v2470
    %5812 = vmatprep.subr.bf16.mxu0 %v2483
    %5813 = vmatpush1.bf16.msra.mxu0 %v2482
    %5814 = vmatprep.subr.bf16.mxu0 %v2495
    %5815 = vmatpush1.bf16.msra.mxu0 %v2494
    %5816 = vmatprep.subr.bf16.mxu0 0
    %5817 = vmatpush1.bf16.msra.mxu0 0
    %5818 = vmatprep.subr.bf16.mxu0 0
    %5819 = vmatpush1.bf16.msra.mxu0 0
    %5820 = vmatprep.subr.bf16.mxu0 0
    %5821 = vmatpush1.bf16.msra.mxu0 0
    %5822 = vmatprep.subr.bf16.mxu0 0
    %5823 = vmatpush1.bf16.msra.mxu0 0
    %5824 = vmatprep.subr.bf16.mxu0 0
    %5825 = vmatpush1.bf16.msra.mxu0 0
    %5826 = vmatprep.subr.bf16.mxu0 0
    %5827 = vmatpush1.bf16.msra.mxu0 0
    %5828 = vmatprep.subr.bf16.mxu0 0
    %5829 = vmatpush1.bf16.msra.mxu0 0
    %5830 = vmatprep.subr.bf16.mxu0 0
    %5831 = vmatpush1.bf16.msra.mxu0 0
    %5832 = vmatprep.mubr.bf16.mxu0 0
    %5833 = vmatmul.mubr.bf16.gmra.mrb[0].mxu0 %v5594
    %v5834 = vpop.f32.mrb[0].mxu0
    %v5835 = vadd.f32 %v5794, %v5834
    %v5836 = vpop.f32.mrb[0].mxu0
    %v5837 = vadd.f32 %v5796, %v5836
    %v5838 = vpop.f32.mrb[0].mxu0
    %v5839 = vpop.f32.mrb[0].mxu0
    %5840 = vdwg.mxu0
    %5841 = vmatprep.subr.bf16.mxu0 %v2221
    %5842 = vmatpush1.bf16.msra.mxu0 %v2220
    %5843 = vmatprep.subr.bf16.mxu0 %v2233
    %5844 = vmatpush1.bf16.msra.mxu0 %v2232
    %5845 = vmatprep.subr.bf16.mxu0 %v2245
    %5846 = vmatpush1.bf16.msra.mxu0 %v2244
    %5847 = vmatprep.subr.bf16.mxu0 %v2257
    %5848 = vmatpush1.bf16.msra.mxu0 %v2256
    %5849 = vmatprep.subr.bf16.mxu0 %v2269
    %5850 = vmatpush1.bf16.msra.mxu0 %v2268
    %5851 = vmatprep.subr.bf16.mxu0 %v2281
    %5852 = vmatpush1.bf16.msra.mxu0 %v2280
    %5853 = vmatprep.subr.bf16.mxu0 %v2293
    %5854 = vmatpush1.bf16.msra.mxu0 %v2292
    %5855 = vmatprep.subr.bf16.mxu0 %v2305
    %5856 = vmatpush1.bf16.msra.mxu0 %v2304
    %5857 = vmatprep.subr.bf16.mxu0 %v2317
    %5858 = vmatpush1.bf16.msra.mxu0 %v2316
    %5859 = vmatprep.subr.bf16.mxu0 %v2329
    %5860 = vmatpush1.bf16.msra.mxu0 %v2328
    %5861 = vmatprep.subr.bf16.mxu0 %v2341
    %5862 = vmatpush1.bf16.msra.mxu0 %v2340
    %5863 = vmatprep.subr.bf16.mxu0 %v2353
    %5864 = vmatpush1.bf16.msra.mxu0 %v2352
    %5865 = vmatprep.subr.bf16.mxu0 %v2365
    %5866 = vmatpush1.bf16.msra.mxu0 %v2364
    %5867 = vmatprep.subr.bf16.mxu0 %v2377
    %5868 = vmatpush1.bf16.msra.mxu0 %v2376
    %5869 = vmatprep.subr.bf16.mxu0 %v2389
    %5870 = vmatpush1.bf16.msra.mxu0 %v2388
    %5871 = vmatprep.subr.bf16.mxu0 %v2401
    %5872 = vmatpush1.bf16.msra.mxu0 %v2400
    %5873 = vmatprep.mubr.bf16.mxu0 %v5593
    %5874 = vmatmul.mubr.bf16.gmra.mrb[0].mxu0 %v5592
    %v5875 = vpop.f32.mrb[0].mxu0
    %v5876 = vadd.f32 0.0, %v5875
    %v5877 = vpop.f32.mrb[0].mxu0
    %v5878 = vadd.f32 0.0, %v5877
    %v5879 = vpop.f32.mrb[0].mxu0
    %v5880 = vpop.f32.mrb[0].mxu0
    %5881 = vdwg.mxu0
    %5882 = vmatprep.subr.bf16.mxu0 %v2413
    %5883 = vmatpush1.bf16.msra.mxu0 %v2412
    %5884 = vmatprep.subr.bf16.mxu0 %v2425
    %5885 = vmatpush1.bf16.msra.mxu0 %v2424
    %5886 = vmatprep.subr.bf16.mxu0 %v2437
    %5887 = vmatpush1.bf16.msra.mxu0 %v2436
    %5888 = vmatprep.subr.bf16.mxu0 %v2449
    %5889 = vmatpush1.bf16.msra.mxu0 %v2448
    %5890 = vmatprep.subr.bf16.mxu0 %v2461
    %5891 = vmatpush1.bf16.msra.mxu0 %v2460
    %5892 = vmatprep.subr.bf16.mxu0 %v2473
    %5893 = vmatpush1.bf16.msra.mxu0 %v2472
    %5894 = vmatprep.subr.bf16.mxu0 %v2485
    %5895 = vmatpush1.bf16.msra.mxu0 %v2484
    %5896 = vmatprep.subr.bf16.mxu0 %v2497
    %5897 = vmatpush1.bf16.msra.mxu0 %v2496
    %5898 = vmatprep.subr.bf16.mxu0 0
    %5899 = vmatpush1.bf16.msra.mxu0 0
    %5900 = vmatprep.subr.bf16.mxu0 0
    %5901 = vmatpush1.bf16.msra.mxu0 0
    %5902 = vmatprep.subr.bf16.mxu0 0
    %5903 = vmatpush1.bf16.msra.mxu0 0
    %5904 = vmatprep.subr.bf16.mxu0 0
    %5905 = vmatpush1.bf16.msra.mxu0 0
    %5906 = vmatprep.subr.bf16.mxu0 0
    %5907 = vmatpush1.bf16.msra.mxu0 0
    %5908 = vmatprep.subr.bf16.mxu0 0
    %5909 = vmatpush1.bf16.msra.mxu0 0
    %5910 = vmatprep.subr.bf16.mxu0 0
    %5911 = vmatpush1.bf16.msra.mxu0 0
    %5912 = vmatprep.subr.bf16.mxu0 0
    %5913 = vmatpush1.bf16.msra.mxu0 0
    %5914 = vmatprep.mubr.bf16.mxu0 0
    %5915 = vmatmul.mubr.bf16.gmra.mrb[0].mxu0 %v5594
    %v5916 = vpop.f32.mrb[0].mxu0
    %v5917 = vadd.f32 %v5876, %v5916
    %v5918 = vpop.f32.mrb[0].mxu0
    %v5919 = vadd.f32 %v5878, %v5918
    %v5920 = vpop.f32.mrb[0].mxu0
    %v5921 = vpop.f32.mrb[0].mxu0
    %5922 = vdwg.mxu0
    %5923 = vmatprep.subr.bf16.mxu0 %v2223
    %5924 = vmatpush1.bf16.msra.mxu0 %v2222
    %5925 = vmatprep.subr.bf16.mxu0 %v2235
    %5926 = vmatpush1.bf16.msra.mxu0 %v2234
    %5927 = vmatprep.subr.bf16.mxu0 %v2247
    %5928 = vmatpush1.bf16.msra.mxu0 %v2246
    %5929 = vmatprep.subr.bf16.mxu0 %v2259
    %5930 = vmatpush1.bf16.msra.mxu0 %v2258
    %5931 = vmatprep.subr.bf16.mxu0 %v2271
    %5932 = vmatpush1.bf16.msra.mxu0 %v2270
    %5933 = vmatprep.subr.bf16.mxu0 %v2283
    %5934 = vmatpush1.bf16.msra.mxu0 %v2282
    %5935 = vmatprep.subr.bf16.mxu0 %v2295
    %5936 = vmatpush1.bf16.msra.mxu0 %v2294
    %5937 = vmatprep.subr.bf16.mxu0 %v2307
    %5938 = vmatpush1.bf16.msra.mxu0 %v2306
    %5939 = vmatprep.subr.bf16.mxu0 %v2319
    %5940 = vmatpush1.bf16.msra.mxu0 %v2318
    %5941 = vmatprep.subr.bf16.mxu0 %v2331
    %5942 = vmatpush1.bf16.msra.mxu0 %v2330
    %5943 = vmatprep.subr.bf16.mxu0 %v2343
    %5944 = vmatpush1.bf16.msra.mxu0 %v2342
    %5945 = vmatprep.subr.bf16.mxu0 %v2355
    %5946 = vmatpush1.bf16.msra.mxu0 %v2354
    %5947 = vmatprep.subr.bf16.mxu0 %v2367
    %5948 = vmatpush1.bf16.msra.mxu0 %v2366
    %5949 = vmatprep.subr.bf16.mxu0 %v2379
    %5950 = vmatpush1.bf16.msra.mxu0 %v2378
    %5951 = vmatprep.subr.bf16.mxu0 %v2391
    %5952 = vmatpush1.bf16.msra.mxu0 %v2390
    %5953 = vmatprep.subr.bf16.mxu0 %v2403
    %5954 = vmatpush1.bf16.msra.mxu0 %v2402
    %5955 = vmatprep.mubr.bf16.mxu0 %v5593
    %5956 = vmatmul.mubr.bf16.gmra.mrb[0].mxu0 %v5592
    %v5957 = vpop.f32.mrb[0].mxu0
    %v5958 = vadd.f32 0.0, %v5957
    %v5959 = vpop.f32.mrb[0].mxu0
    %v5960 = vadd.f32 0.0, %v5959
    %v5961 = vpop.f32.mrb[0].mxu0
    %v5962 = vpop.f32.mrb[0].mxu0
    %5963 = vdwg.mxu0
    %5964 = vmatprep.subr.bf16.mxu0 %v2415
    %5965 = vmatpush1.bf16.msra.mxu0 %v2414
    %5966 = vmatprep.subr.bf16.mxu0 %v2427
    %5967 = vmatpush1.bf16.msra.mxu0 %v2426
    %5968 = vmatprep.subr.bf16.mxu0 %v2439
    %5969 = vmatpush1.bf16.msra.mxu0 %v2438
    %5970 = vmatprep.subr.bf16.mxu0 %v2451
    %5971 = vmatpush1.bf16.msra.mxu0 %v2450
    %5972 = vmatprep.subr.bf16.mxu0 %v2463
    %5973 = vmatpush1.bf16.msra.mxu0 %v2462
    %5974 = vmatprep.subr.bf16.mxu0 %v2475
    %5975 = vmatpush1.bf16.msra.mxu0 %v2474
    %5976 = vmatprep.subr.bf16.mxu0 %v2487
    %5977 = vmatpush1.bf16.msra.mxu0 %v2486
    %5978 = vmatprep.subr.bf16.mxu0 %v2499
    %5979 = vmatpush1.bf16.msra.mxu0 %v2498
    %5980 = vmatprep.subr.bf16.mxu0 0
    %5981 = vmatpush1.bf16.msra.mxu0 0
    %5982 = vmatprep.subr.bf16.mxu0 0
    %5983 = vmatpush1.bf16.msra.mxu0 0
    %5984 = vmatprep.subr.bf16.mxu0 0
    %5985 = vmatpush1.bf16.msra.mxu0 0
    %5986 = vmatprep.subr.bf16.mxu0 0
    %5987 = vmatpush1.bf16.msra.mxu0 0
    %5988 = vmatprep.subr.bf16.mxu0 0
    %5989 = vmatpush1.bf16.msra.mxu0 0
    %5990 = vmatprep.subr.bf16.mxu0 0
    %5991 = vmatpush1.bf16.msra.mxu0 0
    %5992 = vmatprep.subr.bf16.mxu0 0
    %5993 = vmatpush1.bf16.msra.mxu0 0
    %5994 = vmatprep.subr.bf16.mxu0 0
    %5995 = vmatpush1.bf16.msra.mxu0 0
    %5996 = vmatprep.mubr.bf16.mxu0 0
    %5997 = vmatmul.mubr.bf16.gmra.mrb[0].mxu0 %v5594
    %v5998 = vpop.f32.mrb[0].mxu0
    %v5999 = vadd.f32 %v5958, %v5998
    %v6000 = vpop.f32.mrb[0].mxu0
    %v6001 = vadd.f32 %v5960, %v6000
    %v6002 = vpop.f32.mrb[0].mxu0
    %v6003 = vpop.f32.mrb[0].mxu0
    %6004 = vdwg.mxu0
    %6005 = vmatprep.subr.bf16.mxu0 %v2225
    %6006 = vmatpush1.bf16.msra.mxu0 %v2224
    %6007 = vmatprep.subr.bf16.mxu0 %v2237
    %6008 = vmatpush1.bf16.msra.mxu0 %v2236
    %6009 = vmatprep.subr.bf16.mxu0 %v2249
    %6010 = vmatpush1.bf16.msra.mxu0 %v2248
    %6011 = vmatprep.subr.bf16.mxu0 %v2261
    %6012 = vmatpush1.bf16.msra.mxu0 %v2260
    %6013 = vmatprep.subr.bf16.mxu0 %v2273
    %6014 = vmatpush1.bf16.msra.mxu0 %v2272
    %6015 = vmatprep.subr.bf16.mxu0 %v2285
    %6016 = vmatpush1.bf16.msra.mxu0 %v2284
    %6017 = vmatprep.subr.bf16.mxu0 %v2297
    %6018 = vmatpush1.bf16.msra.mxu0 %v2296
    %6019 = vmatprep.subr.bf16.mxu0 %v2309
    %6020 = vmatpush1.bf16.msra.mxu0 %v2308
    %6021 = vmatprep.subr.bf16.mxu0 %v2321
    %6022 = vmatpush1.bf16.msra.mxu0 %v2320
    %6023 = vmatprep.subr.bf16.mxu0 %v2333
    %6024 = vmatpush1.bf16.msra.mxu0 %v2332
    %6025 = vmatprep.subr.bf16.mxu0 %v2345
    %6026 = vmatpush1.bf16.msra.mxu0 %v2344
    %6027 = vmatprep.subr.bf16.mxu0 %v2357
    %6028 = vmatpush1.bf16.msra.mxu0 %v2356
    %6029 = vmatprep.subr.bf16.mxu0 %v2369
    %6030 = vmatpush1.bf16.msra.mxu0 %v2368
    %6031 = vmatprep.subr.bf16.mxu0 %v2381
    %6032 = vmatpush1.bf16.msra.mxu0 %v2380
    %6033 = vmatprep.subr.bf16.mxu0 %v2393
    %6034 = vmatpush1.bf16.msra.mxu0 %v2392
    %6035 = vmatprep.subr.bf16.mxu0 %v2405
    %6036 = vmatpush1.bf16.msra.mxu0 %v2404
    %6037 = vmatprep.mubr.bf16.mxu0 %v5593
    %6038 = vmatmul.mubr.bf16.gmra.mrb[0].mxu0 %v5592
    %v6039 = vpop.f32.mrb[0].mxu0
    %v6040 = vadd.f32 0.0, %v6039
    %v6041 = vpop.f32.mrb[0].mxu0
    %v6042 = vadd.f32 0.0, %v6041
    %v6043 = vpop.f32.mrb[0].mxu0
    %v6044 = vpop.f32.mrb[0].mxu0
    %6045 = vdwg.mxu0
    %6046 = vmatprep.subr.bf16.mxu0 %v2417
    %6047 = vmatpush1.bf16.msra.mxu0 %v2416
    %6048 = vmatprep.subr.bf16.mxu0 %v2429
    %6049 = vmatpush1.bf16.msra.mxu0 %v2428
    %6050 = vmatprep.subr.bf16.mxu0 %v2441
    %6051 = vmatpush1.bf16.msra.mxu0 %v2440
    %6052 = vmatprep.subr.bf16.mxu0 %v2453
    %6053 = vmatpush1.bf16.msra.mxu0 %v2452
    %6054 = vmatprep.subr.bf16.mxu0 %v2465
    %6055 = vmatpush1.bf16.msra.mxu0 %v2464
    %6056 = vmatprep.subr.bf16.mxu0 %v2477
    %6057 = vmatpush1.bf16.msra.mxu0 %v2476
    %6058 = vmatprep.subr.bf16.mxu0 %v2489
    %6059 = vmatpush1.bf16.msra.mxu0 %v2488
    %6060 = vmatprep.subr.bf16.mxu0 %v2501
    %6061 = vmatpush1.bf16.msra.mxu0 %v2500
    %6062 = vmatprep.subr.bf16.mxu0 0
    %6063 = vmatpush1.bf16.msra.mxu0 0
    %6064 = vmatprep.subr.bf16.mxu0 0
    %6065 = vmatpush1.bf16.msra.mxu0 0
    %6066 = vmatprep.subr.bf16.mxu0 0
    %6067 = vmatpush1.bf16.msra.mxu0 0
    %6068 = vmatprep.subr.bf16.mxu0 0
    %6069 = vmatpush1.bf16.msra.mxu0 0
    %6070 = vmatprep.subr.bf16.mxu0 0
    %6071 = vmatpush1.bf16.msra.mxu0 0
    %6072 = vmatprep.subr.bf16.mxu0 0
    %6073 = vmatpush1.bf16.msra.mxu0 0
    %6074 = vmatprep.subr.bf16.mxu0 0
    %6075 = vmatpush1.bf16.msra.mxu0 0
    %6076 = vmatprep.subr.bf16.mxu0 0
    %6077 = vmatpush1.bf16.msra.mxu0 0
    %6078 = vmatprep.mubr.bf16.mxu0 0
    %6079 = vmatmul.mubr.bf16.gmra.mrb[0].mxu0 %v5594
    %v6080 = vpop.f32.mrb[0].mxu0
    %v6081 = vadd.f32 %v6040, %v6080
    %v6082 = vpop.f32.mrb[0].mxu0
    %v6083 = vadd.f32 %v6042, %v6082
    %v6084 = vpop.f32.mrb[0].mxu0
    %v6085 = vpop.f32.mrb[0].mxu0
    %6086 = vdwg.mxu0
    %v6087 = vadd.f32 %v674, %v5671
    %v6088 = vadd.f32 %v676, %v5673
    %v6089 = vadd.f32 %v747, %v5753
    %v6090 = vadd.f32 %v749, %v5755
    %v6091 = vadd.f32 %v820, %v5835
    %v6092 = vadd.f32 %v822, %v5837
    %v6093 = vadd.f32 %v893, %v5917
    %v6094 = vadd.f32 %v895, %v5919
    %v6095 = vadd.f32 %v966, %v5999
    %v6096 = vadd.f32 %v968, %v6001
    %v6097 = vadd.f32 %v1039, %v6081
    %v6098 = vadd.f32 %v1041, %v6083
    %v6099 = vmul.f32 %v6087, 0.5
    %v6100 = vmul.f32 %v6088, 0.5
    %v6101 = vmul.f32 %v6089, 0.5
    %v6102 = vtanh.pop %v6099
    %v6103 = vtanh.pop %v6100
    %v6104 = vtanh.pop %v6101
    %v6105 = vadd.f32 %v6102, 1.0
    %v6106 = vadd.f32 %v6103, 1.0
    %v6107 = vadd.f32 %v6104, 1.0
    %v6108 = vmul.f32 %v6105, 0.5
    %v6109 = vmul.f32 %v6106, 0.5
    %v6110 = vmul.f32 %v6107, 0.5
    %v6111 = vmul.f32 %v6090, 0.5
    %v6112 = vmul.f32 %v6091, 0.5
    %v6113 = vmul.f32 %v6092, 0.5
    %v6114 = vtanh.pop %v6111
    %v6115 = vtanh.pop %v6112
    %v6116 = vtanh.pop %v6113
    %v6117 = vadd.f32 %v6114, 1.0
    %v6118 = vadd.f32 %v6115, 1.0
    %v6119 = vadd.f32 %v6116, 1.0
    %v6120 = vmul.f32 %v6117, 0.5
    %v6121 = vmul.f32 %v6118, 0.5
    %v6122 = vmul.f32 %v6119, 0.5
    %v6123 = vtanh.pop %v6093
    %v6124 = vtanh.pop %v6094
    %v6125 = vtanh.pop %v6095
    %v6126 = vmul.f32 %v6096, 0.5
    %v6127 = vmul.f32 %v6097, 0.5
    %v6128 = vmul.f32 %v6098, 0.5
    %v6129 = vtanh.pop %v6126
    %v6130 = vtanh.pop %v6127
    %v6131 = vtanh.pop %v6128
    %v6132 = vadd.f32 %v6129, 1.0
    %v6133 = vadd.f32 %v6130, 1.0
    %v6134 = vadd.f32 %v6131, 1.0
    %v6135 = vmul.f32 %v6132, 0.5
    %v6136 = vmul.f32 %v6133, 0.5
    %v6137 = vmul.f32 %v6134, 0.5
    %v6138 = vmul.f32 %v6120, %v5583
    %v6139 = vmul.f32 %v6121, %v5584
    %v6140 = vmul.f32 %v6122, %v5585
    %v6141 = vmul.f32 %v6108, %v6123
    %v6142 = vmul.f32 %v6109, %v6124
    %v6143 = vmul.f32 %v6110, %v6125
    %v6144 = vadd.f32 %v6138, %v6141
    %v6145 = vadd.f32 %v6139, %v6142
    %v6146 = vadd.f32 %v6140, %v6143
    %v6147 = vtanh.pop %v6144
    %v6148 = vtanh.pop %v6145
    %v6149 = vtanh.pop %v6146
    %v6150 = vmul.f32 %v6135, %v6147
    %v6151 = vmul.f32 %v6136, %v6148
    %v6152 = vmul.f32 %v6137, %v6149
    %v6153 = vpack.c.bf16 %v6150, %v6150
    %v6154 = vpack.c.bf16 %v6151, %v6151
    %v6155 = vpack.c.bf16 %v6152, %v6152
    %6156 = vmatprep.subr.bf16.mxu0 %v2215
    %6157 = vmatpush1.bf16.msra.mxu0 %v2214
    %6158 = vmatprep.subr.bf16.mxu0 %v2227
    %6159 = vmatpush1.bf16.msra.mxu0 %v2226
    %6160 = vmatprep.subr.bf16.mxu0 %v2239
    %6161 = vmatpush1.bf16.msra.mxu0 %v2238
    %6162 = vmatprep.subr.bf16.mxu0 %v2251
    %6163 = vmatpush1.bf16.msra.mxu0 %v2250
    %6164 = vmatprep.subr.bf16.mxu0 %v2263
    %6165 = vmatpush1.bf16.msra.mxu0 %v2262
    %6166 = vmatprep.subr.bf16.mxu0 %v2275
    %6167 = vmatpush1.bf16.msra.mxu0 %v2274
    %6168 = vmatprep.subr.bf16.mxu0 %v2287
    %6169 = vmatpush1.bf16.msra.mxu0 %v2286
    %6170 = vmatprep.subr.bf16.mxu0 %v2299
    %6171 = vmatpush1.bf16.msra.mxu0 %v2298
    %6172 = vmatprep.subr.bf16.mxu0 %v2311
    %6173 = vmatpush1.bf16.msra.mxu0 %v2310
    %6174 = vmatprep.subr.bf16.mxu0 %v2323
    %6175 = vmatpush1.bf16.msra.mxu0 %v2322
    %6176 = vmatprep.subr.bf16.mxu0 %v2335
    %6177 = vmatpush1.bf16.msra.mxu0 %v2334
    %6178 = vmatprep.subr.bf16.mxu0 %v2347
    %6179 = vmatpush1.bf16.msra.mxu0 %v2346
    %6180 = vmatprep.subr.bf16.mxu0 %v2359
    %6181 = vmatpush1.bf16.msra.mxu0 %v2358
    %6182 = vmatprep.subr.bf16.mxu0 %v2371
    %6183 = vmatpush1.bf16.msra.mxu0 %v2370
    %6184 = vmatprep.subr.bf16.mxu0 %v2383
    %6185 = vmatpush1.bf16.msra.mxu0 %v2382
    %6186 = vmatprep.subr.bf16.mxu0 %v2395
    %6187 = vmatpush1.bf16.msra.mxu0 %v2394
    %6188 = vmatprep.mubr.bf16.mxu0 %v6154
    %6189 = vmatmul.mubr.bf16.gmra.mrb[0].mxu0 %v6153
    %v6190 = vpop.f32.mrb[0].mxu0
    %v6191 = vadd.f32 0.0, %v6190
    %v6192 = vpop.f32.mrb[0].mxu0
    %v6193 = vadd.f32 0.0, %v6192
    %v6194 = vpop.f32.mrb[0].mxu0
    %v6195 = vpop.f32.mrb[0].mxu0
    %6196 = vdwg.mxu0
    %6197 = vmatprep.subr.bf16.mxu0 %v2407
    %6198 = vmatpush1.bf16.msra.mxu0 %v2406
    %6199 = vmatprep.subr.bf16.mxu0 %v2419
    %6200 = vmatpush1.bf16.msra.mxu0 %v2418
    %6201 = vmatprep.subr.bf16.mxu0 %v2431
    %6202 = vmatpush1.bf16.msra.mxu0 %v2430
    %6203 = vmatprep.subr.bf16.mxu0 %v2443
    %6204 = vmatpush1.bf16.msra.mxu0 %v2442
    %6205 = vmatprep.subr.bf16.mxu0 %v2455
    %6206 = vmatpush1.bf16.msra.mxu0 %v2454
    %6207 = vmatprep.subr.bf16.mxu0 %v2467
    %6208 = vmatpush1.bf16.msra.mxu0 %v2466
    %6209 = vmatprep.subr.bf16.mxu0 %v2479
    %6210 = vmatpush1.bf16.msra.mxu0 %v2478
    %6211 = vmatprep.subr.bf16.mxu0 %v2491
    %6212 = vmatpush1.bf16.msra.mxu0 %v2490
    %6213 = vmatprep.subr.bf16.mxu0 0
    %6214 = vmatpush1.bf16.msra.mxu0 0
    %6215 = vmatprep.subr.bf16.mxu0 0
    %6216 = vmatpush1.bf16.msra.mxu0 0
    %6217 = vmatprep.subr.bf16.mxu0 0
    %6218 = vmatpush1.bf16.msra.mxu0 0
    %6219 = vmatprep.subr.bf16.mxu0 0
    %6220 = vmatpush1.bf16.msra.mxu0 0
    %6221 = vmatprep.subr.bf16.mxu0 0
    %6222 = vmatpush1.bf16.msra.mxu0 0
    %6223 = vmatprep.subr.bf16.mxu0 0
    %6224 = vmatpush1.bf16.msra.mxu0 0
    %6225 = vmatprep.subr.bf16.mxu0 0
    %6226 = vmatpush1.bf16.msra.mxu0 0
    %6227 = vmatprep.subr.bf16.mxu0 0
    %6228 = vmatpush1.bf16.msra.mxu0 0
    %6229 = vmatprep.mubr.bf16.mxu0 0
    %6230 = vmatmul.mubr.bf16.gmra.mrb[0].mxu0 %v6155
    %v6231 = vpop.f32.mrb[0].mxu0
    %v6232 = vadd.f32 %v6191, %v6231
    %v6233 = vpop.f32.mrb[0].mxu0
    %v6234 = vadd.f32 %v6193, %v6233
    %v6235 = vpop.f32.mrb[0].mxu0
    %v6236 = vpop.f32.mrb[0].mxu0
    %6237 = vdwg.mxu0
    %6238 = vmatprep.subr.bf16.mxu0 %v2217
    %6239 = vmatpush1.bf16.msra.mxu0 %v2216
    %6240 = vmatprep.subr.bf16.mxu0 %v2229
    %6241 = vmatpush1.bf16.msra.mxu0 %v2228
    %6242 = vmatprep.subr.bf16.mxu0 %v2241
    %6243 = vmatpush1.bf16.msra.mxu0 %v2240
    %6244 = vmatprep.subr.bf16.mxu0 %v2253
    %6245 = vmatpush1.bf16.msra.mxu0 %v2252
    %6246 = vmatprep.subr.bf16.mxu0 %v2265
    %6247 = vmatpush1.bf16.msra.mxu0 %v2264
    %6248 = vmatprep.subr.bf16.mxu0 %v2277
    %6249 = vmatpush1.bf16.msra.mxu0 %v2276
    %6250 = vmatprep.subr.bf16.mxu0 %v2289
    %6251 = vmatpush1.bf16.msra.mxu0 %v2288
    %6252 = vmatprep.subr.bf16.mxu0 %v2301
    %6253 = vmatpush1.bf16.msra.mxu0 %v2300
    %6254 = vmatprep.subr.bf16.mxu0 %v2313
    %6255 = vmatpush1.bf16.msra.mxu0 %v2312
    %6256 = vmatprep.subr.bf16.mxu0 %v2325
    %6257 = vmatpush1.bf16.msra.mxu0 %v2324
    %6258 = vmatprep.subr.bf16.mxu0 %v2337
    %6259 = vmatpush1.bf16.msra.mxu0 %v2336
    %6260 = vmatprep.subr.bf16.mxu0 %v2349
    %6261 = vmatpush1.bf16.msra.mxu0 %v2348
    %6262 = vmatprep.subr.bf16.mxu0 %v2361
    %6263 = vmatpush1.bf16.msra.mxu0 %v2360
    %6264 = vmatprep.subr.bf16.mxu0 %v2373
    %6265 = vmatpush1.bf16.msra.mxu0 %v2372
    %6266 = vmatprep.subr.bf16.mxu0 %v2385
    %6267 = vmatpush1.bf16.msra.mxu0 %v2384
    %6268 = vmatprep.subr.bf16.mxu0 %v2397
    %6269 = vmatpush1.bf16.msra.mxu0 %v2396
    %6270 = vmatprep.mubr.bf16.mxu0 %v6154
    %6271 = vmatmul.mubr.bf16.gmra.mrb[0].mxu0 %v6153
    %v6272 = vpop.f32.mrb[0].mxu0
    %v6273 = vadd.f32 0.0, %v6272
    %v6274 = vpop.f32.mrb[0].mxu0
    %v6275 = vadd.f32 0.0, %v6274
    %v6276 = vpop.f32.mrb[0].mxu0
    %v6277 = vpop.f32.mrb[0].mxu0
    %6278 = vdwg.mxu0
    %6279 = vmatprep.subr.bf16.mxu0 %v2409
    %6280 = vmatpush1.bf16.msra.mxu0 %v2408
    %6281 = vmatprep.subr.bf16.mxu0 %v2421
    %6282 = vmatpush1.bf16.msra.mxu0 %v2420
    %6283 = vmatprep.subr.bf16.mxu0 %v2433
    %6284 = vmatpush1.bf16.msra.mxu0 %v2432
    %6285 = vmatprep.subr.bf16.mxu0 %v2445
    %6286 = vmatpush1.bf16.msra.mxu0 %v2444
    %6287 = vmatprep.subr.bf16.mxu0 %v2457
    %6288 = vmatpush1.bf16.msra.mxu0 %v2456
    %6289 = vmatprep.subr.bf16.mxu0 %v2469
    %6290 = vmatpush1.bf16.msra.mxu0 %v2468
    %6291 = vmatprep.subr.bf16.mxu0 %v2481
    %6292 = vmatpush1.bf16.msra.mxu0 %v2480
    %6293 = vmatprep.subr.bf16.mxu0 %v2493
    %6294 = vmatpush1.bf16.msra.mxu0 %v2492
    %6295 = vmatprep.subr.bf16.mxu0 0
    %6296 = vmatpush1.bf16.msra.mxu0 0
    %6297 = vmatprep.subr.bf16.mxu0 0
    %6298 = vmatpush1.bf16.msra.mxu0 0
    %6299 = vmatprep.subr.bf16.mxu0 0
    %6300 = vmatpush1.bf16.msra.mxu0 0
    %6301 = vmatprep.subr.bf16.mxu0 0
    %6302 = vmatpush1.bf16.msra.mxu0 0
    %6303 = vmatprep.subr.bf16.mxu0 0
    %6304 = vmatpush1.bf16.msra.mxu0 0
    %6305 = vmatprep.subr.bf16.mxu0 0
    %6306 = vmatpush1.bf16.msra.mxu0 0
    %6307 = vmatprep.subr.bf16.mxu0 0
    %6308 = vmatpush1.bf16.msra.mxu0 0
    %6309 = vmatprep.subr.bf16.mxu0 0
    %6310 = vmatpush1.bf16.msra.mxu0 0
    %6311 = vmatprep.mubr.bf16.mxu0 0
    %6312 = vmatmul.mubr.bf16.gmra.mrb[0].mxu0 %v6155
    %v6313 = vpop.f32.mrb[0].mxu0
    %v6314 = vadd.f32 %v6273, %v6313
    %v6315 = vpop.f32.mrb[0].mxu0
    %v6316 = vadd.f32 %v6275, %v6315
    %v6317 = vpop.f32.mrb[0].mxu0
    %v6318 = vpop.f32.mrb[0].mxu0
    %6319 = vdwg.mxu0
    %6320 = vmatprep.subr.bf16.mxu0 %v2219
    %6321 = vmatpush1.bf16.msra.mxu0 %v2218
    %6322 = vmatprep.subr.bf16.mxu0 %v2231
    %6323 = vmatpush1.bf16.msra.mxu0 %v2230
    %6324 = vmatprep.subr.bf16.mxu0 %v2243
    %6325 = vmatpush1.bf16.msra.mxu0 %v2242
    %6326 = vmatprep.subr.bf16.mxu0 %v2255
    %6327 = vmatpush1.bf16.msra.mxu0 %v2254
    %6328 = vmatprep.subr.bf16.mxu0 %v2267
    %6329 = vmatpush1.bf16.msra.mxu0 %v2266
    %6330 = vmatprep.subr.bf16.mxu0 %v2279
    %6331 = vmatpush1.bf16.msra.mxu0 %v2278
    %6332 = vmatprep.subr.bf16.mxu0 %v2291
    %6333 = vmatpush1.bf16.msra.mxu0 %v2290
    %6334 = vmatprep.subr.bf16.mxu0 %v2303
    %6335 = vmatpush1.bf16.msra.mxu0 %v2302
    %6336 = vmatprep.subr.bf16.mxu0 %v2315
    %6337 = vmatpush1.bf16.msra.mxu0 %v2314
    %6338 = vmatprep.subr.bf16.mxu0 %v2327
    %6339 = vmatpush1.bf16.msra.mxu0 %v2326
    %6340 = vmatprep.subr.bf16.mxu0 %v2339
    %6341 = vmatpush1.bf16.msra.mxu0 %v2338
    %6342 = vmatprep.subr.bf16.mxu0 %v2351
    %6343 = vmatpush1.bf16.msra.mxu0 %v2350
    %6344 = vmatprep.subr.bf16.mxu0 %v2363
    %6345 = vmatpush1.bf16.msra.mxu0 %v2362
    %6346 = vmatprep.subr.bf16.mxu0 %v2375
    %6347 = vmatpush1.bf16.msra.mxu0 %v2374
    %6348 = vmatprep.subr.bf16.mxu0 %v2387
    %6349 = vmatpush1.bf16.msra.mxu0 %v2386
    %6350 = vmatprep.subr.bf16.mxu0 %v2399
    %6351 = vmatpush1.bf16.msra.mxu0 %v2398
    %6352 = vmatprep.mubr.bf16.mxu0 %v6154
    %6353 = vmatmul.mubr.bf16.gmra.mrb[0].mxu0 %v6153
    %v6354 = vpop.f32.mrb[0].mxu0
    %v6355 = vadd.f32 0.0, %v6354
    %v6356 = vpop.f32.mrb[0].mxu0
    %v6357 = vadd.f32 0.0, %v6356
    %v6358 = vpop.f32.mrb[0].mxu0
    %v6359 = vpop.f32.mrb[0].mxu0
    %6360 = vdwg.mxu0
    %6361 = vmatprep.subr.bf16.mxu0 %v2411
    %6362 = vmatpush1.bf16.msra.mxu0 %v2410
    %6363 = vmatprep.subr.bf16.mxu0 %v2423
    %6364 = vmatpush1.bf16.msra.mxu0 %v2422
    %6365 = vmatprep.subr.bf16.mxu0 %v2435
    %6366 = vmatpush1.bf16.msra.mxu0 %v2434
    %6367 = vmatprep.subr.bf16.mxu0 %v2447
    %6368 = vmatpush1.bf16.msra.mxu0 %v2446
    %6369 = vmatprep.subr.bf16.mxu0 %v2459
    %6370 = vmatpush1.bf16.msra.mxu0 %v2458
    %6371 = vmatprep.subr.bf16.mxu0 %v2471
    %6372 = vmatpush1.bf16.msra.mxu0 %v2470
    %6373 = vmatprep.subr.bf16.mxu0 %v2483
    %6374 = vmatpush1.bf16.msra.mxu0 %v2482
    %6375 = vmatprep.subr.bf16.mxu0 %v2495
    %6376 = vmatpush1.bf16.msra.mxu0 %v2494
    %6377 = vmatprep.subr.bf16.mxu0 0
    %6378 = vmatpush1.bf16.msra.mxu0 0
    %6379 = vmatprep.subr.bf16.mxu0 0
    %6380 = vmatpush1.bf16.msra.mxu0 0
    %6381 = vmatprep.subr.bf16.mxu0 0
    %6382 = vmatpush1.bf16.msra.mxu0 0
    %6383 = vmatprep.subr.bf16.mxu0 0
    %6384 = vmatpush1.bf16.msra.mxu0 0
    %6385 = vmatprep.subr.bf16.mxu0 0
    %6386 = vmatpush1.bf16.msra.mxu0 0
    %6387 = vmatprep.subr.bf16.mxu0 0
    %6388 = vmatpush1.bf16.msra.mxu0 0
    %6389 = vmatprep.subr.bf16.mxu0 0
    %6390 = vmatpush1.bf16.msra.mxu0 0
    %6391 = vmatprep.subr.bf16.mxu0 0
    %6392 = vmatpush1.bf16.msra.mxu0 0
    %6393 = vmatprep.mubr.bf16.mxu0 0
    %6394 = vmatmul.mubr.bf16.gmra.mrb[0].mxu0 %v6155
    %v6395 = vpop.f32.mrb[0].mxu0
    %v6396 = vadd.f32 %v6355, %v6395
    %v6397 = vpop.f32.mrb[0].mxu0
    %v6398 = vadd.f32 %v6357, %v6397
    %v6399 = vpop.f32.mrb[0].mxu0
    %v6400 = vpop.f32.mrb[0].mxu0
    %6401 = vdwg.mxu0
    %6402 = vmatprep.subr.bf16.mxu0 %v2221
    %6403 = vmatpush1.bf16.msra.mxu0 %v2220
    %6404 = vmatprep.subr.bf16.mxu0 %v2233
    %6405 = vmatpush1.bf16.msra.mxu0 %v2232
    %6406 = vmatprep.subr.bf16.mxu0 %v2245
    %6407 = vmatpush1.bf16.msra.mxu0 %v2244
    %6408 = vmatprep.subr.bf16.mxu0 %v2257
    %6409 = vmatpush1.bf16.msra.mxu0 %v2256
    %6410 = vmatprep.subr.bf16.mxu0 %v2269
    %6411 = vmatpush1.bf16.msra.mxu0 %v2268
    %6412 = vmatprep.subr.bf16.mxu0 %v2281
    %6413 = vmatpush1.bf16.msra.mxu0 %v2280
    %6414 = vmatprep.subr.bf16.mxu0 %v2293
    %6415 = vmatpush1.bf16.msra.mxu0 %v2292
    %6416 = vmatprep.subr.bf16.mxu0 %v2305
    %6417 = vmatpush1.bf16.msra.mxu0 %v2304
    %6418 = vmatprep.subr.bf16.mxu0 %v2317
    %6419 = vmatpush1.bf16.msra.mxu0 %v2316
    %6420 = vmatprep.subr.bf16.mxu0 %v2329
    %6421 = vmatpush1.bf16.msra.mxu0 %v2328
    %6422 = vmatprep.subr.bf16.mxu0 %v2341
    %6423 = vmatpush1.bf16.msra.mxu0 %v2340
    %6424 = vmatprep.subr.bf16.mxu0 %v2353
    %6425 = vmatpush1.bf16.msra.mxu0 %v2352
    %6426 = vmatprep.subr.bf16.mxu0 %v2365
    %6427 = vmatpush1.bf16.msra.mxu0 %v2364
    %6428 = vmatprep.subr.bf16.mxu0 %v2377
    %6429 = vmatpush1.bf16.msra.mxu0 %v2376
    %6430 = vmatprep.subr.bf16.mxu0 %v2389
    %6431 = vmatpush1.bf16.msra.mxu0 %v2388
    %6432 = vmatprep.subr.bf16.mxu0 %v2401
    %6433 = vmatpush1.bf16.msra.mxu0 %v2400
    %6434 = vmatprep.mubr.bf16.mxu0 %v6154
    %6435 = vmatmul.mubr.bf16.gmra.mrb[0].mxu0 %v6153
    %v6436 = vpop.f32.mrb[0].mxu0
    %v6437 = vadd.f32 0.0, %v6436
    %v6438 = vpop.f32.mrb[0].mxu0
    %v6439 = vadd.f32 0.0, %v6438
    %v6440 = vpop.f32.mrb[0].mxu0
    %v6441 = vpop.f32.mrb[0].mxu0
    %6442 = vdwg.mxu0
    %6443 = vmatprep.subr.bf16.mxu0 %v2413
    %6444 = vmatpush1.bf16.msra.mxu0 %v2412
    %6445 = vmatprep.subr.bf16.mxu0 %v2425
    %6446 = vmatpush1.bf16.msra.mxu0 %v2424
    %6447 = vmatprep.subr.bf16.mxu0 %v2437
    %6448 = vmatpush1.bf16.msra.mxu0 %v2436
    %6449 = vmatprep.subr.bf16.mxu0 %v2449
    %6450 = vmatpush1.bf16.msra.mxu0 %v2448
    %6451 = vmatprep.subr.bf16.mxu0 %v2461
    %6452 = vmatpush1.bf16.msra.mxu0 %v2460
    %6453 = vmatprep.subr.bf16.mxu0 %v2473
    %6454 = vmatpush1.bf16.msra.mxu0 %v2472
    %6455 = vmatprep.subr.bf16.mxu0 %v2485
    %6456 = vmatpush1.bf16.msra.mxu0 %v2484
    %6457 = vmatprep.subr.bf16.mxu0 %v2497
    %6458 = vmatpush1.bf16.msra.mxu0 %v2496
    %6459 = vmatprep.subr.bf16.mxu0 0
    %6460 = vmatpush1.bf16.msra.mxu0 0
    %6461 = vmatprep.subr.bf16.mxu0 0
    %6462 = vmatpush1.bf16.msra.mxu0 0
    %6463 = vmatprep.subr.bf16.mxu0 0
    %6464 = vmatpush1.bf16.msra.mxu0 0
    %6465 = vmatprep.subr.bf16.mxu0 0
    %6466 = vmatpush1.bf16.msra.mxu0 0
    %6467 = vmatprep.subr.bf16.mxu0 0
    %6468 = vmatpush1.bf16.msra.mxu0 0
    %6469 = vmatprep.subr.bf16.mxu0 0
    %6470 = vmatpush1.bf16.msra.mxu0 0
    %6471 = vmatprep.subr.bf16.mxu0 0
    %6472 = vmatpush1.bf16.msra.mxu0 0
    %6473 = vmatprep.subr.bf16.mxu0 0
    %6474 = vmatpush1.bf16.msra.mxu0 0
    %6475 = vmatprep.mubr.bf16.mxu0 0
    %6476 = vmatmul.mubr.bf16.gmra.mrb[0].mxu0 %v6155
    %v6477 = vpop.f32.mrb[0].mxu0
    %v6478 = vadd.f32 %v6437, %v6477
    %v6479 = vpop.f32.mrb[0].mxu0
    %v6480 = vadd.f32 %v6439, %v6479
    %v6481 = vpop.f32.mrb[0].mxu0
    %v6482 = vpop.f32.mrb[0].mxu0
    %6483 = vdwg.mxu0
    %6484 = vmatprep.subr.bf16.mxu0 %v2223
    %6485 = vmatpush1.bf16.msra.mxu0 %v2222
    %6486 = vmatprep.subr.bf16.mxu0 %v2235
    %6487 = vmatpush1.bf16.msra.mxu0 %v2234
    %6488 = vmatprep.subr.bf16.mxu0 %v2247
    %6489 = vmatpush1.bf16.msra.mxu0 %v2246
    %6490 = vmatprep.subr.bf16.mxu0 %v2259
    %6491 = vmatpush1.bf16.msra.mxu0 %v2258
    %6492 = vmatprep.subr.bf16.mxu0 %v2271
    %6493 = vmatpush1.bf16.msra.mxu0 %v2270
    %6494 = vmatprep.subr.bf16.mxu0 %v2283
    %6495 = vmatpush1.bf16.msra.mxu0 %v2282
    %6496 = vmatprep.subr.bf16.mxu0 %v2295
    %6497 = vmatpush1.bf16.msra.mxu0 %v2294
    %6498 = vmatprep.subr.bf16.mxu0 %v2307
    %6499 = vmatpush1.bf16.msra.mxu0 %v2306
    %6500 = vmatprep.subr.bf16.mxu0 %v2319
    %6501 = vmatpush1.bf16.msra.mxu0 %v2318
    %6502 = vmatprep.subr.bf16.mxu0 %v2331
    %6503 = vmatpush1.bf16.msra.mxu0 %v2330
    %6504 = vmatprep.subr.bf16.mxu0 %v2343
    %6505 = vmatpush1.bf16.msra.mxu0 %v2342
    %6506 = vmatprep.subr.bf16.mxu0 %v2355
    %6507 = vmatpush1.bf16.msra.mxu0 %v2354
    %6508 = vmatprep.subr.bf16.mxu0 %v2367
    %6509 = vmatpush1.bf16.msra.mxu0 %v2366
    %6510 = vmatprep.subr.bf16.mxu0 %v2379
    %6511 = vmatpush1.bf16.msra.mxu0 %v2378
    %6512 = vmatprep.subr.bf16.mxu0 %v2391
    %6513 = vmatpush1.bf16.msra.mxu0 %v2390
    %6514 = vmatprep.subr.bf16.mxu0 %v2403
    %6515 = vmatpush1.bf16.msra.mxu0 %v2402
    %6516 = vmatprep.mubr.bf16.mxu0 %v6154
    %6517 = vmatmul.mubr.bf16.gmra.mrb[0].mxu0 %v6153
    %v6518 = vpop.f32.mrb[0].mxu0
    %v6519 = vadd.f32 0.0, %v6518
    %v6520 = vpop.f32.mrb[0].mxu0
    %v6521 = vadd.f32 0.0, %v6520
    %v6522 = vpop.f32.mrb[0].mxu0
    %v6523 = vpop.f32.mrb[0].mxu0
    %6524 = vdwg.mxu0
    %6525 = vmatprep.subr.bf16.mxu0 %v2415
    %6526 = vmatpush1.bf16.msra.mxu0 %v2414
    %6527 = vmatprep.subr.bf16.mxu0 %v2427
    %6528 = vmatpush1.bf16.msra.mxu0 %v2426
    %6529 = vmatprep.subr.bf16.mxu0 %v2439
    %6530 = vmatpush1.bf16.msra.mxu0 %v2438
    %6531 = vmatprep.subr.bf16.mxu0 %v2451
    %6532 = vmatpush1.bf16.msra.mxu0 %v2450
    %6533 = vmatprep.subr.bf16.mxu0 %v2463
    %6534 = vmatpush1.bf16.msra.mxu0 %v2462
    %6535 = vmatprep.subr.bf16.mxu0 %v2475
    %6536 = vmatpush1.bf16.msra.mxu0 %v2474
    %6537 = vmatprep.subr.bf16.mxu0 %v2487
    %6538 = vmatpush1.bf16.msra.mxu0 %v2486
    %6539 = vmatprep.subr.bf16.mxu0 %v2499
    %6540 = vmatpush1.bf16.msra.mxu0 %v2498
    %6541 = vmatprep.subr.bf16.mxu0 0
    %6542 = vmatpush1.bf16.msra.mxu0 0
    %6543 = vmatprep.subr.bf16.mxu0 0
    %6544 = vmatpush1.bf16.msra.mxu0 0
    %6545 = vmatprep.subr.bf16.mxu0 0
    %6546 = vmatpush1.bf16.msra.mxu0 0
    %6547 = vmatprep.subr.bf16.mxu0 0
    %6548 = vmatpush1.bf16.msra.mxu0 0
    %6549 = vmatprep.subr.bf16.mxu0 0
    %6550 = vmatpush1.bf16.msra.mxu0 0
    %6551 = vmatprep.subr.bf16.mxu0 0
    %6552 = vmatpush1.bf16.msra.mxu0 0
    %6553 = vmatprep.subr.bf16.mxu0 0
    %6554 = vmatpush1.bf16.msra.mxu0 0
    %6555 = vmatprep.subr.bf16.mxu0 0
    %6556 = vmatpush1.bf16.msra.mxu0 0
    %6557 = vmatprep.mubr.bf16.mxu0 0
    %6558 = vmatmul.mubr.bf16.gmra.mrb[0].mxu0 %v6155
    %v6559 = vpop.f32.mrb[0].mxu0
    %v6560 = vadd.f32 %v6519, %v6559
    %v6561 = vpop.f32.mrb[0].mxu0
    %v6562 = vadd.f32 %v6521, %v6561
    %v6563 = vpop.f32.mrb[0].mxu0
    %v6564 = vpop.f32.mrb[0].mxu0
    %6565 = vdwg.mxu0
    %6566 = vmatprep.subr.bf16.mxu0 %v2225
    %6567 = vmatpush1.bf16.msra.mxu0 %v2224
    %6568 = vmatprep.subr.bf16.mxu0 %v2237
    %6569 = vmatpush1.bf16.msra.mxu0 %v2236
    %6570 = vmatprep.subr.bf16.mxu0 %v2249
    %6571 = vmatpush1.bf16.msra.mxu0 %v2248
    %6572 = vmatprep.subr.bf16.mxu0 %v2261
    %6573 = vmatpush1.bf16.msra.mxu0 %v2260
    %6574 = vmatprep.subr.bf16.mxu0 %v2273
    %6575 = vmatpush1.bf16.msra.mxu0 %v2272
    %6576 = vmatprep.subr.bf16.mxu0 %v2285
    %6577 = vmatpush1.bf16.msra.mxu0 %v2284
    %6578 = vmatprep.subr.bf16.mxu0 %v2297
    %6579 = vmatpush1.bf16.msra.mxu0 %v2296
    %6580 = vmatprep.subr.bf16.mxu0 %v2309
    %6581 = vmatpush1.bf16.msra.mxu0 %v2308
    %6582 = vmatprep.subr.bf16.mxu0 %v2321
    %6583 = vmatpush1.bf16.msra.mxu0 %v2320
    %6584 = vmatprep.subr.bf16.mxu0 %v2333
    %6585 = vmatpush1.bf16.msra.mxu0 %v2332
    %6586 = vmatprep.subr.bf16.mxu0 %v2345
    %6587 = vmatpush1.bf16.msra.mxu0 %v2344
    %6588 = vmatprep.subr.bf16.mxu0 %v2357
    %6589 = vmatpush1.bf16.msra.mxu0 %v2356
    %6590 = vmatprep.subr.bf16.mxu0 %v2369
    %6591 = vmatpush1.bf16.msra.mxu0 %v2368
    %6592 = vmatprep.subr.bf16.mxu0 %v2381
    %6593 = vmatpush1.bf16.msra.mxu0 %v2380
    %6594 = vmatprep.subr.bf16.mxu0 %v2393
    %6595 = vmatpush1.bf16.msra.mxu0 %v2392
    %6596 = vmatprep.subr.bf16.mxu0 %v2405
    %6597 = vmatpush1.bf16.msra.mxu0 %v2404
    %6598 = vmatprep.mubr.bf16.mxu0 %v6154
    %6599 = vmatmul.mubr.bf16.gmra.mrb[0].mxu0 %v6153
    %v6600 = vpop.f32.mrb[0].mxu0
    %v6601 = vadd.f32 0.0, %v6600
    %v6602 = vpop.f32.mrb[0].mxu0
    %v6603 = vadd.f32 0.0, %v6602
    %v6604 = vpop.f32.mrb[0].mxu0
    %v6605 = vpop.f32.mrb[0].mxu0
    %6606 = vdwg.mxu0
    %6607 = vmatprep.subr.bf16.mxu0 %v2417
    %6608 = vmatpush1.bf16.msra.mxu0 %v2416
    %6609 = vmatprep.subr.bf16.mxu0 %v2429
    %6610 = vmatpush1.bf16.msra.mxu0 %v2428
    %6611 = vmatprep.subr.bf16.mxu0 %v2441
    %6612 = vmatpush1.bf16.msra.mxu0 %v2440
    %6613 = vmatprep.subr.bf16.mxu0 %v2453
    %6614 = vmatpush1.bf16.msra.mxu0 %v2452
    %6615 = vmatprep.subr.bf16.mxu0 %v2465
    %6616 = vmatpush1.bf16.msra.mxu0 %v2464
    %6617 = vmatprep.subr.bf16.mxu0 %v2477
    %6618 = vmatpush1.bf16.msra.mxu0 %v2476
    %6619 = vmatprep.subr.bf16.mxu0 %v2489
    %6620 = vmatpush1.bf16.msra.mxu0 %v2488
    %6621 = vmatprep.subr.bf16.mxu0 %v2501
    %6622 = vmatpush1.bf16.msra.mxu0 %v2500
    %6623 = vmatprep.subr.bf16.mxu0 0
    %6624 = vmatpush1.bf16.msra.mxu0 0
    %6625 = vmatprep.subr.bf16.mxu0 0
    %6626 = vmatpush1.bf16.msra.mxu0 0
    %6627 = vmatprep.subr.bf16.mxu0 0
    %6628 = vmatpush1.bf16.msra.mxu0 0
    %6629 = vmatprep.subr.bf16.mxu0 0
    %6630 = vmatpush1.bf16.msra.mxu0 0
    %6631 = vmatprep.subr.bf16.mxu0 0
    %6632 = vmatpush1.bf16.msra.mxu0 0
    %6633 = vmatprep.subr.bf16.mxu0 0
    %6634 = vmatpush1.bf16.msra.mxu0 0
    %6635 = vmatprep.subr.bf16.mxu0 0
    %6636 = vmatpush1.bf16.msra.mxu0 0
    %6637 = vmatprep.subr.bf16.mxu0 0
    %6638 = vmatpush1.bf16.msra.mxu0 0
    %6639 = vmatprep.mubr.bf16.mxu0 0
    %6640 = vmatmul.mubr.bf16.gmra.mrb[0].mxu0 %v6155
    %v6641 = vpop.f32.mrb[0].mxu0
    %v6642 = vadd.f32 %v6601, %v6641
    %v6643 = vpop.f32.mrb[0].mxu0
    %v6644 = vadd.f32 %v6603, %v6643
    %v6645 = vpop.f32.mrb[0].mxu0
    %v6646 = vpop.f32.mrb[0].mxu0
    %6647 = vdwg.mxu0
    %v6648 = vadd.f32 %v680, %v6232
    %v6649 = vadd.f32 %v682, %v6234
    %v6650 = vadd.f32 %v753, %v6314
    %v6651 = vadd.f32 %v755, %v6316
    %v6652 = vadd.f32 %v826, %v6396
    %v6653 = vadd.f32 %v828, %v6398
    %v6654 = vadd.f32 %v899, %v6478
    %v6655 = vadd.f32 %v901, %v6480
    %v6656 = vadd.f32 %v972, %v6560
    %v6657 = vadd.f32 %v974, %v6562
    %v6658 = vadd.f32 %v1045, %v6642
    %v6659 = vadd.f32 %v1047, %v6644
    %v6660 = vmul.f32 %v6648, 0.5
    %v6661 = vmul.f32 %v6649, 0.5
    %v6662 = vmul.f32 %v6650, 0.5
    %v6663 = vtanh.pop %v6660
    %v6664 = vtanh.pop %v6661
    %v6665 = vtanh.pop %v6662
    %v6666 = vadd.f32 %v6663, 1.0
    %v6667 = vadd.f32 %v6664, 1.0
    %v6668 = vadd.f32 %v6665, 1.0
    %v6669 = vmul.f32 %v6666, 0.5
    %v6670 = vmul.f32 %v6667, 0.5
    %v6671 = vmul.f32 %v6668, 0.5
    %v6672 = vmul.f32 %v6651, 0.5
    %v6673 = vmul.f32 %v6652, 0.5
    %v6674 = vmul.f32 %v6653, 0.5
    %v6675 = vtanh.pop %v6672
    %v6676 = vtanh.pop %v6673
    %v6677 = vtanh.pop %v6674
    %v6678 = vadd.f32 %v6675, 1.0
    %v6679 = vadd.f32 %v6676, 1.0
    %v6680 = vadd.f32 %v6677, 1.0
    %v6681 = vmul.f32 %v6678, 0.5
    %v6682 = vmul.f32 %v6679, 0.5
    %v6683 = vmul.f32 %v6680, 0.5
    %v6684 = vtanh.pop %v6654
    %v6685 = vtanh.pop %v6655
    %v6686 = vtanh.pop %v6656
    %v6687 = vmul.f32 %v6657, 0.5
    %v6688 = vmul.f32 %v6658, 0.5
    %v6689 = vmul.f32 %v6659, 0.5
    %v6690 = vtanh.pop %v6687
    %v6691 = vtanh.pop %v6688
    %v6692 = vtanh.pop %v6689
    %v6693 = vadd.f32 %v6690, 1.0
    %v6694 = vadd.f32 %v6691, 1.0
    %v6695 = vadd.f32 %v6692, 1.0
    %v6696 = vmul.f32 %v6693, 0.5
    %v6697 = vmul.f32 %v6694, 0.5
    %v6698 = vmul.f32 %v6695, 0.5
    %v6699 = vmul.f32 %v6681, %v6144
    %v6700 = vmul.f32 %v6682, %v6145
    %v6701 = vmul.f32 %v6683, %v6146
    %v6702 = vmul.f32 %v6669, %v6684
    %v6703 = vmul.f32 %v6670, %v6685
    %v6704 = vmul.f32 %v6671, %v6686
    %v6705 = vadd.f32 %v6699, %v6702
    %v6706 = vadd.f32 %v6700, %v6703
    %v6707 = vadd.f32 %v6701, %v6704
    %v6708 = vtanh.pop %v6705
    %v6709 = vtanh.pop %v6706
    %v6710 = vtanh.pop %v6707
    %v6711 = vmul.f32 %v6696, %v6708
    %v6712 = vmul.f32 %v6697, %v6709
    %v6713 = vmul.f32 %v6698, %v6710
    %v6714 = vpack.c.bf16 %v6711, %v6711
    %v6715 = vpack.c.bf16 %v6712, %v6712
    %v6716 = vpack.c.bf16 %v6713, %v6713
    %6717 = vmatprep.subr.bf16.mxu0 %v2215
    %6718 = vmatpush1.bf16.msra.mxu0 %v2214
    %6719 = vmatprep.subr.bf16.mxu0 %v2227
    %6720 = vmatpush1.bf16.msra.mxu0 %v2226
    %6721 = vmatprep.subr.bf16.mxu0 %v2239
    %6722 = vmatpush1.bf16.msra.mxu0 %v2238
    %6723 = vmatprep.subr.bf16.mxu0 %v2251
    %6724 = vmatpush1.bf16.msra.mxu0 %v2250
    %6725 = vmatprep.subr.bf16.mxu0 %v2263
    %6726 = vmatpush1.bf16.msra.mxu0 %v2262
    %6727 = vmatprep.subr.bf16.mxu0 %v2275
    %6728 = vmatpush1.bf16.msra.mxu0 %v2274
    %6729 = vmatprep.subr.bf16.mxu0 %v2287
    %6730 = vmatpush1.bf16.msra.mxu0 %v2286
    %6731 = vmatprep.subr.bf16.mxu0 %v2299
    %6732 = vmatpush1.bf16.msra.mxu0 %v2298
    %6733 = vmatprep.subr.bf16.mxu0 %v2311
    %6734 = vmatpush1.bf16.msra.mxu0 %v2310
    %6735 = vmatprep.subr.bf16.mxu0 %v2323
    %6736 = vmatpush1.bf16.msra.mxu0 %v2322
    %6737 = vmatprep.subr.bf16.mxu0 %v2335
    %6738 = vmatpush1.bf16.msra.mxu0 %v2334
    %6739 = vmatprep.subr.bf16.mxu0 %v2347
    %6740 = vmatpush1.bf16.msra.mxu0 %v2346
    %6741 = vmatprep.subr.bf16.mxu0 %v2359
    %6742 = vmatpush1.bf16.msra.mxu0 %v2358
    %6743 = vmatprep.subr.bf16.mxu0 %v2371
    %6744 = vmatpush1.bf16.msra.mxu0 %v2370
    %6745 = vmatprep.subr.bf16.mxu0 %v2383
    %6746 = vmatpush1.bf16.msra.mxu0 %v2382
    %6747 = vmatprep.subr.bf16.mxu0 %v2395
    %6748 = vmatpush1.bf16.msra.mxu0 %v2394
    %6749 = vmatprep.mubr.bf16.mxu0 %v6715
    %6750 = vmatmul.mubr.bf16.gmra.mrb[0].mxu0 %v6714
    %v6751 = vpop.f32.mrb[0].mxu0
    %v6752 = vadd.f32 0.0, %v6751
    %v6753 = vpop.f32.mrb[0].mxu0
    %v6754 = vadd.f32 0.0, %v6753
    %v6755 = vpop.f32.mrb[0].mxu0
    %v6756 = vpop.f32.mrb[0].mxu0
    %6757 = vdwg.mxu0
    %6758 = vmatprep.subr.bf16.mxu0 %v2407
    %6759 = vmatpush1.bf16.msra.mxu0 %v2406
    %6760 = vmatprep.subr.bf16.mxu0 %v2419
    %6761 = vmatpush1.bf16.msra.mxu0 %v2418
    %6762 = vmatprep.subr.bf16.mxu0 %v2431
    %6763 = vmatpush1.bf16.msra.mxu0 %v2430
    %6764 = vmatprep.subr.bf16.mxu0 %v2443
    %6765 = vmatpush1.bf16.msra.mxu0 %v2442
    %6766 = vmatprep.subr.bf16.mxu0 %v2455
    %6767 = vmatpush1.bf16.msra.mxu0 %v2454
    %6768 = vmatprep.subr.bf16.mxu0 %v2467
    %6769 = vmatpush1.bf16.msra.mxu0 %v2466
    %6770 = vmatprep.subr.bf16.mxu0 %v2479
    %6771 = vmatpush1.bf16.msra.mxu0 %v2478
    %6772 = vmatprep.subr.bf16.mxu0 %v2491
    %6773 = vmatpush1.bf16.msra.mxu0 %v2490
    %6774 = vmatprep.subr.bf16.mxu0 0
    %6775 = vmatpush1.bf16.msra.mxu0 0
    %6776 = vmatprep.subr.bf16.mxu0 0
    %6777 = vmatpush1.bf16.msra.mxu0 0
    %6778 = vmatprep.subr.bf16.mxu0 0
    %6779 = vmatpush1.bf16.msra.mxu0 0
    %6780 = vmatprep.subr.bf16.mxu0 0
    %6781 = vmatpush1.bf16.msra.mxu0 0
    %6782 = vmatprep.subr.bf16.mxu0 0
    %6783 = vmatpush1.bf16.msra.mxu0 0
    %6784 = vmatprep.subr.bf16.mxu0 0
    %6785 = vmatpush1.bf16.msra.mxu0 0
    %6786 = vmatprep.subr.bf16.mxu0 0
    %6787 = vmatpush1.bf16.msra.mxu0 0
    %6788 = vmatprep.subr.bf16.mxu0 0
    %6789 = vmatpush1.bf16.msra.mxu0 0
    %6790 = vmatprep.mubr.bf16.mxu0 0
    %6791 = vmatmul.mubr.bf16.gmra.mrb[0].mxu0 %v6716
    %v6792 = vpop.f32.mrb[0].mxu0
    %v6793 = vadd.f32 %v6752, %v6792
    %v6794 = vpop.f32.mrb[0].mxu0
    %v6795 = vadd.f32 %v6754, %v6794
    %v6796 = vpop.f32.mrb[0].mxu0
    %v6797 = vpop.f32.mrb[0].mxu0
    %6798 = vdwg.mxu0
    %6799 = vmatprep.subr.bf16.mxu0 %v2217
    %6800 = vmatpush1.bf16.msra.mxu0 %v2216
    %6801 = vmatprep.subr.bf16.mxu0 %v2229
    %6802 = vmatpush1.bf16.msra.mxu0 %v2228
    %6803 = vmatprep.subr.bf16.mxu0 %v2241
    %6804 = vmatpush1.bf16.msra.mxu0 %v2240
    %6805 = vmatprep.subr.bf16.mxu0 %v2253
    %6806 = vmatpush1.bf16.msra.mxu0 %v2252
    %6807 = vmatprep.subr.bf16.mxu0 %v2265
    %6808 = vmatpush1.bf16.msra.mxu0 %v2264
    %6809 = vmatprep.subr.bf16.mxu0 %v2277
    %6810 = vmatpush1.bf16.msra.mxu0 %v2276
    %6811 = vmatprep.subr.bf16.mxu0 %v2289
    %6812 = vmatpush1.bf16.msra.mxu0 %v2288
    %6813 = vmatprep.subr.bf16.mxu0 %v2301
    %6814 = vmatpush1.bf16.msra.mxu0 %v2300
    %6815 = vmatprep.subr.bf16.mxu0 %v2313
    %6816 = vmatpush1.bf16.msra.mxu0 %v2312
    %6817 = vmatprep.subr.bf16.mxu0 %v2325
    %6818 = vmatpush1.bf16.msra.mxu0 %v2324
    %6819 = vmatprep.subr.bf16.mxu0 %v2337
    %6820 = vmatpush1.bf16.msra.mxu0 %v2336
    %6821 = vmatprep.subr.bf16.mxu0 %v2349
    %6822 = vmatpush1.bf16.msra.mxu0 %v2348
    %6823 = vmatprep.subr.bf16.mxu0 %v2361
    %6824 = vmatpush1.bf16.msra.mxu0 %v2360
    %6825 = vmatprep.subr.bf16.mxu0 %v2373
    %6826 = vmatpush1.bf16.msra.mxu0 %v2372
    %6827 = vmatprep.subr.bf16.mxu0 %v2385
    %6828 = vmatpush1.bf16.msra.mxu0 %v2384
    %6829 = vmatprep.subr.bf16.mxu0 %v2397
    %6830 = vmatpush1.bf16.msra.mxu0 %v2396
    %6831 = vmatprep.mubr.bf16.mxu0 %v6715
    %6832 = vmatmul.mubr.bf16.gmra.mrb[0].mxu0 %v6714
    %v6833 = vpop.f32.mrb[0].mxu0
    %v6834 = vadd.f32 0.0, %v6833
    %v6835 = vpop.f32.mrb[0].mxu0
    %v6836 = vadd.f32 0.0, %v6835
    %v6837 = vpop.f32.mrb[0].mxu0
    %v6838 = vpop.f32.mrb[0].mxu0
    %6839 = vdwg.mxu0
    %6840 = vmatprep.subr.bf16.mxu0 %v2409
    %6841 = vmatpush1.bf16.msra.mxu0 %v2408
    %6842 = vmatprep.subr.bf16.mxu0 %v2421
    %6843 = vmatpush1.bf16.msra.mxu0 %v2420
    %6844 = vmatprep.subr.bf16.mxu0 %v2433
    %6845 = vmatpush1.bf16.msra.mxu0 %v2432
    %6846 = vmatprep.subr.bf16.mxu0 %v2445
    %6847 = vmatpush1.bf16.msra.mxu0 %v2444
    %6848 = vmatprep.subr.bf16.mxu0 %v2457
    %6849 = vmatpush1.bf16.msra.mxu0 %v2456
    %6850 = vmatprep.subr.bf16.mxu0 %v2469
    %6851 = vmatpush1.bf16.msra.mxu0 %v2468
    %6852 = vmatprep.subr.bf16.mxu0 %v2481
    %6853 = vmatpush1.bf16.msra.mxu0 %v2480
    %6854 = vmatprep.subr.bf16.mxu0 %v2493
    %6855 = vmatpush1.bf16.msra.mxu0 %v2492
    %6856 = vmatprep.subr.bf16.mxu0 0
    %6857 = vmatpush1.bf16.msra.mxu0 0
    %6858 = vmatprep.subr.bf16.mxu0 0
    %6859 = vmatpush1.bf16.msra.mxu0 0
    %6860 = vmatprep.subr.bf16.mxu0 0
    %6861 = vmatpush1.bf16.msra.mxu0 0
    %6862 = vmatprep.subr.bf16.mxu0 0
    %6863 = vmatpush1.bf16.msra.mxu0 0
    %6864 = vmatprep.subr.bf16.mxu0 0
    %6865 = vmatpush1.bf16.msra.mxu0 0
    %6866 = vmatprep.subr.bf16.mxu0 0
    %6867 = vmatpush1.bf16.msra.mxu0 0
    %6868 = vmatprep.subr.bf16.mxu0 0
    %6869 = vmatpush1.bf16.msra.mxu0 0
    %6870 = vmatprep.subr.bf16.mxu0 0
    %6871 = vmatpush1.bf16.msra.mxu0 0
    %6872 = vmatprep.mubr.bf16.mxu0 0
    %6873 = vmatmul.mubr.bf16.gmra.mrb[0].mxu0 %v6716
    %v6874 = vpop.f32.mrb[0].mxu0
    %v6875 = vadd.f32 %v6834, %v6874
    %v6876 = vpop.f32.mrb[0].mxu0
    %v6877 = vadd.f32 %v6836, %v6876
    %v6878 = vpop.f32.mrb[0].mxu0
    %v6879 = vpop.f32.mrb[0].mxu0
    %6880 = vdwg.mxu0
    %6881 = vmatprep.subr.bf16.mxu0 %v2219
    %6882 = vmatpush1.bf16.msra.mxu0 %v2218
    %6883 = vmatprep.subr.bf16.mxu0 %v2231
    %6884 = vmatpush1.bf16.msra.mxu0 %v2230
    %6885 = vmatprep.subr.bf16.mxu0 %v2243
    %6886 = vmatpush1.bf16.msra.mxu0 %v2242
    %6887 = vmatprep.subr.bf16.mxu0 %v2255
    %6888 = vmatpush1.bf16.msra.mxu0 %v2254
    %6889 = vmatprep.subr.bf16.mxu0 %v2267
    %6890 = vmatpush1.bf16.msra.mxu0 %v2266
    %6891 = vmatprep.subr.bf16.mxu0 %v2279
    %6892 = vmatpush1.bf16.msra.mxu0 %v2278
    %6893 = vmatprep.subr.bf16.mxu0 %v2291
    %6894 = vmatpush1.bf16.msra.mxu0 %v2290
    %6895 = vmatprep.subr.bf16.mxu0 %v2303
    %6896 = vmatpush1.bf16.msra.mxu0 %v2302
    %6897 = vmatprep.subr.bf16.mxu0 %v2315
    %6898 = vmatpush1.bf16.msra.mxu0 %v2314
    %6899 = vmatprep.subr.bf16.mxu0 %v2327
    %6900 = vmatpush1.bf16.msra.mxu0 %v2326
    %6901 = vmatprep.subr.bf16.mxu0 %v2339
    %6902 = vmatpush1.bf16.msra.mxu0 %v2338
    %6903 = vmatprep.subr.bf16.mxu0 %v2351
    %6904 = vmatpush1.bf16.msra.mxu0 %v2350
    %6905 = vmatprep.subr.bf16.mxu0 %v2363
    %6906 = vmatpush1.bf16.msra.mxu0 %v2362
    %6907 = vmatprep.subr.bf16.mxu0 %v2375
    %6908 = vmatpush1.bf16.msra.mxu0 %v2374
    %6909 = vmatprep.subr.bf16.mxu0 %v2387
    %6910 = vmatpush1.bf16.msra.mxu0 %v2386
    %6911 = vmatprep.subr.bf16.mxu0 %v2399
    %6912 = vmatpush1.bf16.msra.mxu0 %v2398
    %6913 = vmatprep.mubr.bf16.mxu0 %v6715
    %6914 = vmatmul.mubr.bf16.gmra.mrb[0].mxu0 %v6714
    %v6915 = vpop.f32.mrb[0].mxu0
    %v6916 = vadd.f32 0.0, %v6915
    %v6917 = vpop.f32.mrb[0].mxu0
    %v6918 = vadd.f32 0.0, %v6917
    %v6919 = vpop.f32.mrb[0].mxu0
    %v6920 = vpop.f32.mrb[0].mxu0
    %6921 = vdwg.mxu0
    %6922 = vmatprep.subr.bf16.mxu0 %v2411
    %6923 = vmatpush1.bf16.msra.mxu0 %v2410
    %6924 = vmatprep.subr.bf16.mxu0 %v2423
    %6925 = vmatpush1.bf16.msra.mxu0 %v2422
    %6926 = vmatprep.subr.bf16.mxu0 %v2435
    %6927 = vmatpush1.bf16.msra.mxu0 %v2434
    %6928 = vmatprep.subr.bf16.mxu0 %v2447
    %6929 = vmatpush1.bf16.msra.mxu0 %v2446
    %6930 = vmatprep.subr.bf16.mxu0 %v2459
    %6931 = vmatpush1.bf16.msra.mxu0 %v2458
    %6932 = vmatprep.subr.bf16.mxu0 %v2471
    %6933 = vmatpush1.bf16.msra.mxu0 %v2470
    %6934 = vmatprep.subr.bf16.mxu0 %v2483
    %6935 = vmatpush1.bf16.msra.mxu0 %v2482
    %6936 = vmatprep.subr.bf16.mxu0 %v2495
    %6937 = vmatpush1.bf16.msra.mxu0 %v2494
    %6938 = vmatprep.subr.bf16.mxu0 0
    %6939 = vmatpush1.bf16.msra.mxu0 0
    %6940 = vmatprep.subr.bf16.mxu0 0
    %6941 = vmatpush1.bf16.msra.mxu0 0
    %6942 = vmatprep.subr.bf16.mxu0 0
    %6943 = vmatpush1.bf16.msra.mxu0 0
    %6944 = vmatprep.subr.bf16.mxu0 0
    %6945 = vmatpush1.bf16.msra.mxu0 0
    %6946 = vmatprep.subr.bf16.mxu0 0
    %6947 = vmatpush1.bf16.msra.mxu0 0
    %6948 = vmatprep.subr.bf16.mxu0 0
    %6949 = vmatpush1.bf16.msra.mxu0 0
    %6950 = vmatprep.subr.bf16.mxu0 0
    %6951 = vmatpush1.bf16.msra.mxu0 0
    %6952 = vmatprep.subr.bf16.mxu0 0
    %6953 = vmatpush1.bf16.msra.mxu0 0
    %6954 = vmatprep.mubr.bf16.mxu0 0
    %6955 = vmatmul.mubr.bf16.gmra.mrb[0].mxu0 %v6716
    %v6956 = vpop.f32.mrb[0].mxu0
    %v6957 = vadd.f32 %v6916, %v6956
    %v6958 = vpop.f32.mrb[0].mxu0
    %v6959 = vadd.f32 %v6918, %v6958
    %v6960 = vpop.f32.mrb[0].mxu0
    %v6961 = vpop.f32.mrb[0].mxu0
    %6962 = vdwg.mxu0
    %6963 = vmatprep.subr.bf16.mxu0 %v2221
    %6964 = vmatpush1.bf16.msra.mxu0 %v2220
    %6965 = vmatprep.subr.bf16.mxu0 %v2233
    %6966 = vmatpush1.bf16.msra.mxu0 %v2232
    %6967 = vmatprep.subr.bf16.mxu0 %v2245
    %6968 = vmatpush1.bf16.msra.mxu0 %v2244
    %6969 = vmatprep.subr.bf16.mxu0 %v2257
    %6970 = vmatpush1.bf16.msra.mxu0 %v2256
    %6971 = vmatprep.subr.bf16.mxu0 %v2269
    %6972 = vmatpush1.bf16.msra.mxu0 %v2268
    %6973 = vmatprep.subr.bf16.mxu0 %v2281
    %6974 = vmatpush1.bf16.msra.mxu0 %v2280
    %6975 = vmatprep.subr.bf16.mxu0 %v2293
    %6976 = vmatpush1.bf16.msra.mxu0 %v2292
    %6977 = vmatprep.subr.bf16.mxu0 %v2305
    %6978 = vmatpush1.bf16.msra.mxu0 %v2304
    %6979 = vmatprep.subr.bf16.mxu0 %v2317
    %6980 = vmatpush1.bf16.msra.mxu0 %v2316
    %6981 = vmatprep.subr.bf16.mxu0 %v2329
    %6982 = vmatpush1.bf16.msra.mxu0 %v2328
    %6983 = vmatprep.subr.bf16.mxu0 %v2341
    %6984 = vmatpush1.bf16.msra.mxu0 %v2340
    %6985 = vmatprep.subr.bf16.mxu0 %v2353
    %6986 = vmatpush1.bf16.msra.mxu0 %v2352
    %6987 = vmatprep.subr.bf16.mxu0 %v2365
    %6988 = vmatpush1.bf16.msra.mxu0 %v2364
    %6989 = vmatprep.subr.bf16.mxu0 %v2377
    %6990 = vmatpush1.bf16.msra.mxu0 %v2376
    %6991 = vmatprep.subr.bf16.mxu0 %v2389
    %6992 = vmatpush1.bf16.msra.mxu0 %v2388
    %6993 = vmatprep.subr.bf16.mxu0 %v2401
    %6994 = vmatpush1.bf16.msra.mxu0 %v2400
    %6995 = vmatprep.mubr.bf16.mxu0 %v6715
    %6996 = vmatmul.mubr.bf16.gmra.mrb[0].mxu0 %v6714
    %v6997 = vpop.f32.mrb[0].mxu0
    %v6998 = vadd.f32 0.0, %v6997
    %v6999 = vpop.f32.mrb[0].mxu0
    %v7000 = vadd.f32 0.0, %v6999
    %v7001 = vpop.f32.mrb[0].mxu0
    %v7002 = vpop.f32.mrb[0].mxu0
    %7003 = vdwg.mxu0
    %7004 = vmatprep.subr.bf16.mxu0 %v2413
    %7005 = vmatpush1.bf16.msra.mxu0 %v2412
    %7006 = vmatprep.subr.bf16.mxu0 %v2425
    %7007 = vmatpush1.bf16.msra.mxu0 %v2424
    %7008 = vmatprep.subr.bf16.mxu0 %v2437
    %7009 = vmatpush1.bf16.msra.mxu0 %v2436
    %7010 = vmatprep.subr.bf16.mxu0 %v2449
    %7011 = vmatpush1.bf16.msra.mxu0 %v2448
    %7012 = vmatprep.subr.bf16.mxu0 %v2461
    %7013 = vmatpush1.bf16.msra.mxu0 %v2460
    %7014 = vmatprep.subr.bf16.mxu0 %v2473
    %7015 = vmatpush1.bf16.msra.mxu0 %v2472
    %7016 = vmatprep.subr.bf16.mxu0 %v2485
    %7017 = vmatpush1.bf16.msra.mxu0 %v2484
    %7018 = vmatprep.subr.bf16.mxu0 %v2497
    %7019 = vmatpush1.bf16.msra.mxu0 %v2496
    %7020 = vmatprep.subr.bf16.mxu0 0
    %7021 = vmatpush1.bf16.msra.mxu0 0
    %7022 = vmatprep.subr.bf16.mxu0 0
    %7023 = vmatpush1.bf16.msra.mxu0 0
    %7024 = vmatprep.subr.bf16.mxu0 0
    %7025 = vmatpush1.bf16.msra.mxu0 0
    %7026 = vmatprep.subr.bf16.mxu0 0
    %7027 = vmatpush1.bf16.msra.mxu0 0
    %7028 = vmatprep.subr.bf16.mxu0 0
    %7029 = vmatpush1.bf16.msra.mxu0 0
    %7030 = vmatprep.subr.bf16.mxu0 0
    %7031 = vmatpush1.bf16.msra.mxu0 0
    %7032 = vmatprep.subr.bf16.mxu0 0
    %7033 = vmatpush1.bf16.msra.mxu0 0
    %7034 = vmatprep.subr.bf16.mxu0 0
    %7035 = vmatpush1.bf16.msra.mxu0 0
    %7036 = vmatprep.mubr.bf16.mxu0 0
    %7037 = vmatmul.mubr.bf16.gmra.mrb[0].mxu0 %v6716
    %v7038 = vpop.f32.mrb[0].mxu0
    %v7039 = vadd.f32 %v6998, %v7038
    %v7040 = vpop.f32.mrb[0].mxu0
    %v7041 = vadd.f32 %v7000, %v7040
    %v7042 = vpop.f32.mrb[0].mxu0
    %v7043 = vpop.f32.mrb[0].mxu0
    %7044 = vdwg.mxu0
    %7045 = vmatprep.subr.bf16.mxu0 %v2223
    %7046 = vmatpush1.bf16.msra.mxu0 %v2222
    %7047 = vmatprep.subr.bf16.mxu0 %v2235
    %7048 = vmatpush1.bf16.msra.mxu0 %v2234
    %7049 = vmatprep.subr.bf16.mxu0 %v2247
    %7050 = vmatpush1.bf16.msra.mxu0 %v2246
    %7051 = vmatprep.subr.bf16.mxu0 %v2259
    %7052 = vmatpush1.bf16.msra.mxu0 %v2258
    %7053 = vmatprep.subr.bf16.mxu0 %v2271
    %7054 = vmatpush1.bf16.msra.mxu0 %v2270
    %7055 = vmatprep.subr.bf16.mxu0 %v2283
    %7056 = vmatpush1.bf16.msra.mxu0 %v2282
    %7057 = vmatprep.subr.bf16.mxu0 %v2295
    %7058 = vmatpush1.bf16.msra.mxu0 %v2294
    %7059 = vmatprep.subr.bf16.mxu0 %v2307
    %7060 = vmatpush1.bf16.msra.mxu0 %v2306
    %7061 = vmatprep.subr.bf16.mxu0 %v2319
    %7062 = vmatpush1.bf16.msra.mxu0 %v2318
    %7063 = vmatprep.subr.bf16.mxu0 %v2331
    %7064 = vmatpush1.bf16.msra.mxu0 %v2330
    %7065 = vmatprep.subr.bf16.mxu0 %v2343
    %7066 = vmatpush1.bf16.msra.mxu0 %v2342
    %7067 = vmatprep.subr.bf16.mxu0 %v2355
    %7068 = vmatpush1.bf16.msra.mxu0 %v2354
    %7069 = vmatprep.subr.bf16.mxu0 %v2367
    %7070 = vmatpush1.bf16.msra.mxu0 %v2366
    %7071 = vmatprep.subr.bf16.mxu0 %v2379
    %7072 = vmatpush1.bf16.msra.mxu0 %v2378
    %7073 = vmatprep.subr.bf16.mxu0 %v2391
    %7074 = vmatpush1.bf16.msra.mxu0 %v2390
    %7075 = vmatprep.subr.bf16.mxu0 %v2403
    %7076 = vmatpush1.bf16.msra.mxu0 %v2402
    %7077 = vmatprep.mubr.bf16.mxu0 %v6715
    %7078 = vmatmul.mubr.bf16.gmra.mrb[0].mxu0 %v6714
    %v7079 = vpop.f32.mrb[0].mxu0
    %v7080 = vadd.f32 0.0, %v7079
    %v7081 = vpop.f32.mrb[0].mxu0
    %v7082 = vadd.f32 0.0, %v7081
    %v7083 = vpop.f32.mrb[0].mxu0
    %v7084 = vpop.f32.mrb[0].mxu0
    %7085 = vdwg.mxu0
    %7086 = vmatprep.subr.bf16.mxu0 %v2415
    %7087 = vmatpush1.bf16.msra.mxu0 %v2414
    %7088 = vmatprep.subr.bf16.mxu0 %v2427
    %7089 = vmatpush1.bf16.msra.mxu0 %v2426
    %7090 = vmatprep.subr.bf16.mxu0 %v2439
    %7091 = vmatpush1.bf16.msra.mxu0 %v2438
    %7092 = vmatprep.subr.bf16.mxu0 %v2451
    %7093 = vmatpush1.bf16.msra.mxu0 %v2450
    %7094 = vmatprep.subr.bf16.mxu0 %v2463
    %7095 = vmatpush1.bf16.msra.mxu0 %v2462
    %7096 = vmatprep.subr.bf16.mxu0 %v2475
    %7097 = vmatpush1.bf16.msra.mxu0 %v2474
    %7098 = vmatprep.subr.bf16.mxu0 %v2487
    %7099 = vmatpush1.bf16.msra.mxu0 %v2486
    %7100 = vmatprep.subr.bf16.mxu0 %v2499
    %7101 = vmatpush1.bf16.msra.mxu0 %v2498
    %7102 = vmatprep.subr.bf16.mxu0 0
    %7103 = vmatpush1.bf16.msra.mxu0 0
    %7104 = vmatprep.subr.bf16.mxu0 0
    %7105 = vmatpush1.bf16.msra.mxu0 0
    %7106 = vmatprep.subr.bf16.mxu0 0
    %7107 = vmatpush1.bf16.msra.mxu0 0
    %7108 = vmatprep.subr.bf16.mxu0 0
    %7109 = vmatpush1.bf16.msra.mxu0 0
    %7110 = vmatprep.subr.bf16.mxu0 0
    %7111 = vmatpush1.bf16.msra.mxu0 0
    %7112 = vmatprep.subr.bf16.mxu0 0
    %7113 = vmatpush1.bf16.msra.mxu0 0
    %7114 = vmatprep.subr.bf16.mxu0 0
    %7115 = vmatpush1.bf16.msra.mxu0 0
    %7116 = vmatprep.subr.bf16.mxu0 0
    %7117 = vmatpush1.bf16.msra.mxu0 0
    %7118 = vmatprep.mubr.bf16.mxu0 0
    %7119 = vmatmul.mubr.bf16.gmra.mrb[0].mxu0 %v6716
    %v7120 = vpop.f32.mrb[0].mxu0
    %v7121 = vadd.f32 %v7080, %v7120
    %v7122 = vpop.f32.mrb[0].mxu0
    %v7123 = vadd.f32 %v7082, %v7122
    %v7124 = vpop.f32.mrb[0].mxu0
    %v7125 = vpop.f32.mrb[0].mxu0
    %7126 = vdwg.mxu0
    %7127 = vmatprep.subr.bf16.mxu0 %v2225
    %7128 = vmatpush1.bf16.msra.mxu0 %v2224
    %7129 = vmatprep.subr.bf16.mxu0 %v2237
    %7130 = vmatpush1.bf16.msra.mxu0 %v2236
    %7131 = vmatprep.subr.bf16.mxu0 %v2249
    %7132 = vmatpush1.bf16.msra.mxu0 %v2248
    %7133 = vmatprep.subr.bf16.mxu0 %v2261
    %7134 = vmatpush1.bf16.msra.mxu0 %v2260
    %7135 = vmatprep.subr.bf16.mxu0 %v2273
    %7136 = vmatpush1.bf16.msra.mxu0 %v2272
    %7137 = vmatprep.subr.bf16.mxu0 %v2285
    %7138 = vmatpush1.bf16.msra.mxu0 %v2284
    %7139 = vmatprep.subr.bf16.mxu0 %v2297
    %7140 = vmatpush1.bf16.msra.mxu0 %v2296
    %7141 = vmatprep.subr.bf16.mxu0 %v2309
    %7142 = vmatpush1.bf16.msra.mxu0 %v2308
    %7143 = vmatprep.subr.bf16.mxu0 %v2321
    %7144 = vmatpush1.bf16.msra.mxu0 %v2320
    %7145 = vmatprep.subr.bf16.mxu0 %v2333
    %7146 = vmatpush1.bf16.msra.mxu0 %v2332
    %7147 = vmatprep.subr.bf16.mxu0 %v2345
    %7148 = vmatpush1.bf16.msra.mxu0 %v2344
    %7149 = vmatprep.subr.bf16.mxu0 %v2357
    %7150 = vmatpush1.bf16.msra.mxu0 %v2356
    %7151 = vmatprep.subr.bf16.mxu0 %v2369
    %7152 = vmatpush1.bf16.msra.mxu0 %v2368
    %7153 = vmatprep.subr.bf16.mxu0 %v2381
    %7154 = vmatpush1.bf16.msra.mxu0 %v2380
    %7155 = vmatprep.subr.bf16.mxu0 %v2393
    %7156 = vmatpush1.bf16.msra.mxu0 %v2392
    %7157 = vmatprep.subr.bf16.mxu0 %v2405
    %7158 = vmatpush1.bf16.msra.mxu0 %v2404
    %7159 = vmatprep.mubr.bf16.mxu0 %v6715
    %7160 = vmatmul.mubr.bf16.gmra.mrb[0].mxu0 %v6714
    %v7161 = vpop.f32.mrb[0].mxu0
    %v7162 = vadd.f32 0.0, %v7161
    %v7163 = vpop.f32.mrb[0].mxu0
    %v7164 = vadd.f32 0.0, %v7163
    %v7165 = vpop.f32.mrb[0].mxu0
    %v7166 = vpop.f32.mrb[0].mxu0
    %7167 = vdwg.mxu0
    %7168 = vmatprep.subr.bf16.mxu0 %v2417
    %7169 = vmatpush1.bf16.msra.mxu0 %v2416
    %7170 = vmatprep.subr.bf16.mxu0 %v2429
    %7171 = vmatpush1.bf16.msra.mxu0 %v2428
    %7172 = vmatprep.subr.bf16.mxu0 %v2441
    %7173 = vmatpush1.bf16.msra.mxu0 %v2440
    %7174 = vmatprep.subr.bf16.mxu0 %v2453
    %7175 = vmatpush1.bf16.msra.mxu0 %v2452
    %7176 = vmatprep.subr.bf16.mxu0 %v2465
    %7177 = vmatpush1.bf16.msra.mxu0 %v2464
    %7178 = vmatprep.subr.bf16.mxu0 %v2477
    %7179 = vmatpush1.bf16.msra.mxu0 %v2476
    %7180 = vmatprep.subr.bf16.mxu0 %v2489
    %7181 = vmatpush1.bf16.msra.mxu0 %v2488
    %7182 = vmatprep.subr.bf16.mxu0 %v2501
    %7183 = vmatpush1.bf16.msra.mxu0 %v2500
    %7184 = vmatprep.subr.bf16.mxu0 0
    %7185 = vmatpush1.bf16.msra.mxu0 0
    %7186 = vmatprep.subr.bf16.mxu0 0
    %7187 = vmatpush1.bf16.msra.mxu0 0
    %7188 = vmatprep.subr.bf16.mxu0 0
    %7189 = vmatpush1.bf16.msra.mxu0 0
    %7190 = vmatprep.subr.bf16.mxu0 0
    %7191 = vmatpush1.bf16.msra.mxu0 0
    %7192 = vmatprep.subr.bf16.mxu0 0
    %7193 = vmatpush1.bf16.msra.mxu0 0
    %7194 = vmatprep.subr.bf16.mxu0 0
    %7195 = vmatpush1.bf16.msra.mxu0 0
    %7196 = vmatprep.subr.bf16.mxu0 0
    %7197 = vmatpush1.bf16.msra.mxu0 0
    %7198 = vmatprep.subr.bf16.mxu0 0
    %7199 = vmatpush1.bf16.msra.mxu0 0
    %7200 = vmatprep.mubr.bf16.mxu0 0
    %7201 = vmatmul.mubr.bf16.gmra.mrb[0].mxu0 %v6716
    %v7202 = vpop.f32.mrb[0].mxu0
    %v7203 = vadd.f32 %v7162, %v7202
    %v7204 = vpop.f32.mrb[0].mxu0
    %v7205 = vadd.f32 %v7164, %v7204
    %v7206 = vpop.f32.mrb[0].mxu0
    %v7207 = vpop.f32.mrb[0].mxu0
    %7208 = vdwg.mxu0
    %v7209 = vadd.f32 %v684, %v6793
    %v7210 = vadd.f32 %v686, %v6795
    %v7211 = vadd.f32 %v757, %v6875
    %v7212 = vadd.f32 %v759, %v6877
    %v7213 = vadd.f32 %v830, %v6957
    %v7214 = vadd.f32 %v832, %v6959
    %v7215 = vadd.f32 %v903, %v7039
    %v7216 = vadd.f32 %v905, %v7041
    %v7217 = vadd.f32 %v976, %v7121
    %v7218 = vadd.f32 %v978, %v7123
    %v7219 = vadd.f32 %v1049, %v7203
    %v7220 = vadd.f32 %v1051, %v7205
    %v7221 = vmul.f32 %v7209, 0.5
    %v7222 = vmul.f32 %v7210, 0.5
    %v7223 = vmul.f32 %v7211, 0.5
    %v7224 = vtanh.pop %v7221
    %v7225 = vtanh.pop %v7222
    %v7226 = vtanh.pop %v7223
    %v7227 = vadd.f32 %v7224, 1.0
    %v7228 = vadd.f32 %v7225, 1.0
    %v7229 = vadd.f32 %v7226, 1.0
    %v7230 = vmul.f32 %v7227, 0.5
    %v7231 = vmul.f32 %v7228, 0.5
    %v7232 = vmul.f32 %v7229, 0.5
    %v7233 = vmul.f32 %v7212, 0.5
    %v7234 = vmul.f32 %v7213, 0.5
    %v7235 = vmul.f32 %v7214, 0.5
    %v7236 = vtanh.pop %v7233
    %v7237 = vtanh.pop %v7234
    %v7238 = vtanh.pop %v7235
    %v7239 = vadd.f32 %v7236, 1.0
    %v7240 = vadd.f32 %v7237, 1.0
    %v7241 = vadd.f32 %v7238, 1.0
    %v7242 = vmul.f32 %v7239, 0.5
    %v7243 = vmul.f32 %v7240, 0.5
    %v7244 = vmul.f32 %v7241, 0.5
    %v7245 = vtanh.pop %v7215
    %v7246 = vtanh.pop %v7216
    %v7247 = vtanh.pop %v7217
    %v7248 = vmul.f32 %v7218, 0.5
    %v7249 = vmul.f32 %v7219, 0.5
    %v7250 = vmul.f32 %v7220, 0.5
    %v7251 = vtanh.pop %v7248
    %v7252 = vtanh.pop %v7249
    %v7253 = vtanh.pop %v7250
    %v7254 = vadd.f32 %v7251, 1.0
    %v7255 = vadd.f32 %v7252, 1.0
    %v7256 = vadd.f32 %v7253, 1.0
    %v7257 = vmul.f32 %v7254, 0.5
    %v7258 = vmul.f32 %v7255, 0.5
    %v7259 = vmul.f32 %v7256, 0.5
    %v7260 = vmul.f32 %v7242, %v6705
    %v7261 = vmul.f32 %v7243, %v6706
    %v7262 = vmul.f32 %v7244, %v6707
    %v7263 = vmul.f32 %v7230, %v7245
    %v7264 = vmul.f32 %v7231, %v7246
    %v7265 = vmul.f32 %v7232, %v7247
    %v7266 = vadd.f32 %v7260, %v7263
    %v7267 = vadd.f32 %v7261, %v7264
    %v7268 = vadd.f32 %v7262, %v7265
    %v7269 = vtanh.pop %v7266
    %v7270 = vtanh.pop %v7267
    %v7271 = vtanh.pop %v7268
    %v7272 = vmul.f32 %v7257, %v7269
    %v7273 = vmul.f32 %v7258, %v7270
    %v7274 = vmul.f32 %v7259, %v7271
    %7275 = vst [vmem:[#allocation2] sm:$0xff] %v7272
    %7276 = vst [vmem:[#allocation2 + $0x8] sm:$0xff] %v7273
    %7277 = vst [vmem:[#allocation2 + $0x10] sm:$0xff] %v7274
    %7278 = vst [vmem:[#allocation3] sm:$0xff] %v7266
    %7279 = vst [vmem:[#allocation3 + $0x8] sm:$0xff] %v7267
    %7280 = vst [vmem:[#allocation3 + $0x10] sm:$0xff] %v7268
    // Predicated region
    $region110: #{tpu_custom_call.1} parent=1 // pred_check
      %p7281 = pneg %p212
    $region111: #{tpu_custom_call.1} parent=1 // pred_check_branch
      %7283 = sbr.rel (%p7281) target = $region113
    $region112: #{tpu_custom_call.1} parent=1 // pred_region
      %v7284 = vld [vmem:[#allocation12] sm:$0xff]
      %v7285 = vld [vmem:[#allocation12 + $0x8] sm:$0xff]
      %v7286 = vld [vmem:[#allocation12 + $0x10] sm:$0xff]
      %v7287 = vld [vmem:[#allocation12 + $0x18] sm:$0xff]
      %v7288 = vld [vmem:[#allocation12 + $0x20] sm:$0xff]
      %v7289 = vld [vmem:[#allocation12 + $0x28] sm:$0xff]
      %v7290 = vld [vmem:[#allocation12 + $0x30] sm:$0xff]
      %v7291 = vld [vmem:[#allocation12 + $0x38] sm:$0xff]
      %v7292 = vld [vmem:[#allocation12 + $0x40] sm:$0xff]
      %v7293 = vld [vmem:[#allocation12 + $0x48] sm:$0xff]
      %v7294 = vld [vmem:[#allocation12 + $0x50] sm:$0xff]
      %v7295 = vld [vmem:[#allocation12 + $0x58] sm:$0xff]
      %v7296 = vld [vmem:[#allocation12 + $0x60] sm:$0xff]
      %v7297 = vld [vmem:[#allocation12 + $0x68] sm:$0xff]
      %v7298 = vld [vmem:[#allocation12 + $0x70] sm:$0xff]
      %v7299 = vld [vmem:[#allocation12 + $0x78] sm:$0xff]
      %v7300 = vld [vmem:[#allocation12 + $0x80] sm:$0xff]
      %v7301 = vld [vmem:[#allocation12 + $0x88] sm:$0xff]
      %v7302 = vld [vmem:[#allocation12 + $0x90] sm:$0xff]
      %v7303 = vld [vmem:[#allocation12 + $0x98] sm:$0xff]
      %v7304 = vld [vmem:[#allocation12 + $0xa0] sm:$0xff]
      %v7305 = vld [vmem:[#allocation12 + $0xa8] sm:$0xff]
      %v7306 = vld [vmem:[#allocation12 + $0xb0] sm:$0xff]
      %v7307 = vld [vmem:[#allocation12 + $0xb8] sm:$0xff]
      %v7308 = vld [vmem:[#allocation12 + $0xc0] sm:$0xff]
      %v7309 = vld [vmem:[#allocation12 + $0xc8] sm:$0xff]
      %v7310 = vld [vmem:[#allocation12 + $0xd0] sm:$0xff]
      %v7311 = vld [vmem:[#allocation12 + $0xd8] sm:$0xff]
      %v7312 = vld [vmem:[#allocation12 + $0xe0] sm:$0xff]
      %v7313 = vld [vmem:[#allocation12 + $0xe8] sm:$0xff]
      %v7314 = vld [vmem:[#allocation12 + $0xf0] sm:$0xff]
      %v7315 = vld [vmem:[#allocation12 + $0xf8] sm:$0xff]
      %v7316 = vld [vmem:[#allocation12 + $0x100] sm:$0xff]
      %v7317 = vld [vmem:[#allocation12 + $0x108] sm:$0xff]
      %v7318 = vld [vmem:[#allocation12 + $0x110] sm:$0xff]
      %v7319 = vld [vmem:[#allocation12 + $0x118] sm:$0xff]
      %v7320 = vld [vmem:[#allocation12 + $0x120] sm:$0xff]
      %v7321 = vld [vmem:[#allocation12 + $0x128] sm:$0xff]
      %v7322 = vld [vmem:[#allocation12 + $0x130] sm:$0xff]
      %v7323 = vld [vmem:[#allocation12 + $0x138] sm:$0xff]
      %v7324 = vld [vmem:[#allocation12 + $0x140] sm:$0xff]
      %v7325 = vld [vmem:[#allocation12 + $0x148] sm:$0xff]
      %v7326 = vld [vmem:[#allocation12 + $0x150] sm:$0xff]
      %v7327 = vld [vmem:[#allocation12 + $0x158] sm:$0xff]
      %v7328 = vld [vmem:[#allocation12 + $0x160] sm:$0xff]
      %v7329 = vld [vmem:[#allocation12 + $0x168] sm:$0xff]
      %v7330 = vld [vmem:[#allocation12 + $0x170] sm:$0xff]
      %v7331 = vld [vmem:[#allocation12 + $0x178] sm:$0xff]
      %v7332 = vld [vmem:[#allocation13] sm:$0xff]
      %v7333 = vld [vmem:[#allocation13 + $0x8] sm:$0xf]
      %v7336 = vlaneseq
      %v7337 = vshrl.u32 %v7336, 7
      %v7338 = vsub.s32 0, %v7337
      %v7339 = vrot.slane %v7332, %v7338
      %v7340 = vlaneseq
      %v7341 = vshrl.u32 %v7340, 7
      %v7342 = vsub.s32 1, %v7341
      %v7343 = vrot.slane %v7332, %v7342
      %v7344 = vlaneseq
      %v7345 = vshrl.u32 %v7344, 7
      %v7346 = vsub.s32 2, %v7345
      %v7347 = vrot.slane %v7332, %v7346
      %v7348 = vlaneseq
      %v7349 = vshrl.u32 %v7348, 7
      %v7350 = vsub.s32 3, %v7349
      %v7351 = vrot.slane %v7332, %v7350
      %v7352 = vlaneseq
      %v7353 = vshrl.u32 %v7352, 7
      %v7354 = vsub.s32 4, %v7353
      %v7355 = vrot.slane %v7332, %v7354
      %v7356 = vlaneseq
      %v7357 = vshrl.u32 %v7356, 7
      %v7358 = vsub.s32 5, %v7357
      %v7359 = vrot.slane %v7332, %v7358
      %v7360 = vlaneseq
      %v7361 = vshrl.u32 %v7360, 7
      %v7362 = vsub.s32 6, %v7361
      %v7363 = vrot.slane %v7332, %v7362
      %v7364 = vlaneseq
      %v7365 = vshrl.u32 %v7364, 7
      %v7366 = vsub.s32 7, %v7365
      %v7367 = vrot.slane %v7332, %v7366
      %v7368 = vlaneseq
      %v7369 = vshrl.u32 %v7368, 7
      %v7370 = vsub.s32 0, %v7369
      %v7371 = vrot.slane %v7333, %v7370
      %v7372 = vlaneseq
      %v7373 = vshrl.u32 %v7372, 7
      %v7374 = vsub.s32 1, %v7373
      %v7375 = vrot.slane %v7333, %v7374
      %v7376 = vlaneseq
      %v7377 = vshrl.u32 %v7376, 7
      %v7378 = vsub.s32 2, %v7377
      %v7379 = vrot.slane %v7333, %v7378
      %v7380 = vlaneseq
      %v7381 = vshrl.u32 %v7380, 7
      %v7382 = vsub.s32 3, %v7381
      %v7383 = vrot.slane %v7333, %v7382
      %v7444 = vunpack.c.l.b16 %v7284
      %v7445 = vunpack.c.h.b16 %v7284
      %v7446 = vunpack.c.l.b16 %v7285
      %v7447 = vunpack.c.h.b16 %v7285
      %v7448 = vunpack.c.l.b16 %v7286
      %v7449 = vunpack.c.h.b16 %v7286
      %v7450 = vunpack.c.l.b16 %v7287
      %v7451 = vunpack.c.h.b16 %v7287
      %v7452 = vunpack.c.l.b16 %v7288
      %v7453 = vunpack.c.h.b16 %v7288
      %v7454 = vunpack.c.l.b16 %v7289
      %v7455 = vunpack.c.h.b16 %v7289
      %v7456 = vunpack.c.l.b16 %v7290
      %v7457 = vunpack.c.h.b16 %v7290
      %v7458 = vunpack.c.l.b16 %v7291
      %v7459 = vunpack.c.h.b16 %v7291
      %v7460 = vunpack.c.l.b16 %v7292
      %v7461 = vunpack.c.h.b16 %v7292
      %v7462 = vunpack.c.l.b16 %v7293
      %v7463 = vunpack.c.h.b16 %v7293
      %v7464 = vunpack.c.l.b16 %v7294
      %v7465 = vunpack.c.h.b16 %v7294
      %v7466 = vunpack.c.l.b16 %v7295
      %v7467 = vunpack.c.h.b16 %v7295
      %v7468 = vunpack.c.l.b16 %v7296
      %v7469 = vunpack.c.h.b16 %v7296
      %v7470 = vunpack.c.l.b16 %v7297
      %v7471 = vunpack.c.h.b16 %v7297
      %v7472 = vunpack.c.l.b16 %v7298
      %v7473 = vunpack.c.h.b16 %v7298
      %v7474 = vunpack.c.l.b16 %v7299
      %v7475 = vunpack.c.h.b16 %v7299
      %v7476 = vunpack.c.l.b16 %v7300
      %v7477 = vunpack.c.h.b16 %v7300
      %v7478 = vunpack.c.l.b16 %v7301
      %v7479 = vunpack.c.h.b16 %v7301
      %v7480 = vunpack.c.l.b16 %v7302
      %v7481 = vunpack.c.h.b16 %v7302
      %v7482 = vunpack.c.l.b16 %v7303
      %v7483 = vunpack.c.h.b16 %v7303
      %v7484 = vunpack.c.l.b16 %v7304
      %v7485 = vunpack.c.h.b16 %v7304
      %v7486 = vunpack.c.l.b16 %v7305
      %v7487 = vunpack.c.h.b16 %v7305
      %v7488 = vunpack.c.l.b16 %v7306
      %v7489 = vunpack.c.h.b16 %v7306
      %v7490 = vunpack.c.l.b16 %v7307
      %v7491 = vunpack.c.h.b16 %v7307
      %v7492 = vunpack.c.l.b16 %v7308
      %v7493 = vunpack.c.h.b16 %v7308
      %v7494 = vunpack.c.l.b16 %v7309
      %v7495 = vunpack.c.h.b16 %v7309
      %v7496 = vunpack.c.l.b16 %v7310
      %v7497 = vunpack.c.h.b16 %v7310
      %v7498 = vunpack.c.l.b16 %v7311
      %v7499 = vunpack.c.h.b16 %v7311
      %v7500 = vunpack.c.l.b16 %v7312
      %v7501 = vunpack.c.h.b16 %v7312
      %v7502 = vunpack.c.l.b16 %v7313
      %v7503 = vunpack.c.h.b16 %v7313
      %v7504 = vunpack.c.l.b16 %v7314
      %v7505 = vunpack.c.h.b16 %v7314
      %v7506 = vunpack.c.l.b16 %v7315
      %v7507 = vunpack.c.h.b16 %v7315
      %v7508 = vunpack.c.l.b16 %v7316
      %v7509 = vunpack.c.h.b16 %v7316
      %v7510 = vunpack.c.l.b16 %v7317
      %v7511 = vunpack.c.h.b16 %v7317
      %v7512 = vunpack.c.l.b16 %v7318
      %v7513 = vunpack.c.h.b16 %v7318
      %v7514 = vunpack.c.l.b16 %v7319
      %v7515 = vunpack.c.h.b16 %v7319
      %v7516 = vunpack.c.l.b16 %v7320
      %v7517 = vunpack.c.h.b16 %v7320
      %v7518 = vunpack.c.l.b16 %v7321
      %v7519 = vunpack.c.h.b16 %v7321
      %v7520 = vunpack.c.l.b16 %v7322
      %v7521 = vunpack.c.h.b16 %v7322
      %v7522 = vunpack.c.l.b16 %v7323
      %v7523 = vunpack.c.h.b16 %v7323
      %v7524 = vunpack.c.l.b16 %v7324
      %v7525 = vunpack.c.h.b16 %v7324
      %v7526 = vunpack.c.l.b16 %v7325
      %v7527 = vunpack.c.h.b16 %v7325
      %v7528 = vunpack.c.l.b16 %v7326
      %v7529 = vunpack.c.h.b16 %v7326
      %v7530 = vunpack.c.l.b16 %v7327
      %v7531 = vunpack.c.h.b16 %v7327
      %v7532 = vunpack.c.l.b16 %v7328
      %v7533 = vunpack.c.h.b16 %v7328
      %v7534 = vunpack.c.l.b16 %v7329
      %v7535 = vunpack.c.h.b16 %v7329
      %v7536 = vunpack.c.l.b16 %v7330
      %v7537 = vunpack.c.h.b16 %v7330
      %v7538 = vunpack.c.l.b16 %v7331
      %v7539 = vunpack.c.h.b16 %v7331
      %v7540 = vpack.c.b16 %v7456, %v7444
      %v7541 = vpack.c.b16 %v7457, %v7445
      %v7542 = vpack.c.b16 %v7458, %v7446
      %v7543 = vpack.c.b16 %v7459, %v7447
      %v7544 = vpack.c.b16 %v7460, %v7448
      %v7545 = vpack.c.b16 %v7461, %v7449
      %v7546 = vpack.c.b16 %v7462, %v7450
      %v7547 = vpack.c.b16 %v7463, %v7451
      %v7548 = vpack.c.b16 %v7464, %v7452
      %v7549 = vpack.c.b16 %v7465, %v7453
      %v7550 = vpack.c.b16 %v7466, %v7454
      %v7551 = vpack.c.b16 %v7467, %v7455
      %v7552 = vpack.c.b16 %v7480, %v7468
      %v7553 = vpack.c.b16 %v7481, %v7469
      %v7554 = vpack.c.b16 %v7482, %v7470
      %v7555 = vpack.c.b16 %v7483, %v7471
      %v7556 = vpack.c.b16 %v7484, %v7472
      %v7557 = vpack.c.b16 %v7485, %v7473
      %v7558 = vpack.c.b16 %v7486, %v7474
      %v7559 = vpack.c.b16 %v7487, %v7475
      %v7560 = vpack.c.b16 %v7488, %v7476
      %v7561 = vpack.c.b16 %v7489, %v7477
      %v7562 = vpack.c.b16 %v7490, %v7478
      %v7563 = vpack.c.b16 %v7491, %v7479
      %v7564 = vpack.c.b16 %v7504, %v7492
      %v7565 = vpack.c.b16 %v7505, %v7493
      %v7566 = vpack.c.b16 %v7506, %v7494
      %v7567 = vpack.c.b16 %v7507, %v7495
      %v7568 = vpack.c.b16 %v7508, %v7496
      %v7569 = vpack.c.b16 %v7509, %v7497
      %v7570 = vpack.c.b16 %v7510, %v7498
      %v7571 = vpack.c.b16 %v7511, %v7499
      %v7572 = vpack.c.b16 %v7512, %v7500
      %v7573 = vpack.c.b16 %v7513, %v7501
      %v7574 = vpack.c.b16 %v7514, %v7502
      %v7575 = vpack.c.b16 %v7515, %v7503
      %v7576 = vpack.c.b16 %v7528, %v7516
      %v7577 = vpack.c.b16 %v7529, %v7517
      %v7578 = vpack.c.b16 %v7530, %v7518
      %v7579 = vpack.c.b16 %v7531, %v7519
      %v7580 = vpack.c.b16 %v7532, %v7520
      %v7581 = vpack.c.b16 %v7533, %v7521
      %v7582 = vpack.c.b16 %v7534, %v7522
      %v7583 = vpack.c.b16 %v7535, %v7523
      %v7584 = vpack.c.b16 %v7536, %v7524
      %v7585 = vpack.c.b16 %v7537, %v7525
      %v7586 = vpack.c.b16 %v7538, %v7526
      %v7587 = vpack.c.b16 %v7539, %v7527
      %v7637 = vsel %vm602, %v229, 0
      %7639 = vmatprep.subr.bf16.mxu0 %v7541
      %7640 = vmatpush1.bf16.msra.mxu0 %v7540
      %7641 = vmatprep.subr.bf16.mxu0 %v7553
      %7642 = vmatpush1.bf16.msra.mxu0 %v7552
      %7643 = vmatprep.subr.bf16.mxu0 %v7565
      %7644 = vmatpush1.bf16.msra.mxu0 %v7564
      %7645 = vmatprep.subr.bf16.mxu0 %v7577
      %7646 = vmatpush1.bf16.msra.mxu0 %v7576
      %7647 = vmatprep.subr.bf16.mxu0 0
      %7648 = vmatpush1.bf16.msra.mxu0 0
      %7649 = vmatprep.subr.bf16.mxu0 0
      %7650 = vmatpush1.bf16.msra.mxu0 0
      %7651 = vmatprep.subr.bf16.mxu0 0
      %7652 = vmatpush1.bf16.msra.mxu0 0
      %7653 = vmatprep.subr.bf16.mxu0 0
      %7654 = vmatpush1.bf16.msra.mxu0 0
      %7655 = vmatprep.subr.bf16.mxu0 0
      %7656 = vmatpush1.bf16.msra.mxu0 0
      %7657 = vmatprep.subr.bf16.mxu0 0
      %7658 = vmatpush1.bf16.msra.mxu0 0
      %7659 = vmatprep.subr.bf16.mxu0 0
      %7660 = vmatpush1.bf16.msra.mxu0 0
      %7661 = vmatprep.subr.bf16.mxu0 0
      %7662 = vmatpush1.bf16.msra.mxu0 0
      %7663 = vmatprep.subr.bf16.mxu0 0
      %7664 = vmatpush1.bf16.msra.mxu0 0
      %7665 = vmatprep.subr.bf16.mxu0 0
      %7666 = vmatpush1.bf16.msra.mxu0 0
      %7667 = vmatprep.subr.bf16.mxu0 0
      %7668 = vmatpush1.bf16.msra.mxu0 0
      %7669 = vmatprep.subr.bf16.mxu0 0
      %7670 = vmatpush1.bf16.msra.mxu0 0
      %7671 = vmatprep.mubr.bf16.mxu0 0
      %7672 = vmatmul.mubr.bf16.gmra.mrb[0].mxu0 %v7637
      %v7673 = vpop.f32.mrb[0].mxu0
      %v7674 = vadd.f32 %v7339, %v7673
      %v7675 = vpop.f32.mrb[0].mxu0
      %v7676 = vadd.f32 %v7343, %v7675
      %v7677 = vpop.f32.mrb[0].mxu0
      %v7678 = vpop.f32.mrb[0].mxu0
      %7679 = vdwg.mxu0
      %7680 = vmatprep.subr.bf16.mxu0 %v7543
      %7681 = vmatpush1.bf16.msra.mxu0 %v7542
      %7682 = vmatprep.subr.bf16.mxu0 %v7555
      %7683 = vmatpush1.bf16.msra.mxu0 %v7554
      %7684 = vmatprep.subr.bf16.mxu0 %v7567
      %7685 = vmatpush1.bf16.msra.mxu0 %v7566
      %7686 = vmatprep.subr.bf16.mxu0 %v7579
      %7687 = vmatpush1.bf16.msra.mxu0 %v7578
      %7688 = vmatprep.subr.bf16.mxu0 0
      %7689 = vmatpush1.bf16.msra.mxu0 0
      %7690 = vmatprep.subr.bf16.mxu0 0
      %7691 = vmatpush1.bf16.msra.mxu0 0
      %7692 = vmatprep.subr.bf16.mxu0 0
      %7693 = vmatpush1.bf16.msra.mxu0 0
      %7694 = vmatprep.subr.bf16.mxu0 0
      %7695 = vmatpush1.bf16.msra.mxu0 0
      %7696 = vmatprep.subr.bf16.mxu0 0
      %7697 = vmatpush1.bf16.msra.mxu0 0
      %7698 = vmatprep.subr.bf16.mxu0 0
      %7699 = vmatpush1.bf16.msra.mxu0 0
      %7700 = vmatprep.subr.bf16.mxu0 0
      %7701 = vmatpush1.bf16.msra.mxu0 0
      %7702 = vmatprep.subr.bf16.mxu0 0
      %7703 = vmatpush1.bf16.msra.mxu0 0
      %7704 = vmatprep.subr.bf16.mxu0 0
      %7705 = vmatpush1.bf16.msra.mxu0 0
      %7706 = vmatprep.subr.bf16.mxu0 0
      %7707 = vmatpush1.bf16.msra.mxu0 0
      %7708 = vmatprep.subr.bf16.mxu0 0
      %7709 = vmatpush1.bf16.msra.mxu0 0
      %7710 = vmatprep.subr.bf16.mxu0 0
      %7711 = vmatpush1.bf16.msra.mxu0 0
      %7712 = vmatprep.mubr.bf16.mxu0 0
      %7713 = vmatmul.mubr.bf16.gmra.mrb[0].mxu0 %v7637
      %v7714 = vpop.f32.mrb[0].mxu0
      %v7715 = vadd.f32 %v7347, %v7714
      %v7716 = vpop.f32.mrb[0].mxu0
      %v7717 = vadd.f32 %v7351, %v7716
      %v7718 = vpop.f32.mrb[0].mxu0
      %v7719 = vpop.f32.mrb[0].mxu0
      %7720 = vdwg.mxu0
      %7721 = vmatprep.subr.bf16.mxu0 %v7545
      %7722 = vmatpush1.bf16.msra.mxu0 %v7544
      %7723 = vmatprep.subr.bf16.mxu0 %v7557
      %7724 = vmatpush1.bf16.msra.mxu0 %v7556
      %7725 = vmatprep.subr.bf16.mxu0 %v7569
      %7726 = vmatpush1.bf16.msra.mxu0 %v7568
      %7727 = vmatprep.subr.bf16.mxu0 %v7581
      %7728 = vmatpush1.bf16.msra.mxu0 %v7580
      %7729 = vmatprep.subr.bf16.mxu0 0
      %7730 = vmatpush1.bf16.msra.mxu0 0
      %7731 = vmatprep.subr.bf16.mxu0 0
      %7732 = vmatpush1.bf16.msra.mxu0 0
      %7733 = vmatprep.subr.bf16.mxu0 0
      %7734 = vmatpush1.bf16.msra.mxu0 0
      %7735 = vmatprep.subr.bf16.mxu0 0
      %7736 = vmatpush1.bf16.msra.mxu0 0
      %7737 = vmatprep.subr.bf16.mxu0 0
      %7738 = vmatpush1.bf16.msra.mxu0 0
      %7739 = vmatprep.subr.bf16.mxu0 0
      %7740 = vmatpush1.bf16.msra.mxu0 0
      %7741 = vmatprep.subr.bf16.mxu0 0
      %7742 = vmatpush1.bf16.msra.mxu0 0
      %7743 = vmatprep.subr.bf16.mxu0 0
      %7744 = vmatpush1.bf16.msra.mxu0 0
      %7745 = vmatprep.subr.bf16.mxu0 0
      %7746 = vmatpush1.bf16.msra.mxu0 0
      %7747 = vmatprep.subr.bf16.mxu0 0
      %7748 = vmatpush1.bf16.msra.mxu0 0
      %7749 = vmatprep.subr.bf16.mxu0 0
      %7750 = vmatpush1.bf16.msra.mxu0 0
      %7751 = vmatprep.subr.bf16.mxu0 0
      %7752 = vmatpush1.bf16.msra.mxu0 0
      %7753 = vmatprep.mubr.bf16.mxu0 0
      %7754 = vmatmul.mubr.bf16.gmra.mrb[0].mxu0 %v7637
      %v7755 = vpop.f32.mrb[0].mxu0
      %v7756 = vadd.f32 %v7355, %v7755
      %v7757 = vpop.f32.mrb[0].mxu0
      %v7758 = vadd.f32 %v7359, %v7757
      %v7759 = vpop.f32.mrb[0].mxu0
      %v7760 = vpop.f32.mrb[0].mxu0
      %7761 = vdwg.mxu0
      %7762 = vmatprep.subr.bf16.mxu0 %v7547
      %7763 = vmatpush1.bf16.msra.mxu0 %v7546
      %7764 = vmatprep.subr.bf16.mxu0 %v7559
      %7765 = vmatpush1.bf16.msra.mxu0 %v7558
      %7766 = vmatprep.subr.bf16.mxu0 %v7571
      %7767 = vmatpush1.bf16.msra.mxu0 %v7570
      %7768 = vmatprep.subr.bf16.mxu0 %v7583
      %7769 = vmatpush1.bf16.msra.mxu0 %v7582
      %7770 = vmatprep.subr.bf16.mxu0 0
      %7771 = vmatpush1.bf16.msra.mxu0 0
      %7772 = vmatprep.subr.bf16.mxu0 0
      %7773 = vmatpush1.bf16.msra.mxu0 0
      %7774 = vmatprep.subr.bf16.mxu0 0
      %7775 = vmatpush1.bf16.msra.mxu0 0
      %7776 = vmatprep.subr.bf16.mxu0 0
      %7777 = vmatpush1.bf16.msra.mxu0 0
      %7778 = vmatprep.subr.bf16.mxu0 0
      %7779 = vmatpush1.bf16.msra.mxu0 0
      %7780 = vmatprep.subr.bf16.mxu0 0
      %7781 = vmatpush1.bf16.msra.mxu0 0
      %7782 = vmatprep.subr.bf16.mxu0 0
      %7783 = vmatpush1.bf16.msra.mxu0 0
      %7784 = vmatprep.subr.bf16.mxu0 0
      %7785 = vmatpush1.bf16.msra.mxu0 0
      %7786 = vmatprep.subr.bf16.mxu0 0
      %7787 = vmatpush1.bf16.msra.mxu0 0
      %7788 = vmatprep.subr.bf16.mxu0 0
      %7789 = vmatpush1.bf16.msra.mxu0 0
      %7790 = vmatprep.subr.bf16.mxu0 0
      %7791 = vmatpush1.bf16.msra.mxu0 0
      %7792 = vmatprep.subr.bf16.mxu0 0
      %7793 = vmatpush1.bf16.msra.mxu0 0
      %7794 = vmatprep.mubr.bf16.mxu0 0
      %7795 = vmatmul.mubr.bf16.gmra.mrb[0].mxu0 %v7637
      %v7796 = vpop.f32.mrb[0].mxu0
      %v7797 = vadd.f32 %v7363, %v7796
      %v7798 = vpop.f32.mrb[0].mxu0
      %v7799 = vadd.f32 %v7367, %v7798
      %v7800 = vpop.f32.mrb[0].mxu0
      %v7801 = vpop.f32.mrb[0].mxu0
      %7802 = vdwg.mxu0
      %7803 = vmatprep.subr.bf16.mxu0 %v7549
      %7804 = vmatpush1.bf16.msra.mxu0 %v7548
      %7805 = vmatprep.subr.bf16.mxu0 %v7561
      %7806 = vmatpush1.bf16.msra.mxu0 %v7560
      %7807 = vmatprep.subr.bf16.mxu0 %v7573
      %7808 = vmatpush1.bf16.msra.mxu0 %v7572
      %7809 = vmatprep.subr.bf16.mxu0 %v7585
      %7810 = vmatpush1.bf16.msra.mxu0 %v7584
      %7811 = vmatprep.subr.bf16.mxu0 0
      %7812 = vmatpush1.bf16.msra.mxu0 0
      %7813 = vmatprep.subr.bf16.mxu0 0
      %7814 = vmatpush1.bf16.msra.mxu0 0
      %7815 = vmatprep.subr.bf16.mxu0 0
      %7816 = vmatpush1.bf16.msra.mxu0 0
      %7817 = vmatprep.subr.bf16.mxu0 0
      %7818 = vmatpush1.bf16.msra.mxu0 0
      %7819 = vmatprep.subr.bf16.mxu0 0
      %7820 = vmatpush1.bf16.msra.mxu0 0
      %7821 = vmatprep.subr.bf16.mxu0 0
      %7822 = vmatpush1.bf16.msra.mxu0 0
      %7823 = vmatprep.subr.bf16.mxu0 0
      %7824 = vmatpush1.bf16.msra.mxu0 0
      %7825 = vmatprep.subr.bf16.mxu0 0
      %7826 = vmatpush1.bf16.msra.mxu0 0
      %7827 = vmatprep.subr.bf16.mxu0 0
      %7828 = vmatpush1.bf16.msra.mxu0 0
      %7829 = vmatprep.subr.bf16.mxu0 0
      %7830 = vmatpush1.bf16.msra.mxu0 0
      %7831 = vmatprep.subr.bf16.mxu0 0
      %7832 = vmatpush1.bf16.msra.mxu0 0
      %7833 = vmatprep.subr.bf16.mxu0 0
      %7834 = vmatpush1.bf16.msra.mxu0 0
      %7835 = vmatprep.mubr.bf16.mxu0 0
      %7836 = vmatmul.mubr.bf16.gmra.mrb[0].mxu0 %v7637
      %v7837 = vpop.f32.mrb[0].mxu0
      %v7838 = vadd.f32 %v7371, %v7837
      %v7839 = vpop.f32.mrb[0].mxu0
      %v7840 = vadd.f32 %v7375, %v7839
      %v7841 = vpop.f32.mrb[0].mxu0
      %v7842 = vpop.f32.mrb[0].mxu0
      %7843 = vdwg.mxu0
      %7844 = vmatprep.subr.bf16.mxu0 %v7551
      %7845 = vmatpush1.bf16.msra.mxu0 %v7550
      %7846 = vmatprep.subr.bf16.mxu0 %v7563
      %7847 = vmatpush1.bf16.msra.mxu0 %v7562
      %7848 = vmatprep.subr.bf16.mxu0 %v7575
      %7849 = vmatpush1.bf16.msra.mxu0 %v7574
      %7850 = vmatprep.subr.bf16.mxu0 %v7587
      %7851 = vmatpush1.bf16.msra.mxu0 %v7586
      %7852 = vmatprep.subr.bf16.mxu0 0
      %7853 = vmatpush1.bf16.msra.mxu0 0
      %7854 = vmatprep.subr.bf16.mxu0 0
      %7855 = vmatpush1.bf16.msra.mxu0 0
      %7856 = vmatprep.subr.bf16.mxu0 0
      %7857 = vmatpush1.bf16.msra.mxu0 0
      %7858 = vmatprep.subr.bf16.mxu0 0
      %7859 = vmatpush1.bf16.msra.mxu0 0
      %7860 = vmatprep.subr.bf16.mxu0 0
      %7861 = vmatpush1.bf16.msra.mxu0 0
      %7862 = vmatprep.subr.bf16.mxu0 0
      %7863 = vmatpush1.bf16.msra.mxu0 0
      %7864 = vmatprep.subr.bf16.mxu0 0
      %7865 = vmatpush1.bf16.msra.mxu0 0
      %7866 = vmatprep.subr.bf16.mxu0 0
      %7867 = vmatpush1.bf16.msra.mxu0 0
      %7868 = vmatprep.subr.bf16.mxu0 0
      %7869 = vmatpush1.bf16.msra.mxu0 0
      %7870 = vmatprep.subr.bf16.mxu0 0
      %7871 = vmatpush1.bf16.msra.mxu0 0
      %7872 = vmatprep.subr.bf16.mxu0 0
      %7873 = vmatpush1.bf16.msra.mxu0 0
      %7874 = vmatprep.subr.bf16.mxu0 0
      %7875 = vmatpush1.bf16.msra.mxu0 0
      %7876 = vmatprep.mubr.bf16.mxu0 0
      %7877 = vmatmul.mubr.bf16.gmra.mrb[0].mxu0 %v7637
      %v7878 = vpop.f32.mrb[0].mxu0
      %v7879 = vadd.f32 %v7379, %v7878
      %v7880 = vpop.f32.mrb[0].mxu0
      %v7881 = vadd.f32 %v7383, %v7880
      %v7882 = vpop.f32.mrb[0].mxu0
      %v7883 = vpop.f32.mrb[0].mxu0
      %7884 = vdwg.mxu0
      %v7885 = vmul.f32 %v7674, 0.5
      %v7886 = vmul.f32 %v7676, 0.5
      %v7887 = vmul.f32 %v7715, 0.5
      %v7888 = vtanh.pop %v7885
      %v7889 = vtanh.pop %v7886
      %v7890 = vtanh.pop %v7887
      %v7891 = vadd.f32 %v7888, 1.0
      %v7892 = vadd.f32 %v7889, 1.0
      %v7893 = vadd.f32 %v7890, 1.0
      %v7894 = vmul.f32 %v7891, 0.5
      %v7895 = vmul.f32 %v7892, 0.5
      %v7896 = vmul.f32 %v7893, 0.5
      %v7897 = vmul.f32 %v7717, 0.5
      %v7898 = vmul.f32 %v7756, 0.5
      %v7899 = vmul.f32 %v7758, 0.5
      %v7900 = vtanh.pop %v7897
      %v7901 = vtanh.pop %v7898
      %v7902 = vtanh.pop %v7899
      %v7903 = vadd.f32 %v7900, 1.0
      %v7904 = vadd.f32 %v7901, 1.0
      %v7905 = vadd.f32 %v7902, 1.0
      %v7906 = vmul.f32 %v7903, 0.5
      %v7907 = vmul.f32 %v7904, 0.5
      %v7908 = vmul.f32 %v7905, 0.5
      %v7909 = vtanh.pop %v7797
      %v7910 = vtanh.pop %v7799
      %v7911 = vtanh.pop %v7838
      %v7912 = vmul.f32 %v7840, 0.5
      %v7913 = vmul.f32 %v7879, 0.5
      %v7914 = vmul.f32 %v7881, 0.5
      %v7915 = vtanh.pop %v7912
      %v7916 = vtanh.pop %v7913
      %v7917 = vtanh.pop %v7914
      %v7918 = vadd.f32 %v7915, 1.0
      %v7919 = vadd.f32 %v7916, 1.0
      %v7920 = vadd.f32 %v7917, 1.0
      %v7921 = vmul.f32 %v7918, 0.5
      %v7922 = vmul.f32 %v7919, 0.5
      %v7923 = vmul.f32 %v7920, 0.5
      %v7924 = vmul.f32 %v7906, 0.0
      %v7925 = vmul.f32 %v7907, 0.0
      %v7926 = vmul.f32 %v7908, 0.0
      %v7927 = vmul.f32 %v7894, %v7909
      %v7928 = vmul.f32 %v7895, %v7910
      %v7929 = vmul.f32 %v7896, %v7911
      %v7930 = vadd.f32 %v7924, %v7927
      %v7931 = vadd.f32 %v7925, %v7928
      %v7932 = vadd.f32 %v7926, %v7929
      %v7933 = vtanh.pop %v7930
      %v7934 = vtanh.pop %v7931
      %v7935 = vtanh.pop %v7932
      %v7936 = vmul.f32 %v7921, %v7933
      %v7937 = vmul.f32 %v7922, %v7934
      %v7938 = vmul.f32 %v7923, %v7935
      %v7939 = vpack.c.bf16 %v7272, %v7272
      %v7940 = vpack.c.bf16 %v7273, %v7273
      %v7941 = vpack.c.bf16 %v7274, %v7274
      %v7942 = vld [vmem:[#allocation15] sm:$0xf]
      %v7943 = vld [vmem:[#allocation15 + $0x4] sm:$0xf]
      %v7944 = vld [vmem:[#allocation15 + $0x8] sm:$0xf]
      %v7945 = vld [vmem:[#allocation15 + $0xc] sm:$0xf]
      %v7946 = vld [vmem:[#allocation15 + $0x10] sm:$0xf]
      %v7947 = vld [vmem:[#allocation15 + $0x14] sm:$0xf]
      %v7948 = vld [vmem:[#allocation15 + $0x18] sm:$0xf]
      %v7949 = vld [vmem:[#allocation15 + $0x1c] sm:$0xf]
      %v7950 = vld [vmem:[#allocation15 + $0x20] sm:$0xf]
      %v7951 = vld [vmem:[#allocation15 + $0x24] sm:$0xf]
      %v7952 = vld [vmem:[#allocation15 + $0x28] sm:$0xf]
      %v7953 = vld [vmem:[#allocation15 + $0x2c] sm:$0xf]
      %v7954 = vld [vmem:[#allocation15 + $0x30] sm:$0xf]
      %v7955 = vld [vmem:[#allocation15 + $0x34] sm:$0xf]
      %v7956 = vld [vmem:[#allocation15 + $0x38] sm:$0xf]
      %v7957 = vld [vmem:[#allocation15 + $0x3c] sm:$0xf]
      %v7958 = vld [vmem:[#allocation15 + $0x40] sm:$0xf]
      %v7959 = vld [vmem:[#allocation15 + $0x44] sm:$0xf]
      %v7960 = vld [vmem:[#allocation15 + $0x48] sm:$0xf]
      %v7961 = vld [vmem:[#allocation15 + $0x4c] sm:$0xf]
      %v7962 = vld [vmem:[#allocation15 + $0x50] sm:$0xf]
      %v7963 = vld [vmem:[#allocation15 + $0x54] sm:$0xf]
      %v7964 = vld [vmem:[#allocation15 + $0x58] sm:$0xf]
      %v7965 = vld [vmem:[#allocation15 + $0x5c] sm:$0xf]
      %v7966 = vld [vmem:[#allocation15 + $0x60] sm:$0xf]
      %v7967 = vld [vmem:[#allocation15 + $0x64] sm:$0xf]
      %v7968 = vld [vmem:[#allocation15 + $0x68] sm:$0xf]
      %v7969 = vld [vmem:[#allocation15 + $0x6c] sm:$0xf]
      %v7970 = vld [vmem:[#allocation15 + $0x70] sm:$0xf]
      %v7971 = vld [vmem:[#allocation15 + $0x74] sm:$0xf]
      %v7972 = vld [vmem:[#allocation15 + $0x78] sm:$0xf]
      %v7973 = vld [vmem:[#allocation15 + $0x7c] sm:$0xf]
      %v7974 = vld [vmem:[#allocation15 + $0x80] sm:$0xf]
      %v7975 = vld [vmem:[#allocation15 + $0x84] sm:$0xf]
      %v7976 = vld [vmem:[#allocation15 + $0x88] sm:$0xf]
      %v7977 = vld [vmem:[#allocation15 + $0x8c] sm:$0xf]
      %v7978 = vld [vmem:[#allocation15 + $0x90] sm:$0xf]
      %v7979 = vld [vmem:[#allocation15 + $0x94] sm:$0xf]
      %v7980 = vld [vmem:[#allocation15 + $0x98] sm:$0xf]
      %v7981 = vld [vmem:[#allocation15 + $0x9c] sm:$0xf]
      %v7982 = vld [vmem:[#allocation15 + $0xa0] sm:$0xf]
      %v7983 = vld [vmem:[#allocation15 + $0xa4] sm:$0xf]
      %v7984 = vld [vmem:[#allocation15 + $0xa8] sm:$0xf]
      %v7985 = vld [vmem:[#allocation15 + $0xac] sm:$0xf]
      %v7986 = vld [vmem:[#allocation15 + $0xb0] sm:$0xf]
      %v7987 = vld [vmem:[#allocation15 + $0xb4] sm:$0xf]
      %v7988 = vld [vmem:[#allocation15 + $0xb8] sm:$0xf]
      %v7989 = vld [vmem:[#allocation15 + $0xbc] sm:$0xf]
      %v7990 = vpack.c.bf16 %v7936, %v7936
      %v7991 = vpack.c.bf16 %v7937, %v7937
      %v7992 = vpack.c.bf16 %v7938, %v7938
      %v7993 = vld [vmem:[#allocation16] sm:$0xf]
      %v7994 = vld [vmem:[#allocation16 + $0x4] sm:$0xf]
      %v7995 = vld [vmem:[#allocation16 + $0x8] sm:$0xf]
      %v7996 = vld [vmem:[#allocation16 + $0xc] sm:$0xf]
      %v7997 = vld [vmem:[#allocation16 + $0x10] sm:$0xf]
      %v7998 = vld [vmem:[#allocation16 + $0x14] sm:$0xf]
      %v7999 = vld [vmem:[#allocation16 + $0x18] sm:$0xf]
      %v8000 = vld [vmem:[#allocation16 + $0x1c] sm:$0xf]
      %v8001 = vld [vmem:[#allocation16 + $0x20] sm:$0xf]
      %v8002 = vld [vmem:[#allocation16 + $0x24] sm:$0xf]
      %v8003 = vld [vmem:[#allocation16 + $0x28] sm:$0xf]
      %v8004 = vld [vmem:[#allocation16 + $0x2c] sm:$0xf]
      %v8005 = vld [vmem:[#allocation16 + $0x30] sm:$0xf]
      %v8006 = vld [vmem:[#allocation16 + $0x34] sm:$0xf]
      %v8007 = vld [vmem:[#allocation16 + $0x38] sm:$0xf]
      %v8008 = vld [vmem:[#allocation16 + $0x3c] sm:$0xf]
      %v8009 = vld [vmem:[#allocation16 + $0x40] sm:$0xf]
      %v8010 = vld [vmem:[#allocation16 + $0x44] sm:$0xf]
      %v8011 = vld [vmem:[#allocation16 + $0x48] sm:$0xf]
      %v8012 = vld [vmem:[#allocation16 + $0x4c] sm:$0xf]
      %v8013 = vld [vmem:[#allocation16 + $0x50] sm:$0xf]
      %v8014 = vld [vmem:[#allocation16 + $0x54] sm:$0xf]
      %v8015 = vld [vmem:[#allocation16 + $0x58] sm:$0xf]
      %v8016 = vld [vmem:[#allocation16 + $0x5c] sm:$0xf]
      %v8017 = vld [vmem:[#allocation16 + $0x60] sm:$0xf]
      %v8018 = vld [vmem:[#allocation16 + $0x64] sm:$0xf]
      %v8019 = vld [vmem:[#allocation16 + $0x68] sm:$0xf]
      %v8020 = vld [vmem:[#allocation16 + $0x6c] sm:$0xf]
      %v8021 = vld [vmem:[#allocation16 + $0x70] sm:$0xf]
      %v8022 = vld [vmem:[#allocation16 + $0x74] sm:$0xf]
      %v8023 = vld [vmem:[#allocation16 + $0x78] sm:$0xf]
      %v8024 = vld [vmem:[#allocation16 + $0x7c] sm:$0xf]
      %v8025 = vld [vmem:[#allocation16 + $0x80] sm:$0xf]
      %v8026 = vld [vmem:[#allocation16 + $0x84] sm:$0xf]
      %v8027 = vld [vmem:[#allocation16 + $0x88] sm:$0xf]
      %v8028 = vld [vmem:[#allocation16 + $0x8c] sm:$0xf]
      %v8029 = vld [vmem:[#allocation16 + $0x90] sm:$0xf]
      %v8030 = vld [vmem:[#allocation16 + $0x94] sm:$0xf]
      %v8031 = vld [vmem:[#allocation16 + $0x98] sm:$0xf]
      %v8032 = vld [vmem:[#allocation16 + $0x9c] sm:$0xf]
      %v8033 = vld [vmem:[#allocation16 + $0xa0] sm:$0xf]
      %v8034 = vld [vmem:[#allocation16 + $0xa4] sm:$0xf]
      %v8035 = vld [vmem:[#allocation16 + $0xa8] sm:$0xf]
      %v8036 = vld [vmem:[#allocation16 + $0xac] sm:$0xf]
      %v8037 = vld [vmem:[#allocation16 + $0xb0] sm:$0xf]
      %v8038 = vld [vmem:[#allocation16 + $0xb4] sm:$0xf]
      %v8039 = vld [vmem:[#allocation16 + $0xb8] sm:$0xf]
      %v8040 = vld [vmem:[#allocation16 + $0xbc] sm:$0xf]
      %v8089 = vunpack.c.l.b16 %v7993
      %v8090 = vunpack.c.l.b16 %v7994
      %v8091 = vunpack.c.l.b16 %v7995
      %v8092 = vunpack.c.l.b16 %v7996
      %v8093 = vunpack.c.l.b16 %v7997
      %v8094 = vunpack.c.l.b16 %v7998
      %v8095 = vunpack.c.l.b16 %v7999
      %v8096 = vunpack.c.l.b16 %v8000
      %v8097 = vunpack.c.l.b16 %v8001
      %v8098 = vunpack.c.l.b16 %v8002
      %v8099 = vunpack.c.l.b16 %v8003
      %v8100 = vunpack.c.l.b16 %v8004
      %v8101 = vunpack.c.l.b16 %v8005
      %v8102 = vunpack.c.l.b16 %v8006
      %v8103 = vunpack.c.l.b16 %v8007
      %v8104 = vunpack.c.l.b16 %v8008
      %v8105 = vunpack.c.l.b16 %v8009
      %v8106 = vunpack.c.l.b16 %v8010
      %v8107 = vunpack.c.l.b16 %v8011
      %v8108 = vunpack.c.l.b16 %v8012
      %v8109 = vunpack.c.l.b16 %v8013
      %v8110 = vunpack.c.l.b16 %v8014
      %v8111 = vunpack.c.l.b16 %v8015
      %v8112 = vunpack.c.l.b16 %v8016
      %v8113 = vunpack.c.l.b16 %v8017
      %v8114 = vunpack.c.l.b16 %v8018
      %v8115 = vunpack.c.l.b16 %v8019
      %v8116 = vunpack.c.l.b16 %v8020
      %v8117 = vunpack.c.l.b16 %v8021
      %v8118 = vunpack.c.l.b16 %v8022
      %v8119 = vunpack.c.l.b16 %v8023
      %v8120 = vunpack.c.l.b16 %v8024
      %v8121 = vunpack.c.l.b16 %v8025
      %v8122 = vunpack.c.l.b16 %v8026
      %v8123 = vunpack.c.l.b16 %v8027
      %v8124 = vunpack.c.l.b16 %v8028
      %v8125 = vunpack.c.l.b16 %v8029
      %v8126 = vunpack.c.l.b16 %v8030
      %v8127 = vunpack.c.l.b16 %v8031
      %v8128 = vunpack.c.l.b16 %v8032
      %v8129 = vunpack.c.l.b16 %v8033
      %v8130 = vunpack.c.l.b16 %v8034
      %v8131 = vunpack.c.l.b16 %v8035
      %v8132 = vunpack.c.l.b16 %v8036
      %v8133 = vunpack.c.l.b16 %v8037
      %v8134 = vunpack.c.l.b16 %v8038
      %v8135 = vunpack.c.l.b16 %v8039
      %v8136 = vunpack.c.l.b16 %v8040
      %v8137 = vpack.c.b16 %v8090, %v8089
      %v8138 = vpack.c.b16 %v8092, %v8091
      %v8139 = vpack.c.b16 %v8094, %v8093
      %v8140 = vpack.c.b16 %v8096, %v8095
      %v8141 = vpack.c.b16 %v8098, %v8097
      %v8142 = vpack.c.b16 %v8100, %v8099
      %v8143 = vpack.c.b16 %v8102, %v8101
      %v8144 = vpack.c.b16 %v8104, %v8103
      %v8145 = vpack.c.b16 %v8106, %v8105
      %v8146 = vpack.c.b16 %v8108, %v8107
      %v8147 = vpack.c.b16 %v8110, %v8109
      %v8148 = vpack.c.b16 %v8112, %v8111
      %v8149 = vpack.c.b16 %v8114, %v8113
      %v8150 = vpack.c.b16 %v8116, %v8115
      %v8151 = vpack.c.b16 %v8118, %v8117
      %v8152 = vpack.c.b16 %v8120, %v8119
      %v8153 = vpack.c.b16 %v8122, %v8121
      %v8154 = vpack.c.b16 %v8124, %v8123
      %v8155 = vpack.c.b16 %v8126, %v8125
      %v8156 = vpack.c.b16 %v8128, %v8127
      %v8157 = vpack.c.b16 %v8130, %v8129
      %v8158 = vpack.c.b16 %v8132, %v8131
      %v8159 = vpack.c.b16 %v8134, %v8133
      %v8160 = vpack.c.b16 %v8136, %v8135
      %8185 = vmatprep.subr.bf16.mxu0 0
      %8186 = vmatpush1.bf16.msra.mxu0 %v8137
      %8187 = vmatprep.subr.bf16.mxu0 0
      %8188 = vmatpush1.bf16.msra.mxu0 %v8138
      %8189 = vmatprep.subr.bf16.mxu0 0
      %8190 = vmatpush1.bf16.msra.mxu0 %v8139
      %8191 = vmatprep.subr.bf16.mxu0 0
      %8192 = vmatpush1.bf16.msra.mxu0 %v8140
      %8193 = vmatprep.subr.bf16.mxu0 0
      %8194 = vmatpush1.bf16.msra.mxu0 %v8141
      %8195 = vmatprep.subr.bf16.mxu0 0
      %8196 = vmatpush1.bf16.msra.mxu0 %v8142
      %8197 = vmatprep.subr.bf16.mxu0 0
      %8198 = vmatpush1.bf16.msra.mxu0 %v8143
      %8199 = vmatprep.subr.bf16.mxu0 0
      %8200 = vmatpush1.bf16.msra.mxu0 %v8144
      %8201 = vmatprep.subr.bf16.mxu0 0
      %8202 = vmatpush1.bf16.msra.mxu0 %v8145
      %8203 = vmatprep.subr.bf16.mxu0 0
      %8204 = vmatpush1.bf16.msra.mxu0 %v8146
      %8205 = vmatprep.subr.bf16.mxu0 0
      %8206 = vmatpush1.bf16.msra.mxu0 %v8147
      %8207 = vmatprep.subr.bf16.mxu0 0
      %8208 = vmatpush1.bf16.msra.mxu0 %v8148
      %8209 = vmatprep.subr.bf16.mxu0 0
      %8210 = vmatpush1.bf16.msra.mxu0 %v8149
      %8211 = vmatprep.subr.bf16.mxu0 0
      %8212 = vmatpush1.bf16.msra.mxu0 %v8150
      %8213 = vmatprep.subr.bf16.mxu0 0
      %8214 = vmatpush1.bf16.msra.mxu0 %v8151
      %8215 = vmatprep.subr.bf16.mxu0 0
      %8216 = vmatpush1.bf16.msra.mxu0 %v8152
      %8217 = vmatprep.mubr.bf16.mxu0 %v7991
      %8218 = vmatmul.mubr.bf16.gmra.mrb[0].mxu0 %v7990
      %v8219 = vpop.f32.mrb[0].mxu0
      %v8220 = vadd.f32 0.0, %v8219
      %v8221 = vpop.f32.mrb[0].mxu0
      %v8222 = vpop.f32.mrb[0].mxu0
      %v8223 = vpop.f32.mrb[0].mxu0
      %8224 = vdwg.mxu0
      %8225 = vmatprep.subr.bf16.mxu0 0
      %8226 = vmatpush1.bf16.msra.mxu0 %v8153
      %8227 = vmatprep.subr.bf16.mxu0 0
      %8228 = vmatpush1.bf16.msra.mxu0 %v8154
      %8229 = vmatprep.subr.bf16.mxu0 0
      %8230 = vmatpush1.bf16.msra.mxu0 %v8155
      %8231 = vmatprep.subr.bf16.mxu0 0
      %8232 = vmatpush1.bf16.msra.mxu0 %v8156
      %8233 = vmatprep.subr.bf16.mxu0 0
      %8234 = vmatpush1.bf16.msra.mxu0 %v8157
      %8235 = vmatprep.subr.bf16.mxu0 0
      %8236 = vmatpush1.bf16.msra.mxu0 %v8158
      %8237 = vmatprep.subr.bf16.mxu0 0
      %8238 = vmatpush1.bf16.msra.mxu0 %v8159
      %8239 = vmatprep.subr.bf16.mxu0 0
      %8240 = vmatpush1.bf16.msra.mxu0 %v8160
      %8241 = vmatprep.subr.bf16.mxu0 0
      %8242 = vmatpush1.bf16.msra.mxu0 0
      %8243 = vmatprep.subr.bf16.mxu0 0
      %8244 = vmatpush1.bf16.msra.mxu0 0
      %8245 = vmatprep.subr.bf16.mxu0 0
      %8246 = vmatpush1.bf16.msra.mxu0 0
      %8247 = vmatprep.subr.bf16.mxu0 0
      %8248 = vmatpush1.bf16.msra.mxu0 0
      %8249 = vmatprep.subr.bf16.mxu0 0
      %8250 = vmatpush1.bf16.msra.mxu0 0
      %8251 = vmatprep.subr.bf16.mxu0 0
      %8252 = vmatpush1.bf16.msra.mxu0 0
      %8253 = vmatprep.subr.bf16.mxu0 0
      %8254 = vmatpush1.bf16.msra.mxu0 0
      %8255 = vmatprep.subr.bf16.mxu0 0
      %8256 = vmatpush1.bf16.msra.mxu0 0
      %8257 = vmatprep.mubr.bf16.mxu0 0
      %8258 = vmatmul.mubr.bf16.gmra.mrb[0].mxu0 %v7992
      %v8259 = vpop.f32.mrb[0].mxu0
      %v8260 = vadd.f32 %v8220, %v8259
      %v8261 = vpop.f32.mrb[0].mxu0
      %v8262 = vpop.f32.mrb[0].mxu0
      %v8263 = vpop.f32.mrb[0].mxu0
      %8264 = vdwg.mxu0
      %v8313 = vunpack.c.l.b16 %v7942
      %v8314 = vunpack.c.l.b16 %v7943
      %v8315 = vunpack.c.l.b16 %v7944
      %v8316 = vunpack.c.l.b16 %v7945
      %v8317 = vunpack.c.l.b16 %v7946
      %v8318 = vunpack.c.l.b16 %v7947
      %v8319 = vunpack.c.l.b16 %v7948
      %v8320 = vunpack.c.l.b16 %v7949
      %v8321 = vunpack.c.l.b16 %v7950
      %v8322 = vunpack.c.l.b16 %v7951
      %v8323 = vunpack.c.l.b16 %v7952
      %v8324 = vunpack.c.l.b16 %v7953
      %v8325 = vunpack.c.l.b16 %v7954
      %v8326 = vunpack.c.l.b16 %v7955
      %v8327 = vunpack.c.l.b16 %v7956
      %v8328 = vunpack.c.l.b16 %v7957
      %v8329 = vunpack.c.l.b16 %v7958
      %v8330 = vunpack.c.l.b16 %v7959
      %v8331 = vunpack.c.l.b16 %v7960
      %v8332 = vunpack.c.l.b16 %v7961
      %v8333 = vunpack.c.l.b16 %v7962
      %v8334 = vunpack.c.l.b16 %v7963
      %v8335 = vunpack.c.l.b16 %v7964
      %v8336 = vunpack.c.l.b16 %v7965
      %v8337 = vunpack.c.l.b16 %v7966
      %v8338 = vunpack.c.l.b16 %v7967
      %v8339 = vunpack.c.l.b16 %v7968
      %v8340 = vunpack.c.l.b16 %v7969
      %v8341 = vunpack.c.l.b16 %v7970
      %v8342 = vunpack.c.l.b16 %v7971
      %v8343 = vunpack.c.l.b16 %v7972
      %v8344 = vunpack.c.l.b16 %v7973
      %v8345 = vunpack.c.l.b16 %v7974
      %v8346 = vunpack.c.l.b16 %v7975
      %v8347 = vunpack.c.l.b16 %v7976
      %v8348 = vunpack.c.l.b16 %v7977
      %v8349 = vunpack.c.l.b16 %v7978
      %v8350 = vunpack.c.l.b16 %v7979
      %v8351 = vunpack.c.l.b16 %v7980
      %v8352 = vunpack.c.l.b16 %v7981
      %v8353 = vunpack.c.l.b16 %v7982
      %v8354 = vunpack.c.l.b16 %v7983
      %v8355 = vunpack.c.l.b16 %v7984
      %v8356 = vunpack.c.l.b16 %v7985
      %v8357 = vunpack.c.l.b16 %v7986
      %v8358 = vunpack.c.l.b16 %v7987
      %v8359 = vunpack.c.l.b16 %v7988
      %v8360 = vunpack.c.l.b16 %v7989
      %v8361 = vpack.c.b16 %v8314, %v8313
      %v8362 = vpack.c.b16 %v8316, %v8315
      %v8363 = vpack.c.b16 %v8318, %v8317
      %v8364 = vpack.c.b16 %v8320, %v8319
      %v8365 = vpack.c.b16 %v8322, %v8321
      %v8366 = vpack.c.b16 %v8324, %v8323
      %v8367 = vpack.c.b16 %v8326, %v8325
      %v8368 = vpack.c.b16 %v8328, %v8327
      %v8369 = vpack.c.b16 %v8330, %v8329
      %v8370 = vpack.c.b16 %v8332, %v8331
      %v8371 = vpack.c.b16 %v8334, %v8333
      %v8372 = vpack.c.b16 %v8336, %v8335
      %v8373 = vpack.c.b16 %v8338, %v8337
      %v8374 = vpack.c.b16 %v8340, %v8339
      %v8375 = vpack.c.b16 %v8342, %v8341
      %v8376 = vpack.c.b16 %v8344, %v8343
      %v8377 = vpack.c.b16 %v8346, %v8345
      %v8378 = vpack.c.b16 %v8348, %v8347
      %v8379 = vpack.c.b16 %v8350, %v8349
      %v8380 = vpack.c.b16 %v8352, %v8351
      %v8381 = vpack.c.b16 %v8354, %v8353
      %v8382 = vpack.c.b16 %v8356, %v8355
      %v8383 = vpack.c.b16 %v8358, %v8357
      %v8384 = vpack.c.b16 %v8360, %v8359
      %8409 = vmatprep.subr.bf16.mxu0 0
      %8410 = vmatpush1.bf16.msra.mxu0 %v8361
      %8411 = vmatprep.subr.bf16.mxu0 0
      %8412 = vmatpush1.bf16.msra.mxu0 %v8362
      %8413 = vmatprep.subr.bf16.mxu0 0
      %8414 = vmatpush1.bf16.msra.mxu0 %v8363
      %8415 = vmatprep.subr.bf16.mxu0 0
      %8416 = vmatpush1.bf16.msra.mxu0 %v8364
      %8417 = vmatprep.subr.bf16.mxu0 0
      %8418 = vmatpush1.bf16.msra.mxu0 %v8365
      %8419 = vmatprep.subr.bf16.mxu0 0
      %8420 = vmatpush1.bf16.msra.mxu0 %v8366
      %8421 = vmatprep.subr.bf16.mxu0 0
      %8422 = vmatpush1.bf16.msra.mxu0 %v8367
      %8423 = vmatprep.subr.bf16.mxu0 0
      %8424 = vmatpush1.bf16.msra.mxu0 %v8368
      %8425 = vmatprep.subr.bf16.mxu0 0
      %8426 = vmatpush1.bf16.msra.mxu0 %v8369
      %8427 = vmatprep.subr.bf16.mxu0 0
      %8428 = vmatpush1.bf16.msra.mxu0 %v8370
      %8429 = vmatprep.subr.bf16.mxu0 0
      %8430 = vmatpush1.bf16.msra.mxu0 %v8371
      %8431 = vmatprep.subr.bf16.mxu0 0
      %8432 = vmatpush1.bf16.msra.mxu0 %v8372
      %8433 = vmatprep.subr.bf16.mxu0 0
      %8434 = vmatpush1.bf16.msra.mxu0 %v8373
      %8435 = vmatprep.subr.bf16.mxu0 0
      %8436 = vmatpush1.bf16.msra.mxu0 %v8374
      %8437 = vmatprep.subr.bf16.mxu0 0
      %8438 = vmatpush1.bf16.msra.mxu0 %v8375
      %8439 = vmatprep.subr.bf16.mxu0 0
      %8440 = vmatpush1.bf16.msra.mxu0 %v8376
      %8441 = vmatprep.mubr.bf16.mxu0 %v7940
      %8442 = vmatmul.mubr.bf16.gmra.mrb[0].mxu0 %v7939
      %v8443 = vpop.f32.mrb[0].mxu0
      %v8444 = vadd.f32 %v8260, %v8443
      %v8445 = vpop.f32.mrb[0].mxu0
      %v8446 = vpop.f32.mrb[0].mxu0
      %v8447 = vpop.f32.mrb[0].mxu0
      %8448 = vdwg.mxu0
      %8449 = vmatprep.subr.bf16.mxu0 0
      %8450 = vmatpush1.bf16.msra.mxu0 %v8377
      %8451 = vmatprep.subr.bf16.mxu0 0
      %8452 = vmatpush1.bf16.msra.mxu0 %v8378
      %8453 = vmatprep.subr.bf16.mxu0 0
      %8454 = vmatpush1.bf16.msra.mxu0 %v8379
      %8455 = vmatprep.subr.bf16.mxu0 0
      %8456 = vmatpush1.bf16.msra.mxu0 %v8380
      %8457 = vmatprep.subr.bf16.mxu0 0
      %8458 = vmatpush1.bf16.msra.mxu0 %v8381
      %8459 = vmatprep.subr.bf16.mxu0 0
      %8460 = vmatpush1.bf16.msra.mxu0 %v8382
      %8461 = vmatprep.subr.bf16.mxu0 0
      %8462 = vmatpush1.bf16.msra.mxu0 %v8383
      %8463 = vmatprep.subr.bf16.mxu0 0
      %8464 = vmatpush1.bf16.msra.mxu0 %v8384
      %8465 = vmatprep.subr.bf16.mxu0 0
      %8466 = vmatpush1.bf16.msra.mxu0 0
      %8467 = vmatprep.subr.bf16.mxu0 0
      %8468 = vmatpush1.bf16.msra.mxu0 0
      %8469 = vmatprep.subr.bf16.mxu0 0
      %8470 = vmatpush1.bf16.msra.mxu0 0
      %8471 = vmatprep.subr.bf16.mxu0 0
      %8472 = vmatpush1.bf16.msra.mxu0 0
      %8473 = vmatprep.subr.bf16.mxu0 0
      %8474 = vmatpush1.bf16.msra.mxu0 0
      %8475 = vmatprep.subr.bf16.mxu0 0
      %8476 = vmatpush1.bf16.msra.mxu0 0
      %8477 = vmatprep.subr.bf16.mxu0 0
      %8478 = vmatpush1.bf16.msra.mxu0 0
      %8479 = vmatprep.subr.bf16.mxu0 0
      %8480 = vmatpush1.bf16.msra.mxu0 0
      %8481 = vmatprep.mubr.bf16.mxu0 0
      %8482 = vmatmul.mubr.bf16.gmra.mrb[0].mxu0 %v7941
      %v8483 = vpop.f32.mrb[0].mxu0
      %v8484 = vadd.f32 %v8444, %v8483
      %v8485 = vpop.f32.mrb[0].mxu0
      %v8486 = vpop.f32.mrb[0].mxu0
      %v8487 = vpop.f32.mrb[0].mxu0
      %8488 = vdwg.mxu0
      %v8489 = vld [vmem:[#allocation18] sm:$0x1]
      %v8491 = vlaneseq
      %v8492 = vshrl.u32 %v8491, 7
      %v8493 = vsub.s32 0, %v8492
      %v8494 = vrot.slane %v8489, %v8493
      %v8496 = vadd.f32 %v8484, %v8494
      %v8497 = vld [vmem:[#allocation19] sm:$0xff]
      %v8498 = vld [vmem:[#allocation19 + $0x8] sm:$0xff]
      %v8499 = vld [vmem:[#allocation19 + $0x10] sm:$0xff]
      %v8500 = vld [vmem:[#allocation19 + $0x18] sm:$0xff]
      %v8501 = vld [vmem:[#allocation19 + $0x20] sm:$0xff]
      %v8502 = vld [vmem:[#allocation19 + $0x28] sm:$0xff]
      %v8503 = vld [vmem:[#allocation19 + $0x30] sm:$0xff]
      %v8504 = vld [vmem:[#allocation19 + $0x38] sm:$0xff]
      %v8505 = vld [vmem:[#allocation19 + $0x40] sm:$0xff]
      %v8506 = vld [vmem:[#allocation19 + $0x48] sm:$0xff]
      %v8507 = vld [vmem:[#allocation21] sm:$0x1]
      %v8509 = vlaneseq
      %v8510 = vshrl.u32 %v8509, 7
      %v8511 = vsub.s32 0, %v8510
      %v8512 = vrot.slane %v8507, %v8511
      %vm8514 = vcmask 654336
      %v8516 = vsel %vm8514, %v8496, 0
      %8518 = vmatprep.subr.mxu0 0.0
      %8519 = vmatpush1.msra.mxu0 %v8497
      %8520 = vmatprep.subr.mxu0 0.0
      %8521 = vmatpush1.msra.mxu0 %v8498
      %8522 = vmatprep.subr.mxu0 0.0
      %8523 = vmatpush1.msra.mxu0 %v8499
      %8524 = vmatprep.subr.mxu0 0.0
      %8525 = vmatpush1.msra.mxu0 %v8500
      %8526 = vmatprep.subr.mxu0 0.0
      %8527 = vmatpush1.msra.mxu0 %v8501
      %8528 = vmatprep.subr.mxu0 0.0
      %8529 = vmatpush1.msra.mxu0 %v8502
      %8530 = vmatprep.subr.mxu0 0.0
      %8531 = vmatpush1.msra.mxu0 %v8503
      %8532 = vmatprep.subr.mxu0 0.0
      %8533 = vmatpush1.msra.mxu0 %v8504
      %8534 = vmatprep.subr.mxu0 0.0
      %8535 = vmatpush1.msra.mxu0 %v8505
      %8536 = vmatprep.subr.mxu0 0.0
      %8537 = vmatpush1.msra.mxu0 %v8506
      %8538 = vmatprep.subr.mxu0 0.0
      %8539 = vmatpush1.msra.mxu0 0.0
      %8540 = vmatprep.subr.mxu0 0.0
      %8541 = vmatpush1.msra.mxu0 0.0
      %8542 = vmatprep.subr.mxu0 0.0
      %8543 = vmatpush1.msra.mxu0 0.0
      %8544 = vmatprep.subr.mxu0 0.0
      %8545 = vmatpush1.msra.mxu0 0.0
      %8546 = vmatprep.subr.mxu0 0.0
      %8547 = vmatpush1.msra.mxu0 0.0
      %8548 = vmatprep.subr.mxu0 0.0
      %8549 = vmatpush1.msra.mxu0 0.0
      %8550 = vmatprep.subr.mxu0 0.0
      %8551 = vmatpush1.msra.mxu0 0.0
      %8552 = vmatprep.subr.mxu0 0.0
      %8553 = vmatpush1.msra.mxu0 0.0
      %8554 = vmatprep.subr.mxu0 0.0
      %8555 = vmatpush1.msra.mxu0 0.0
      %8556 = vmatprep.subr.mxu0 0.0
      %8557 = vmatpush1.msra.mxu0 0.0
      %8558 = vmatprep.subr.mxu0 0.0
      %8559 = vmatpush1.msra.mxu0 0.0
      %8560 = vmatprep.subr.mxu0 0.0
      %8561 = vmatpush1.msra.mxu0 0.0
      %8562 = vmatprep.subr.mxu0 0.0
      %8563 = vmatpush1.msra.mxu0 0.0
      %8564 = vmatprep.subr.mxu0 0.0
      %8565 = vmatpush1.msra.mxu0 0.0
      %8566 = vmatprep.subr.mxu0 0.0
      %8567 = vmatpush1.msra.mxu0 0.0
      %8568 = vmatprep.subr.mxu0 0.0
      %8569 = vmatpush1.msra.mxu0 0.0
      %8570 = vmatprep.subr.mxu0 0.0
      %8571 = vmatpush1.msra.mxu0 0.0
      %8572 = vmatprep.subr.mxu0 0.0
      %8573 = vmatpush1.msra.mxu0 0.0
      %8574 = vmatprep.subr.mxu0 0.0
      %8575 = vmatpush1.msra.mxu0 0.0
      %8576 = vmatprep.subr.mxu0 0.0
      %8577 = vmatpush1.msra.mxu0 0.0
      %8578 = vmatprep.subr.mxu0 0.0
      %8579 = vmatpush1.msra.mxu0 0.0
      %8580 = vmatprep.subr.mxu0 0.0
      %8581 = vmatpush1.msra.mxu0 0.0
      %8582 = vmatprep.mubr.f32.mxu0 0.0
      %8583 = vmatmul.mubr.f32.gmra.mrb[0].mxu0 %v8516
      %v8584 = vpop.f32.mrb[0].mxu0
      %v8585 = vadd.f32 %v8512, %v8584
      %v8586 = vpop.f32.mrb[0].mxu0
      %8587 = vdwg.mxu0
      %v8588 = vld [vmem:[#allocation22] sm:$0xff]
      %v8589 = vld [vmem:[#allocation22 + $0x8] sm:$0xff]
      %v8590 = vld [vmem:[#allocation22 + $0x10] sm:$0xf]
      %v8591 = vld [vmem:[#allocation24] sm:$0x1]
      %v8593 = vlaneseq
      %v8594 = vshrl.u32 %v8593, 7
      %v8595 = vsub.s32 0, %v8594
      %v8596 = vrot.slane %v8591, %v8595
      %vm8598 = vcmask 162816
      %v8600 = vsel %vm8598, %v8585, 0
      %vm8602 = vcmask 1043456
      %v8604 = vsel %vm8602, %v8590, 0
      %8606 = vmatprep.subr.mxu0 0.0
      %8607 = vmatpush1.msra.mxu0 %v8588
      %8608 = vmatprep.subr.mxu0 0.0
      %8609 = vmatpush1.msra.mxu0 %v8589
      %8610 = vmatprep.subr.mxu0 0.0
      %8611 = vmatpush1.msra.mxu0 %v8604
      %8612 = vmatprep.subr.mxu0 0.0
      %8613 = vmatpush1.msra.mxu0 0.0
      %8614 = vmatprep.subr.mxu0 0.0
      %8615 = vmatpush1.msra.mxu0 0.0
      %8616 = vmatprep.subr.mxu0 0.0
      %8617 = vmatpush1.msra.mxu0 0.0
      %8618 = vmatprep.subr.mxu0 0.0
      %8619 = vmatpush1.msra.mxu0 0.0
      %8620 = vmatprep.subr.mxu0 0.0
      %8621 = vmatpush1.msra.mxu0 0.0
      %8622 = vmatprep.subr.mxu0 0.0
      %8623 = vmatpush1.msra.mxu0 0.0
      %8624 = vmatprep.subr.mxu0 0.0
      %8625 = vmatpush1.msra.mxu0 0.0
      %8626 = vmatprep.subr.mxu0 0.0
      %8627 = vmatpush1.msra.mxu0 0.0
      %8628 = vmatprep.subr.mxu0 0.0
      %8629 = vmatpush1.msra.mxu0 0.0
      %8630 = vmatprep.subr.mxu0 0.0
      %8631 = vmatpush1.msra.mxu0 0.0
      %8632 = vmatprep.subr.mxu0 0.0
      %8633 = vmatpush1.msra.mxu0 0.0
      %8634 = vmatprep.subr.mxu0 0.0
      %8635 = vmatpush1.msra.mxu0 0.0
      %8636 = vmatprep.subr.mxu0 0.0
      %8637 = vmatpush1.msra.mxu0 0.0
      %8638 = vmatprep.subr.mxu0 0.0
      %8639 = vmatpush1.msra.mxu0 0.0
      %8640 = vmatprep.subr.mxu0 0.0
      %8641 = vmatpush1.msra.mxu0 0.0
      %8642 = vmatprep.subr.mxu0 0.0
      %8643 = vmatpush1.msra.mxu0 0.0
      %8644 = vmatprep.subr.mxu0 0.0
      %8645 = vmatpush1.msra.mxu0 0.0
      %8646 = vmatprep.subr.mxu0 0.0
      %8647 = vmatpush1.msra.mxu0 0.0
      %8648 = vmatprep.subr.mxu0 0.0
      %8649 = vmatpush1.msra.mxu0 0.0
      %8650 = vmatprep.subr.mxu0 0.0
      %8651 = vmatpush1.msra.mxu0 0.0
      %8652 = vmatprep.subr.mxu0 0.0
      %8653 = vmatpush1.msra.mxu0 0.0
      %8654 = vmatprep.subr.mxu0 0.0
      %8655 = vmatpush1.msra.mxu0 0.0
      %8656 = vmatprep.subr.mxu0 0.0
      %8657 = vmatpush1.msra.mxu0 0.0
      %8658 = vmatprep.subr.mxu0 0.0
      %8659 = vmatpush1.msra.mxu0 0.0
      %8660 = vmatprep.subr.mxu0 0.0
      %8661 = vmatpush1.msra.mxu0 0.0
      %8662 = vmatprep.subr.mxu0 0.0
      %8663 = vmatpush1.msra.mxu0 0.0
      %8664 = vmatprep.subr.mxu0 0.0
      %8665 = vmatpush1.msra.mxu0 0.0
      %8666 = vmatprep.subr.mxu0 0.0
      %8667 = vmatpush1.msra.mxu0 0.0
      %8668 = vmatprep.subr.mxu0 0.0
      %8669 = vmatpush1.msra.mxu0 0.0
      %8670 = vmatprep.mubr.f32.mxu0 0.0
      %8671 = vmatmul.mubr.f32.gmra.mrb[0].mxu0 %v8600
      %v8672 = vpop.f32.mrb[0].mxu0
      %v8673 = vadd.f32 %v8596, %v8672
      %v8674 = vpop.f32.mrb[0].mxu0
      %8675 = vdwg.mxu0
      %vm8676 = vcmask 15360
      %v8677 = vsel %vm8676, %v8673, -inf
      %8678 = vmax.xlane.f32.xlu0 %v8677
      %v8679 = vpop.xlane.xlu0 %8678
      %v8680 = vsub.f32 %v8673, %v8679
      %v8681 = vmul.f32 %v8680, 1.442695
      %v8682 = vpow.pop %v8681
      %v8683 = vsel %vm8676, %v8682, 0.0
      %8684 = vadd.xlane.f32.xlu0 %v8683
      %v8685 = vpop.xlane.xlu0 %8684
      %v8686 = vrcp.pop %v8685
      %v8687 = vmul.f32 %v8682, %v8686
      %8688 = vst.msk [vmem:[#allocation25] sm:$0xff] %vm8676, %v8687
    $region113: #{tpu_custom_call.1} parent=1 // pred_fallthru
      _
    // Predicated region
    $region114: #{tpu_custom_call.1} parent=1 // pred_check
      _
    $region115: #{tpu_custom_call.1} parent=1 // pred_check_branch
      %8690 = sbr.rel (0) target = $region117
    $region116: #{tpu_custom_call.1} parent=1 // pred_region
      %s8692 = ssub.s32 128, 128
      %8693 = vsyncadd [#allocation6], %s8692
      %s8695 = sshll.u32 [#allocation25], 4
      %s8696 = int_to_ptr.vmem [resolvable:$true] %s8695
      %8698 = dma.vmem_to_hbm [thread:$0]  %s8696, 128, %s13, [#allocation6]
    $region117: #{tpu_custom_call.1} parent=1 // pred_fallthru
      _
    // Predicated region
    $region118: #{tpu_custom_call.1} parent=1 // pred_check
      _
    $region119: #{tpu_custom_call.1} parent=1 // pred_check_branch
      %8700 = sbr.rel (0) target = $region121
    $region120: #{tpu_custom_call.1} parent=1 // pred_region
      %8701 = dma.done [#allocation6], 128
    $region121: #{tpu_custom_call.1} parent=1 // pred_fallthru
      _
    %8702 = vsyncpa [#allocation5], 1
    %8703 = vsyncpa [#allocation8], 1
    %8704 = vsyncpa [#allocation11], 1
    %8705 = vsyncpa [#allocation14], 1
    %8706 = vsyncpa [#allocation17], 1
    %8707 = vsyncpa [#allocation20], 1
    %8708 = vsyncpa [#allocation23], 1
    %8709 = vsyncpa [#allocation6], 1

</llo_original>
